<compile_context>
chip_gen: v5e
topology: v5e:2x2
jax: 0.10.0
libtpu: 0.0.40
codegen_flags: <defaults>
</compile_context>

<pallas_src>
import functools

import jax
import jax.numpy as jnp
from jax import lax
from jax.experimental import pallas as pl
from jax.experimental.pallas import tpu as pltpu


def _round_up(x, m):
    return ((x + m - 1) // m) * m


def _largest_divisor(n, pred, default):
    best = default
    for d in range(1, n + 1):
        if n % d == 0 and pred(d):
            best = d
    return best


# ----------------------------------------------------------------------------
# Kernel 1: ConvTranspose2d(k=2, s=2) as a per-row-tile matmul that writes the
# sub-pixel output layout directly.  One x read per tile, both parities in the
# same body (x block stays resident, weight (2, Cin, 2*Cs) is VMEM-resident).
# ----------------------------------------------------------------------------
def _upsample_kernel(x_ref, w_ref, b_ref, o_ref):
    # x_ref: (TR*W, Cin) bf16   w_ref: (2, Cin, 2*Cs) bf16 (cols = (dw, c))
    # b_ref: (1, 2*Cs)   f32    o_ref: (TR, 2, W, 2*Cs)    bf16
    TR, _, W, C2s = o_ref.shape
    x = x_ref[...]
    b = b_ref[...]
    for dh in range(2):                      # both parities share the x load
        y = jnp.dot(x, w_ref[dh], preferred_element_type=jnp.float32) + b
        o_ref[:, dh, :, :] = y.reshape(TR, W, C2s).astype(o_ref.dtype)


def conv_transpose2x2_pallas(x_nhwc, w_iohw, b):
    """ConvTranspose2d(k=2, s=2). w_iohw: (Cin, Cs, 2, 2) (PyTorch layout)."""
    N, H, W, Cin = x_nhwc.shape
    Cs = int(w_iohw.shape[1])
    R = N * H                                   # fold batch into the row axis
    # Largest row tile with TR*W <= 2048 rows (keeps M >= 128 at small shapes
    # without blowing VMEM at large ones); must keep the sublane dim 8-aligned.
    TR = _largest_divisor(R, lambda d: d * W <= 2048 and (d * W) % 8 == 0,
                          default=R)

    x2 = x_nhwc.reshape(R * W, Cin)             # free contiguous view
    # wmat[dh][ci, dw*Cs + c] = w[ci, c, dh, dw]
    wmat = jnp.transpose(w_iohw, (2, 0, 3, 1)).reshape(2, Cin, 2 * Cs)
    wmat = wmat.astype(jnp.bfloat16)
    bvec = jnp.tile(b, 2).reshape(1, 2 * Cs).astype(jnp.float32)

    out = pl.pallas_call(
        _upsample_kernel,
        out_shape=jax.ShapeDtypeStruct((R, 2, W, 2 * Cs), jnp.bfloat16),
        grid=(R // TR,),
        in_specs=[
            pl.BlockSpec((TR * W, Cin), lambda t: (t, 0)),
            pl.BlockSpec((2, Cin, 2 * Cs), lambda t: (0, 0, 0)),
            pl.BlockSpec((1, 2 * Cs), lambda t: (0, 0)),
        ],
        out_specs=pl.BlockSpec((TR, 2, W, 2 * Cs), lambda t: (t, 0, 0, 0)),
        compiler_params=pltpu.CompilerParams(
            dimension_semantics=("parallel",)),
    )(x2, wmat, bvec)
    # (N, H, 2, W, 2, Cs) -> (N, 2H, 2W, Cs): contiguous -> free reshape.
    return out.reshape(N, 2 * H, 2 * W, Cs)


# ----------------------------------------------------------------------------
# Kernel 2: fused [optional channel-concat] + Conv3x3(pad=1) + BN(eval) + ReLU.
# Flat padded tile in VMEM; 9 taps = 9 contiguous-window matmuls on the MXU.
# ----------------------------------------------------------------------------
def _block_kernel(*args, wp):
    *in_refs, w_ref, sb_ref, o_ref, pad_ref = args
    Ht, Wh, Cout = o_ref.shape               # output row tile
    C2 = pad_ref.shape[-1]
    Wp = wp                                  # padded (flat) row width, %8 == 0
    Hp = Ht + 2
    Hh = in_refs[0].shape[0]                 # full image rows (input block)
    M = Ht * Wp                              # matmul rows (incl. pad columns)

    t = pl.program_id(1)
    r0 = t * Ht

    # --- (a) zero only the W-halo / unused column strips (not the whole buf) -
    pad_ref[pl.ds(0, 1), :] = jnp.zeros((1, C2), pad_ref.dtype)
    for ph in range(Hp - 1):
        # right halo + unused cols of padded row ph, plus left halo of ph+1.
        pad_ref[pl.ds(ph * Wp + Wh + 1, Wp - Wh), :] = jnp.zeros(
            (Wp - Wh, C2), pad_ref.dtype)
    tail = 2 * Wp - Wh - 1                   # last row's halo + spill-over tail
    pad_ref[pl.ds((Hp - 1) * Wp + Wh + 1, tail), :] = jnp.zeros(
        (tail, C2), pad_ref.dtype)

    # --- (b) copy Ht interior rows + 2 halo rows (clamped at the image edge),
    #         channel-concatenating the inputs into the scratch --------------
    ch0 = 0
    for ref in in_refs:
        Ca = ref.shape[-1]
        for ph in range(Hp):
            sr = jnp.clip(r0 - 1 + ph, 0, Hh - 1)
            pad_ref[pl.ds(ph * Wp + 1, Wh), ch0:ch0 + Ca] = (
                ref[sr].astype(pad_ref.dtype))
        ch0 += Ca

    # --- (c) image-boundary rows are zero padding, not clamped copies --------
    @pl.when(t == 0)
    def _():
        pad_ref[pl.ds(1, Wh), :] = jnp.zeros((Wh, C2), pad_ref.dtype)

    @pl.when(t == pl.num_programs(1) - 1)
    def _():
        pad_ref[pl.ds((Hp - 1) * Wp + 1, Wh), :] = jnp.zeros(
            (Wh, C2), pad_ref.dtype)

    # --- 9 taps = 9 deep matmuls on contiguous flat windows ------------------
    acc = jnp.zeros((M, Cout), jnp.float32)
    for k in range(9):
        dh, dw = divmod(k, 3)
        patch = pad_ref[pl.ds(dh * Wp + dw, M), :]
        acc = acc + jnp.dot(patch, w_ref[k], preferred_element_type=jnp.float32)

    y = acc * sb_ref[0:1, :] + sb_ref[1:2, :]     # fused conv-bias + BN affine
    y = jnp.maximum(y, 0.0).reshape(Ht, Wp, Cout)[:, :Wh, :]   # drop pad cols
    o_ref[...] = y.astype(o_ref.dtype)


def block_pallas(inputs, w_hwio, conv_b, gamma, beta, mean, var, *,
                 out_dtype, eps=1e-5):
    """Conv3x3(pad=1)+BN(eval)+ReLU over the channel-concat of `inputs` (NHWC)."""
    N, Hh, Wh = inputs[0].shape[:3]
    C2 = sum(int(a.shape[3]) for a in inputs)
    Cout = int(w_hwio.shape[3])

    Wp = _round_up(Wh + 2, 8)                 # padded flat row width (aligned)
    # Output row tile: keep M = Ht*Wp around 128-256 (small accumulator, full
    # MXU rows) and > 2 grid steps at typical shapes.
    Ht = _largest_divisor(Hh, lambda d: d * Wp <= 256, default=1)
    T = Hh // Ht

    scale = gamma / jnp.sqrt(var + eps)
    bias = (conv_b - mean) * scale + beta
    sb = jnp.stack([scale, bias], axis=0).astype(jnp.float32)    # (2, Cout)
    wmat = w_hwio.reshape(9, C2, Cout).astype(jnp.bfloat16)      # tap-major

    in_specs = [pl.BlockSpec((None, Hh, Wh, int(a.shape[3])),
                             lambda n, t: (n, 0, 0, 0)) for a in inputs]
    in_specs += [pl.BlockSpec((9, C2, Cout), lambda n, t: (0, 0, 0)),
                 pl.BlockSpec((2, Cout), lambda n, t: (0, 0))]

    return pl.pallas_call(
        functools.partial(_block_kernel, wp=Wp),
        out_shape=jax.ShapeDtypeStruct((N, Hh, Wh, Cout), out_dtype),
        grid=(N, T),
        in_specs=in_specs,
        out_specs=pl.BlockSpec((None, Ht, Wh, Cout), lambda n, t: (n, t, 0, 0)),
        # (Ht+3)*Wp flat rows: Ht+2 padded rows + one spare row so the widest
        # tap window never reads past the allocation (and its tail is zeroed).
        scratch_shapes=[pltpu.VMEM(((Ht + 3) * Wp, C2), jnp.bfloat16)],
        compiler_params=pltpu.CompilerParams(
            dimension_semantics=("parallel", "parallel")),
    )(*inputs, wmat, sb)


# ----------------------------------------------------------------------------
# Upsampler forward (public wrapper keeps the PyTorch NCHW interface)
# ----------------------------------------------------------------------------
def upsampler_forward(left_nchw, x_nchw, params):
    # bf16 cast folded into the (already materializing) layout transpose so
    # both Pallas kernels read half the HBM bytes.
    left = jnp.transpose(left_nchw, (0, 2, 3, 1)).astype(jnp.bfloat16)  # NHWC
    x = jnp.transpose(x_nchw, (0, 2, 3, 1)).astype(jnp.bfloat16)

    # 1) upsample (bf16 intermediate -> half the HBM traffic for `up`)
    up = conv_transpose2x2_pallas(x, params["up_w"], params["up_b"])

    # 2+3) concat fused into conv2 = Block(2*size, size)
    p = params["b2"]
    h = block_pallas([left, up], p["w"], p["b"], p["gamma"], p["beta"],
                     p["mean"], p["var"], out_dtype=jnp.bfloat16)

    # 4) conv1 = Block(size, size)
    p = params["b1"]
    h = block_pallas([h], p["w"], p["b"], p["gamma"], p["beta"],
                     p["mean"], p["var"], out_dtype=jnp.float32)

    return jnp.transpose(h, (0, 3, 1, 2))                               # NCHW


# ----------------------------------------------------------------------------
# Pure-JAX f32 reference (for correctness check)
# ----------------------------------------------------------------------------
def ref_block(x, w_hwio, b, gamma, beta, mean, var, eps=1e-5):
    y = lax.conv_general_dilated(
        x, w_hwio, window_strides=(1, 1), padding="SAME",
        dimension_numbers=("NHWC", "HWIO", "NHWC"),
        precision=lax.Precision.HIGHEST) + b
    y = (y - mean) / jnp.sqrt(var + eps) * gamma + beta
    return jnp.maximum(y, 0.0)


def ref_upsampler(left_nchw, x_nchw, params):
    left = jnp.transpose(left_nchw, (0, 2, 3, 1)).astype(jnp.float32)
    x = jnp.transpose(x_nchw, (0, 2, 3, 1)).astype(jnp.float32)
    w = params["up_w"]                                     # (Cin, Cs, 2, 2)
    up = jnp.einsum("nhwc,codk->nhdwko", x, w, precision=lax.Precision.HIGHEST)
    N, H, _, W, _, Cs = up.shape
    up = up.reshape(N, 2 * H, 2 * W, Cs) + params["up_b"]
    cat = jnp.concatenate([left, up], axis=-1)
    p = params["b2"]
    h = ref_block(cat, p["w"], p["b"], p["gamma"], p["beta"], p["mean"], p["var"])
    p = params["b1"]
    h = ref_block(h, p["w"], p["b"], p["gamma"], p["beta"], p["mean"], p["var"])
    return jnp.transpose(h, (0, 3, 1, 2))


# ----------------------------------------------------------------------------
# Parameter construction (deterministic, synthetic, variance-preserving init)
# ----------------------------------------------------------------------------
def make_params(key, inlen, size):
    ks = jax.random.split(key, 14)

    def block_params(i, cin, cout):
        std = (9.0 * cin) ** -0.5
        w_oihw = std * jax.random.normal(ks[i], (cout, cin, 3, 3), jnp.float32)
        return dict(
            w=jnp.transpose(w_oihw, (2, 3, 1, 0)),                     # HWIO
            b=0.1 * jax.random.normal(ks[i + 1], (cout,), jnp.float32),
            gamma=1.0 + 0.1 * jax.random.normal(ks[i + 2], (cout,), jnp.float32),
            beta=0.1 * jax.random.normal(ks[i + 3], (cout,), jnp.float32),
            mean=0.1 * jax.random.normal(ks[i + 4], (cout,), jnp.float32),
            var=1.0 + 0.1 * jax.random.uniform(ks[i + 5], (cout,), jnp.float32),
        )

    up_std = float(inlen) ** -0.5
    return dict(
        # PyTorch ConvTranspose2d weight layout: (in_channels, out_channels, kH, kW)
        up_w=up_std * jax.random.normal(ks[12], (inlen, size, 2, 2), jnp.float32),
        up_b=0.1 * jax.random.normal(ks[13], (size,), jnp.float32),
        b2=block_params(0, 2 * size, size),
        b1=block_params(6, size, size),
    )


if __name__ == "__main__":
    key = jax.random.PRNGKey(0)
    k1, k2, k3 = jax.random.split(key, 3)

    # Realistic Swin2-Large decoder channel counts (keeps the 128-lane axis dense).
    inlen, size = 256, 128
    N, Hx, Wx = 2, 8, 8                          # x spatial; left is 2x that
    x = jax.random.normal(k1, (N, inlen, Hx, Wx), jnp.float32)            # NCHW
    left = jax.random.normal(k2, (N, size, 2 * Hx, 2 * Wx), jnp.float32)  # NCHW

    params = make_params(k3, inlen, size)

    fwd = jax.jit(upsampler_forward)
    out = jax.block_until_ready(fwd(left, x, params))
    ref = jax.block_until_ready(jax.jit(ref_upsampler)(left, x, params))

    assert out.shape == (N, size, 2 * Hx, 2 * Wx), out.shape
    max_err = float(jnp.max(jnp.abs(out - ref)))
    # bf16 matmul inputs (f32 accumulation) -> slightly loosened tolerance.
    assert jnp.allclose(out, ref, rtol=5e-2, atol=5e-2), max_err
    print("KERNEL_OK")
</pallas_src>

<mosaic_0001>
module attributes {stable_mosaic.version = 11 : i64} {
  func.func @_upsample_kernel(%arg0: i32, %arg1: memref<128x256xbf16, #tpu.memory_space<vmem>>, %arg2: memref<2x256x256xbf16, #tpu.memory_space<vmem>>, %arg3: memref<1x256xf32, #tpu.memory_space<vmem>>, %arg4: memref<16x2x8x256xbf16, #tpu.memory_space<vmem>>) attributes {dimension_semantics = [#tpu.dimension_semantics<parallel>], iteration_bounds = array<i64: 1>, scalar_prefetch = 0 : i64, scratch_operands = 0 : i64, tpu.core_type = #tpu.core_type<tc>, window_params = [{transform_indices = @transform_0, window_bounds = array<i64: 128, 256>}, {pipeline_mode = #tpu.pipeline_mode<synchronous>, transform_indices = @transform_1, window_bounds = array<i64: 2, 256, 256>}, {pipeline_mode = #tpu.pipeline_mode<synchronous>, transform_indices = @transform_2, window_bounds = array<i64: 1, 256>}, {transform_indices = @transform_3, window_bounds = array<i64: 16, 2, 8, 256>}]} {
    %c0 = arith.constant 0 : index
    %c0_0 = arith.constant 0 : index
    %0 = vector.load %arg1[%c0, %c0_0] : memref<128x256xbf16, #tpu.memory_space<vmem>>, vector<128x256xbf16>
    %c0_1 = arith.constant 0 : index
    %c0_2 = arith.constant 0 : index
    %1 = vector.load %arg3[%c0_1, %c0_2] : memref<1x256xf32, #tpu.memory_space<vmem>>, vector<1x256xf32>
    %c0_3 = arith.constant 0 : index
    %c0_4 = arith.constant 0 : index
    %c0_5 = arith.constant 0 : index
    %2 = vector.load %arg2[%c0_3, %c0_4, %c0_5] : memref<2x256x256xbf16, #tpu.memory_space<vmem>>, vector<1x256x256xbf16>
    %3 = vector.shape_cast %2 : vector<1x256x256xbf16> to vector<256x256xbf16>
    %cst = arith.constant dense<0.000000e+00> : vector<128x256xf32>
    %4 = tpu.matmul %0, %3, %cst {dimension_numbers = #tpu.dot_dimension_numbers<[1], [0], [0], [1], [0, 0, 1, 1], [], []>} : vector<128x256xbf16>, vector<256x256xbf16>, vector<128x256xf32> -> vector<128x256xf32>
    %5 = vector.broadcast %1 : vector<1x256xf32> to vector<128x256xf32>
    %6 = arith.addf %4, %5 : vector<128x256xf32>
    %7 = vector.shape_cast %6 : vector<128x256xf32> to vector<16x8x256xf32>
    %8 = arith.truncf %7 : vector<16x8x256xf32> to vector<16x8x256xbf16>
    %c0_6 = arith.constant 0 : index
    %c0_7 = arith.constant 0 : index
    %c0_8 = arith.constant 0 : index
    %c0_9 = arith.constant 0 : index
    %9 = vector.load %arg4[%c0_6, %c0_7, %c0_8, %c0_9] : memref<16x2x8x256xbf16, #tpu.memory_space<vmem>>, vector<16x1x8x256xbf16>
    %10 = vector.shape_cast %9 : vector<16x1x8x256xbf16> to vector<16x8x256xbf16>
    %11 = vector.shape_cast %8 : vector<16x8x256xbf16> to vector<16x1x8x256xbf16>
    tpu.vector_store %arg4[%c0_6, %c0_7, %c0_8, %c0_9], %11 {strides = array<i32>} : memref<16x2x8x256xbf16, #tpu.memory_space<vmem>>, vector<16x1x8x256xbf16>,
    %c1 = arith.constant 1 : index
    %c0_10 = arith.constant 0 : index
    %c0_11 = arith.constant 0 : index
    %12 = vector.load %arg2[%c1, %c0_10, %c0_11] : memref<2x256x256xbf16, #tpu.memory_space<vmem>>, vector<1x256x256xbf16>
    %13 = vector.shape_cast %12 : vector<1x256x256xbf16> to vector<256x256xbf16>
    %cst_12 = arith.constant dense<0.000000e+00> : vector<128x256xf32>
    %14 = tpu.matmul %0, %13, %cst_12 {dimension_numbers = #tpu.dot_dimension_numbers<[1], [0], [0], [1], [0, 0, 1, 1], [], []>} : vector<128x256xbf16>, vector<256x256xbf16>, vector<128x256xf32> -> vector<128x256xf32>
    %15 = vector.broadcast %1 : vector<1x256xf32> to vector<128x256xf32>
    %16 = arith.addf %14, %15 : vector<128x256xf32>
    %17 = vector.shape_cast %16 : vector<128x256xf32> to vector<16x8x256xf32>
    %18 = arith.truncf %17 : vector<16x8x256xf32> to vector<16x8x256xbf16>
    %c0_13 = arith.constant 0 : index
    %c1_14 = arith.constant 1 : index
    %c0_15 = arith.constant 0 : index
    %c0_16 = arith.constant 0 : index
    %19 = vector.load %arg4[%c0_13, %c1_14, %c0_15, %c0_16] : memref<16x2x8x256xbf16, #tpu.memory_space<vmem>>, vector<16x1x8x256xbf16>
    %20 = vector.shape_cast %19 : vector<16x1x8x256xbf16> to vector<16x8x256xbf16>
    %21 = vector.shape_cast %18 : vector<16x8x256xbf16> to vector<16x1x8x256xbf16>
    tpu.vector_store %arg4[%c0_13, %c1_14, %c0_15, %c0_16], %21 {strides = array<i32>} : memref<16x2x8x256xbf16, #tpu.memory_space<vmem>>, vector<16x1x8x256xbf16>,
    return
  }
  func.func @transform_0(%arg0: i32) -> (i32, i32) {
    %c0_i32 = arith.constant 0 : i32
    %c0_i32_0 = arith.constant 0 : i32
    return %arg0, %c0_i32 : i32, i32
  }
  func.func @transform_1(%arg0: i32) -> (i32, i32, i32) {
    %c0_i32 = arith.constant 0 : i32
    %c0_i32_0 = arith.constant 0 : i32
    %c0_i32_1 = arith.constant 0 : i32
    %c0_i32_2 = arith.constant 0 : i32
    return %c0_i32, %c0_i32_0, %c0_i32_1 : i32, i32, i32
  }
  func.func @transform_2(%arg0: i32) -> (i32, i32) {
    %c0_i32 = arith.constant 0 : i32
    %c0_i32_0 = arith.constant 0 : i32
    %c0_i32_1 = arith.constant 0 : i32
    return %c0_i32, %c0_i32_0 : i32, i32
  }
  func.func @transform_3(%arg0: i32) -> (i32, i32, i32, i32) {
    %c0_i32 = arith.constant 0 : i32
    %c0_i32_0 = arith.constant 0 : i32
    %c0_i32_1 = arith.constant 0 : i32
    %c0_i32_2 = arith.constant 0 : i32
    return %arg0, %c0_i32, %c0_i32_0, %c0_i32_1 : i32, i32, i32, i32
  }
}

module attributes {stable_mosaic.version = 11 : i64} {
  func.func @_block_kernel(%arg0: i32, %arg1: i32, %arg2: memref<1x16x16x128xbf16, #tpu.memory_space<vmem>>, %arg3: memref<1x16x16x128xbf16, #tpu.memory_space<vmem>>, %arg4: memref<9x256x128xbf16, #tpu.memory_space<vmem>>, %arg5: memref<2x128xf32, #tpu.memory_space<vmem>>, %arg6: memref<1x8x16x128xbf16, #tpu.memory_space<vmem>>, %arg7: memref<264x256xbf16, #tpu.memory_space<vmem>>) attributes {dimension_semantics = [#tpu.dimension_semantics<parallel>, #tpu.dimension_semantics<parallel>], iteration_bounds = array<i64: 2, 2>, scalar_prefetch = 0 : i64, scratch_operands = 1 : i64, tpu.core_type = #tpu.core_type<tc>, window_params = [{transform_indices = @transform_0, window_bounds = array<i64: 1, 16, 16, 128>}, {transform_indices = @transform_1, window_bounds = array<i64: 1, 16, 16, 128>}, {pipeline_mode = #tpu.pipeline_mode<synchronous>, transform_indices = @transform_2, window_bounds = array<i64: 9, 256, 128>}, {pipeline_mode = #tpu.pipeline_mode<synchronous>, transform_indices = @transform_3, window_bounds = array<i64: 2, 128>}, {transform_indices = @transform_4, window_bounds = array<i64: 1, 8, 16, 128>}]} {
    %c8_i32 = arith.constant 8 : i32
    %0 = arith.muli %arg1, %c8_i32 : i32
    %cst = arith.constant 0.000000e+00 : bf16
    %1 = vector.broadcast %cst : bf16 to vector<1x256xbf16>
    %c0 = arith.constant 0 : index
    %c0_0 = arith.constant 0 : index
    %2 = vector.load %arg7[%c0, %c0_0] : memref<264x256xbf16, #tpu.memory_space<vmem>>, vector<1x256xbf16>
    tpu.vector_store %arg7[%c0, %c0_0], %1 {strides = array<i32>} : memref<264x256xbf16, #tpu.memory_space<vmem>>, vector<1x256xbf16>,
    %cst_1 = arith.constant 0.000000e+00 : bf16
    %3 = vector.broadcast %cst_1 : bf16 to vector<8x256xbf16>
    %c17 = arith.constant 17 : index
    %c0_2 = arith.constant 0 : index
    %4 = vector.load %arg7[%c17, %c0_2] : memref<264x256xbf16, #tpu.memory_space<vmem>>, vector<8x256xbf16>
    tpu.vector_store %arg7[%c17, %c0_2], %3 {strides = array<i32>} : memref<264x256xbf16, #tpu.memory_space<vmem>>, vector<8x256xbf16>,
    %cst_3 = arith.constant 0.000000e+00 : bf16
    %5 = vector.broadcast %cst_3 : bf16 to vector<8x256xbf16>
    %c41 = arith.constant 41 : index
    %c0_4 = arith.constant 0 : index
    %6 = vector.load %arg7[%c41, %c0_4] : memref<264x256xbf16, #tpu.memory_space<vmem>>, vector<8x256xbf16>
    tpu.vector_store %arg7[%c41, %c0_4], %5 {strides = array<i32>} : memref<264x256xbf16, #tpu.memory_space<vmem>>, vector<8x256xbf16>,
    %cst_5 = arith.constant 0.000000e+00 : bf16
    %7 = vector.broadcast %cst_5 : bf16 to vector<8x256xbf16>
    %c65 = arith.constant 65 : index
    %c0_6 = arith.constant 0 : index
    %8 = vector.load %arg7[%c65, %c0_6] : memref<264x256xbf16, #tpu.memory_space<vmem>>, vector<8x256xbf16>
    tpu.vector_store %arg7[%c65, %c0_6], %7 {strides = array<i32>} : memref<264x256xbf16, #tpu.memory_space<vmem>>, vector<8x256xbf16>,
    %cst_7 = arith.constant 0.000000e+00 : bf16
    %9 = vector.broadcast %cst_7 : bf16 to vector<8x256xbf16>
    %c89 = arith.constant 89 : index
    %c0_8 = arith.constant 0 : index
    %10 = vector.load %arg7[%c89, %c0_8] : memref<264x256xbf16, #tpu.memory_space<vmem>>, vector<8x256xbf16>
    tpu.vector_store %arg7[%c89, %c0_8], %9 {strides = array<i32>} : memref<264x256xbf16, #tpu.memory_space<vmem>>, vector<8x256xbf16>,
    %cst_9 = arith.constant 0.000000e+00 : bf16
    %11 = vector.broadcast %cst_9 : bf16 to vector<8x256xbf16>
    %c113 = arith.constant 113 : index
    %c0_10 = arith.constant 0 : index
    %12 = vector.load %arg7[%c113, %c0_10] : memref<264x256xbf16, #tpu.memory_space<vmem>>, vector<8x256xbf16>
    tpu.vector_store %arg7[%c113, %c0_10], %11 {strides = array<i32>} : memref<264x256xbf16, #tpu.memory_space<vmem>>, vector<8x256xbf16>,
    %cst_11 = arith.constant 0.000000e+00 : bf16
    %13 = vector.broadcast %cst_11 : bf16 to vector<8x256xbf16>
    %c137 = arith.constant 137 : index
    %c0_12 = arith.constant 0 : index
    %14 = vector.load %arg7[%c137, %c0_12] : memref<264x256xbf16, #tpu.memory_space<vmem>>, vector<8x256xbf16>
    tpu.vector_store %arg7[%c137, %c0_12], %13 {strides = array<i32>} : memref<264x256xbf16, #tpu.memory_space<vmem>>, vector<8x256xbf16>,
    %cst_13 = arith.constant 0.000000e+00 : bf16
    %15 = vector.broadcast %cst_13 : bf16 to vector<8x256xbf16>
    %c161 = arith.constant 161 : index
    %c0_14 = arith.constant 0 : index
    %16 = vector.load %arg7[%c161, %c0_14] : memref<264x256xbf16, #tpu.memory_space<vmem>>, vector<8x256xbf16>
    tpu.vector_store %arg7[%c161, %c0_14], %15 {strides = array<i32>} : memref<264x256xbf16, #tpu.memory_space<vmem>>, vector<8x256xbf16>,
    %cst_15 = arith.constant 0.000000e+00 : bf16
    %17 = vector.broadcast %cst_15 : bf16 to vector<8x256xbf16>
    %c185 = arith.constant 185 : index
    %c0_16 = arith.constant 0 : index
    %18 = vector.load %arg7[%c185, %c0_16] : memref<264x256xbf16, #tpu.memory_space<vmem>>, vector<8x256xbf16>
    tpu.vector_store %arg7[%c185, %c0_16], %17 {strides = array<i32>} : memref<264x256xbf16, #tpu.memory_space<vmem>>, vector<8x256xbf16>,
    %cst_17 = arith.constant 0.000000e+00 : bf16
    %19 = vector.broadcast %cst_17 : bf16 to vector<8x256xbf16>
    %c209 = arith.constant 209 : index
    %c0_18 = arith.constant 0 : index
    %20 = vector.load %arg7[%c209, %c0_18] : memref<264x256xbf16, #tpu.memory_space<vmem>>, vector<8x256xbf16>
    tpu.vector_store %arg7[%c209, %c0_18], %19 {strides = array<i32>} : memref<264x256xbf16, #tpu.memory_space<vmem>>, vector<8x256xbf16>,
    %cst_19 = arith.constant 0.000000e+00 : bf16
    %21 = vector.broadcast %cst_19 : bf16 to vector<31x256xbf16>
    %c233 = arith.constant 233 : index
    %c0_20 = arith.constant 0 : index
    %22 = vector.load %arg7[%c233, %c0_20] : memref<264x256xbf16, #tpu.memory_space<vmem>>, vector<31x256xbf16>
    tpu.vector_store %arg7[%c233, %c0_20], %21 {strides = array<i32>} : memref<264x256xbf16, #tpu.memory_space<vmem>>, vector<31x256xbf16>,
    %c1_i32 = arith.constant 1 : i32
    %23 = arith.subi %0, %c1_i32 : i32
    %c0_i32 = arith.constant 0 : i32
    %24 = arith.addi %23, %c0_i32 : i32
    %c0_i32_21 = arith.constant 0 : i32
    %c15_i32 = arith.constant 15 : i32
    %25 = arith.maxsi %c0_i32_21, %24 : i32
    %26 = arith.minsi %c15_i32, %25 : i32
    %c0_22 = arith.constant 0 : index
    %27 = arith.index_cast %26 : i32 to index
    %c0_23 = arith.constant 0 : index
    %c0_24 = arith.constant 0 : index
    %28 = vector.load %arg2[%c0_22, %27, %c0_23, %c0_24] : memref<1x16x16x128xbf16, #tpu.memory_space<vmem>>, vector<1x1x16x128xbf16>
    %29 = vector.shape_cast %28 : vector<1x1x16x128xbf16> to vector<16x128xbf16>
    %c1 = arith.constant 1 : index
    %c0_25 = arith.constant 0 : index
    %30 = vector.load %arg7[%c1, %c0_25] : memref<264x256xbf16, #tpu.memory_space<vmem>>, vector<16x128xbf16>
    tpu.vector_store %arg7[%c1, %c0_25], %29 {strides = array<i32>} : memref<264x256xbf16, #tpu.memory_space<vmem>>, vector<16x128xbf16>,
    %c1_i32_26 = arith.constant 1 : i32
    %31 = arith.subi %0, %c1_i32_26 : i32
    %c1_i32_27 = arith.constant 1 : i32
    %32 = arith.addi %31, %c1_i32_27 : i32
    %c0_i32_28 = arith.constant 0 : i32
    %c15_i32_29 = arith.constant 15 : i32
    %33 = arith.maxsi %c0_i32_28, %32 : i32
    %34 = arith.minsi %c15_i32_29, %33 : i32
    %c0_30 = arith.constant 0 : index
    %35 = arith.index_cast %34 : i32 to index
    %c0_31 = arith.constant 0 : index
    %c0_32 = arith.constant 0 : index
    %36 = vector.load %arg2[%c0_30, %35, %c0_31, %c0_32] : memref<1x16x16x128xbf16, #tpu.memory_space<vmem>>, vector<1x1x16x128xbf16>
    %37 = vector.shape_cast %36 : vector<1x1x16x128xbf16> to vector<16x128xbf16>
    %c25 = arith.constant 25 : index
    %c0_33 = arith.constant 0 : index
    %38 = vector.load %arg7[%c25, %c0_33] : memref<264x256xbf16, #tpu.memory_space<vmem>>, vector<16x128xbf16>
    tpu.vector_store %arg7[%c25, %c0_33], %37 {strides = array<i32>} : memref<264x256xbf16, #tpu.memory_space<vmem>>, vector<16x128xbf16>,
    %c1_i32_34 = arith.constant 1 : i32
    %39 = arith.subi %0, %c1_i32_34 : i32
    %c2_i32 = arith.constant 2 : i32
    %40 = arith.addi %39, %c2_i32 : i32
    %c0_i32_35 = arith.constant 0 : i32
    %c15_i32_36 = arith.constant 15 : i32
    %41 = arith.maxsi %c0_i32_35, %40 : i32
    %42 = arith.minsi %c15_i32_36, %41 : i32
    %c0_37 = arith.constant 0 : index
    %43 = arith.index_cast %42 : i32 to index
    %c0_38 = arith.constant 0 : index
    %c0_39 = arith.constant 0 : index
    %44 = vector.load %arg2[%c0_37, %43, %c0_38, %c0_39] : memref<1x16x16x128xbf16, #tpu.memory_space<vmem>>, vector<1x1x16x128xbf16>
    %45 = vector.shape_cast %44 : vector<1x1x16x128xbf16> to vector<16x128xbf16>
    %c49 = arith.constant 49 : index
    %c0_40 = arith.constant 0 : index
    %46 = vector.load %arg7[%c49, %c0_40] : memref<264x256xbf16, #tpu.memory_space<vmem>>, vector<16x128xbf16>
    tpu.vector_store %arg7[%c49, %c0_40], %45 {strides = array<i32>} : memref<264x256xbf16, #tpu.memory_space<vmem>>, vector<16x128xbf16>,
    %c1_i32_41 = arith.constant 1 : i32
    %47 = arith.subi %0, %c1_i32_41 : i32
    %c3_i32 = arith.constant 3 : i32
    %48 = arith.addi %47, %c3_i32 : i32
    %c0_i32_42 = arith.constant 0 : i32
    %c15_i32_43 = arith.constant 15 : i32
    %49 = arith.maxsi %c0_i32_42, %48 : i32
    %50 = arith.minsi %c15_i32_43, %49 : i32
    %c0_44 = arith.constant 0 : index
    %51 = arith.index_cast %50 : i32 to index
    %c0_45 = arith.constant 0 : index
    %c0_46 = arith.constant 0 : index
    %52 = vector.load %arg2[%c0_44, %51, %c0_45, %c0_46] : memref<1x16x16x128xbf16, #tpu.memory_space<vmem>>, vector<1x1x16x128xbf16>
    %53 = vector.shape_cast %52 : vector<1x1x16x128xbf16> to vector<16x128xbf16>
    %c73 = arith.constant 73 : index
    %c0_47 = arith.constant 0 : index
    %54 = vector.load %arg7[%c73, %c0_47] : memref<264x256xbf16, #tpu.memory_space<vmem>>, vector<16x128xbf16>
    tpu.vector_store %arg7[%c73, %c0_47], %53 {strides = array<i32>} : memref<264x256xbf16, #tpu.memory_space<vmem>>, vector<16x128xbf16>,
    %c1_i32_48 = arith.constant 1 : i32
    %55 = arith.subi %0, %c1_i32_48 : i32
    %c4_i32 = arith.constant 4 : i32
    %56 = arith.addi %55, %c4_i32 : i32
    %c0_i32_49 = arith.constant 0 : i32
    %c15_i32_50 = arith.constant 15 : i32
    %57 = arith.maxsi %c0_i32_49, %56 : i32
    %58 = arith.minsi %c15_i32_50, %57 : i32
    %c0_51 = arith.constant 0 : index
    %59 = arith.index_cast %58 : i32 to index
    %c0_52 = arith.constant 0 : index
    %c0_53 = arith.constant 0 : index
    %60 = vector.load %arg2[%c0_51, %59, %c0_52, %c0_53] : memref<1x16x16x128xbf16, #tpu.memory_space<vmem>>, vector<1x1x16x128xbf16>
    %61 = vector.shape_cast %60 : vector<1x1x16x128xbf16> to vector<16x128xbf16>
    %c97 = arith.constant 97 : index
    %c0_54 = arith.constant 0 : index
    %62 = vector.load %arg7[%c97, %c0_54] : memref<264x256xbf16, #tpu.memory_space<vmem>>, vector<16x128xbf16>
    tpu.vector_store %arg7[%c97, %c0_54], %61 {strides = array<i32>} : memref<264x256xbf16, #tpu.memory_space<vmem>>, vector<16x128xbf16>,
    %c1_i32_55 = arith.constant 1 : i32
    %63 = arith.subi %0, %c1_i32_55 : i32
    %c5_i32 = arith.constant 5 : i32
    %64 = arith.addi %63, %c5_i32 : i32
    %c0_i32_56 = arith.constant 0 : i32
    %c15_i32_57 = arith.constant 15 : i32
    %65 = arith.maxsi %c0_i32_56, %64 : i32
    %66 = arith.minsi %c15_i32_57, %65 : i32
    %c0_58 = arith.constant 0 : index
    %67 = arith.index_cast %66 : i32 to index
    %c0_59 = arith.constant 0 : index
    %c0_60 = arith.constant 0 : index
    %68 = vector.load %arg2[%c0_58, %67, %c0_59, %c0_60] : memref<1x16x16x128xbf16, #tpu.memory_space<vmem>>, vector<1x1x16x128xbf16>
    %69 = vector.shape_cast %68 : vector<1x1x16x128xbf16> to vector<16x128xbf16>
    %c121 = arith.constant 121 : index
    %c0_61 = arith.constant 0 : index
    %70 = vector.load %arg7[%c121, %c0_61] : memref<264x256xbf16, #tpu.memory_space<vmem>>, vector<16x128xbf16>
    tpu.vector_store %arg7[%c121, %c0_61], %69 {strides = array<i32>} : memref<264x256xbf16, #tpu.memory_space<vmem>>, vector<16x128xbf16>,
    %c1_i32_62 = arith.constant 1 : i32
    %71 = arith.subi %0, %c1_i32_62 : i32
    %c6_i32 = arith.constant 6 : i32
    %72 = arith.addi %71, %c6_i32 : i32
    %c0_i32_63 = arith.constant 0 : i32
    %c15_i32_64 = arith.constant 15 : i32
    %73 = arith.maxsi %c0_i32_63, %72 : i32
    %74 = arith.minsi %c15_i32_64, %73 : i32
    %c0_65 = arith.constant 0 : index
    %75 = arith.index_cast %74 : i32 to index
    %c0_66 = arith.constant 0 : index
    %c0_67 = arith.constant 0 : index
    %76 = vector.load %arg2[%c0_65, %75, %c0_66, %c0_67] : memref<1x16x16x128xbf16, #tpu.memory_space<vmem>>, vector<1x1x16x128xbf16>
    %77 = vector.shape_cast %76 : vector<1x1x16x128xbf16> to vector<16x128xbf16>
    %c145 = arith.constant 145 : index
    %c0_68 = arith.constant 0 : index
    %78 = vector.load %arg7[%c145, %c0_68] : memref<264x256xbf16, #tpu.memory_space<vmem>>, vector<16x128xbf16>
    tpu.vector_store %arg7[%c145, %c0_68], %77 {strides = array<i32>} : memref<264x256xbf16, #tpu.memory_space<vmem>>, vector<16x128xbf16>,
    %c1_i32_69 = arith.constant 1 : i32
    %79 = arith.subi %0, %c1_i32_69 : i32
    %c7_i32 = arith.constant 7 : i32
    %80 = arith.addi %79, %c7_i32 : i32
    %c0_i32_70 = arith.constant 0 : i32
    %c15_i32_71 = arith.constant 15 : i32
    %81 = arith.maxsi %c0_i32_70, %80 : i32
    %82 = arith.minsi %c15_i32_71, %81 : i32
    %c0_72 = arith.constant 0 : index
    %83 = arith.index_cast %82 : i32 to index
    %c0_73 = arith.constant 0 : index
    %c0_74 = arith.constant 0 : index
    %84 = vector.load %arg2[%c0_72, %83, %c0_73, %c0_74] : memref<1x16x16x128xbf16, #tpu.memory_space<vmem>>, vector<1x1x16x128xbf16>
    %85 = vector.shape_cast %84 : vector<1x1x16x128xbf16> to vector<16x128xbf16>
    %c169 = arith.constant 169 : index
    %c0_75 = arith.constant 0 : index
    %86 = vector.load %arg7[%c169, %c0_75] : memref<264x256xbf16, #tpu.memory_space<vmem>>, vector<16x128xbf16>
    tpu.vector_store %arg7[%c169, %c0_75], %85 {strides = array<i32>} : memref<264x256xbf16, #tpu.memory_space<vmem>>, vector<16x128xbf16>,
    %c1_i32_76 = arith.constant 1 : i32
    %87 = arith.subi %0, %c1_i32_76 : i32
    %c8_i32_77 = arith.constant 8 : i32
    %88 = arith.addi %87, %c8_i32_77 : i32
    %c0_i32_78 = arith.constant 0 : i32
    %c15_i32_79 = arith.constant 15 : i32
    %89 = arith.maxsi %c0_i32_78, %88 : i32
    %90 = arith.minsi %c15_i32_79, %89 : i32
    %c0_80 = arith.constant 0 : index
    %91 = arith.index_cast %90 : i32 to index
    %c0_81 = arith.constant 0 : index
    %c0_82 = arith.constant 0 : index
    %92 = vector.load %arg2[%c0_80, %91, %c0_81, %c0_82] : memref<1x16x16x128xbf16, #tpu.memory_space<vmem>>, vector<1x1x16x128xbf16>
    %93 = vector.shape_cast %92 : vector<1x1x16x128xbf16> to vector<16x128xbf16>
    %c193 = arith.constant 193 : index
    %c0_83 = arith.constant 0 : index
    %94 = vector.load %arg7[%c193, %c0_83] : memref<264x256xbf16, #tpu.memory_space<vmem>>, vector<16x128xbf16>
    tpu.vector_store %arg7[%c193, %c0_83], %93 {strides = array<i32>} : memref<264x256xbf16, #tpu.memory_space<vmem>>, vector<16x128xbf16>,
    %c1_i32_84 = arith.constant 1 : i32
    %95 = arith.subi %0, %c1_i32_84 : i32
    %c9_i32 = arith.constant 9 : i32
    %96 = arith.addi %95, %c9_i32 : i32
    %c0_i32_85 = arith.constant 0 : i32
    %c15_i32_86 = arith.constant 15 : i32
    %97 = arith.maxsi %c0_i32_85, %96 : i32
    %98 = arith.minsi %c15_i32_86, %97 : i32
    %c0_87 = arith.constant 0 : index
    %99 = arith.index_cast %98 : i32 to index
    %c0_88 = arith.constant 0 : index
    %c0_89 = arith.constant 0 : index
    %100 = vector.load %arg2[%c0_87, %99, %c0_88, %c0_89] : memref<1x16x16x128xbf16, #tpu.memory_space<vmem>>, vector<1x1x16x128xbf16>
    %101 = vector.shape_cast %100 : vector<1x1x16x128xbf16> to vector<16x128xbf16>
    %c217 = arith.constant 217 : index
    %c0_90 = arith.constant 0 : index
    %102 = vector.load %arg7[%c217, %c0_90] : memref<264x256xbf16, #tpu.memory_space<vmem>>, vector<16x128xbf16>
    tpu.vector_store %arg7[%c217, %c0_90], %101 {strides = array<i32>} : memref<264x256xbf16, #tpu.memory_space<vmem>>, vector<16x128xbf16>,
    %c1_i32_91 = arith.constant 1 : i32
    %103 = arith.subi %0, %c1_i32_91 : i32
    %c0_i32_92 = arith.constant 0 : i32
    %104 = arith.addi %103, %c0_i32_92 : i32
    %c0_i32_93 = arith.constant 0 : i32
    %c15_i32_94 = arith.constant 15 : i32
    %105 = arith.maxsi %c0_i32_93, %104 : i32
    %106 = arith.minsi %c15_i32_94, %105 : i32
    %c0_95 = arith.constant 0 : index
    %107 = arith.index_cast %106 : i32 to index
    %c0_96 = arith.constant 0 : index
    %c0_97 = arith.constant 0 : index
    %108 = vector.load %arg3[%c0_95, %107, %c0_96, %c0_97] : memref<1x16x16x128xbf16, #tpu.memory_space<vmem>>, vector<1x1x16x128xbf16>
    %109 = vector.shape_cast %108 : vector<1x1x16x128xbf16> to vector<16x128xbf16>
    %c1_98 = arith.constant 1 : index
    %c128 = arith.constant 128 : index
    %110 = vector.load %arg7[%c1_98, %c128] : memref<264x256xbf16, #tpu.memory_space<vmem>>, vector<16x128xbf16>
    tpu.vector_store %arg7[%c1_98, %c128], %109 {strides = array<i32>} : memref<264x256xbf16, #tpu.memory_space<vmem>>, vector<16x128xbf16>,
    %c1_i32_99 = arith.constant 1 : i32
    %111 = arith.subi %0, %c1_i32_99 : i32
    %c1_i32_100 = arith.constant 1 : i32
    %112 = arith.addi %111, %c1_i32_100 : i32
    %c0_i32_101 = arith.constant 0 : i32
    %c15_i32_102 = arith.constant 15 : i32
    %113 = arith.maxsi %c0_i32_101, %112 : i32
    %114 = arith.minsi %c15_i32_102, %113 : i32
    %c0_103 = arith.constant 0 : index
    %115 = arith.index_cast %114 : i32 to index
    %c0_104 = arith.constant 0 : index
    %c0_105 = arith.constant 0 : index
    %116 = vector.load %arg3[%c0_103, %115, %c0_104, %c0_105] : memref<1x16x16x128xbf16, #tpu.memory_space<vmem>>, vector<1x1x16x128xbf16>
    %117 = vector.shape_cast %116 : vector<1x1x16x128xbf16> to vector<16x128xbf16>
    %c25_106 = arith.constant 25 : index
    %c128_107 = arith.constant 128 : index
    %118 = vector.load %arg7[%c25_106, %c128_107] : memref<264x256xbf16, #tpu.memory_space<vmem>>, vector<16x128xbf16>
    tpu.vector_store %arg7[%c25_106, %c128_107], %117 {strides = array<i32>} : memref<264x256xbf16, #tpu.memory_space<vmem>>, vector<16x128xbf16>,
    %c1_i32_108 = arith.constant 1 : i32
    %119 = arith.subi %0, %c1_i32_108 : i32
    %c2_i32_109 = arith.constant 2 : i32
    %120 = arith.addi %119, %c2_i32_109 : i32
    %c0_i32_110 = arith.constant 0 : i32
    %c15_i32_111 = arith.constant 15 : i32
    %121 = arith.maxsi %c0_i32_110, %120 : i32
    %122 = arith.minsi %c15_i32_111, %121 : i32
    %c0_112 = arith.constant 0 : index
    %123 = arith.index_cast %122 : i32 to index
    %c0_113 = arith.constant 0 : index
    %c0_114 = arith.constant 0 : index
    %124 = vector.load %arg3[%c0_112, %123, %c0_113, %c0_114] : memref<1x16x16x128xbf16, #tpu.memory_space<vmem>>, vector<1x1x16x128xbf16>
    %125 = vector.shape_cast %124 : vector<1x1x16x128xbf16> to vector<16x128xbf16>
    %c49_115 = arith.constant 49 : index
    %c128_116 = arith.constant 128 : index
    %126 = vector.load %arg7[%c49_115, %c128_116] : memref<264x256xbf16, #tpu.memory_space<vmem>>, vector<16x128xbf16>
    tpu.vector_store %arg7[%c49_115, %c128_116], %125 {strides = array<i32>} : memref<264x256xbf16, #tpu.memory_space<vmem>>, vector<16x128xbf16>,
    %c1_i32_117 = arith.constant 1 : i32
    %127 = arith.subi %0, %c1_i32_117 : i32
    %c3_i32_118 = arith.constant 3 : i32
    %128 = arith.addi %127, %c3_i32_118 : i32
    %c0_i32_119 = arith.constant 0 : i32
    %c15_i32_120 = arith.constant 15 : i32
    %129 = arith.maxsi %c0_i32_119, %128 : i32
    %130 = arith.minsi %c15_i32_120, %129 : i32
    %c0_121 = arith.constant 0 : index
    %131 = arith.index_cast %130 : i32 to index
    %c0_122 = arith.constant 0 : index
    %c0_123 = arith.constant 0 : index
    %132 = vector.load %arg3[%c0_121, %131, %c0_122, %c0_123] : memref<1x16x16x128xbf16, #tpu.memory_space<vmem>>, vector<1x1x16x128xbf16>
    %133 = vector.shape_cast %132 : vector<1x1x16x128xbf16> to vector<16x128xbf16>
    %c73_124 = arith.constant 73 : index
    %c128_125 = arith.constant 128 : index
    %134 = vector.load %arg7[%c73_124, %c128_125] : memref<264x256xbf16, #tpu.memory_space<vmem>>, vector<16x128xbf16>
    tpu.vector_store %arg7[%c73_124, %c128_125], %133 {strides = array<i32>} : memref<264x256xbf16, #tpu.memory_space<vmem>>, vector<16x128xbf16>,
    %c1_i32_126 = arith.constant 1 : i32
    %135 = arith.subi %0, %c1_i32_126 : i32
    %c4_i32_127 = arith.constant 4 : i32
    %136 = arith.addi %135, %c4_i32_127 : i32
    %c0_i32_128 = arith.constant 0 : i32
    %c15_i32_129 = arith.constant 15 : i32
    %137 = arith.maxsi %c0_i32_128, %136 : i32
    %138 = arith.minsi %c15_i32_129, %137 : i32
    %c0_130 = arith.constant 0 : index
    %139 = arith.index_cast %138 : i32 to index
    %c0_131 = arith.constant 0 : index
    %c0_132 = arith.constant 0 : index
    %140 = vector.load %arg3[%c0_130, %139, %c0_131, %c0_132] : memref<1x16x16x128xbf16, #tpu.memory_space<vmem>>, vector<1x1x16x128xbf16>
    %141 = vector.shape_cast %140 : vector<1x1x16x128xbf16> to vector<16x128xbf16>
    %c97_133 = arith.constant 97 : index
    %c128_134 = arith.constant 128 : index
    %142 = vector.load %arg7[%c97_133, %c128_134] : memref<264x256xbf16, #tpu.memory_space<vmem>>, vector<16x128xbf16>
    tpu.vector_store %arg7[%c97_133, %c128_134], %141 {strides = array<i32>} : memref<264x256xbf16, #tpu.memory_space<vmem>>, vector<16x128xbf16>,
    %c1_i32_135 = arith.constant 1 : i32
    %143 = arith.subi %0, %c1_i32_135 : i32
    %c5_i32_136 = arith.constant 5 : i32
    %144 = arith.addi %143, %c5_i32_136 : i32
    %c0_i32_137 = arith.constant 0 : i32
    %c15_i32_138 = arith.constant 15 : i32
    %145 = arith.maxsi %c0_i32_137, %144 : i32
    %146 = arith.minsi %c15_i32_138, %145 : i32
    %c0_139 = arith.constant 0 : index
    %147 = arith.index_cast %146 : i32 to index
    %c0_140 = arith.constant 0 : index
    %c0_141 = arith.constant 0 : index
    %148 = vector.load %arg3[%c0_139, %147, %c0_140, %c0_141] : memref<1x16x16x128xbf16, #tpu.memory_space<vmem>>, vector<1x1x16x128xbf16>
    %149 = vector.shape_cast %148 : vector<1x1x16x128xbf16> to vector<16x128xbf16>
    %c121_142 = arith.constant 121 : index
    %c128_143 = arith.constant 128 : index
    %150 = vector.load %arg7[%c121_142, %c128_143] : memref<264x256xbf16, #tpu.memory_space<vmem>>, vector<16x128xbf16>
    tpu.vector_store %arg7[%c121_142, %c128_143], %149 {strides = array<i32>} : memref<264x256xbf16, #tpu.memory_space<vmem>>, vector<16x128xbf16>,
    %c1_i32_144 = arith.constant 1 : i32
    %151 = arith.subi %0, %c1_i32_144 : i32
    %c6_i32_145 = arith.constant 6 : i32
    %152 = arith.addi %151, %c6_i32_145 : i32
    %c0_i32_146 = arith.constant 0 : i32
    %c15_i32_147 = arith.constant 15 : i32
    %153 = arith.maxsi %c0_i32_146, %152 : i32
    %154 = arith.minsi %c15_i32_147, %153 : i32
    %c0_148 = arith.constant 0 : index
    %155 = arith.index_cast %154 : i32 to index
    %c0_149 = arith.constant 0 : index
    %c0_150 = arith.constant 0 : index
    %156 = vector.load %arg3[%c0_148, %155, %c0_149, %c0_150] : memref<1x16x16x128xbf16, #tpu.memory_space<vmem>>, vector<1x1x16x128xbf16>
    %157 = vector.shape_cast %156 : vector<1x1x16x128xbf16> to vector<16x128xbf16>
    %c145_151 = arith.constant 145 : index
    %c128_152 = arith.constant 128 : index
    %158 = vector.load %arg7[%c145_151, %c128_152] : memref<264x256xbf16, #tpu.memory_space<vmem>>, vector<16x128xbf16>
    tpu.vector_store %arg7[%c145_151, %c128_152], %157 {strides = array<i32>} : memref<264x256xbf16, #tpu.memory_space<vmem>>, vector<16x128xbf16>,
    %c1_i32_153 = arith.constant 1 : i32
    %159 = arith.subi %0, %c1_i32_153 : i32
    %c7_i32_154 = arith.constant 7 : i32
    %160 = arith.addi %159, %c7_i32_154 : i32
    %c0_i32_155 = arith.constant 0 : i32
    %c15_i32_156 = arith.constant 15 : i32
    %161 = arith.maxsi %c0_i32_155, %160 : i32
    %162 = arith.minsi %c15_i32_156, %161 : i32
    %c0_157 = arith.constant 0 : index
    %163 = arith.index_cast %162 : i32 to index
    %c0_158 = arith.constant 0 : index
    %c0_159 = arith.constant 0 : index
    %164 = vector.load %arg3[%c0_157, %163, %c0_158, %c0_159] : memref<1x16x16x128xbf16, #tpu.memory_space<vmem>>, vector<1x1x16x128xbf16>
    %165 = vector.shape_cast %164 : vector<1x1x16x128xbf16> to vector<16x128xbf16>
    %c169_160 = arith.constant 169 : index
    %c128_161 = arith.constant 128 : index
    %166 = vector.load %arg7[%c169_160, %c128_161] : memref<264x256xbf16, #tpu.memory_space<vmem>>, vector<16x128xbf16>
    tpu.vector_store %arg7[%c169_160, %c128_161], %165 {strides = array<i32>} : memref<264x256xbf16, #tpu.memory_space<vmem>>, vector<16x128xbf16>,
    %c1_i32_162 = arith.constant 1 : i32
    %167 = arith.subi %0, %c1_i32_162 : i32
    %c8_i32_163 = arith.constant 8 : i32
    %168 = arith.addi %167, %c8_i32_163 : i32
    %c0_i32_164 = arith.constant 0 : i32
    %c15_i32_165 = arith.constant 15 : i32
    %169 = arith.maxsi %c0_i32_164, %168 : i32
    %170 = arith.minsi %c15_i32_165, %169 : i32
    %c0_166 = arith.constant 0 : index
    %171 = arith.index_cast %170 : i32 to index
    %c0_167 = arith.constant 0 : index
    %c0_168 = arith.constant 0 : index
    %172 = vector.load %arg3[%c0_166, %171, %c0_167, %c0_168] : memref<1x16x16x128xbf16, #tpu.memory_space<vmem>>, vector<1x1x16x128xbf16>
    %173 = vector.shape_cast %172 : vector<1x1x16x128xbf16> to vector<16x128xbf16>
    %c193_169 = arith.constant 193 : index
    %c128_170 = arith.constant 128 : index
    %174 = vector.load %arg7[%c193_169, %c128_170] : memref<264x256xbf16, #tpu.memory_space<vmem>>, vector<16x128xbf16>
    tpu.vector_store %arg7[%c193_169, %c128_170], %173 {strides = array<i32>} : memref<264x256xbf16, #tpu.memory_space<vmem>>, vector<16x128xbf16>,
    %c1_i32_171 = arith.constant 1 : i32
    %175 = arith.subi %0, %c1_i32_171 : i32
    %c9_i32_172 = arith.constant 9 : i32
    %176 = arith.addi %175, %c9_i32_172 : i32
    %c0_i32_173 = arith.constant 0 : i32
    %c15_i32_174 = arith.constant 15 : i32
    %177 = arith.maxsi %c0_i32_173, %176 : i32
    %178 = arith.minsi %c15_i32_174, %177 : i32
    %c0_175 = arith.constant 0 : index
    %179 = arith.index_cast %178 : i32 to index
    %c0_176 = arith.constant 0 : index
    %c0_177 = arith.constant 0 : index
    %180 = vector.load %arg3[%c0_175, %179, %c0_176, %c0_177] : memref<1x16x16x128xbf16, #tpu.memory_space<vmem>>, vector<1x1x16x128xbf16>
    %181 = vector.shape_cast %180 : vector<1x1x16x128xbf16> to vector<16x128xbf16>
    %c217_178 = arith.constant 217 : index
    %c128_179 = arith.constant 128 : index
    %182 = vector.load %arg7[%c217_178, %c128_179] : memref<264x256xbf16, #tpu.memory_space<vmem>>, vector<16x128xbf16>
    tpu.vector_store %arg7[%c217_178, %c128_179], %181 {strides = array<i32>} : memref<264x256xbf16, #tpu.memory_space<vmem>>, vector<16x128xbf16>,
    %c0_i32_180 = arith.constant 0 : i32
    %183 = arith.cmpi eq, %arg1, %c0_i32_180 : i32
    %184 = arith.extui %183 : i1 to i32
    %c0_i32_181 = arith.constant 0 : i32
    %185 = arith.cmpi ne, %184, %c0_i32_181 : i32
    scf.if %185 {
      %cst_237 = arith.constant 0.000000e+00 : bf16
      %249 = vector.broadcast %cst_237 : bf16 to vector<16x256xbf16>
      %c1_238 = arith.constant 1 : index
      %c0_239 = arith.constant 0 : index
      %250 = vector.load %arg7[%c1_238, %c0_239] : memref<264x256xbf16, #tpu.memory_space<vmem>>, vector<16x256xbf16>
      tpu.vector_store %arg7[%c1_238, %c0_239], %249 {strides = array<i32>} : memref<264x256xbf16, #tpu.memory_space<vmem>>, vector<16x256xbf16>,
    } else {
    }
    %c1_i32_182 = arith.constant 1 : i32
    %186 = arith.cmpi eq, %arg1, %c1_i32_182 : i32
    %187 = arith.extui %186 : i1 to i32
    %c0_i32_183 = arith.constant 0 : i32
    %188 = arith.cmpi ne, %187, %c0_i32_183 : i32
    scf.if %188 {
      %cst_237 = arith.constant 0.000000e+00 : bf16
      %249 = vector.broadcast %cst_237 : bf16 to vector<16x256xbf16>
      %c217_238 = arith.constant 217 : index
      %c0_239 = arith.constant 0 : index
      %250 = vector.load %arg7[%c217_238, %c0_239] : memref<264x256xbf16, #tpu.memory_space<vmem>>, vector<16x256xbf16>
      tpu.vector_store %arg7[%c217_238, %c0_239], %249 {strides = array<i32>} : memref<264x256xbf16, #tpu.memory_space<vmem>>, vector<16x256xbf16>,
    } else {
    }
    %cst_184 = arith.constant 0.000000e+00 : f32
    %189 = vector.broadcast %cst_184 : f32 to vector<192x128xf32>
    %c0_185 = arith.constant 0 : index
    %c0_186 = arith.constant 0 : index
    %190 = vector.load %arg7[%c0_185, %c0_186] : memref<264x256xbf16, #tpu.memory_space<vmem>>, vector<192x256xbf16>
    %c0_187 = arith.constant 0 : index
    %c0_188 = arith.constant 0 : index
    %c0_189 = arith.constant 0 : index
    %191 = vector.load %arg4[%c0_187, %c0_188, %c0_189] : memref<9x256x128xbf16, #tpu.memory_space<vmem>>, vector<1x256x128xbf16>
    %192 = vector.shape_cast %191 : vector<1x256x128xbf16> to vector<256x128xbf16>
    %cst_190 = arith.constant dense<0.000000e+00> : vector<192x128xf32>
    %193 = tpu.matmul %190, %192, %cst_190 {dimension_numbers = #tpu.dot_dimension_numbers<[1], [0], [0], [1], [0, 0, 1, 1], [], []>} : vector<192x256xbf16>, vector<256x128xbf16>, vector<192x128xf32> -> vector<192x128xf32>
    %194 = arith.addf %189, %193 : vector<192x128xf32>
    %c1_191 = arith.constant 1 : index
    %c0_192 = arith.constant 0 : index
    %195 = vector.load %arg7[%c1_191, %c0_192] : memref<264x256xbf16, #tpu.memory_space<vmem>>, vector<192x256xbf16>
    %c1_193 = arith.constant 1 : index
    %c0_194 = arith.constant 0 : index
    %c0_195 = arith.constant 0 : index
    %196 = vector.load %arg4[%c1_193, %c0_194, %c0_195] : memref<9x256x128xbf16, #tpu.memory_space<vmem>>, vector<1x256x128xbf16>
    %197 = vector.shape_cast %196 : vector<1x256x128xbf16> to vector<256x128xbf16>
    %cst_196 = arith.constant dense<0.000000e+00> : vector<192x128xf32>
    %198 = tpu.matmul %195, %197, %cst_196 {dimension_numbers = #tpu.dot_dimension_numbers<[1], [0], [0], [1], [0, 0, 1, 1], [], []>} : vector<192x256xbf16>, vector<256x128xbf16>, vector<192x128xf32> -> vector<192x128xf32>
    %199 = arith.addf %194, %198 : vector<192x128xf32>
    %c2 = arith.constant 2 : index
    %c0_197 = arith.constant 0 : index
    %200 = vector.load %arg7[%c2, %c0_197] : memref<264x256xbf16, #tpu.memory_space<vmem>>, vector<192x256xbf16>
    %c2_198 = arith.constant 2 : index
    %c0_199 = arith.constant 0 : index
    %c0_200 = arith.constant 0 : index
    %201 = vector.load %arg4[%c2_198, %c0_199, %c0_200] : memref<9x256x128xbf16, #tpu.memory_space<vmem>>, vector<1x256x128xbf16>
    %202 = vector.shape_cast %201 : vector<1x256x128xbf16> to vector<256x128xbf16>
    %cst_201 = arith.constant dense<0.000000e+00> : vector<192x128xf32>
    %203 = tpu.matmul %200, %202, %cst_201 {dimension_numbers = #tpu.dot_dimension_numbers<[1], [0], [0], [1], [0, 0, 1, 1], [], []>} : vector<192x256xbf16>, vector<256x128xbf16>, vector<192x128xf32> -> vector<192x128xf32>
    %204 = arith.addf %199, %203 : vector<192x128xf32>
    %c24 = arith.constant 24 : index
    %c0_202 = arith.constant 0 : index
    %205 = vector.load %arg7[%c24, %c0_202] : memref<264x256xbf16, #tpu.memory_space<vmem>>, vector<192x256xbf16>
    %c3 = arith.constant 3 : index
    %c0_203 = arith.constant 0 : index
    %c0_204 = arith.constant 0 : index
    %206 = vector.load %arg4[%c3, %c0_203, %c0_204] : memref<9x256x128xbf16, #tpu.memory_space<vmem>>, vector<1x256x128xbf16>
    %207 = vector.shape_cast %206 : vector<1x256x128xbf16> to vector<256x128xbf16>
    %cst_205 = arith.constant dense<0.000000e+00> : vector<192x128xf32>
    %208 = tpu.matmul %205, %207, %cst_205 {dimension_numbers = #tpu.dot_dimension_numbers<[1], [0], [0], [1], [0, 0, 1, 1], [], []>} : vector<192x256xbf16>, vector<256x128xbf16>, vector<192x128xf32> -> vector<192x128xf32>
    %209 = arith.addf %204, %208 : vector<192x128xf32>
    %c25_206 = arith.constant 25 : index
    %c0_207 = arith.constant 0 : index
    %210 = vector.load %arg7[%c25_206, %c0_207] : memref<264x256xbf16, #tpu.memory_space<vmem>>, vector<192x256xbf16>
    %c4 = arith.constant 4 : index
    %c0_208 = arith.constant 0 : index
    %c0_209 = arith.constant 0 : index
    %211 = vector.load %arg4[%c4, %c0_208, %c0_209] : memref<9x256x128xbf16, #tpu.memory_space<vmem>>, vector<1x256x128xbf16>
    %212 = vector.shape_cast %211 : vector<1x256x128xbf16> to vector<256x128xbf16>
    %cst_210 = arith.constant dense<0.000000e+00> : vector<192x128xf32>
    %213 = tpu.matmul %210, %212, %cst_210 {dimension_numbers = #tpu.dot_dimension_numbers<[1], [0], [0], [1], [0, 0, 1, 1], [], []>} : vector<192x256xbf16>, vector<256x128xbf16>, vector<192x128xf32> -> vector<192x128xf32>
    %214 = arith.addf %209, %213 : vector<192x128xf32>
    %c26 = arith.constant 26 : index
    %c0_211 = arith.constant 0 : index
    %215 = vector.load %arg7[%c26, %c0_211] : memref<264x256xbf16, #tpu.memory_space<vmem>>, vector<192x256xbf16>
    %c5 = arith.constant 5 : index
    %c0_212 = arith.constant 0 : index
    %c0_213 = arith.constant 0 : index
    %216 = vector.load %arg4[%c5, %c0_212, %c0_213] : memref<9x256x128xbf16, #tpu.memory_space<vmem>>, vector<1x256x128xbf16>
    %217 = vector.shape_cast %216 : vector<1x256x128xbf16> to vector<256x128xbf16>
    %cst_214 = arith.constant dense<0.000000e+00> : vector<192x128xf32>
    %218 = tpu.matmul %215, %217, %cst_214 {dimension_numbers = #tpu.dot_dimension_numbers<[1], [0], [0], [1], [0, 0, 1, 1], [], []>} : vector<192x256xbf16>, vector<256x128xbf16>, vector<192x128xf32> -> vector<192x128xf32>
    %219 = arith.addf %214, %218 : vector<192x128xf32>
    %c48 = arith.constant 48 : index
    %c0_215 = arith.constant 0 : index
    %220 = vector.load %arg7[%c48, %c0_215] : memref<264x256xbf16, #tpu.memory_space<vmem>>, vector<192x256xbf16>
    %c6 = arith.constant 6 : index
    %c0_216 = arith.constant 0 : index
    %c0_217 = arith.constant 0 : index
    %221 = vector.load %arg4[%c6, %c0_216, %c0_217] : memref<9x256x128xbf16, #tpu.memory_space<vmem>>, vector<1x256x128xbf16>
    %222 = vector.shape_cast %221 : vector<1x256x128xbf16> to vector<256x128xbf16>
    %cst_218 = arith.constant dense<0.000000e+00> : vector<192x128xf32>
    %223 = tpu.matmul %220, %222, %cst_218 {dimension_numbers = #tpu.dot_dimension_numbers<[1], [0], [0], [1], [0, 0, 1, 1], [], []>} : vector<192x256xbf16>, vector<256x128xbf16>, vector<192x128xf32> -> vector<192x128xf32>
    %224 = arith.addf %219, %223 : vector<192x128xf32>
    %c49_219 = arith.constant 49 : index
    %c0_220 = arith.constant 0 : index
    %225 = vector.load %arg7[%c49_219, %c0_220] : memref<264x256xbf16, #tpu.memory_space<vmem>>, vector<192x256xbf16>
    %c7 = arith.constant 7 : index
    %c0_221 = arith.constant 0 : index
    %c0_222 = arith.constant 0 : index
    %226 = vector.load %arg4[%c7, %c0_221, %c0_222] : memref<9x256x128xbf16, #tpu.memory_space<vmem>>, vector<1x256x128xbf16>
    %227 = vector.shape_cast %226 : vector<1x256x128xbf16> to vector<256x128xbf16>
    %cst_223 = arith.constant dense<0.000000e+00> : vector<192x128xf32>
    %228 = tpu.matmul %225, %227, %cst_223 {dimension_numbers = #tpu.dot_dimension_numbers<[1], [0], [0], [1], [0, 0, 1, 1], [], []>} : vector<192x256xbf16>, vector<256x128xbf16>, vector<192x128xf32> -> vector<192x128xf32>
    %229 = arith.addf %224, %228 : vector<192x128xf32>
    %c50 = arith.constant 50 : index
    %c0_224 = arith.constant 0 : index
    %230 = vector.load %arg7[%c50, %c0_224] : memref<264x256xbf16, #tpu.memory_space<vmem>>, vector<192x256xbf16>
    %c8 = arith.constant 8 : index
    %c0_225 = arith.constant 0 : index
    %c0_226 = arith.constant 0 : index
    %231 = vector.load %arg4[%c8, %c0_225, %c0_226] : memref<9x256x128xbf16, #tpu.memory_space<vmem>>, vector<1x256x128xbf16>
    %232 = vector.shape_cast %231 : vector<1x256x128xbf16> to vector<256x128xbf16>
    %cst_227 = arith.constant dense<0.000000e+00> : vector<192x128xf32>
    %233 = tpu.matmul %230, %232, %cst_227 {dimension_numbers = #tpu.dot_dimension_numbers<[1], [0], [0], [1], [0, 0, 1, 1], [], []>} : vector<192x256xbf16>, vector<256x128xbf16>, vector<192x128xf32> -> vector<192x128xf32>
    %234 = arith.addf %229, %233 : vector<192x128xf32>
    %c0_228 = arith.constant 0 : index
    %c0_229 = arith.constant 0 : index
    %235 = vector.load %arg5[%c0_228, %c0_229] : memref<2x128xf32, #tpu.memory_space<vmem>>, vector<1x128xf32>
    %236 = vector.broadcast %235 : vector<1x128xf32> to vector<192x128xf32>
    %237 = arith.mulf %234, %236 : vector<192x128xf32>
    %c1_230 = arith.constant 1 : index
    %c0_231 = arith.constant 0 : index
    %238 = vector.load %arg5[%c1_230, %c0_231] : memref<2x128xf32, #tpu.memory_space<vmem>>, vector<1x128xf32>
    %239 = vector.broadcast %238 : vector<1x128xf32> to vector<192x128xf32>
    %240 = arith.addf %237, %239 : vector<192x128xf32>
    %cst_232 = arith.constant 0.000000e+00 : f32
    %241 = vector.broadcast %cst_232 : f32 to vector<192x128xf32>
    %242 = arith.maximumf %240, %241 : vector<192x128xf32>
    %243 = vector.shape_cast %242 : vector<192x128xf32> to vector<8x24x128xf32>
    %244 = vector.extract_strided_slice %243 {offsets = [0, 0, 0], sizes = [8, 16, 128], strides = [1, 1, 1]} : vector<8x24x128xf32> to vector<8x16x128xf32>
    %245 = arith.truncf %244 : vector<8x16x128xf32> to vector<8x16x128xbf16>
    %c0_233 = arith.constant 0 : index
    %c0_234 = arith.constant 0 : index
    %c0_235 = arith.constant 0 : index
    %c0_236 = arith.constant 0 : index
    %246 = vector.load %arg6[%c0_233, %c0_234, %c0_235, %c0_236] : memref<1x8x16x128xbf16, #tpu.memory_space<vmem>>, vector<1x8x16x128xbf16>
    %247 = vector.shape_cast %246 : vector<1x8x16x128xbf16> to vector<8x16x128xbf16>
    %248 = vector.shape_cast %245 : vector<8x16x128xbf16> to vector<1x8x16x128xbf16>
    tpu.vector_store %arg6[%c0_233, %c0_234, %c0_235, %c0_236], %248 {strides = array<i32>} : memref<1x8x16x128xbf16, #tpu.memory_space<vmem>>, vector<1x8x16x128xbf16>,
    return
  }
  func.func @transform_0(%arg0: i32, %arg1: i32) -> (i32, i32, i32, i32) {
    %c0_i32 = arith.constant 0 : i32
    %c0_i32_0 = arith.constant 0 : i32
    %c0_i32_1 = arith.constant 0 : i32
    %c0_i32_2 = arith.constant 0 : i32
    return %arg0, %c0_i32, %c0_i32_0, %c0_i32_1 : i32, i32, i32, i32
  }
  func.func @transform_1(%arg0: i32, %arg1: i32) -> (i32, i32, i32, i32) {
    %c0_i32 = arith.constant 0 : i32
    %c0_i32_0 = arith.constant 0 : i32
    %c0_i32_1 = arith.constant 0 : i32
    %c0_i32_2 = arith.constant 0 : i32
    return %arg0, %c0_i32, %c0_i32_0, %c0_i32_1 : i32, i32, i32, i32
  }
  func.func @transform_2(%arg0: i32, %arg1: i32) -> (i32, i32, i32) {
    %c0_i32 = arith.constant 0 : i32
    %c0_i32_0 = arith.constant 0 : i32
    %c0_i32_1 = arith.constant 0 : i32
    %c0_i32_2 = arith.constant 0 : i32
    return %c0_i32, %c0_i32_0, %c0_i32_1 : i32, i32, i32
  }
  func.func @transform_3(%arg0: i32, %arg1: i32) -> (i32, i32) {
    %c0_i32 = arith.constant 0 : i32
    %c0_i32_0 = arith.constant 0 : i32
    %c0_i32_1 = arith.constant 0 : i32
    return %c0_i32, %c0_i32_0 : i32, i32
  }
  func.func @transform_4(%arg0: i32, %arg1: i32) -> (i32, i32, i32, i32) {
    %c0_i32 = arith.constant 0 : i32
    %c0_i32_0 = arith.constant 0 : i32
    %c0_i32_1 = arith.constant 0 : i32
    return %arg0, %arg1, %c0_i32, %c0_i32_0 : i32, i32, i32, i32
  }
}

module attributes {stable_mosaic.version = 11 : i64} {
  func.func @_block_kernel(%arg0: i32, %arg1: i32, %arg2: memref<1x16x16x128xbf16, #tpu.memory_space<vmem>>, %arg3: memref<9x128x128xbf16, #tpu.memory_space<vmem>>, %arg4: memref<2x128xf32, #tpu.memory_space<vmem>>, %arg5: memref<1x8x16x128xf32, #tpu.memory_space<vmem>>, %arg6: memref<264x128xbf16, #tpu.memory_space<vmem>>) attributes {dimension_semantics = [#tpu.dimension_semantics<parallel>, #tpu.dimension_semantics<parallel>], iteration_bounds = array<i64: 2, 2>, scalar_prefetch = 0 : i64, scratch_operands = 1 : i64, tpu.core_type = #tpu.core_type<tc>, window_params = [{transform_indices = @transform_0, window_bounds = array<i64: 1, 16, 16, 128>}, {pipeline_mode = #tpu.pipeline_mode<synchronous>, transform_indices = @transform_1, window_bounds = array<i64: 9, 128, 128>}, {pipeline_mode = #tpu.pipeline_mode<synchronous>, transform_indices = @transform_2, window_bounds = array<i64: 2, 128>}, {transform_indices = @transform_3, window_bounds = array<i64: 1, 8, 16, 128>}]} {
    %c8_i32 = arith.constant 8 : i32
    %0 = arith.muli %arg1, %c8_i32 : i32
    %cst = arith.constant 0.000000e+00 : bf16
    %1 = vector.broadcast %cst : bf16 to vector<1x128xbf16>
    %c0 = arith.constant 0 : index
    %c0_0 = arith.constant 0 : index
    %2 = vector.load %arg6[%c0, %c0_0] : memref<264x128xbf16, #tpu.memory_space<vmem>>, vector<1x128xbf16>
    tpu.vector_store %arg6[%c0, %c0_0], %1 {strides = array<i32>} : memref<264x128xbf16, #tpu.memory_space<vmem>>, vector<1x128xbf16>,
    %cst_1 = arith.constant 0.000000e+00 : bf16
    %3 = vector.broadcast %cst_1 : bf16 to vector<8x128xbf16>
    %c17 = arith.constant 17 : index
    %c0_2 = arith.constant 0 : index
    %4 = vector.load %arg6[%c17, %c0_2] : memref<264x128xbf16, #tpu.memory_space<vmem>>, vector<8x128xbf16>
    tpu.vector_store %arg6[%c17, %c0_2], %3 {strides = array<i32>} : memref<264x128xbf16, #tpu.memory_space<vmem>>, vector<8x128xbf16>,
    %cst_3 = arith.constant 0.000000e+00 : bf16
    %5 = vector.broadcast %cst_3 : bf16 to vector<8x128xbf16>
    %c41 = arith.constant 41 : index
    %c0_4 = arith.constant 0 : index
    %6 = vector.load %arg6[%c41, %c0_4] : memref<264x128xbf16, #tpu.memory_space<vmem>>, vector<8x128xbf16>
    tpu.vector_store %arg6[%c41, %c0_4], %5 {strides = array<i32>} : memref<264x128xbf16, #tpu.memory_space<vmem>>, vector<8x128xbf16>,
    %cst_5 = arith.constant 0.000000e+00 : bf16
    %7 = vector.broadcast %cst_5 : bf16 to vector<8x128xbf16>
    %c65 = arith.constant 65 : index
    %c0_6 = arith.constant 0 : index
    %8 = vector.load %arg6[%c65, %c0_6] : memref<264x128xbf16, #tpu.memory_space<vmem>>, vector<8x128xbf16>
    tpu.vector_store %arg6[%c65, %c0_6], %7 {strides = array<i32>} : memref<264x128xbf16, #tpu.memory_space<vmem>>, vector<8x128xbf16>,
    %cst_7 = arith.constant 0.000000e+00 : bf16
    %9 = vector.broadcast %cst_7 : bf16 to vector<8x128xbf16>
    %c89 = arith.constant 89 : index
    %c0_8 = arith.constant 0 : index
    %10 = vector.load %arg6[%c89, %c0_8] : memref<264x128xbf16, #tpu.memory_space<vmem>>, vector<8x128xbf16>
    tpu.vector_store %arg6[%c89, %c0_8], %9 {strides = array<i32>} : memref<264x128xbf16, #tpu.memory_space<vmem>>, vector<8x128xbf16>,
    %cst_9 = arith.constant 0.000000e+00 : bf16
    %11 = vector.broadcast %cst_9 : bf16 to vector<8x128xbf16>
    %c113 = arith.constant 113 : index
    %c0_10 = arith.constant 0 : index
    %12 = vector.load %arg6[%c113, %c0_10] : memref<264x128xbf16, #tpu.memory_space<vmem>>, vector<8x128xbf16>
    tpu.vector_store %arg6[%c113, %c0_10], %11 {strides = array<i32>} : memref<264x128xbf16, #tpu.memory_space<vmem>>, vector<8x128xbf16>,
    %cst_11 = arith.constant 0.000000e+00 : bf16
    %13 = vector.broadcast %cst_11 : bf16 to vector<8x128xbf16>
    %c137 = arith.constant 137 : index
    %c0_12 = arith.constant 0 : index
    %14 = vector.load %arg6[%c137, %c0_12] : memref<264x128xbf16, #tpu.memory_space<vmem>>, vector<8x128xbf16>
    tpu.vector_store %arg6[%c137, %c0_12], %13 {strides = array<i32>} : memref<264x128xbf16, #tpu.memory_space<vmem>>, vector<8x128xbf16>,
    %cst_13 = arith.constant 0.000000e+00 : bf16
    %15 = vector.broadcast %cst_13 : bf16 to vector<8x128xbf16>
    %c161 = arith.constant 161 : index
    %c0_14 = arith.constant 0 : index
    %16 = vector.load %arg6[%c161, %c0_14] : memref<264x128xbf16, #tpu.memory_space<vmem>>, vector<8x128xbf16>
    tpu.vector_store %arg6[%c161, %c0_14], %15 {strides = array<i32>} : memref<264x128xbf16, #tpu.memory_space<vmem>>, vector<8x128xbf16>,
    %cst_15 = arith.constant 0.000000e+00 : bf16
    %17 = vector.broadcast %cst_15 : bf16 to vector<8x128xbf16>
    %c185 = arith.constant 185 : index
    %c0_16 = arith.constant 0 : index
    %18 = vector.load %arg6[%c185, %c0_16] : memref<264x128xbf16, #tpu.memory_space<vmem>>, vector<8x128xbf16>
    tpu.vector_store %arg6[%c185, %c0_16], %17 {strides = array<i32>} : memref<264x128xbf16, #tpu.memory_space<vmem>>, vector<8x128xbf16>,
    %cst_17 = arith.constant 0.000000e+00 : bf16
    %19 = vector.broadcast %cst_17 : bf16 to vector<8x128xbf16>
    %c209 = arith.constant 209 : index
    %c0_18 = arith.constant 0 : index
    %20 = vector.load %arg6[%c209, %c0_18] : memref<264x128xbf16, #tpu.memory_space<vmem>>, vector<8x128xbf16>
    tpu.vector_store %arg6[%c209, %c0_18], %19 {strides = array<i32>} : memref<264x128xbf16, #tpu.memory_space<vmem>>, vector<8x128xbf16>,
    %cst_19 = arith.constant 0.000000e+00 : bf16
    %21 = vector.broadcast %cst_19 : bf16 to vector<31x128xbf16>
    %c233 = arith.constant 233 : index
    %c0_20 = arith.constant 0 : index
    %22 = vector.load %arg6[%c233, %c0_20] : memref<264x128xbf16, #tpu.memory_space<vmem>>, vector<31x128xbf16>
    tpu.vector_store %arg6[%c233, %c0_20], %21 {strides = array<i32>} : memref<264x128xbf16, #tpu.memory_space<vmem>>, vector<31x128xbf16>,
    %c1_i32 = arith.constant 1 : i32
    %23 = arith.subi %0, %c1_i32 : i32
    %c0_i32 = arith.constant 0 : i32
    %24 = arith.addi %23, %c0_i32 : i32
    %c0_i32_21 = arith.constant 0 : i32
    %c15_i32 = arith.constant 15 : i32
    %25 = arith.maxsi %c0_i32_21, %24 : i32
    %26 = arith.minsi %c15_i32, %25 : i32
    %c0_22 = arith.constant 0 : index
    %27 = arith.index_cast %26 : i32 to index
    %c0_23 = arith.constant 0 : index
    %c0_24 = arith.constant 0 : index
    %28 = vector.load %arg2[%c0_22, %27, %c0_23, %c0_24] : memref<1x16x16x128xbf16, #tpu.memory_space<vmem>>, vector<1x1x16x128xbf16>
    %29 = vector.shape_cast %28 : vector<1x1x16x128xbf16> to vector<16x128xbf16>
    %c1 = arith.constant 1 : index
    %c0_25 = arith.constant 0 : index
    %30 = vector.load %arg6[%c1, %c0_25] : memref<264x128xbf16, #tpu.memory_space<vmem>>, vector<16x128xbf16>
    tpu.vector_store %arg6[%c1, %c0_25], %29 {strides = array<i32>} : memref<264x128xbf16, #tpu.memory_space<vmem>>, vector<16x128xbf16>,
    %c1_i32_26 = arith.constant 1 : i32
    %31 = arith.subi %0, %c1_i32_26 : i32
    %c1_i32_27 = arith.constant 1 : i32
    %32 = arith.addi %31, %c1_i32_27 : i32
    %c0_i32_28 = arith.constant 0 : i32
    %c15_i32_29 = arith.constant 15 : i32
    %33 = arith.maxsi %c0_i32_28, %32 : i32
    %34 = arith.minsi %c15_i32_29, %33 : i32
    %c0_30 = arith.constant 0 : index
    %35 = arith.index_cast %34 : i32 to index
    %c0_31 = arith.constant 0 : index
    %c0_32 = arith.constant 0 : index
    %36 = vector.load %arg2[%c0_30, %35, %c0_31, %c0_32] : memref<1x16x16x128xbf16, #tpu.memory_space<vmem>>, vector<1x1x16x128xbf16>
    %37 = vector.shape_cast %36 : vector<1x1x16x128xbf16> to vector<16x128xbf16>
    %c25 = arith.constant 25 : index
    %c0_33 = arith.constant 0 : index
    %38 = vector.load %arg6[%c25, %c0_33] : memref<264x128xbf16, #tpu.memory_space<vmem>>, vector<16x128xbf16>
    tpu.vector_store %arg6[%c25, %c0_33], %37 {strides = array<i32>} : memref<264x128xbf16, #tpu.memory_space<vmem>>, vector<16x128xbf16>,
    %c1_i32_34 = arith.constant 1 : i32
    %39 = arith.subi %0, %c1_i32_34 : i32
    %c2_i32 = arith.constant 2 : i32
    %40 = arith.addi %39, %c2_i32 : i32
    %c0_i32_35 = arith.constant 0 : i32
    %c15_i32_36 = arith.constant 15 : i32
    %41 = arith.maxsi %c0_i32_35, %40 : i32
    %42 = arith.minsi %c15_i32_36, %41 : i32
    %c0_37 = arith.constant 0 : index
    %43 = arith.index_cast %42 : i32 to index
    %c0_38 = arith.constant 0 : index
    %c0_39 = arith.constant 0 : index
    %44 = vector.load %arg2[%c0_37, %43, %c0_38, %c0_39] : memref<1x16x16x128xbf16, #tpu.memory_space<vmem>>, vector<1x1x16x128xbf16>
    %45 = vector.shape_cast %44 : vector<1x1x16x128xbf16> to vector<16x128xbf16>
    %c49 = arith.constant 49 : index
    %c0_40 = arith.constant 0 : index
    %46 = vector.load %arg6[%c49, %c0_40] : memref<264x128xbf16, #tpu.memory_space<vmem>>, vector<16x128xbf16>
    tpu.vector_store %arg6[%c49, %c0_40], %45 {strides = array<i32>} : memref<264x128xbf16, #tpu.memory_space<vmem>>, vector<16x128xbf16>,
    %c1_i32_41 = arith.constant 1 : i32
    %47 = arith.subi %0, %c1_i32_41 : i32
    %c3_i32 = arith.constant 3 : i32
    %48 = arith.addi %47, %c3_i32 : i32
    %c0_i32_42 = arith.constant 0 : i32
    %c15_i32_43 = arith.constant 15 : i32
    %49 = arith.maxsi %c0_i32_42, %48 : i32
    %50 = arith.minsi %c15_i32_43, %49 : i32
    %c0_44 = arith.constant 0 : index
    %51 = arith.index_cast %50 : i32 to index
    %c0_45 = arith.constant 0 : index
    %c0_46 = arith.constant 0 : index
    %52 = vector.load %arg2[%c0_44, %51, %c0_45, %c0_46] : memref<1x16x16x128xbf16, #tpu.memory_space<vmem>>, vector<1x1x16x128xbf16>
    %53 = vector.shape_cast %52 : vector<1x1x16x128xbf16> to vector<16x128xbf16>
    %c73 = arith.constant 73 : index
    %c0_47 = arith.constant 0 : index
    %54 = vector.load %arg6[%c73, %c0_47] : memref<264x128xbf16, #tpu.memory_space<vmem>>, vector<16x128xbf16>
    tpu.vector_store %arg6[%c73, %c0_47], %53 {strides = array<i32>} : memref<264x128xbf16, #tpu.memory_space<vmem>>, vector<16x128xbf16>,
    %c1_i32_48 = arith.constant 1 : i32
    %55 = arith.subi %0, %c1_i32_48 : i32
    %c4_i32 = arith.constant 4 : i32
    %56 = arith.addi %55, %c4_i32 : i32
    %c0_i32_49 = arith.constant 0 : i32
    %c15_i32_50 = arith.constant 15 : i32
    %57 = arith.maxsi %c0_i32_49, %56 : i32
    %58 = arith.minsi %c15_i32_50, %57 : i32
    %c0_51 = arith.constant 0 : index
    %59 = arith.index_cast %58 : i32 to index
    %c0_52 = arith.constant 0 : index
    %c0_53 = arith.constant 0 : index
    %60 = vector.load %arg2[%c0_51, %59, %c0_52, %c0_53] : memref<1x16x16x128xbf16, #tpu.memory_space<vmem>>, vector<1x1x16x128xbf16>
    %61 = vector.shape_cast %60 : vector<1x1x16x128xbf16> to vector<16x128xbf16>
    %c97 = arith.constant 97 : index
    %c0_54 = arith.constant 0 : index
    %62 = vector.load %arg6[%c97, %c0_54] : memref<264x128xbf16, #tpu.memory_space<vmem>>, vector<16x128xbf16>
    tpu.vector_store %arg6[%c97, %c0_54], %61 {strides = array<i32>} : memref<264x128xbf16, #tpu.memory_space<vmem>>, vector<16x128xbf16>,
    %c1_i32_55 = arith.constant 1 : i32
    %63 = arith.subi %0, %c1_i32_55 : i32
    %c5_i32 = arith.constant 5 : i32
    %64 = arith.addi %63, %c5_i32 : i32
    %c0_i32_56 = arith.constant 0 : i32
    %c15_i32_57 = arith.constant 15 : i32
    %65 = arith.maxsi %c0_i32_56, %64 : i32
    %66 = arith.minsi %c15_i32_57, %65 : i32
    %c0_58 = arith.constant 0 : index
    %67 = arith.index_cast %66 : i32 to index
    %c0_59 = arith.constant 0 : index
    %c0_60 = arith.constant 0 : index
    %68 = vector.load %arg2[%c0_58, %67, %c0_59, %c0_60] : memref<1x16x16x128xbf16, #tpu.memory_space<vmem>>, vector<1x1x16x128xbf16>
    %69 = vector.shape_cast %68 : vector<1x1x16x128xbf16> to vector<16x128xbf16>
    %c121 = arith.constant 121 : index
    %c0_61 = arith.constant 0 : index
    %70 = vector.load %arg6[%c121, %c0_61] : memref<264x128xbf16, #tpu.memory_space<vmem>>, vector<16x128xbf16>
    tpu.vector_store %arg6[%c121, %c0_61], %69 {strides = array<i32>} : memref<264x128xbf16, #tpu.memory_space<vmem>>, vector<16x128xbf16>,
    %c1_i32_62 = arith.constant 1 : i32
    %71 = arith.subi %0, %c1_i32_62 : i32
    %c6_i32 = arith.constant 6 : i32
    %72 = arith.addi %71, %c6_i32 : i32
    %c0_i32_63 = arith.constant 0 : i32
    %c15_i32_64 = arith.constant 15 : i32
    %73 = arith.maxsi %c0_i32_63, %72 : i32
    %74 = arith.minsi %c15_i32_64, %73 : i32
    %c0_65 = arith.constant 0 : index
    %75 = arith.index_cast %74 : i32 to index
    %c0_66 = arith.constant 0 : index
    %c0_67 = arith.constant 0 : index
    %76 = vector.load %arg2[%c0_65, %75, %c0_66, %c0_67] : memref<1x16x16x128xbf16, #tpu.memory_space<vmem>>, vector<1x1x16x128xbf16>
    %77 = vector.shape_cast %76 : vector<1x1x16x128xbf16> to vector<16x128xbf16>
    %c145 = arith.constant 145 : index
    %c0_68 = arith.constant 0 : index
    %78 = vector.load %arg6[%c145, %c0_68] : memref<264x128xbf16, #tpu.memory_space<vmem>>, vector<16x128xbf16>
    tpu.vector_store %arg6[%c145, %c0_68], %77 {strides = array<i32>} : memref<264x128xbf16, #tpu.memory_space<vmem>>, vector<16x128xbf16>,
    %c1_i32_69 = arith.constant 1 : i32
    %79 = arith.subi %0, %c1_i32_69 : i32
    %c7_i32 = arith.constant 7 : i32
    %80 = arith.addi %79, %c7_i32 : i32
    %c0_i32_70 = arith.constant 0 : i32
    %c15_i32_71 = arith.constant 15 : i32
    %81 = arith.maxsi %c0_i32_70, %80 : i32
    %82 = arith.minsi %c15_i32_71, %81 : i32
    %c0_72 = arith.constant 0 : index
    %83 = arith.index_cast %82 : i32 to index
    %c0_73 = arith.constant 0 : index
    %c0_74 = arith.constant 0 : index
    %84 = vector.load %arg2[%c0_72, %83, %c0_73, %c0_74] : memref<1x16x16x128xbf16, #tpu.memory_space<vmem>>, vector<1x1x16x128xbf16>
    %85 = vector.shape_cast %84 : vector<1x1x16x128xbf16> to vector<16x128xbf16>
    %c169 = arith.constant 169 : index
    %c0_75 = arith.constant 0 : index
    %86 = vector.load %arg6[%c169, %c0_75] : memref<264x128xbf16, #tpu.memory_space<vmem>>, vector<16x128xbf16>
    tpu.vector_store %arg6[%c169, %c0_75], %85 {strides = array<i32>} : memref<264x128xbf16, #tpu.memory_space<vmem>>, vector<16x128xbf16>,
    %c1_i32_76 = arith.constant 1 : i32
    %87 = arith.subi %0, %c1_i32_76 : i32
    %c8_i32_77 = arith.constant 8 : i32
    %88 = arith.addi %87, %c8_i32_77 : i32
    %c0_i32_78 = arith.constant 0 : i32
    %c15_i32_79 = arith.constant 15 : i32
    %89 = arith.maxsi %c0_i32_78, %88 : i32
    %90 = arith.minsi %c15_i32_79, %89 : i32
    %c0_80 = arith.constant 0 : index
    %91 = arith.index_cast %90 : i32 to index
    %c0_81 = arith.constant 0 : index
    %c0_82 = arith.constant 0 : index
    %92 = vector.load %arg2[%c0_80, %91, %c0_81, %c0_82] : memref<1x16x16x128xbf16, #tpu.memory_space<vmem>>, vector<1x1x16x128xbf16>
    %93 = vector.shape_cast %92 : vector<1x1x16x128xbf16> to vector<16x128xbf16>
    %c193 = arith.constant 193 : index
    %c0_83 = arith.constant 0 : index
    %94 = vector.load %arg6[%c193, %c0_83] : memref<264x128xbf16, #tpu.memory_space<vmem>>, vector<16x128xbf16>
    tpu.vector_store %arg6[%c193, %c0_83], %93 {strides = array<i32>} : memref<264x128xbf16, #tpu.memory_space<vmem>>, vector<16x128xbf16>,
    %c1_i32_84 = arith.constant 1 : i32
    %95 = arith.subi %0, %c1_i32_84 : i32
    %c9_i32 = arith.constant 9 : i32
    %96 = arith.addi %95, %c9_i32 : i32
    %c0_i32_85 = arith.constant 0 : i32
    %c15_i32_86 = arith.constant 15 : i32
    %97 = arith.maxsi %c0_i32_85, %96 : i32
    %98 = arith.minsi %c15_i32_86, %97 : i32
    %c0_87 = arith.constant 0 : index
    %99 = arith.index_cast %98 : i32 to index
    %c0_88 = arith.constant 0 : index
    %c0_89 = arith.constant 0 : index
    %100 = vector.load %arg2[%c0_87, %99, %c0_88, %c0_89] : memref<1x16x16x128xbf16, #tpu.memory_space<vmem>>, vector<1x1x16x128xbf16>
    %101 = vector.shape_cast %100 : vector<1x1x16x128xbf16> to vector<16x128xbf16>
    %c217 = arith.constant 217 : index
    %c0_90 = arith.constant 0 : index
    %102 = vector.load %arg6[%c217, %c0_90] : memref<264x128xbf16, #tpu.memory_space<vmem>>, vector<16x128xbf16>
    tpu.vector_store %arg6[%c217, %c0_90], %101 {strides = array<i32>} : memref<264x128xbf16, #tpu.memory_space<vmem>>, vector<16x128xbf16>,
    %c0_i32_91 = arith.constant 0 : i32
    %103 = arith.cmpi eq, %arg1, %c0_i32_91 : i32
    %104 = arith.extui %103 : i1 to i32
    %c0_i32_92 = arith.constant 0 : i32
    %105 = arith.cmpi ne, %104, %c0_i32_92 : i32
    scf.if %105 {
      %cst_148 = arith.constant 0.000000e+00 : bf16
      %168 = vector.broadcast %cst_148 : bf16 to vector<16x128xbf16>
      %c1_149 = arith.constant 1 : index
      %c0_150 = arith.constant 0 : index
      %169 = vector.load %arg6[%c1_149, %c0_150] : memref<264x128xbf16, #tpu.memory_space<vmem>>, vector<16x128xbf16>
      tpu.vector_store %arg6[%c1_149, %c0_150], %168 {strides = array<i32>} : memref<264x128xbf16, #tpu.memory_space<vmem>>, vector<16x128xbf16>,
    } else {
    }
    %c1_i32_93 = arith.constant 1 : i32
    %106 = arith.cmpi eq, %arg1, %c1_i32_93 : i32
    %107 = arith.extui %106 : i1 to i32
    %c0_i32_94 = arith.constant 0 : i32
    %108 = arith.cmpi ne, %107, %c0_i32_94 : i32
    scf.if %108 {
      %cst_148 = arith.constant 0.000000e+00 : bf16
      %168 = vector.broadcast %cst_148 : bf16 to vector<16x128xbf16>
      %c217_149 = arith.constant 217 : index
      %c0_150 = arith.constant 0 : index
      %169 = vector.load %arg6[%c217_149, %c0_150] : memref<264x128xbf16, #tpu.memory_space<vmem>>, vector<16x128xbf16>
      tpu.vector_store %arg6[%c217_149, %c0_150], %168 {strides = array<i32>} : memref<264x128xbf16, #tpu.memory_space<vmem>>, vector<16x128xbf16>,
    } else {
    }
    %cst_95 = arith.constant 0.000000e+00 : f32
    %109 = vector.broadcast %cst_95 : f32 to vector<192x128xf32>
    %c0_96 = arith.constant 0 : index
    %c0_97 = arith.constant 0 : index
    %110 = vector.load %arg6[%c0_96, %c0_97] : memref<264x128xbf16, #tpu.memory_space<vmem>>, vector<192x128xbf16>
    %c0_98 = arith.constant 0 : index
    %c0_99 = arith.constant 0 : index
    %c0_100 = arith.constant 0 : index
    %111 = vector.load %arg3[%c0_98, %c0_99, %c0_100] : memref<9x128x128xbf16, #tpu.memory_space<vmem>>, vector<1x128x128xbf16>
    %112 = vector.shape_cast %111 : vector<1x128x128xbf16> to vector<128x128xbf16>
    %cst_101 = arith.constant dense<0.000000e+00> : vector<192x128xf32>
    %113 = tpu.matmul %110, %112, %cst_101 {dimension_numbers = #tpu.dot_dimension_numbers<[1], [0], [0], [1], [0, 0, 1, 1], [], []>} : vector<192x128xbf16>, vector<128x128xbf16>, vector<192x128xf32> -> vector<192x128xf32>
    %114 = arith.addf %109, %113 : vector<192x128xf32>
    %c1_102 = arith.constant 1 : index
    %c0_103 = arith.constant 0 : index
    %115 = vector.load %arg6[%c1_102, %c0_103] : memref<264x128xbf16, #tpu.memory_space<vmem>>, vector<192x128xbf16>
    %c1_104 = arith.constant 1 : index
    %c0_105 = arith.constant 0 : index
    %c0_106 = arith.constant 0 : index
    %116 = vector.load %arg3[%c1_104, %c0_105, %c0_106] : memref<9x128x128xbf16, #tpu.memory_space<vmem>>, vector<1x128x128xbf16>
    %117 = vector.shape_cast %116 : vector<1x128x128xbf16> to vector<128x128xbf16>
    %cst_107 = arith.constant dense<0.000000e+00> : vector<192x128xf32>
    %118 = tpu.matmul %115, %117, %cst_107 {dimension_numbers = #tpu.dot_dimension_numbers<[1], [0], [0], [1], [0, 0, 1, 1], [], []>} : vector<192x128xbf16>, vector<128x128xbf16>, vector<192x128xf32> -> vector<192x128xf32>
    %119 = arith.addf %114, %118 : vector<192x128xf32>
    %c2 = arith.constant 2 : index
    %c0_108 = arith.constant 0 : index
    %120 = vector.load %arg6[%c2, %c0_108] : memref<264x128xbf16, #tpu.memory_space<vmem>>, vector<192x128xbf16>
    %c2_109 = arith.constant 2 : index
    %c0_110 = arith.constant 0 : index
    %c0_111 = arith.constant 0 : index
    %121 = vector.load %arg3[%c2_109, %c0_110, %c0_111] : memref<9x128x128xbf16, #tpu.memory_space<vmem>>, vector<1x128x128xbf16>
    %122 = vector.shape_cast %121 : vector<1x128x128xbf16> to vector<128x128xbf16>
    %cst_112 = arith.constant dense<0.000000e+00> : vector<192x128xf32>
    %123 = tpu.matmul %120, %122, %cst_112 {dimension_numbers = #tpu.dot_dimension_numbers<[1], [0], [0], [1], [0, 0, 1, 1], [], []>} : vector<192x128xbf16>, vector<128x128xbf16>, vector<192x128xf32> -> vector<192x128xf32>
    %124 = arith.addf %119, %123 : vector<192x128xf32>
    %c24 = arith.constant 24 : index
    %c0_113 = arith.constant 0 : index
    %125 = vector.load %arg6[%c24, %c0_113] : memref<264x128xbf16, #tpu.memory_space<vmem>>, vector<192x128xbf16>
    %c3 = arith.constant 3 : index
    %c0_114 = arith.constant 0 : index
    %c0_115 = arith.constant 0 : index
    %126 = vector.load %arg3[%c3, %c0_114, %c0_115] : memref<9x128x128xbf16, #tpu.memory_space<vmem>>, vector<1x128x128xbf16>
    %127 = vector.shape_cast %126 : vector<1x128x128xbf16> to vector<128x128xbf16>
    %cst_116 = arith.constant dense<0.000000e+00> : vector<192x128xf32>
    %128 = tpu.matmul %125, %127, %cst_116 {dimension_numbers = #tpu.dot_dimension_numbers<[1], [0], [0], [1], [0, 0, 1, 1], [], []>} : vector<192x128xbf16>, vector<128x128xbf16>, vector<192x128xf32> -> vector<192x128xf32>
    %129 = arith.addf %124, %128 : vector<192x128xf32>
    %c25_117 = arith.constant 25 : index
    %c0_118 = arith.constant 0 : index
    %130 = vector.load %arg6[%c25_117, %c0_118] : memref<264x128xbf16, #tpu.memory_space<vmem>>, vector<192x128xbf16>
    %c4 = arith.constant 4 : index
    %c0_119 = arith.constant 0 : index
    %c0_120 = arith.constant 0 : index
    %131 = vector.load %arg3[%c4, %c0_119, %c0_120] : memref<9x128x128xbf16, #tpu.memory_space<vmem>>, vector<1x128x128xbf16>
    %132 = vector.shape_cast %131 : vector<1x128x128xbf16> to vector<128x128xbf16>
    %cst_121 = arith.constant dense<0.000000e+00> : vector<192x128xf32>
    %133 = tpu.matmul %130, %132, %cst_121 {dimension_numbers = #tpu.dot_dimension_numbers<[1], [0], [0], [1], [0, 0, 1, 1], [], []>} : vector<192x128xbf16>, vector<128x128xbf16>, vector<192x128xf32> -> vector<192x128xf32>
    %134 = arith.addf %129, %133 : vector<192x128xf32>
    %c26 = arith.constant 26 : index
    %c0_122 = arith.constant 0 : index
    %135 = vector.load %arg6[%c26, %c0_122] : memref<264x128xbf16, #tpu.memory_space<vmem>>, vector<192x128xbf16>
    %c5 = arith.constant 5 : index
    %c0_123 = arith.constant 0 : index
    %c0_124 = arith.constant 0 : index
    %136 = vector.load %arg3[%c5, %c0_123, %c0_124] : memref<9x128x128xbf16, #tpu.memory_space<vmem>>, vector<1x128x128xbf16>
    %137 = vector.shape_cast %136 : vector<1x128x128xbf16> to vector<128x128xbf16>
    %cst_125 = arith.constant dense<0.000000e+00> : vector<192x128xf32>
    %138 = tpu.matmul %135, %137, %cst_125 {dimension_numbers = #tpu.dot_dimension_numbers<[1], [0], [0], [1], [0, 0, 1, 1], [], []>} : vector<192x128xbf16>, vector<128x128xbf16>, vector<192x128xf32> -> vector<192x128xf32>
    %139 = arith.addf %134, %138 : vector<192x128xf32>
    %c48 = arith.constant 48 : index
    %c0_126 = arith.constant 0 : index
    %140 = vector.load %arg6[%c48, %c0_126] : memref<264x128xbf16, #tpu.memory_space<vmem>>, vector<192x128xbf16>
    %c6 = arith.constant 6 : index
    %c0_127 = arith.constant 0 : index
    %c0_128 = arith.constant 0 : index
    %141 = vector.load %arg3[%c6, %c0_127, %c0_128] : memref<9x128x128xbf16, #tpu.memory_space<vmem>>, vector<1x128x128xbf16>
    %142 = vector.shape_cast %141 : vector<1x128x128xbf16> to vector<128x128xbf16>
    %cst_129 = arith.constant dense<0.000000e+00> : vector<192x128xf32>
    %143 = tpu.matmul %140, %142, %cst_129 {dimension_numbers = #tpu.dot_dimension_numbers<[1], [0], [0], [1], [0, 0, 1, 1], [], []>} : vector<192x128xbf16>, vector<128x128xbf16>, vector<192x128xf32> -> vector<192x128xf32>
    %144 = arith.addf %139, %143 : vector<192x128xf32>
    %c49_130 = arith.constant 49 : index
    %c0_131 = arith.constant 0 : index
    %145 = vector.load %arg6[%c49_130, %c0_131] : memref<264x128xbf16, #tpu.memory_space<vmem>>, vector<192x128xbf16>
    %c7 = arith.constant 7 : index
    %c0_132 = arith.constant 0 : index
    %c0_133 = arith.constant 0 : index
    %146 = vector.load %arg3[%c7, %c0_132, %c0_133] : memref<9x128x128xbf16, #tpu.memory_space<vmem>>, vector<1x128x128xbf16>
    %147 = vector.shape_cast %146 : vector<1x128x128xbf16> to vector<128x128xbf16>
    %cst_134 = arith.constant dense<0.000000e+00> : vector<192x128xf32>
    %148 = tpu.matmul %145, %147, %cst_134 {dimension_numbers = #tpu.dot_dimension_numbers<[1], [0], [0], [1], [0, 0, 1, 1], [], []>} : vector<192x128xbf16>, vector<128x128xbf16>, vector<192x128xf32> -> vector<192x128xf32>
    %149 = arith.addf %144, %148 : vector<192x128xf32>
    %c50 = arith.constant 50 : index
    %c0_135 = arith.constant 0 : index
    %150 = vector.load %arg6[%c50, %c0_135] : memref<264x128xbf16, #tpu.memory_space<vmem>>, vector<192x128xbf16>
    %c8 = arith.constant 8 : index
    %c0_136 = arith.constant 0 : index
    %c0_137 = arith.constant 0 : index
    %151 = vector.load %arg3[%c8, %c0_136, %c0_137] : memref<9x128x128xbf16, #tpu.memory_space<vmem>>, vector<1x128x128xbf16>
    %152 = vector.shape_cast %151 : vector<1x128x128xbf16> to vector<128x128xbf16>
    %cst_138 = arith.constant dense<0.000000e+00> : vector<192x128xf32>
    %153 = tpu.matmul %150, %152, %cst_138 {dimension_numbers = #tpu.dot_dimension_numbers<[1], [0], [0], [1], [0, 0, 1, 1], [], []>} : vector<192x128xbf16>, vector<128x128xbf16>, vector<192x128xf32> -> vector<192x128xf32>
    %154 = arith.addf %149, %153 : vector<192x128xf32>
    %c0_139 = arith.constant 0 : index
    %c0_140 = arith.constant 0 : index
    %155 = vector.load %arg4[%c0_139, %c0_140] : memref<2x128xf32, #tpu.memory_space<vmem>>, vector<1x128xf32>
    %156 = vector.broadcast %155 : vector<1x128xf32> to vector<192x128xf32>
    %157 = arith.mulf %154, %156 : vector<192x128xf32>
    %c1_141 = arith.constant 1 : index
    %c0_142 = arith.constant 0 : index
    %158 = vector.load %arg4[%c1_141, %c0_142] : memref<2x128xf32, #tpu.memory_space<vmem>>, vector<1x128xf32>
    %159 = vector.broadcast %158 : vector<1x128xf32> to vector<192x128xf32>
    %160 = arith.addf %157, %159 : vector<192x128xf32>
    %cst_143 = arith.constant 0.000000e+00 : f32
    %161 = vector.broadcast %cst_143 : f32 to vector<192x128xf32>
    %162 = arith.maximumf %160, %161 : vector<192x128xf32>
    %163 = vector.shape_cast %162 : vector<192x128xf32> to vector<8x24x128xf32>
    %164 = vector.extract_strided_slice %163 {offsets = [0, 0, 0], sizes = [8, 16, 128], strides = [1, 1, 1]} : vector<8x24x128xf32> to vector<8x16x128xf32>
    %c0_144 = arith.constant 0 : index
    %c0_145 = arith.constant 0 : index
    %c0_146 = arith.constant 0 : index
    %c0_147 = arith.constant 0 : index
    %165 = vector.load %arg5[%c0_144, %c0_145, %c0_146, %c0_147] : memref<1x8x16x128xf32, #tpu.memory_space<vmem>>, vector<1x8x16x128xf32>
    %166 = vector.shape_cast %165 : vector<1x8x16x128xf32> to vector<8x16x128xf32>
    %167 = vector.shape_cast %164 : vector<8x16x128xf32> to vector<1x8x16x128xf32>
    tpu.vector_store %arg5[%c0_144, %c0_145, %c0_146, %c0_147], %167 {strides = array<i32>} : memref<1x8x16x128xf32, #tpu.memory_space<vmem>>, vector<1x8x16x128xf32>,
    return
  }
  func.func @transform_0(%arg0: i32, %arg1: i32) -> (i32, i32, i32, i32) {
    %c0_i32 = arith.constant 0 : i32
    %c0_i32_0 = arith.constant 0 : i32
    %c0_i32_1 = arith.constant 0 : i32
    %c0_i32_2 = arith.constant 0 : i32
    return %arg0, %c0_i32, %c0_i32_0, %c0_i32_1 : i32, i32, i32, i32
  }
  func.func @transform_1(%arg0: i32, %arg1: i32) -> (i32, i32, i32) {
    %c0_i32 = arith.constant 0 : i32
    %c0_i32_0 = arith.constant 0 : i32
    %c0_i32_1 = arith.constant 0 : i32
    %c0_i32_2 = arith.constant 0 : i32
    return %c0_i32, %c0_i32_0, %c0_i32_1 : i32, i32, i32
  }
  func.func @transform_2(%arg0: i32, %arg1: i32) -> (i32, i32) {
    %c0_i32 = arith.constant 0 : i32
    %c0_i32_0 = arith.constant 0 : i32
    %c0_i32_1 = arith.constant 0 : i32
    return %c0_i32, %c0_i32_0 : i32, i32
  }
  func.func @transform_3(%arg0: i32, %arg1: i32) -> (i32, i32, i32, i32) {
    %c0_i32 = arith.constant 0 : i32
    %c0_i32_0 = arith.constant 0 : i32
    %c0_i32_1 = arith.constant 0 : i32
    return %arg0, %arg1, %c0_i32, %c0_i32_0 : i32, i32, i32, i32
  }
}

</mosaic_0001>

<llo_original>
// kernel: tile.8
$region0: #{tile.8}
  #allocation0 [shape = 's32[1]{0}', space=sflag, size = 0x4, scoped, tag = 'scoped memory for tile.8']
  %s0 = inlined_call_operand.vmem [shape: f32[128], index: 0, kind: input, shape index: {}]
  %s1 = inlined_call_operand.vmem [shape: f32[2,128], index: 1, kind: output, shape index: {}]
  // Predicated region
  $region2: #{tile.8} parent=0 // pred_check
    _
  $region3: #{tile.8} parent=0 // pred_check_branch
    %3 = sbr.rel (0) target = $region5
  $region4: #{tile.8} parent=0 // pred_region
    _
  $region5: #{tile.8} parent=0 // pred_fallthru
    _
  %v4 = vld [vmem:[%s0] ss:$0 sm:$0xff]
  %5 = vst [vmem:[%s1] sm:$0x3] %v4

// kernel: upsampler_forward.3
$region0: #{upsampler_forward.3}
  #allocation0 [shape = 'u32[]', space=smem, size = 0x4, offset = 0x4, fixed_abs, tag = 'smem constant byte address 0x4 - core index']
  #allocation1 [shape = 'u32[72,128]{1,0:T(1,128)}', space=vmem, size = 0x9000, scoped, tag = 'internal scratch']
  %s0 = inlined_call_operand.vmem [shape: bf16[128,256], index: 0, kind: input, shape index: {}]
  %s1 = inlined_call_operand.vmem [shape: bf16[2,256,256], index: 1, kind: input, shape index: {}]
  %s2 = inlined_call_operand.vmem [shape: f32[1,256], index: 2, kind: input, shape index: {}]
  %s3 = inlined_call_operand.vmem [shape: bf16[16,2,8,256], index: 3, kind: output, shape index: {}]
  %s4 = sld [smem:[#allocation0]]
  $region22: #{upsampler_forward.3} parent=0
    _
  %s6 = ssub.s32 1, %s4
  %s7 = scalar_select 0, %s6, %s4
  // Predicated region
  $region2: #{upsampler_forward.3} parent=0 // pred_check
    _
  $region3: #{upsampler_forward.3} parent=0 // pred_check_branch
    %9 = sbr.rel (0) target = $region5
  $region4: #{upsampler_forward.3} parent=0 // pred_region
    _
  $region5: #{upsampler_forward.3} parent=0 // pred_fallthru
    _
  // Predicated region
  $region6: #{upsampler_forward.3} parent=0 // pred_check
    _
  $region7: #{upsampler_forward.3} parent=0 // pred_check_branch
    %11 = sbr.rel (0) target = $region9
  $region8: #{upsampler_forward.3} parent=0 // pred_region
    _
  $region9: #{upsampler_forward.3} parent=0 // pred_fallthru
    _
  // Predicated region
  $region10: #{upsampler_forward.3} parent=0 // pred_check
    _
  $region11: #{upsampler_forward.3} parent=0 // pred_check_branch
    %13 = sbr.rel (0) target = $region13
  $region12: #{upsampler_forward.3} parent=0 // pred_region
    _
  $region13: #{upsampler_forward.3} parent=0 // pred_fallthru
    _
  %v14 = vld [vmem:[%s0] sm:$0xff]
  %v15 = vld [vmem:[%s0 + $0x8] sm:$0xff]
  %v16 = vld [vmem:[%s0 + $0x10] sm:$0xff]
  %v17 = vld [vmem:[%s0 + $0x18] sm:$0xff]
  %v18 = vld [vmem:[%s0 + $0x20] sm:$0xff]
  %v19 = vld [vmem:[%s0 + $0x28] sm:$0xff]
  %v20 = vld [vmem:[%s0 + $0x30] sm:$0xff]
  %v21 = vld [vmem:[%s0 + $0x38] sm:$0xff]
  %v22 = vld [vmem:[%s0 + $0x40] sm:$0xff]
  %v23 = vld [vmem:[%s0 + $0x48] sm:$0xff]
  %v24 = vld [vmem:[%s0 + $0x50] sm:$0xff]
  %v25 = vld [vmem:[%s0 + $0x58] sm:$0xff]
  %v26 = vld [vmem:[%s0 + $0x60] sm:$0xff]
  %v27 = vld [vmem:[%s0 + $0x68] sm:$0xff]
  %v28 = vld [vmem:[%s0 + $0x70] sm:$0xff]
  %v29 = vld [vmem:[%s0 + $0x78] sm:$0xff]
  %v30 = vld [vmem:[%s2] sm:$0x3]
  %v31 = vld [vmem:[%s1] sm:$0xff]
  %v32 = vld [vmem:[%s1 + $0x8] sm:$0xff]
  %v33 = vld [vmem:[%s1 + $0x10] sm:$0xff]
  %v34 = vld [vmem:[%s1 + $0x18] sm:$0xff]
  %v35 = vld [vmem:[%s1 + $0x20] sm:$0xff]
  %v36 = vld [vmem:[%s1 + $0x28] sm:$0xff]
  %v37 = vld [vmem:[%s1 + $0x30] sm:$0xff]
  %v38 = vld [vmem:[%s1 + $0x38] sm:$0xff]
  %v39 = vld [vmem:[%s1 + $0x40] sm:$0xff]
  %v40 = vld [vmem:[%s1 + $0x48] sm:$0xff]
  %v41 = vld [vmem:[%s1 + $0x50] sm:$0xff]
  %v42 = vld [vmem:[%s1 + $0x58] sm:$0xff]
  %v43 = vld [vmem:[%s1 + $0x60] sm:$0xff]
  %v44 = vld [vmem:[%s1 + $0x68] sm:$0xff]
  %v45 = vld [vmem:[%s1 + $0x70] sm:$0xff]
  %v46 = vld [vmem:[%s1 + $0x78] sm:$0xff]
  %v47 = vld [vmem:[%s1 + $0x80] sm:$0xff]
  %v48 = vld [vmem:[%s1 + $0x88] sm:$0xff]
  %v49 = vld [vmem:[%s1 + $0x90] sm:$0xff]
  %v50 = vld [vmem:[%s1 + $0x98] sm:$0xff]
  %v51 = vld [vmem:[%s1 + $0xa0] sm:$0xff]
  %v52 = vld [vmem:[%s1 + $0xa8] sm:$0xff]
  %v53 = vld [vmem:[%s1 + $0xb0] sm:$0xff]
  %v54 = vld [vmem:[%s1 + $0xb8] sm:$0xff]
  %v55 = vld [vmem:[%s1 + $0xc0] sm:$0xff]
  %v56 = vld [vmem:[%s1 + $0xc8] sm:$0xff]
  %v57 = vld [vmem:[%s1 + $0xd0] sm:$0xff]
  %v58 = vld [vmem:[%s1 + $0xd8] sm:$0xff]
  %v59 = vld [vmem:[%s1 + $0xe0] sm:$0xff]
  %v60 = vld [vmem:[%s1 + $0xe8] sm:$0xff]
  %v61 = vld [vmem:[%s1 + $0xf0] sm:$0xff]
  %v62 = vld [vmem:[%s1 + $0xf8] sm:$0xff]
  %v64 = vperm.slane %v30, 0
  %v65 = vperm.slane %v30, 1
  %v84 = vunpack.c.l.b16 %v14
  %v85 = vunpack.c.h.b16 %v14
  %v86 = vunpack.c.l.b16 %v15
  %v87 = vunpack.c.h.b16 %v15
  %v88 = vunpack.c.l.b16 %v16
  %v89 = vunpack.c.h.b16 %v16
  %v90 = vunpack.c.l.b16 %v17
  %v91 = vunpack.c.h.b16 %v17
  %v92 = vunpack.c.l.b16 %v18
  %v93 = vunpack.c.h.b16 %v18
  %v94 = vunpack.c.l.b16 %v19
  %v95 = vunpack.c.h.b16 %v19
  %v96 = vunpack.c.l.b16 %v20
  %v97 = vunpack.c.h.b16 %v20
  %v98 = vunpack.c.l.b16 %v21
  %v99 = vunpack.c.h.b16 %v21
  %v100 = vunpack.c.l.b16 %v22
  %v101 = vunpack.c.h.b16 %v22
  %v102 = vunpack.c.l.b16 %v23
  %v103 = vunpack.c.h.b16 %v23
  %v104 = vunpack.c.l.b16 %v24
  %v105 = vunpack.c.h.b16 %v24
  %v106 = vunpack.c.l.b16 %v25
  %v107 = vunpack.c.h.b16 %v25
  %v108 = vunpack.c.l.b16 %v26
  %v109 = vunpack.c.h.b16 %v26
  %v110 = vunpack.c.l.b16 %v27
  %v111 = vunpack.c.h.b16 %v27
  %v112 = vunpack.c.l.b16 %v28
  %v113 = vunpack.c.h.b16 %v28
  %v114 = vunpack.c.l.b16 %v29
  %v115 = vunpack.c.h.b16 %v29
  %v116 = vpack.c.b16 %v86, %v84
  %v117 = vpack.c.b16 %v87, %v85
  %v118 = vpack.c.b16 %v90, %v88
  %v119 = vpack.c.b16 %v91, %v89
  %v120 = vpack.c.b16 %v94, %v92
  %v121 = vpack.c.b16 %v95, %v93
  %v122 = vpack.c.b16 %v98, %v96
  %v123 = vpack.c.b16 %v99, %v97
  %v124 = vpack.c.b16 %v102, %v100
  %v125 = vpack.c.b16 %v103, %v101
  %v126 = vpack.c.b16 %v106, %v104
  %v127 = vpack.c.b16 %v107, %v105
  %v128 = vpack.c.b16 %v110, %v108
  %v129 = vpack.c.b16 %v111, %v109
  %v130 = vpack.c.b16 %v114, %v112
  %v131 = vpack.c.b16 %v115, %v113
  %v180 = vunpack.c.l.b16 %v31
  %v181 = vunpack.c.h.b16 %v31
  %v182 = vunpack.c.l.b16 %v32
  %v183 = vunpack.c.h.b16 %v32
  %v184 = vunpack.c.l.b16 %v33
  %v185 = vunpack.c.h.b16 %v33
  %v186 = vunpack.c.l.b16 %v34
  %v187 = vunpack.c.h.b16 %v34
  %v188 = vunpack.c.l.b16 %v35
  %v189 = vunpack.c.h.b16 %v35
  %v190 = vunpack.c.l.b16 %v36
  %v191 = vunpack.c.h.b16 %v36
  %v192 = vunpack.c.l.b16 %v37
  %v193 = vunpack.c.h.b16 %v37
  %v194 = vunpack.c.l.b16 %v38
  %v195 = vunpack.c.h.b16 %v38
  %v196 = vunpack.c.l.b16 %v39
  %v197 = vunpack.c.h.b16 %v39
  %v198 = vunpack.c.l.b16 %v40
  %v199 = vunpack.c.h.b16 %v40
  %v200 = vunpack.c.l.b16 %v41
  %v201 = vunpack.c.h.b16 %v41
  %v202 = vunpack.c.l.b16 %v42
  %v203 = vunpack.c.h.b16 %v42
  %v204 = vunpack.c.l.b16 %v43
  %v205 = vunpack.c.h.b16 %v43
  %v206 = vunpack.c.l.b16 %v44
  %v207 = vunpack.c.h.b16 %v44
  %v208 = vunpack.c.l.b16 %v45
  %v209 = vunpack.c.h.b16 %v45
  %v210 = vunpack.c.l.b16 %v46
  %v211 = vunpack.c.h.b16 %v46
  %v212 = vunpack.c.l.b16 %v47
  %v213 = vunpack.c.h.b16 %v47
  %v214 = vunpack.c.l.b16 %v48
  %v215 = vunpack.c.h.b16 %v48
  %v216 = vunpack.c.l.b16 %v49
  %v217 = vunpack.c.h.b16 %v49
  %v218 = vunpack.c.l.b16 %v50
  %v219 = vunpack.c.h.b16 %v50
  %v220 = vunpack.c.l.b16 %v51
  %v221 = vunpack.c.h.b16 %v51
  %v222 = vunpack.c.l.b16 %v52
  %v223 = vunpack.c.h.b16 %v52
  %v224 = vunpack.c.l.b16 %v53
  %v225 = vunpack.c.h.b16 %v53
  %v226 = vunpack.c.l.b16 %v54
  %v227 = vunpack.c.h.b16 %v54
  %v228 = vunpack.c.l.b16 %v55
  %v229 = vunpack.c.h.b16 %v55
  %v230 = vunpack.c.l.b16 %v56
  %v231 = vunpack.c.h.b16 %v56
  %v232 = vunpack.c.l.b16 %v57
  %v233 = vunpack.c.h.b16 %v57
  %v234 = vunpack.c.l.b16 %v58
  %v235 = vunpack.c.h.b16 %v58
  %v236 = vunpack.c.l.b16 %v59
  %v237 = vunpack.c.h.b16 %v59
  %v238 = vunpack.c.l.b16 %v60
  %v239 = vunpack.c.h.b16 %v60
  %v240 = vunpack.c.l.b16 %v61
  %v241 = vunpack.c.h.b16 %v61
  %v242 = vunpack.c.l.b16 %v62
  %v243 = vunpack.c.h.b16 %v62
  %v244 = vpack.c.b16 %v182, %v180
  %v245 = vpack.c.b16 %v183, %v181
  %v246 = vpack.c.b16 %v186, %v184
  %v247 = vpack.c.b16 %v187, %v185
  %v248 = vpack.c.b16 %v190, %v188
  %v249 = vpack.c.b16 %v191, %v189
  %v250 = vpack.c.b16 %v194, %v192
  %v251 = vpack.c.b16 %v195, %v193
  %v252 = vpack.c.b16 %v198, %v196
  %v253 = vpack.c.b16 %v199, %v197
  %v254 = vpack.c.b16 %v202, %v200
  %v255 = vpack.c.b16 %v203, %v201
  %v256 = vpack.c.b16 %v206, %v204
  %v257 = vpack.c.b16 %v207, %v205
  %v258 = vpack.c.b16 %v210, %v208
  %v259 = vpack.c.b16 %v211, %v209
  %v260 = vpack.c.b16 %v214, %v212
  %v261 = vpack.c.b16 %v215, %v213
  %v262 = vpack.c.b16 %v218, %v216
  %v263 = vpack.c.b16 %v219, %v217
  %v264 = vpack.c.b16 %v222, %v220
  %v265 = vpack.c.b16 %v223, %v221
  %v266 = vpack.c.b16 %v226, %v224
  %v267 = vpack.c.b16 %v227, %v225
  %v268 = vpack.c.b16 %v230, %v228
  %v269 = vpack.c.b16 %v231, %v229
  %v270 = vpack.c.b16 %v234, %v232
  %v271 = vpack.c.b16 %v235, %v233
  %v272 = vpack.c.b16 %v238, %v236
  %v273 = vpack.c.b16 %v239, %v237
  %v274 = vpack.c.b16 %v242, %v240
  %v275 = vpack.c.b16 %v243, %v241
  %308 = vmatpush.bf16.msra.mxu0 %v258
  %309 = vmatpush.bf16.msra.mxu0 %v256
  %310 = vmatpush.bf16.msra.mxu0 %v254
  %311 = vmatpush.bf16.msra.mxu0 %v252
  %312 = vmatpush.bf16.msra.mxu0 %v250
  %313 = vmatpush.bf16.msra.mxu0 %v248
  %314 = vmatpush.bf16.msra.mxu0 %v246
  %315 = vmatpush.bf16.msra.mxu0 %v244
  %316 = vmatmul.bf16.gmra.mxu0 %v116
  %v317 = vpop.f32.mrf.mxu0
  %v318 = vadd.f32 %v64, %v317
  %v319 = vpop.f32.mrf.mxu0
  %v320 = vadd.f32 %v64, %v319
  %321 = vmatmul.bf16.gmra.mxu0 %v118
  %v322 = vpop.f32.mrf.mxu0
  %v323 = vadd.f32 %v64, %v322
  %v324 = vpop.f32.mrf.mxu0
  %v325 = vadd.f32 %v64, %v324
  %326 = vmatmul.bf16.gmra.mxu0 %v120
  %v327 = vpop.f32.mrf.mxu0
  %v328 = vadd.f32 %v64, %v327
  %v329 = vpop.f32.mrf.mxu0
  %v330 = vadd.f32 %v64, %v329
  %331 = vmatmul.bf16.gmra.mxu0 %v122
  %v332 = vpop.f32.mrf.mxu0
  %v333 = vadd.f32 %v64, %v332
  %v334 = vpop.f32.mrf.mxu0
  %v335 = vadd.f32 %v64, %v334
  %336 = vmatmul.bf16.gmra.mxu0 %v124
  %v337 = vpop.f32.mrf.mxu0
  %v338 = vadd.f32 %v64, %v337
  %v339 = vpop.f32.mrf.mxu0
  %v340 = vadd.f32 %v64, %v339
  %341 = vmatmul.bf16.gmra.mxu0 %v126
  %v342 = vpop.f32.mrf.mxu0
  %v343 = vadd.f32 %v64, %v342
  %v344 = vpop.f32.mrf.mxu0
  %v345 = vadd.f32 %v64, %v344
  %346 = vmatmul.bf16.gmra.mxu0 %v128
  %v347 = vpop.f32.mrf.mxu0
  %v348 = vadd.f32 %v64, %v347
  %v349 = vpop.f32.mrf.mxu0
  %v350 = vadd.f32 %v64, %v349
  %351 = vmatmul.bf16.gmra.mxu0 %v130
  %v352 = vpop.f32.mrf.mxu0
  %v353 = vadd.f32 %v64, %v352
  %v354 = vpop.f32.mrf.mxu0
  %v355 = vadd.f32 %v64, %v354
  %356 = vdwg.mxu0
  %357 = vmatpush.bf16.msra.mxu0 %v274
  %358 = vmatpush.bf16.msra.mxu0 %v272
  %359 = vmatpush.bf16.msra.mxu0 %v270
  %360 = vmatpush.bf16.msra.mxu0 %v268
  %361 = vmatpush.bf16.msra.mxu0 %v266
  %362 = vmatpush.bf16.msra.mxu0 %v264
  %363 = vmatpush.bf16.msra.mxu0 %v262
  %364 = vmatpush.bf16.msra.mxu0 %v260
  %365 = vmatmul.bf16.gmra.mxu0 %v117
  %v366 = vpop.f32.mrf.mxu0
  %v367 = vadd.f32 %v318, %v366
  %v368 = vpop.f32.mrf.mxu0
  %v369 = vadd.f32 %v320, %v368
  %370 = vmatmul.bf16.gmra.mxu0 %v119
  %v371 = vpop.f32.mrf.mxu0
  %v372 = vadd.f32 %v323, %v371
  %v373 = vpop.f32.mrf.mxu0
  %v374 = vadd.f32 %v325, %v373
  %375 = vmatmul.bf16.gmra.mxu0 %v121
  %v376 = vpop.f32.mrf.mxu0
  %v377 = vadd.f32 %v328, %v376
  %v378 = vpop.f32.mrf.mxu0
  %v379 = vadd.f32 %v330, %v378
  %380 = vmatmul.bf16.gmra.mxu0 %v123
  %v381 = vpop.f32.mrf.mxu0
  %v382 = vadd.f32 %v333, %v381
  %v383 = vpop.f32.mrf.mxu0
  %v384 = vadd.f32 %v335, %v383
  %385 = vmatmul.bf16.gmra.mxu0 %v125
  %v386 = vpop.f32.mrf.mxu0
  %v387 = vadd.f32 %v338, %v386
  %v388 = vpop.f32.mrf.mxu0
  %v389 = vadd.f32 %v340, %v388
  %390 = vmatmul.bf16.gmra.mxu0 %v127
  %v391 = vpop.f32.mrf.mxu0
  %v392 = vadd.f32 %v343, %v391
  %v393 = vpop.f32.mrf.mxu0
  %v394 = vadd.f32 %v345, %v393
  %395 = vmatmul.bf16.gmra.mxu0 %v129
  %v396 = vpop.f32.mrf.mxu0
  %v397 = vadd.f32 %v348, %v396
  %v398 = vpop.f32.mrf.mxu0
  %v399 = vadd.f32 %v350, %v398
  %400 = vmatmul.bf16.gmra.mxu0 %v131
  %v401 = vpop.f32.mrf.mxu0
  %v402 = vadd.f32 %v353, %v401
  %v403 = vpop.f32.mrf.mxu0
  %v404 = vadd.f32 %v355, %v403
  %405 = vdwg.mxu0
  %406 = vmatpush.bf16.msra.mxu0 %v259
  %407 = vmatpush.bf16.msra.mxu0 %v257
  %408 = vmatpush.bf16.msra.mxu0 %v255
  %409 = vmatpush.bf16.msra.mxu0 %v253
  %410 = vmatpush.bf16.msra.mxu0 %v251
  %411 = vmatpush.bf16.msra.mxu0 %v249
  %412 = vmatpush.bf16.msra.mxu0 %v247
  %413 = vmatpush.bf16.msra.mxu0 %v245
  %414 = vmatmul.bf16.gmra.mxu0 %v116
  %v415 = vpop.f32.mrf.mxu0
  %v416 = vadd.f32 %v65, %v415
  %v417 = vpop.f32.mrf.mxu0
  %v418 = vadd.f32 %v65, %v417
  %419 = vmatmul.bf16.gmra.mxu0 %v118
  %v420 = vpop.f32.mrf.mxu0
  %v421 = vadd.f32 %v65, %v420
  %v422 = vpop.f32.mrf.mxu0
  %v423 = vadd.f32 %v65, %v422
  %424 = vmatmul.bf16.gmra.mxu0 %v120
  %v425 = vpop.f32.mrf.mxu0
  %v426 = vadd.f32 %v65, %v425
  %v427 = vpop.f32.mrf.mxu0
  %v428 = vadd.f32 %v65, %v427
  %429 = vmatmul.bf16.gmra.mxu0 %v122
  %v430 = vpop.f32.mrf.mxu0
  %v431 = vadd.f32 %v65, %v430
  %v432 = vpop.f32.mrf.mxu0
  %v433 = vadd.f32 %v65, %v432
  %434 = vmatmul.bf16.gmra.mxu0 %v124
  %v435 = vpop.f32.mrf.mxu0
  %v436 = vadd.f32 %v65, %v435
  %v437 = vpop.f32.mrf.mxu0
  %v438 = vadd.f32 %v65, %v437
  %439 = vmatmul.bf16.gmra.mxu0 %v126
  %v440 = vpop.f32.mrf.mxu0
  %v441 = vadd.f32 %v65, %v440
  %v442 = vpop.f32.mrf.mxu0
  %v443 = vadd.f32 %v65, %v442
  %444 = vmatmul.bf16.gmra.mxu0 %v128
  %v445 = vpop.f32.mrf.mxu0
  %v446 = vadd.f32 %v65, %v445
  %v447 = vpop.f32.mrf.mxu0
  %v448 = vadd.f32 %v65, %v447
  %449 = vmatmul.bf16.gmra.mxu0 %v130
  %v450 = vpop.f32.mrf.mxu0
  %v451 = vadd.f32 %v65, %v450
  %v452 = vpop.f32.mrf.mxu0
  %v453 = vadd.f32 %v65, %v452
  %454 = vdwg.mxu0
  %455 = vmatpush.bf16.msra.mxu0 %v275
  %456 = vmatpush.bf16.msra.mxu0 %v273
  %457 = vmatpush.bf16.msra.mxu0 %v271
  %458 = vmatpush.bf16.msra.mxu0 %v269
  %459 = vmatpush.bf16.msra.mxu0 %v267
  %460 = vmatpush.bf16.msra.mxu0 %v265
  %461 = vmatpush.bf16.msra.mxu0 %v263
  %462 = vmatpush.bf16.msra.mxu0 %v261
  %463 = vmatmul.bf16.gmra.mxu0 %v117
  %v464 = vpop.f32.mrf.mxu0
  %v465 = vadd.f32 %v416, %v464
  %v466 = vpop.f32.mrf.mxu0
  %v467 = vadd.f32 %v418, %v466
  %468 = vmatmul.bf16.gmra.mxu0 %v119
  %v469 = vpop.f32.mrf.mxu0
  %v470 = vadd.f32 %v421, %v469
  %v471 = vpop.f32.mrf.mxu0
  %v472 = vadd.f32 %v423, %v471
  %473 = vmatmul.bf16.gmra.mxu0 %v121
  %v474 = vpop.f32.mrf.mxu0
  %v475 = vadd.f32 %v426, %v474
  %v476 = vpop.f32.mrf.mxu0
  %v477 = vadd.f32 %v428, %v476
  %478 = vmatmul.bf16.gmra.mxu0 %v123
  %v479 = vpop.f32.mrf.mxu0
  %v480 = vadd.f32 %v431, %v479
  %v481 = vpop.f32.mrf.mxu0
  %v482 = vadd.f32 %v433, %v481
  %483 = vmatmul.bf16.gmra.mxu0 %v125
  %v484 = vpop.f32.mrf.mxu0
  %v485 = vadd.f32 %v436, %v484
  %v486 = vpop.f32.mrf.mxu0
  %v487 = vadd.f32 %v438, %v486
  %488 = vmatmul.bf16.gmra.mxu0 %v127
  %v489 = vpop.f32.mrf.mxu0
  %v490 = vadd.f32 %v441, %v489
  %v491 = vpop.f32.mrf.mxu0
  %v492 = vadd.f32 %v443, %v491
  %493 = vmatmul.bf16.gmra.mxu0 %v129
  %v494 = vpop.f32.mrf.mxu0
  %v495 = vadd.f32 %v446, %v494
  %v496 = vpop.f32.mrf.mxu0
  %v497 = vadd.f32 %v448, %v496
  %498 = vmatmul.bf16.gmra.mxu0 %v131
  %v499 = vpop.f32.mrf.mxu0
  %v500 = vadd.f32 %v451, %v499
  %v501 = vpop.f32.mrf.mxu0
  %v502 = vadd.f32 %v453, %v501
  %503 = vdwg.mxu0
  %v504 = vpack.c.bf16 %v465, %v367
  %v505 = vpack.c.bf16 %v467, %v369
  %v506 = vpack.c.bf16 %v470, %v372
  %v507 = vpack.c.bf16 %v472, %v374
  %v508 = vpack.c.bf16 %v475, %v377
  %v509 = vpack.c.bf16 %v477, %v379
  %v510 = vpack.c.bf16 %v480, %v382
  %v511 = vpack.c.bf16 %v482, %v384
  %v512 = vpack.c.bf16 %v485, %v387
  %v513 = vpack.c.bf16 %v487, %v389
  %v514 = vpack.c.bf16 %v490, %v392
  %v515 = vpack.c.bf16 %v492, %v394
  %v516 = vpack.c.bf16 %v495, %v397
  %v517 = vpack.c.bf16 %v497, %v399
  %v518 = vpack.c.bf16 %v500, %v402
  %v519 = vpack.c.bf16 %v502, %v404
  %520 = vst [vmem:[%s3] sm:$0xff] %v504
  %521 = vst [vmem:[%s3 + $0x10] sm:$0xff] %v505
  %522 = vst [vmem:[%s3 + $0x20] sm:$0xff] %v506
  %523 = vst [vmem:[%s3 + $0x30] sm:$0xff] %v507
  %524 = vst [vmem:[%s3 + $0x40] sm:$0xff] %v508
  %525 = vst [vmem:[%s3 + $0x50] sm:$0xff] %v509
  %526 = vst [vmem:[%s3 + $0x60] sm:$0xff] %v510
  %527 = vst [vmem:[%s3 + $0x70] sm:$0xff] %v511
  %528 = vst [vmem:[%s3 + $0x80] sm:$0xff] %v512
  %529 = vst [vmem:[%s3 + $0x90] sm:$0xff] %v513
  %530 = vst [vmem:[%s3 + $0xa0] sm:$0xff] %v514
  %531 = vst [vmem:[%s3 + $0xb0] sm:$0xff] %v515
  %532 = vst [vmem:[%s3 + $0xc0] sm:$0xff] %v516
  %533 = vst [vmem:[%s3 + $0xd0] sm:$0xff] %v517
  %534 = vst [vmem:[%s3 + $0xe0] sm:$0xff] %v518
  %535 = vst [vmem:[%s3 + $0xf0] sm:$0xff] %v519
  %s536 = scalar_lea.vmem %s1, 256
  %v537 = vld [vmem:[%s536] sm:$0xff]
  %v538 = vld [vmem:[%s536 + $0x8] sm:$0xff]
  %v539 = vld [vmem:[%s536 + $0x10] sm:$0xff]
  %v540 = vld [vmem:[%s536 + $0x18] sm:$0xff]
  %v541 = vld [vmem:[%s536 + $0x20] sm:$0xff]
  %v542 = vld [vmem:[%s536 + $0x28] sm:$0xff]
  %v543 = vld [vmem:[%s536 + $0x30] sm:$0xff]
  %v544 = vld [vmem:[%s536 + $0x38] sm:$0xff]
  %v545 = vld [vmem:[%s536 + $0x40] sm:$0xff]
  %v546 = vld [vmem:[%s536 + $0x48] sm:$0xff]
  %v547 = vld [vmem:[%s536 + $0x50] sm:$0xff]
  %v548 = vld [vmem:[%s536 + $0x58] sm:$0xff]
  %v549 = vld [vmem:[%s536 + $0x60] sm:$0xff]
  %v550 = vld [vmem:[%s536 + $0x68] sm:$0xff]
  %v551 = vld [vmem:[%s536 + $0x70] sm:$0xff]
  %v552 = vld [vmem:[%s536 + $0x78] sm:$0xff]
  %v553 = vld [vmem:[%s536 + $0x80] sm:$0xff]
  %v554 = vld [vmem:[%s536 + $0x88] sm:$0xff]
  %v555 = vld [vmem:[%s536 + $0x90] sm:$0xff]
  %v556 = vld [vmem:[%s536 + $0x98] sm:$0xff]
  %v557 = vld [vmem:[%s536 + $0xa0] sm:$0xff]
  %v558 = vld [vmem:[%s536 + $0xa8] sm:$0xff]
  %v559 = vld [vmem:[%s536 + $0xb0] sm:$0xff]
  %v560 = vld [vmem:[%s536 + $0xb8] sm:$0xff]
  %v561 = vld [vmem:[%s536 + $0xc0] sm:$0xff]
  %v562 = vld [vmem:[%s536 + $0xc8] sm:$0xff]
  %v563 = vld [vmem:[%s536 + $0xd0] sm:$0xff]
  %v564 = vld [vmem:[%s536 + $0xd8] sm:$0xff]
  %v565 = vld [vmem:[%s536 + $0xe0] sm:$0xff]
  %v566 = vld [vmem:[%s536 + $0xe8] sm:$0xff]
  %v567 = vld [vmem:[%s536 + $0xf0] sm:$0xff]
  %v568 = vld [vmem:[%s536 + $0xf8] sm:$0xff]
  %v601 = vunpack.c.l.b16 %v537
  %v602 = vunpack.c.h.b16 %v537
  %v603 = vunpack.c.l.b16 %v538
  %v604 = vunpack.c.h.b16 %v538
  %v605 = vunpack.c.l.b16 %v539
  %v606 = vunpack.c.h.b16 %v539
  %v607 = vunpack.c.l.b16 %v540
  %v608 = vunpack.c.h.b16 %v540
  %v609 = vunpack.c.l.b16 %v541
  %v610 = vunpack.c.h.b16 %v541
  %v611 = vunpack.c.l.b16 %v542
  %v612 = vunpack.c.h.b16 %v542
  %v613 = vunpack.c.l.b16 %v543
  %v614 = vunpack.c.h.b16 %v543
  %v615 = vunpack.c.l.b16 %v544
  %v616 = vunpack.c.h.b16 %v544
  %v617 = vunpack.c.l.b16 %v545
  %v618 = vunpack.c.h.b16 %v545
  %v619 = vunpack.c.l.b16 %v546
  %v620 = vunpack.c.h.b16 %v546
  %v621 = vunpack.c.l.b16 %v547
  %v622 = vunpack.c.h.b16 %v547
  %v623 = vunpack.c.l.b16 %v548
  %v624 = vunpack.c.h.b16 %v548
  %v625 = vunpack.c.l.b16 %v549
  %v626 = vunpack.c.h.b16 %v549
  %v627 = vunpack.c.l.b16 %v550
  %v628 = vunpack.c.h.b16 %v550
  %v629 = vunpack.c.l.b16 %v551
  %v630 = vunpack.c.h.b16 %v551
  %v631 = vunpack.c.l.b16 %v552
  %v632 = vunpack.c.h.b16 %v552
  %v633 = vunpack.c.l.b16 %v553
  %v634 = vunpack.c.h.b16 %v553
  %v635 = vunpack.c.l.b16 %v554
  %v636 = vunpack.c.h.b16 %v554
  %v637 = vunpack.c.l.b16 %v555
  %v638 = vunpack.c.h.b16 %v555
  %v639 = vunpack.c.l.b16 %v556
  %v640 = vunpack.c.h.b16 %v556
  %v641 = vunpack.c.l.b16 %v557
  %v642 = vunpack.c.h.b16 %v557
  %v643 = vunpack.c.l.b16 %v558
  %v644 = vunpack.c.h.b16 %v558
  %v645 = vunpack.c.l.b16 %v559
  %v646 = vunpack.c.h.b16 %v559
  %v647 = vunpack.c.l.b16 %v560
  %v648 = vunpack.c.h.b16 %v560
  %v649 = vunpack.c.l.b16 %v561
  %v650 = vunpack.c.h.b16 %v561
  %v651 = vunpack.c.l.b16 %v562
  %v652 = vunpack.c.h.b16 %v562
  %v653 = vunpack.c.l.b16 %v563
  %v654 = vunpack.c.h.b16 %v563
  %v655 = vunpack.c.l.b16 %v564
  %v656 = vunpack.c.h.b16 %v564
  %v657 = vunpack.c.l.b16 %v565
  %v658 = vunpack.c.h.b16 %v565
  %v659 = vunpack.c.l.b16 %v566
  %v660 = vunpack.c.h.b16 %v566
  %v661 = vunpack.c.l.b16 %v567
  %v662 = vunpack.c.h.b16 %v567
  %v663 = vunpack.c.l.b16 %v568
  %v664 = vunpack.c.h.b16 %v568
  %v665 = vpack.c.b16 %v603, %v601
  %v666 = vpack.c.b16 %v604, %v602
  %v667 = vpack.c.b16 %v607, %v605
  %v668 = vpack.c.b16 %v608, %v606
  %v669 = vpack.c.b16 %v611, %v609
  %v670 = vpack.c.b16 %v612, %v610
  %v671 = vpack.c.b16 %v615, %v613
  %v672 = vpack.c.b16 %v616, %v614
  %v673 = vpack.c.b16 %v619, %v617
  %v674 = vpack.c.b16 %v620, %v618
  %v675 = vpack.c.b16 %v623, %v621
  %v676 = vpack.c.b16 %v624, %v622
  %v677 = vpack.c.b16 %v627, %v625
  %v678 = vpack.c.b16 %v628, %v626
  %v679 = vpack.c.b16 %v631, %v629
  %v680 = vpack.c.b16 %v632, %v630
  %v681 = vpack.c.b16 %v635, %v633
  %v682 = vpack.c.b16 %v636, %v634
  %v683 = vpack.c.b16 %v639, %v637
  %v684 = vpack.c.b16 %v640, %v638
  %v685 = vpack.c.b16 %v643, %v641
  %v686 = vpack.c.b16 %v644, %v642
  %v687 = vpack.c.b16 %v647, %v645
  %v688 = vpack.c.b16 %v648, %v646
  %v689 = vpack.c.b16 %v651, %v649
  %v690 = vpack.c.b16 %v652, %v650
  %v691 = vpack.c.b16 %v655, %v653
  %v692 = vpack.c.b16 %v656, %v654
  %v693 = vpack.c.b16 %v659, %v657
  %v694 = vpack.c.b16 %v660, %v658
  %v695 = vpack.c.b16 %v663, %v661
  %v696 = vpack.c.b16 %v664, %v662
  %729 = vmatpush.bf16.msra.mxu0 %v679
  %730 = vmatpush.bf16.msra.mxu0 %v677
  %731 = vmatpush.bf16.msra.mxu0 %v675
  %732 = vmatpush.bf16.msra.mxu0 %v673
  %733 = vmatpush.bf16.msra.mxu0 %v671
  %734 = vmatpush.bf16.msra.mxu0 %v669
  %735 = vmatpush.bf16.msra.mxu0 %v667
  %736 = vmatpush.bf16.msra.mxu0 %v665
  %737 = vmatmul.bf16.gmra.mxu0 %v116
  %v738 = vpop.f32.mrf.mxu0
  %v739 = vadd.f32 %v64, %v738
  %v740 = vpop.f32.mrf.mxu0
  %v741 = vadd.f32 %v64, %v740
  %742 = vmatmul.bf16.gmra.mxu0 %v118
  %v743 = vpop.f32.mrf.mxu0
  %v744 = vadd.f32 %v64, %v743
  %v745 = vpop.f32.mrf.mxu0
  %v746 = vadd.f32 %v64, %v745
  %747 = vmatmul.bf16.gmra.mxu0 %v120
  %v748 = vpop.f32.mrf.mxu0
  %v749 = vadd.f32 %v64, %v748
  %v750 = vpop.f32.mrf.mxu0
  %v751 = vadd.f32 %v64, %v750
  %752 = vmatmul.bf16.gmra.mxu0 %v122
  %v753 = vpop.f32.mrf.mxu0
  %v754 = vadd.f32 %v64, %v753
  %v755 = vpop.f32.mrf.mxu0
  %v756 = vadd.f32 %v64, %v755
  %757 = vmatmul.bf16.gmra.mxu0 %v124
  %v758 = vpop.f32.mrf.mxu0
  %v759 = vadd.f32 %v64, %v758
  %v760 = vpop.f32.mrf.mxu0
  %v761 = vadd.f32 %v64, %v760
  %762 = vmatmul.bf16.gmra.mxu0 %v126
  %v763 = vpop.f32.mrf.mxu0
  %v764 = vadd.f32 %v64, %v763
  %v765 = vpop.f32.mrf.mxu0
  %v766 = vadd.f32 %v64, %v765
  %767 = vmatmul.bf16.gmra.mxu0 %v128
  %v768 = vpop.f32.mrf.mxu0
  %v769 = vadd.f32 %v64, %v768
  %v770 = vpop.f32.mrf.mxu0
  %v771 = vadd.f32 %v64, %v770
  %772 = vmatmul.bf16.gmra.mxu0 %v130
  %v773 = vpop.f32.mrf.mxu0
  %v774 = vadd.f32 %v64, %v773
  %v775 = vpop.f32.mrf.mxu0
  %v776 = vadd.f32 %v64, %v775
  %777 = vdwg.mxu0
  %778 = vmatpush.bf16.msra.mxu0 %v695
  %779 = vmatpush.bf16.msra.mxu0 %v693
  %780 = vmatpush.bf16.msra.mxu0 %v691
  %781 = vmatpush.bf16.msra.mxu0 %v689
  %782 = vmatpush.bf16.msra.mxu0 %v687
  %783 = vmatpush.bf16.msra.mxu0 %v685
  %784 = vmatpush.bf16.msra.mxu0 %v683
  %785 = vmatpush.bf16.msra.mxu0 %v681
  %786 = vmatmul.bf16.gmra.mxu0 %v117
  %v787 = vpop.f32.mrf.mxu0
  %v788 = vadd.f32 %v739, %v787
  %v789 = vpop.f32.mrf.mxu0
  %v790 = vadd.f32 %v741, %v789
  %791 = vmatmul.bf16.gmra.mxu0 %v119
  %v792 = vpop.f32.mrf.mxu0
  %v793 = vadd.f32 %v744, %v792
  %v794 = vpop.f32.mrf.mxu0
  %v795 = vadd.f32 %v746, %v794
  %796 = vmatmul.bf16.gmra.mxu0 %v121
  %v797 = vpop.f32.mrf.mxu0
  %v798 = vadd.f32 %v749, %v797
  %v799 = vpop.f32.mrf.mxu0
  %v800 = vadd.f32 %v751, %v799
  %801 = vmatmul.bf16.gmra.mxu0 %v123
  %v802 = vpop.f32.mrf.mxu0
  %v803 = vadd.f32 %v754, %v802
  %v804 = vpop.f32.mrf.mxu0
  %v805 = vadd.f32 %v756, %v804
  %806 = vmatmul.bf16.gmra.mxu0 %v125
  %v807 = vpop.f32.mrf.mxu0
  %v808 = vadd.f32 %v759, %v807
  %v809 = vpop.f32.mrf.mxu0
  %v810 = vadd.f32 %v761, %v809
  %811 = vmatmul.bf16.gmra.mxu0 %v127
  %v812 = vpop.f32.mrf.mxu0
  %v813 = vadd.f32 %v764, %v812
  %v814 = vpop.f32.mrf.mxu0
  %v815 = vadd.f32 %v766, %v814
  %816 = vmatmul.bf16.gmra.mxu0 %v129
  %v817 = vpop.f32.mrf.mxu0
  %v818 = vadd.f32 %v769, %v817
  %v819 = vpop.f32.mrf.mxu0
  %v820 = vadd.f32 %v771, %v819
  %821 = vmatmul.bf16.gmra.mxu0 %v131
  %v822 = vpop.f32.mrf.mxu0
  %v823 = vadd.f32 %v774, %v822
  %v824 = vpop.f32.mrf.mxu0
  %v825 = vadd.f32 %v776, %v824
  %826 = vdwg.mxu0
  %827 = vmatpush.bf16.msra.mxu0 %v680
  %828 = vmatpush.bf16.msra.mxu0 %v678
  %829 = vmatpush.bf16.msra.mxu0 %v676
  %830 = vmatpush.bf16.msra.mxu0 %v674
  %831 = vmatpush.bf16.msra.mxu0 %v672
  %832 = vmatpush.bf16.msra.mxu0 %v670
  %833 = vmatpush.bf16.msra.mxu0 %v668
  %834 = vmatpush.bf16.msra.mxu0 %v666
  %835 = vmatmul.bf16.gmra.mxu0 %v116
  %v836 = vpop.f32.mrf.mxu0
  %v837 = vadd.f32 %v65, %v836
  %v838 = vpop.f32.mrf.mxu0
  %v839 = vadd.f32 %v65, %v838
  %840 = vmatmul.bf16.gmra.mxu0 %v118
  %v841 = vpop.f32.mrf.mxu0
  %v842 = vadd.f32 %v65, %v841
  %v843 = vpop.f32.mrf.mxu0
  %v844 = vadd.f32 %v65, %v843
  %845 = vmatmul.bf16.gmra.mxu0 %v120
  %v846 = vpop.f32.mrf.mxu0
  %v847 = vadd.f32 %v65, %v846
  %v848 = vpop.f32.mrf.mxu0
  %v849 = vadd.f32 %v65, %v848
  %850 = vmatmul.bf16.gmra.mxu0 %v122
  %v851 = vpop.f32.mrf.mxu0
  %v852 = vadd.f32 %v65, %v851
  %v853 = vpop.f32.mrf.mxu0
  %v854 = vadd.f32 %v65, %v853
  %855 = vmatmul.bf16.gmra.mxu0 %v124
  %v856 = vpop.f32.mrf.mxu0
  %v857 = vadd.f32 %v65, %v856
  %v858 = vpop.f32.mrf.mxu0
  %v859 = vadd.f32 %v65, %v858
  %860 = vmatmul.bf16.gmra.mxu0 %v126
  %v861 = vpop.f32.mrf.mxu0
  %v862 = vadd.f32 %v65, %v861
  %v863 = vpop.f32.mrf.mxu0
  %v864 = vadd.f32 %v65, %v863
  %865 = vmatmul.bf16.gmra.mxu0 %v128
  %v866 = vpop.f32.mrf.mxu0
  %v867 = vadd.f32 %v65, %v866
  %v868 = vpop.f32.mrf.mxu0
  %v869 = vadd.f32 %v65, %v868
  %870 = vmatmul.bf16.gmra.mxu0 %v130
  %v871 = vpop.f32.mrf.mxu0
  %v872 = vadd.f32 %v65, %v871
  %v873 = vpop.f32.mrf.mxu0
  %v874 = vadd.f32 %v65, %v873
  %875 = vdwg.mxu0
  %876 = vmatpush.bf16.msra.mxu0 %v696
  %877 = vmatpush.bf16.msra.mxu0 %v694
  %878 = vmatpush.bf16.msra.mxu0 %v692
  %879 = vmatpush.bf16.msra.mxu0 %v690
  %880 = vmatpush.bf16.msra.mxu0 %v688
  %881 = vmatpush.bf16.msra.mxu0 %v686
  %882 = vmatpush.bf16.msra.mxu0 %v684
  %883 = vmatpush.bf16.msra.mxu0 %v682
  %884 = vmatmul.bf16.gmra.mxu0 %v117
  %v885 = vpop.f32.mrf.mxu0
  %v886 = vadd.f32 %v837, %v885
  %v887 = vpop.f32.mrf.mxu0
  %v888 = vadd.f32 %v839, %v887
  %889 = vmatmul.bf16.gmra.mxu0 %v119
  %v890 = vpop.f32.mrf.mxu0
  %v891 = vadd.f32 %v842, %v890
  %v892 = vpop.f32.mrf.mxu0
  %v893 = vadd.f32 %v844, %v892
  %894 = vmatmul.bf16.gmra.mxu0 %v121
  %v895 = vpop.f32.mrf.mxu0
  %v896 = vadd.f32 %v847, %v895
  %v897 = vpop.f32.mrf.mxu0
  %v898 = vadd.f32 %v849, %v897
  %899 = vmatmul.bf16.gmra.mxu0 %v123
  %v900 = vpop.f32.mrf.mxu0
  %v901 = vadd.f32 %v852, %v900
  %v902 = vpop.f32.mrf.mxu0
  %v903 = vadd.f32 %v854, %v902
  %904 = vmatmul.bf16.gmra.mxu0 %v125
  %v905 = vpop.f32.mrf.mxu0
  %v906 = vadd.f32 %v857, %v905
  %v907 = vpop.f32.mrf.mxu0
  %v908 = vadd.f32 %v859, %v907
  %909 = vmatmul.bf16.gmra.mxu0 %v127
  %v910 = vpop.f32.mrf.mxu0
  %v911 = vadd.f32 %v862, %v910
  %v912 = vpop.f32.mrf.mxu0
  %v913 = vadd.f32 %v864, %v912
  %914 = vmatmul.bf16.gmra.mxu0 %v129
  %v915 = vpop.f32.mrf.mxu0
  %v916 = vadd.f32 %v867, %v915
  %v917 = vpop.f32.mrf.mxu0
  %v918 = vadd.f32 %v869, %v917
  %919 = vmatmul.bf16.gmra.mxu0 %v131
  %v920 = vpop.f32.mrf.mxu0
  %v921 = vadd.f32 %v872, %v920
  %v922 = vpop.f32.mrf.mxu0
  %v923 = vadd.f32 %v874, %v922
  %924 = vdwg.mxu0
  %v925 = vpack.c.bf16 %v886, %v788
  %v926 = vpack.c.bf16 %v888, %v790
  %v927 = vpack.c.bf16 %v891, %v793
  %v928 = vpack.c.bf16 %v893, %v795
  %v929 = vpack.c.bf16 %v896, %v798
  %v930 = vpack.c.bf16 %v898, %v800
  %v931 = vpack.c.bf16 %v901, %v803
  %v932 = vpack.c.bf16 %v903, %v805
  %v933 = vpack.c.bf16 %v906, %v808
  %v934 = vpack.c.bf16 %v908, %v810
  %v935 = vpack.c.bf16 %v911, %v813
  %v936 = vpack.c.bf16 %v913, %v815
  %v937 = vpack.c.bf16 %v916, %v818
  %v938 = vpack.c.bf16 %v918, %v820
  %v939 = vpack.c.bf16 %v921, %v823
  %v940 = vpack.c.bf16 %v923, %v825
  %s941 = scalar_lea.vmem %s3, 8
  %942 = vst [vmem:[%s941] sm:$0xff] %v925
  %943 = vst [vmem:[%s941 + $0x10] sm:$0xff] %v926
  %944 = vst [vmem:[%s941 + $0x20] sm:$0xff] %v927
  %945 = vst [vmem:[%s941 + $0x30] sm:$0xff] %v928
  %946 = vst [vmem:[%s941 + $0x40] sm:$0xff] %v929
  %947 = vst [vmem:[%s941 + $0x50] sm:$0xff] %v930
  %948 = vst [vmem:[%s941 + $0x60] sm:$0xff] %v931
  %949 = vst [vmem:[%s941 + $0x70] sm:$0xff] %v932
  %950 = vst [vmem:[%s941 + $0x80] sm:$0xff] %v933
  %951 = vst [vmem:[%s941 + $0x90] sm:$0xff] %v934
  %952 = vst [vmem:[%s941 + $0xa0] sm:$0xff] %v935
  %953 = vst [vmem:[%s941 + $0xb0] sm:$0xff] %v936
  %954 = vst [vmem:[%s941 + $0xc0] sm:$0xff] %v937
  %955 = vst [vmem:[%s941 + $0xd0] sm:$0xff] %v938
  %956 = vst [vmem:[%s941 + $0xe0] sm:$0xff] %v939
  %957 = vst [vmem:[%s941 + $0xf0] sm:$0xff] %v940
  // Predicated region
  $region14: #{upsampler_forward.3} parent=0 // pred_check
    _
  $region15: #{upsampler_forward.3} parent=0 // pred_check_branch
    %959 = sbr.rel (0) target = $region17
  $region16: #{upsampler_forward.3} parent=0 // pred_region
    _
  $region17: #{upsampler_forward.3} parent=0 // pred_fallthru
    _
  // Predicated region
  $region18: #{upsampler_forward.3} parent=0 // pred_check
    _
  $region19: #{upsampler_forward.3} parent=0 // pred_check_branch
    %961 = sbr.rel (0) target = $region21
  $region20: #{upsampler_forward.3} parent=0 // pred_region
    _
  $region21: #{upsampler_forward.3} parent=0 // pred_fallthru
    _

// kernel: upsampler_forward.5
$region0: #{upsampler_forward.5}
  #allocation0 [shape = 'u32[]', space=smem, size = 0x4, offset = 0x4, fixed_abs, tag = 'smem constant byte address 0x4 - core index']
  #allocation1 [shape = 'u32[72,128]{1,0:T(1,128)}', space=vmem, size = 0x9000, scoped, tag = 'internal scratch']
  #allocation2 [shape = 'bf16[264,128]{1,0:T(8,128)(2,1)}', space=vmem, size = 0x10800, scoped, tag = 'scratch operand']
  %s0 = inlined_call_operand.vmem [shape: bf16[2,16,16,128], index: 0, kind: input, shape index: {}]
  %s1 = inlined_call_operand.vmem [shape: bf16[9,128,128], index: 1, kind: input, shape index: {}]
  %s2 = inlined_call_operand.vmem [shape: f32[2,128], index: 2, kind: input, shape index: {}]
  %s3 = inlined_call_operand.hbm [shape: f32[2,16,16,128], index: 3, kind: output, shape index: {}]
  %s4 = sld [smem:[#allocation0]]
  $region53: #{upsampler_forward.5} parent=0
    _
  %s6 = ssub.s32 1, %s4
  %s7 = scalar_select 0, %s6, %s4
  $region1: #{upsampler_forward.5} parent=0
    #allocation3 [shape = 'u8[131072]{0}', space=vmem, size = 0x20000, scoped, tag = 'output window, operand 0']
    #allocation4 [shape = 's32[2]{0}', space=sflag, size = 0x8, scoped, tag = 'scoped memory for upsampler_forward.5']
    %8 = vsyncpa [#allocation4], 0
    %s9 = scalar_lea.sflag [#allocation4], 1
    %10 = vsyncpa %s9, 0
    loop: start=0, step=1, limit=6
    $region2: #{upsampler_forward.5} parent=1 // loop_pre_header
      _
    $region3: #{upsampler_forward.5} parent=1 // loop_header
      %s12 = sphi 0, %s16
      %p13 = scmp.ge.s32.totalorder %s12, 6
      %s19 = sphi 0, %s31
      %s20 = sphi 0, %s27
      %s21 = sphi 0, %s19
      %s22 = sphi 0, %s20
      %s23 = sphi 0, %s21
      %s24 = sphi 0, %s22
      %s34 = sphi 0, %s36
      %s37 = sphi 0, %s34
      %s38 = sphi 0, %s37
      %s54 = sphi 0, %s38
      %s58 = sphi 0, %s58
      %s60 = sphi 0, %s58
      %s61 = sphi 0, %s60
      %s75 = sphi 0, %s61
      %s79 = sphi 0, %s79
      %s81 = sphi 0, %s79
      %s82 = sphi 0, %s81
      %s96 = sphi 0, %s82
      %s104 = sphi 0, %s106
      %s107 = sphi 0, %s104
      %s108 = sphi 0, %s107
      %s124 = sphi 0, %s108
    $region4: #{upsampler_forward.5} parent=1 // loop_header_branch
      %15 = sbr.rel (%p13) target = $region8
    $region5: #{upsampler_forward.5} parent=1 // loop_body
      %s17 = ssub.s32 %s12, 1
      %s18 = ssub.s32 %s12, 2
      %s25 = sadd.s32 1, %s20
      %p26 = scmp.ge.s32.totalorder %s25, 2
      %s27 = scalar_select %p26, 0, %s25
      %s28 = sadd.s32 1, %s19
      %s29 = scalar_select %p26, %s28, %s19
      %p30 = scmp.ge.s32.totalorder %s29, 2
      %s31 = scalar_select %p30, 0, %s29
      %s32 = ssub.s32 %s19, %s31
      %p33 = scmp.eq.s32.totalorder %s32, 0
      %s35 = sadd.s32 %s34, 1
      %s36 = scalar_select %p33, %s34, %s35
      %p39 = pneg %p33
      %p40 = scmp.eq.s32.totalorder %s12, 3
      %p41 = por %p39, %p40
      %p42 = scmp.ne.s32.totalorder %s34, %s37
      %p43 = scmp.eq.s32.totalorder %s12, 0
      %p44 = por %p42, %p43
      %p45 = scmp.ne.s32.totalorder %s34, %s37
      %p46 = scmp.eq.s32.totalorder %s17, 3
      %p47 = por %p45, %p46
      %p48 = scmp.ne.s32.totalorder %s37, %s38
      %p49 = scmp.eq.s32.totalorder %s17, 0
      %p50 = por %p48, %p49
      %p51 = scmp.ne.s32.totalorder %s37, %s38
      %p52 = scmp.eq.s32.totalorder %s18, 3
      %p53 = por %p51, %p52
      %p55 = scmp.ne.s32.totalorder %s38, %s54
      %p56 = scmp.eq.s32.totalorder %s18, 0
      %p57 = por %p55, %p56
      %s59 = sadd.s32 %s58, 1
      %p62 = scmp.eq.s32.totalorder %s12, 3
      %p63 = scmp.ne.s32.totalorder %s58, %s60
      %p64 = scmp.eq.s32.totalorder %s12, 0
      %p65 = por %p63, %p64
      %p66 = scmp.ne.s32.totalorder %s58, %s60
      %p67 = scmp.eq.s32.totalorder %s17, 3
      %p68 = por %p66, %p67
      %p69 = scmp.ne.s32.totalorder %s60, %s61
      %p70 = scmp.eq.s32.totalorder %s17, 0
      %p71 = por %p69, %p70
      %p72 = scmp.ne.s32.totalorder %s60, %s61
      %p73 = scmp.eq.s32.totalorder %s18, 3
      %p74 = por %p72, %p73
      %p76 = scmp.ne.s32.totalorder %s61, %s75
      %p77 = scmp.eq.s32.totalorder %s18, 0
      %p78 = por %p76, %p77
      %s80 = sadd.s32 %s79, 1
      %p83 = scmp.eq.s32.totalorder %s12, 3
      %p84 = scmp.ne.s32.totalorder %s79, %s81
      %p85 = scmp.eq.s32.totalorder %s12, 0
      %p86 = por %p84, %p85
      %p87 = scmp.ne.s32.totalorder %s79, %s81
      %p88 = scmp.eq.s32.totalorder %s17, 3
      %p89 = por %p87, %p88
      %p90 = scmp.ne.s32.totalorder %s81, %s82
      %p91 = scmp.eq.s32.totalorder %s17, 0
      %p92 = por %p90, %p91
      %p93 = scmp.ne.s32.totalorder %s81, %s82
      %p94 = scmp.eq.s32.totalorder %s18, 3
      %p95 = por %p93, %p94
      %p97 = scmp.ne.s32.totalorder %s82, %s96
      %p98 = scmp.eq.s32.totalorder %s18, 0
      %p99 = por %p97, %p98
      %s100 = ssub.s32 %s19, %s31
      %s101 = ssub.s32 %s20, %s27
      %s102 = sor.u32 %s100, %s101
      %p103 = scmp.eq.s32.totalorder %s102, 0
      %s105 = sadd.s32 %s104, 1
      %s106 = scalar_select %p103, %s104, %s105
      %p109 = pneg %p103
      %p110 = scmp.eq.s32.totalorder %s12, 3
      %p111 = por %p109, %p110
      %p112 = scmp.ne.s32.totalorder %s104, %s107
      %p113 = scmp.eq.s32.totalorder %s12, 0
      %p114 = por %p112, %p113
      %p115 = scmp.ne.s32.totalorder %s104, %s107
      %p116 = scmp.eq.s32.totalorder %s17, 3
      %p117 = por %p115, %p116
      %p118 = scmp.ne.s32.totalorder %s107, %s108
      %p119 = scmp.eq.s32.totalorder %s17, 0
      %p120 = por %p118, %p119
      %p121 = scmp.ne.s32.totalorder %s107, %s108
      %p122 = scmp.eq.s32.totalorder %s18, 3
      %p123 = por %p121, %p122
      %p125 = scmp.ne.s32.totalorder %s108, %s124
      %p126 = scmp.eq.s32.totalorder %s18, 0
      %p127 = por %p125, %p126
      %p128 = scmp.le.s32.totalorder 1, %s12
      %p129 = scmp.lt.s32.totalorder %s12, 5
      %p130 = pnand %p128, %p129
      %p131 = pneg %p130
      // Predicated region
      $region9: #{upsampler_forward.5} parent=5 // pred_check
        _
      $region10: #{upsampler_forward.5} parent=5 // pred_check_branch
        %133 = sbr.rel (%p130) target = $region12
      $region11: #{upsampler_forward.5} parent=5 // pred_region
        %s134 = ssub.s32 %s12, 1
        // Predicated region
        $region13: #{upsampler_forward.5} parent=11 // pred_check
          %p135 = pneg %p71
        $region14: #{upsampler_forward.5} parent=11 // pred_check_branch
          %137 = sbr.rel (%p135) target = $region16
        $region15: #{upsampler_forward.5} parent=11 // pred_region
          _
        $region16: #{upsampler_forward.5} parent=11 // pred_fallthru
          _
        // Predicated region
        $region17: #{upsampler_forward.5} parent=11 // pred_check
          %p138 = pneg %p92
        $region18: #{upsampler_forward.5} parent=11 // pred_check_branch
          %140 = sbr.rel (%p138) target = $region20
        $region19: #{upsampler_forward.5} parent=11 // pred_region
          _
        $region20: #{upsampler_forward.5} parent=11 // pred_fallthru
          _
      $region12: #{upsampler_forward.5} parent=5 // pred_fallthru
        _
      %p141 = scmp.lt.s32.totalorder %s12, 4
      // Predicated region
      $region21: #{upsampler_forward.5} parent=5 // pred_check
        %p142 = pneg %p141
      $region22: #{upsampler_forward.5} parent=5 // pred_check_branch
        %144 = sbr.rel (%p142) target = $region24
      $region23: #{upsampler_forward.5} parent=5 // pred_region
        // Predicated region
        $region25: #{upsampler_forward.5} parent=23 // pred_check
          %p145 = pneg %p44
        $region26: #{upsampler_forward.5} parent=23 // pred_check_branch
          %147 = sbr.rel (%p145) target = $region28
        $region27: #{upsampler_forward.5} parent=23 // pred_region
          %p148 = scmp.lt.s32.totalorder %s19, 1
          %s149 = scalar_select %p148, %s19, 1
          %s150 = smul.addr %s149, 32
          %s151 = smul.addr %s150, 4
          %s152 = scalar_lea.vmem %s0, %s151
        $region28: #{upsampler_forward.5} parent=23 // pred_fallthru
          _
      $region24: #{upsampler_forward.5} parent=5 // pred_fallthru
        _
      %p153 = scmp.le.s32.totalorder 1, %s12
      %p154 = scmp.lt.s32.totalorder %s12, 5
      %p155 = pnand %p153, %p154
      %p156 = pneg %p155
      // Predicated region
      $region29: #{upsampler_forward.5} parent=5 // pred_check
        _
      $region30: #{upsampler_forward.5} parent=5 // pred_check_branch
        %158 = sbr.rel (%p155) target = $region32
      $region31: #{upsampler_forward.5} parent=5 // pred_region
        %s159 = ssub.s32 %s12, 1
        %p160 = scmp.lt.s32.totalorder %s21, 1
        %s161 = scalar_select %p160, %s21, 1
        %s162 = smul.addr %s161, 32
        %s163 = smul.addr %s162, 4
        %s164 = scalar_lea.vmem %s0, %s163
        %p165 = pneg %p50
        %p166 = pneg %p47
        %p167 = pneg %p71
        %p168 = pneg %p68
        %p169 = pneg %p92
        %p170 = pneg %p89
        %p171 = pneg %p120
        %p172 = pneg %p117
        %s173 = sand.u32 %s107, 1
        %s174 = scalar_lea.sflag [#allocation4], %s173
        %s175 = sand.u32 %s107, 1
        %s176 = smul.addr %s175, 128
        %s177 = scalar_lea.vmem [#allocation3], %s176
        %p178 = scmp.lt.s32.totalorder %s21, 1
        %s179 = scalar_select %p178, %s21, 1
        %s180 = smul.addr %s179, 32
        %s181 = smul.addr %s180, 4
        %s182 = scalar_lea.vmem %s0, %s181
        %s183 = smul.u32 8, %s22
        %s185 = smul.u32 %s22, 8
        %vm186 = vcmask 1040384
        %vm187 = vsmask.f32 256
        %vm188 = vmand %vm186, %vm187
        %v189 = vld [vmem:[#allocation2] sm:$0x1]
        %v190 = vsel %vm188, 0, %v189
        %191 = vst [vmem:[#allocation2] sm:$0x1] %v190
        %vm192 = vcmask 1043456
        %vm193 = vsmask.f32 7938
        %vm194 = vmand %vm192, %vm193
        %v195 = vld [vmem:[#allocation2 + $0x8] sm:$0xf]
        %v196 = vsel %vm194, 0, %v195
        %197 = vst [vmem:[#allocation2 + $0x8] sm:$0xf] %v196
        %v198 = vld [vmem:[#allocation2 + $0xc] sm:$0x1]
        %v199 = vsel %vm188, 0, %v198
        %200 = vst [vmem:[#allocation2 + $0xc] sm:$0x1] %v199
        %v201 = vld [vmem:[#allocation2 + $0x14] sm:$0xf]
        %v202 = vsel %vm194, 0, %v201
        %203 = vst [vmem:[#allocation2 + $0x14] sm:$0xf] %v202
        %v204 = vld [vmem:[#allocation2 + $0x18] sm:$0x1]
        %v205 = vsel %vm188, 0, %v204
        %206 = vst [vmem:[#allocation2 + $0x18] sm:$0x1] %v205
        %v207 = vld [vmem:[#allocation2 + $0x20] sm:$0xf]
        %v208 = vsel %vm194, 0, %v207
        %209 = vst [vmem:[#allocation2 + $0x20] sm:$0xf] %v208
        %v210 = vld [vmem:[#allocation2 + $0x24] sm:$0x1]
        %v211 = vsel %vm188, 0, %v210
        %212 = vst [vmem:[#allocation2 + $0x24] sm:$0x1] %v211
        %v213 = vld [vmem:[#allocation2 + $0x2c] sm:$0xf]
        %v214 = vsel %vm194, 0, %v213
        %215 = vst [vmem:[#allocation2 + $0x2c] sm:$0xf] %v214
        %v216 = vld [vmem:[#allocation2 + $0x30] sm:$0x1]
        %v217 = vsel %vm188, 0, %v216
        %218 = vst [vmem:[#allocation2 + $0x30] sm:$0x1] %v217
        %v219 = vld [vmem:[#allocation2 + $0x38] sm:$0xf]
        %v220 = vsel %vm194, 0, %v219
        %221 = vst [vmem:[#allocation2 + $0x38] sm:$0xf] %v220
        %v222 = vld [vmem:[#allocation2 + $0x3c] sm:$0x1]
        %v223 = vsel %vm188, 0, %v222
        %224 = vst [vmem:[#allocation2 + $0x3c] sm:$0x1] %v223
        %v225 = vld [vmem:[#allocation2 + $0x44] sm:$0xf]
        %v226 = vsel %vm194, 0, %v225
        %227 = vst [vmem:[#allocation2 + $0x44] sm:$0xf] %v226
        %v228 = vld [vmem:[#allocation2 + $0x48] sm:$0x1]
        %v229 = vsel %vm188, 0, %v228
        %230 = vst [vmem:[#allocation2 + $0x48] sm:$0x1] %v229
        %v231 = vld [vmem:[#allocation2 + $0x50] sm:$0xf]
        %v232 = vsel %vm194, 0, %v231
        %233 = vst [vmem:[#allocation2 + $0x50] sm:$0xf] %v232
        %v234 = vld [vmem:[#allocation2 + $0x54] sm:$0x1]
        %v235 = vsel %vm188, 0, %v234
        %236 = vst [vmem:[#allocation2 + $0x54] sm:$0x1] %v235
        %v237 = vld [vmem:[#allocation2 + $0x5c] sm:$0xf]
        %v238 = vsel %vm194, 0, %v237
        %239 = vst [vmem:[#allocation2 + $0x5c] sm:$0xf] %v238
        %v240 = vld [vmem:[#allocation2 + $0x60] sm:$0x1]
        %v241 = vsel %vm188, 0, %v240
        %242 = vst [vmem:[#allocation2 + $0x60] sm:$0x1] %v241
        %v243 = vld [vmem:[#allocation2 + $0x68] sm:$0xf]
        %v244 = vsel %vm194, 0, %v243
        %245 = vst [vmem:[#allocation2 + $0x68] sm:$0xf] %v244
        %v246 = vld [vmem:[#allocation2 + $0x6c] sm:$0x1]
        %v247 = vsel %vm188, 0, %v246
        %248 = vst [vmem:[#allocation2 + $0x6c] sm:$0x1] %v247
        %v249 = vld [vmem:[#allocation2 + $0x74] sm:$0xf]
        %v250 = vsel %vm194, 0, %v249
        %251 = vst [vmem:[#allocation2 + $0x74] sm:$0xf] %v250
        %252 = vst [vmem:[#allocation2 + $0x78] sm:$0xf] 0
        %253 = vst [vmem:[#allocation2 + $0x7c] sm:$0xf] 0
        %254 = vst [vmem:[#allocation2 + $0x80] sm:$0xf] 0
        %s255 = ssub.s32 %s185, 1
        %p256 = scmp.gt.s32.totalorder %s255, 0
        %s257 = scalar_select %p256, %s255, 0
        %p258 = scmp.lt.s32.totalorder %s257, 15
        %s259 = scalar_select %p258, %s257, 15
        %s260 = smul.u32 %s259, 2
        %s261 = smul.addr %s260, 4
        %s262 = scalar_lea.vmem %s182, %s261
        %v263 = vld [vmem:[%s262] sm:$0xf]
        %v264 = vld [vmem:[%s262 + $0x4] sm:$0xf]
        %vm265 = vsmask.f32 4368
        %vm266 = vmor %vm187, %vm265
        %v268 = vshrl.u32 %v263, 16
        %v270 = vrot.slane %v268, 7
        %v271 = vshll.u32 %v263, 16
        %v273 = vor.u32 %v270, %v271
        %v274 = vrot.slane %v270, 4
        %v276 = vshrl.u32 %v264, 16
        %v278 = vrot.slane %v276, 7
        %v279 = vshll.u32 %v264, 16
        %v281 = vor.u32 %v278, %v279
        %v282 = vsel %vm266, %v274, %v281
        %v283 = vrot.slane %v278, 4
        %v287 = vld [vmem:[#allocation2] sm:$0xf]
        %v288 = vsel %vm194, %v273, %v287
        %289 = vst [vmem:[#allocation2] sm:$0xf] %v288
        %290 = vst [vmem:[#allocation2 + $0x4] sm:$0xf] %v282
        %v291 = vld [vmem:[#allocation2 + $0x8] sm:$0x1]
        %v292 = vsel %vm188, %v283, %v291
        %293 = vst [vmem:[#allocation2 + $0x8] sm:$0x1] %v292
        %p294 = scmp.gt.s32.totalorder %s185, 0
        %s295 = scalar_select %p294, %s185, 0
        %p296 = scmp.lt.s32.totalorder %s295, 15
        %s297 = scalar_select %p296, %s295, 15
        %s298 = smul.u32 %s297, 2
        %s299 = smul.addr %s298, 4
        %s300 = scalar_lea.vmem %s182, %s299
        %v301 = vld [vmem:[%s300] sm:$0xf]
        %v302 = vld [vmem:[%s300 + $0x4] sm:$0xf]
        %v304 = vshrl.u32 %v301, 16
        %v306 = vrot.slane %v304, 7
        %v307 = vshll.u32 %v301, 16
        %v309 = vor.u32 %v306, %v307
        %v310 = vrot.slane %v306, 4
        %v312 = vshrl.u32 %v302, 16
        %v314 = vrot.slane %v312, 7
        %v315 = vshll.u32 %v302, 16
        %v317 = vor.u32 %v314, %v315
        %v318 = vsel %vm266, %v310, %v317
        %v319 = vrot.slane %v314, 4
        %v323 = vld [vmem:[#allocation2 + $0xc] sm:$0xf]
        %v324 = vsel %vm194, %v309, %v323
        %325 = vst [vmem:[#allocation2 + $0xc] sm:$0xf] %v324
        %326 = vst [vmem:[#allocation2 + $0x10] sm:$0xf] %v318
        %v327 = vld [vmem:[#allocation2 + $0x14] sm:$0x1]
        %v328 = vsel %vm188, %v319, %v327
        %329 = vst [vmem:[#allocation2 + $0x14] sm:$0x1] %v328
        %s330 = sadd.s32 %s185, 1
        %p331 = scmp.gt.s32.totalorder %s330, 0
        %s332 = scalar_select %p331, %s330, 0
        %p333 = scmp.lt.s32.totalorder %s332, 15
        %s334 = scalar_select %p333, %s332, 15
        %s335 = smul.u32 %s334, 2
        %s336 = smul.addr %s335, 4
        %s337 = scalar_lea.vmem %s182, %s336
        %v338 = vld [vmem:[%s337] sm:$0xf]
        %v339 = vld [vmem:[%s337 + $0x4] sm:$0xf]
        %v341 = vshrl.u32 %v338, 16
        %v343 = vrot.slane %v341, 7
        %v344 = vshll.u32 %v338, 16
        %v346 = vor.u32 %v343, %v344
        %v347 = vrot.slane %v343, 4
        %v349 = vshrl.u32 %v339, 16
        %v351 = vrot.slane %v349, 7
        %v352 = vshll.u32 %v339, 16
        %v354 = vor.u32 %v351, %v352
        %v355 = vsel %vm266, %v347, %v354
        %v356 = vrot.slane %v351, 4
        %v360 = vld [vmem:[#allocation2 + $0x18] sm:$0xf]
        %v361 = vsel %vm194, %v346, %v360
        %362 = vst [vmem:[#allocation2 + $0x18] sm:$0xf] %v361
        %363 = vst [vmem:[#allocation2 + $0x1c] sm:$0xf] %v355
        %v364 = vld [vmem:[#allocation2 + $0x20] sm:$0x1]
        %v365 = vsel %vm188, %v356, %v364
        %366 = vst [vmem:[#allocation2 + $0x20] sm:$0x1] %v365
        %s367 = sadd.s32 %s185, 2
        %p368 = scmp.gt.s32.totalorder %s367, 0
        %s369 = scalar_select %p368, %s367, 0
        %p370 = scmp.lt.s32.totalorder %s369, 15
        %s371 = scalar_select %p370, %s369, 15
        %s372 = smul.u32 %s371, 2
        %s373 = smul.addr %s372, 4
        %s374 = scalar_lea.vmem %s182, %s373
        %v375 = vld [vmem:[%s374] sm:$0xf]
        %v376 = vld [vmem:[%s374 + $0x4] sm:$0xf]
        %v378 = vshrl.u32 %v375, 16
        %v380 = vrot.slane %v378, 7
        %v381 = vshll.u32 %v375, 16
        %v383 = vor.u32 %v380, %v381
        %v384 = vrot.slane %v380, 4
        %v386 = vshrl.u32 %v376, 16
        %v388 = vrot.slane %v386, 7
        %v389 = vshll.u32 %v376, 16
        %v391 = vor.u32 %v388, %v389
        %v392 = vsel %vm266, %v384, %v391
        %v393 = vrot.slane %v388, 4
        %v397 = vld [vmem:[#allocation2 + $0x24] sm:$0xf]
        %v398 = vsel %vm194, %v383, %v397
        %399 = vst [vmem:[#allocation2 + $0x24] sm:$0xf] %v398
        %400 = vst [vmem:[#allocation2 + $0x28] sm:$0xf] %v392
        %v401 = vld [vmem:[#allocation2 + $0x2c] sm:$0x1]
        %v402 = vsel %vm188, %v393, %v401
        %403 = vst [vmem:[#allocation2 + $0x2c] sm:$0x1] %v402
        %s404 = sadd.s32 %s185, 3
        %p405 = scmp.gt.s32.totalorder %s404, 0
        %s406 = scalar_select %p405, %s404, 0
        %p407 = scmp.lt.s32.totalorder %s406, 15
        %s408 = scalar_select %p407, %s406, 15
        %s409 = smul.u32 %s408, 2
        %s410 = smul.addr %s409, 4
        %s411 = scalar_lea.vmem %s182, %s410
        %v412 = vld [vmem:[%s411] sm:$0xf]
        %v413 = vld [vmem:[%s411 + $0x4] sm:$0xf]
        %v415 = vshrl.u32 %v412, 16
        %v417 = vrot.slane %v415, 7
        %v418 = vshll.u32 %v412, 16
        %v420 = vor.u32 %v417, %v418
        %v421 = vrot.slane %v417, 4
        %v423 = vshrl.u32 %v413, 16
        %v425 = vrot.slane %v423, 7
        %v426 = vshll.u32 %v413, 16
        %v428 = vor.u32 %v425, %v426
        %v429 = vsel %vm266, %v421, %v428
        %v430 = vrot.slane %v425, 4
        %v434 = vld [vmem:[#allocation2 + $0x30] sm:$0xf]
        %v435 = vsel %vm194, %v420, %v434
        %436 = vst [vmem:[#allocation2 + $0x30] sm:$0xf] %v435
        %437 = vst [vmem:[#allocation2 + $0x34] sm:$0xf] %v429
        %v438 = vld [vmem:[#allocation2 + $0x38] sm:$0x1]
        %v439 = vsel %vm188, %v430, %v438
        %440 = vst [vmem:[#allocation2 + $0x38] sm:$0x1] %v439
        %s441 = sadd.s32 %s185, 4
        %p442 = scmp.gt.s32.totalorder %s441, 0
        %s443 = scalar_select %p442, %s441, 0
        %p444 = scmp.lt.s32.totalorder %s443, 15
        %s445 = scalar_select %p444, %s443, 15
        %s446 = smul.u32 %s445, 2
        %s447 = smul.addr %s446, 4
        %s448 = scalar_lea.vmem %s182, %s447
        %v449 = vld [vmem:[%s448] sm:$0xf]
        %v450 = vld [vmem:[%s448 + $0x4] sm:$0xf]
        %v452 = vshrl.u32 %v449, 16
        %v454 = vrot.slane %v452, 7
        %v455 = vshll.u32 %v449, 16
        %v457 = vor.u32 %v454, %v455
        %v458 = vrot.slane %v454, 4
        %v460 = vshrl.u32 %v450, 16
        %v462 = vrot.slane %v460, 7
        %v463 = vshll.u32 %v450, 16
        %v465 = vor.u32 %v462, %v463
        %v466 = vsel %vm266, %v458, %v465
        %v467 = vrot.slane %v462, 4
        %v471 = vld [vmem:[#allocation2 + $0x3c] sm:$0xf]
        %v472 = vsel %vm194, %v457, %v471
        %473 = vst [vmem:[#allocation2 + $0x3c] sm:$0xf] %v472
        %474 = vst [vmem:[#allocation2 + $0x40] sm:$0xf] %v466
        %v475 = vld [vmem:[#allocation2 + $0x44] sm:$0x1]
        %v476 = vsel %vm188, %v467, %v475
        %477 = vst [vmem:[#allocation2 + $0x44] sm:$0x1] %v476
        %s478 = sadd.s32 %s185, 5
        %p479 = scmp.gt.s32.totalorder %s478, 0
        %s480 = scalar_select %p479, %s478, 0
        %p481 = scmp.lt.s32.totalorder %s480, 15
        %s482 = scalar_select %p481, %s480, 15
        %s483 = smul.u32 %s482, 2
        %s484 = smul.addr %s483, 4
        %s485 = scalar_lea.vmem %s182, %s484
        %v486 = vld [vmem:[%s485] sm:$0xf]
        %v487 = vld [vmem:[%s485 + $0x4] sm:$0xf]
        %v489 = vshrl.u32 %v486, 16
        %v491 = vrot.slane %v489, 7
        %v492 = vshll.u32 %v486, 16
        %v494 = vor.u32 %v491, %v492
        %v495 = vrot.slane %v491, 4
        %v497 = vshrl.u32 %v487, 16
        %v499 = vrot.slane %v497, 7
        %v500 = vshll.u32 %v487, 16
        %v502 = vor.u32 %v499, %v500
        %v503 = vsel %vm266, %v495, %v502
        %v504 = vrot.slane %v499, 4
        %v508 = vld [vmem:[#allocation2 + $0x48] sm:$0xf]
        %v509 = vsel %vm194, %v494, %v508
        %510 = vst [vmem:[#allocation2 + $0x48] sm:$0xf] %v509
        %511 = vst [vmem:[#allocation2 + $0x4c] sm:$0xf] %v503
        %v512 = vld [vmem:[#allocation2 + $0x50] sm:$0x1]
        %v513 = vsel %vm188, %v504, %v512
        %514 = vst [vmem:[#allocation2 + $0x50] sm:$0x1] %v513
        %s515 = sadd.s32 %s185, 6
        %p516 = scmp.gt.s32.totalorder %s515, 0
        %s517 = scalar_select %p516, %s515, 0
        %p518 = scmp.lt.s32.totalorder %s517, 15
        %s519 = scalar_select %p518, %s517, 15
        %s520 = smul.u32 %s519, 2
        %s521 = smul.addr %s520, 4
        %s522 = scalar_lea.vmem %s182, %s521
        %v523 = vld [vmem:[%s522] sm:$0xf]
        %v524 = vld [vmem:[%s522 + $0x4] sm:$0xf]
        %v526 = vshrl.u32 %v523, 16
        %v528 = vrot.slane %v526, 7
        %v529 = vshll.u32 %v523, 16
        %v531 = vor.u32 %v528, %v529
        %v532 = vrot.slane %v528, 4
        %v534 = vshrl.u32 %v524, 16
        %v536 = vrot.slane %v534, 7
        %v537 = vshll.u32 %v524, 16
        %v539 = vor.u32 %v536, %v537
        %v540 = vsel %vm266, %v532, %v539
        %v541 = vrot.slane %v536, 4
        %v545 = vld [vmem:[#allocation2 + $0x54] sm:$0xf]
        %v546 = vsel %vm194, %v531, %v545
        %547 = vst [vmem:[#allocation2 + $0x54] sm:$0xf] %v546
        %548 = vst [vmem:[#allocation2 + $0x58] sm:$0xf] %v540
        %v549 = vld [vmem:[#allocation2 + $0x5c] sm:$0x1]
        %v550 = vsel %vm188, %v541, %v549
        %551 = vst [vmem:[#allocation2 + $0x5c] sm:$0x1] %v550
        %s552 = sadd.s32 %s185, 7
        %p553 = scmp.gt.s32.totalorder %s552, 0
        %s554 = scalar_select %p553, %s552, 0
        %p555 = scmp.lt.s32.totalorder %s554, 15
        %s556 = scalar_select %p555, %s554, 15
        %s557 = smul.u32 %s556, 2
        %s558 = smul.addr %s557, 4
        %s559 = scalar_lea.vmem %s182, %s558
        %v560 = vld [vmem:[%s559] sm:$0xf]
        %v561 = vld [vmem:[%s559 + $0x4] sm:$0xf]
        %v563 = vshrl.u32 %v560, 16
        %v565 = vrot.slane %v563, 7
        %v566 = vshll.u32 %v560, 16
        %v568 = vor.u32 %v565, %v566
        %v569 = vrot.slane %v565, 4
        %v571 = vshrl.u32 %v561, 16
        %v573 = vrot.slane %v571, 7
        %v574 = vshll.u32 %v561, 16
        %v576 = vor.u32 %v573, %v574
        %v577 = vsel %vm266, %v569, %v576
        %v578 = vrot.slane %v573, 4
        %v582 = vld [vmem:[#allocation2 + $0x60] sm:$0xf]
        %v583 = vsel %vm194, %v568, %v582
        %584 = vst [vmem:[#allocation2 + $0x60] sm:$0xf] %v583
        %585 = vst [vmem:[#allocation2 + $0x64] sm:$0xf] %v577
        %v586 = vld [vmem:[#allocation2 + $0x68] sm:$0x1]
        %v587 = vsel %vm188, %v578, %v586
        %588 = vst [vmem:[#allocation2 + $0x68] sm:$0x1] %v587
        %s589 = sadd.s32 %s185, 8
        %p590 = scmp.gt.s32.totalorder %s589, 0
        %s591 = scalar_select %p590, %s589, 0
        %p592 = scmp.lt.s32.totalorder %s591, 15
        %s593 = scalar_select %p592, %s591, 15
        %s594 = smul.u32 %s593, 2
        %s595 = smul.addr %s594, 4
        %s596 = scalar_lea.vmem %s182, %s595
        %v597 = vld [vmem:[%s596] sm:$0xf]
        %v598 = vld [vmem:[%s596 + $0x4] sm:$0xf]
        %v600 = vshrl.u32 %v597, 16
        %v602 = vrot.slane %v600, 7
        %v603 = vshll.u32 %v597, 16
        %v605 = vor.u32 %v602, %v603
        %v606 = vrot.slane %v602, 4
        %v608 = vshrl.u32 %v598, 16
        %v610 = vrot.slane %v608, 7
        %v611 = vshll.u32 %v598, 16
        %v613 = vor.u32 %v610, %v611
        %v614 = vsel %vm266, %v606, %v613
        %v615 = vrot.slane %v610, 4
        %v619 = vld [vmem:[#allocation2 + $0x6c] sm:$0xf]
        %v620 = vsel %vm194, %v605, %v619
        %621 = vst [vmem:[#allocation2 + $0x6c] sm:$0xf] %v620
        %622 = vst [vmem:[#allocation2 + $0x70] sm:$0xf] %v614
        %v623 = vld [vmem:[#allocation2 + $0x74] sm:$0x1]
        %v624 = vsel %vm188, %v615, %v623
        %625 = vst [vmem:[#allocation2 + $0x74] sm:$0x1] %v624
        %p626 = scmp.eq.s32.totalorder %s22, 0
        // Predicated region
        $region33: #{upsampler_forward.5} parent=31 // pred_check
          %p627 = pneg %p626
        $region34: #{upsampler_forward.5} parent=31 // pred_check_branch
          %629 = sbr.rel (%p627) target = $region36
        $region35: #{upsampler_forward.5} parent=31 // pred_region
          %v630 = vld [vmem:[#allocation2] sm:$0xf]
          %v631 = vsel %vm194, 0, %v630
          %632 = vst [vmem:[#allocation2] sm:$0xf] %v631
          %633 = vst [vmem:[#allocation2 + $0x4] sm:$0xf] 0
          %v634 = vld [vmem:[#allocation2 + $0x8] sm:$0x1]
          %v635 = vsel %vm188, 0, %v634
          %636 = vst [vmem:[#allocation2 + $0x8] sm:$0x1] %v635
        $region36: #{upsampler_forward.5} parent=31 // pred_fallthru
          _
        %p637 = scmp.eq.s32.totalorder %s22, 1
        // Predicated region
        $region37: #{upsampler_forward.5} parent=31 // pred_check
          %p638 = pneg %p637
        $region38: #{upsampler_forward.5} parent=31 // pred_check_branch
          %640 = sbr.rel (%p638) target = $region40
        $region39: #{upsampler_forward.5} parent=31 // pred_region
          %v641 = vld [vmem:[#allocation2 + $0x6c] sm:$0xf]
          %v642 = vsel %vm194, 0, %v641
          %643 = vst [vmem:[#allocation2 + $0x6c] sm:$0xf] %v642
          %644 = vst [vmem:[#allocation2 + $0x70] sm:$0xf] 0
          %v645 = vld [vmem:[#allocation2 + $0x74] sm:$0x1]
          %v646 = vsel %vm188, 0, %v645
          %647 = vst [vmem:[#allocation2 + $0x74] sm:$0x1] %v646
        $region40: #{upsampler_forward.5} parent=31 // pred_fallthru
          _
        %v648 = vld [vmem:[#allocation2] sm:$0xf]
        %v649 = vld [vmem:[#allocation2 + $0x4] sm:$0xf]
        %v650 = vld [vmem:[#allocation2 + $0x8] sm:$0xf]
        %v651 = vld [vmem:[#allocation2 + $0xc] sm:$0xf]
        %v652 = vld [vmem:[#allocation2 + $0x10] sm:$0xf]
        %v653 = vld [vmem:[#allocation2 + $0x14] sm:$0xf]
        %v654 = vld [vmem:[#allocation2 + $0x18] sm:$0xf]
        %v655 = vld [vmem:[#allocation2 + $0x1c] sm:$0xf]
        %v656 = vld [vmem:[#allocation2 + $0x20] sm:$0xf]
        %v657 = vld [vmem:[#allocation2 + $0x24] sm:$0xf]
        %v658 = vld [vmem:[#allocation2 + $0x28] sm:$0xf]
        %v659 = vld [vmem:[#allocation2 + $0x2c] sm:$0xf]
        %v660 = vld [vmem:[#allocation2 + $0x30] sm:$0xf]
        %v661 = vld [vmem:[#allocation2 + $0x34] sm:$0xf]
        %v662 = vld [vmem:[#allocation2 + $0x38] sm:$0xf]
        %v663 = vld [vmem:[#allocation2 + $0x3c] sm:$0xf]
        %v664 = vld [vmem:[#allocation2 + $0x40] sm:$0xf]
        %v665 = vld [vmem:[#allocation2 + $0x44] sm:$0xf]
        %v666 = vld [vmem:[#allocation2 + $0x48] sm:$0xf]
        %v667 = vld [vmem:[#allocation2 + $0x4c] sm:$0xf]
        %v668 = vld [vmem:[#allocation2 + $0x50] sm:$0xf]
        %v669 = vld [vmem:[#allocation2 + $0x54] sm:$0xf]
        %v670 = vld [vmem:[#allocation2 + $0x58] sm:$0xf]
        %v671 = vld [vmem:[#allocation2 + $0x5c] sm:$0xf]
        %v672 = vld [vmem:[%s1] sm:$0xf]
        %v673 = vld [vmem:[%s1 + $0x4] sm:$0xf]
        %v674 = vld [vmem:[%s1 + $0x8] sm:$0xf]
        %v675 = vld [vmem:[%s1 + $0xc] sm:$0xf]
        %v676 = vld [vmem:[%s1 + $0x10] sm:$0xf]
        %v677 = vld [vmem:[%s1 + $0x14] sm:$0xf]
        %v678 = vld [vmem:[%s1 + $0x18] sm:$0xf]
        %v679 = vld [vmem:[%s1 + $0x1c] sm:$0xf]
        %v680 = vld [vmem:[%s1 + $0x20] sm:$0xf]
        %v681 = vld [vmem:[%s1 + $0x24] sm:$0xf]
        %v682 = vld [vmem:[%s1 + $0x28] sm:$0xf]
        %v683 = vld [vmem:[%s1 + $0x2c] sm:$0xf]
        %v684 = vld [vmem:[%s1 + $0x30] sm:$0xf]
        %v685 = vld [vmem:[%s1 + $0x34] sm:$0xf]
        %v686 = vld [vmem:[%s1 + $0x38] sm:$0xf]
        %v687 = vld [vmem:[%s1 + $0x3c] sm:$0xf]
        %v688 = vld [vmem:[#allocation2 + $0x60] sm:$0x1]
        %s689 = scalar_lea.vmem %s1, 64
        %v690 = vld [vmem:[%s689] sm:$0xf]
        %v691 = vld [vmem:[%s689 + $0x4] sm:$0xf]
        %v692 = vld [vmem:[%s689 + $0x8] sm:$0xf]
        %v693 = vld [vmem:[%s689 + $0xc] sm:$0xf]
        %v694 = vld [vmem:[%s689 + $0x10] sm:$0xf]
        %v695 = vld [vmem:[%s689 + $0x14] sm:$0xf]
        %v696 = vld [vmem:[%s689 + $0x18] sm:$0xf]
        %v697 = vld [vmem:[%s689 + $0x1c] sm:$0xf]
        %v698 = vld [vmem:[%s689 + $0x20] sm:$0xf]
        %v699 = vld [vmem:[%s689 + $0x24] sm:$0xf]
        %v700 = vld [vmem:[%s689 + $0x28] sm:$0xf]
        %v701 = vld [vmem:[%s689 + $0x2c] sm:$0xf]
        %v702 = vld [vmem:[%s689 + $0x30] sm:$0xf]
        %v703 = vld [vmem:[%s689 + $0x34] sm:$0xf]
        %v704 = vld [vmem:[%s689 + $0x38] sm:$0xf]
        %v705 = vld [vmem:[%s689 + $0x3c] sm:$0xf]
        %v731 = vunpack.c.l.b16 %v648
        %v732 = vunpack.c.l.b16 %v649
        %v733 = vunpack.c.l.b16 %v650
        %v734 = vunpack.c.l.b16 %v651
        %v735 = vunpack.c.l.b16 %v652
        %v736 = vunpack.c.l.b16 %v653
        %v737 = vunpack.c.l.b16 %v654
        %v738 = vunpack.c.l.b16 %v655
        %v739 = vunpack.c.l.b16 %v656
        %v740 = vunpack.c.l.b16 %v657
        %v741 = vunpack.c.l.b16 %v658
        %v742 = vunpack.c.l.b16 %v659
        %v743 = vunpack.c.l.b16 %v660
        %v744 = vunpack.c.l.b16 %v661
        %v745 = vunpack.c.l.b16 %v662
        %v746 = vunpack.c.l.b16 %v663
        %v747 = vunpack.c.l.b16 %v664
        %v748 = vunpack.c.l.b16 %v665
        %v749 = vunpack.c.l.b16 %v666
        %v750 = vunpack.c.l.b16 %v667
        %v751 = vunpack.c.l.b16 %v668
        %v752 = vunpack.c.l.b16 %v669
        %v753 = vunpack.c.l.b16 %v670
        %v754 = vunpack.c.l.b16 %v671
        %v755 = vunpack.c.l.b16 %v688
        %v756 = vpack.c.b16 %v732, %v731
        %v757 = vpack.c.b16 %v734, %v733
        %v758 = vpack.c.b16 %v736, %v735
        %v759 = vpack.c.b16 %v738, %v737
        %v760 = vpack.c.b16 %v740, %v739
        %v761 = vpack.c.b16 %v742, %v741
        %v762 = vpack.c.b16 %v744, %v743
        %v763 = vpack.c.b16 %v746, %v745
        %v764 = vpack.c.b16 %v748, %v747
        %v765 = vpack.c.b16 %v750, %v749
        %v766 = vpack.c.b16 %v752, %v751
        %v767 = vpack.c.b16 %v754, %v753
        %v768 = vpack.c.b16 %v755, %v755
        %vm769 = vsmask.f32 7424
        %v771 = vshrl.u32 %v756, 16
        %v773 = vshll.u32 %v756, 16
        %v775 = vrot.slane %v773, 1
        %v776 = vor.u32 %v771, %v775
        %v778 = vshll.u32 %v757, 16
        %v780 = vrot.slane %v778, 1
        %v781 = vsel %vm769, %v776, %v780
        %v782 = vshrl.u32 %v757, 16
        %v784 = vor.u32 %v782, %v780
        %v786 = vshll.u32 %v758, 16
        %v788 = vrot.slane %v786, 1
        %v789 = vsel %vm769, %v784, %v788
        %v790 = vshrl.u32 %v758, 16
        %v792 = vor.u32 %v790, %v788
        %v794 = vshll.u32 %v759, 16
        %v796 = vrot.slane %v794, 1
        %v797 = vsel %vm769, %v792, %v796
        %v798 = vshrl.u32 %v759, 16
        %v800 = vor.u32 %v798, %v796
        %v802 = vshll.u32 %v760, 16
        %v804 = vrot.slane %v802, 1
        %v805 = vsel %vm769, %v800, %v804
        %v806 = vshrl.u32 %v760, 16
        %v808 = vor.u32 %v806, %v804
        %v810 = vshll.u32 %v761, 16
        %v812 = vrot.slane %v810, 1
        %v813 = vsel %vm769, %v808, %v812
        %v814 = vshrl.u32 %v761, 16
        %v816 = vor.u32 %v814, %v812
        %v818 = vshll.u32 %v762, 16
        %v820 = vrot.slane %v818, 1
        %v821 = vsel %vm769, %v816, %v820
        %v822 = vshrl.u32 %v762, 16
        %v824 = vor.u32 %v822, %v820
        %v826 = vshll.u32 %v763, 16
        %v828 = vrot.slane %v826, 1
        %v829 = vsel %vm769, %v824, %v828
        %v830 = vshrl.u32 %v763, 16
        %v832 = vor.u32 %v830, %v828
        %v834 = vshll.u32 %v764, 16
        %v836 = vrot.slane %v834, 1
        %v837 = vsel %vm769, %v832, %v836
        %v838 = vshrl.u32 %v764, 16
        %v840 = vor.u32 %v838, %v836
        %v842 = vshll.u32 %v765, 16
        %v844 = vrot.slane %v842, 1
        %v845 = vsel %vm769, %v840, %v844
        %v846 = vshrl.u32 %v765, 16
        %v848 = vor.u32 %v846, %v844
        %v850 = vshll.u32 %v766, 16
        %v852 = vrot.slane %v850, 1
        %v853 = vsel %vm769, %v848, %v852
        %v854 = vshrl.u32 %v766, 16
        %v856 = vor.u32 %v854, %v852
        %v858 = vshll.u32 %v767, 16
        %v860 = vrot.slane %v858, 1
        %v861 = vsel %vm769, %v856, %v860
        %v862 = vshrl.u32 %v767, 16
        %v864 = vor.u32 %v862, %v860
        %v866 = vshll.u32 %v768, 16
        %v868 = vrot.slane %v866, 1
        %v869 = vsel %vm769, %v864, %v868
        %v898 = vunpack.c.l.b16 %v690
        %v899 = vunpack.c.l.b16 %v691
        %v900 = vunpack.c.l.b16 %v692
        %v901 = vunpack.c.l.b16 %v693
        %v902 = vunpack.c.l.b16 %v694
        %v903 = vunpack.c.l.b16 %v695
        %v904 = vunpack.c.l.b16 %v696
        %v905 = vunpack.c.l.b16 %v697
        %v906 = vunpack.c.l.b16 %v698
        %v907 = vunpack.c.l.b16 %v699
        %v908 = vunpack.c.l.b16 %v700
        %v909 = vunpack.c.l.b16 %v701
        %v910 = vunpack.c.l.b16 %v702
        %v911 = vunpack.c.l.b16 %v703
        %v912 = vunpack.c.l.b16 %v704
        %v913 = vunpack.c.l.b16 %v705
        %v914 = vpack.c.b16 %v899, %v898
        %v915 = vpack.c.b16 %v901, %v900
        %v916 = vpack.c.b16 %v903, %v902
        %v917 = vpack.c.b16 %v905, %v904
        %v918 = vpack.c.b16 %v907, %v906
        %v919 = vpack.c.b16 %v909, %v908
        %v920 = vpack.c.b16 %v911, %v910
        %v921 = vpack.c.b16 %v913, %v912
        %930 = vmatpush.bf16.msra.mxu0 %v921
        %931 = vmatpush.bf16.msra.mxu0 %v920
        %932 = vmatpush.bf16.msra.mxu0 %v919
        %933 = vmatpush.bf16.msra.mxu0 %v918
        %934 = vmatpush.bf16.msra.mxu0 %v917
        %935 = vmatpush.bf16.msra.mxu0 %v916
        %936 = vmatpush.bf16.msra.mxu0 %v915
        %937 = vmatpush.bf16.msra.mxu0 %v914
        %938 = vmatmul.bf16.gmra.mxu0 %v781
        %v939 = vpop.f32.mrf.mxu0
        %v940 = vadd.f32 0.0, %v939
        %v941 = vpop.f32.mrf.mxu0
        %v942 = vadd.f32 0.0, %v941
        %943 = vmatmul.bf16.gmra.mxu0 %v789
        %v944 = vpop.f32.mrf.mxu0
        %v945 = vpop.f32.mrf.mxu0
        %v946 = vadd.f32 0.0, %v945
        %947 = vmatmul.bf16.gmra.mxu0 %v797
        %v948 = vpop.f32.mrf.mxu0
        %v949 = vadd.f32 0.0, %v948
        %v950 = vpop.f32.mrf.mxu0
        %951 = vmatmul.bf16.gmra.mxu0 %v805
        %v952 = vpop.f32.mrf.mxu0
        %v953 = vadd.f32 0.0, %v952
        %v954 = vpop.f32.mrf.mxu0
        %v955 = vadd.f32 0.0, %v954
        %956 = vmatmul.bf16.gmra.mxu0 %v813
        %v957 = vpop.f32.mrf.mxu0
        %v958 = vpop.f32.mrf.mxu0
        %v959 = vadd.f32 0.0, %v958
        %960 = vmatmul.bf16.gmra.mxu0 %v821
        %v961 = vpop.f32.mrf.mxu0
        %v962 = vadd.f32 0.0, %v961
        %v963 = vpop.f32.mrf.mxu0
        %964 = vmatmul.bf16.gmra.mxu0 %v829
        %v965 = vpop.f32.mrf.mxu0
        %v966 = vadd.f32 0.0, %v965
        %v967 = vpop.f32.mrf.mxu0
        %v968 = vadd.f32 0.0, %v967
        %969 = vmatmul.bf16.gmra.mxu0 %v837
        %v970 = vpop.f32.mrf.mxu0
        %v971 = vpop.f32.mrf.mxu0
        %v972 = vadd.f32 0.0, %v971
        %973 = vmatmul.bf16.gmra.mxu0 %v845
        %v974 = vpop.f32.mrf.mxu0
        %v975 = vadd.f32 0.0, %v974
        %v976 = vpop.f32.mrf.mxu0
        %977 = vmatmul.bf16.gmra.mxu0 %v853
        %v978 = vpop.f32.mrf.mxu0
        %v979 = vadd.f32 0.0, %v978
        %v980 = vpop.f32.mrf.mxu0
        %v981 = vadd.f32 0.0, %v980
        %982 = vmatmul.bf16.gmra.mxu0 %v861
        %v983 = vpop.f32.mrf.mxu0
        %v984 = vpop.f32.mrf.mxu0
        %v985 = vadd.f32 0.0, %v984
        %986 = vmatmul.bf16.gmra.mxu0 %v869
        %v987 = vpop.f32.mrf.mxu0
        %v988 = vadd.f32 0.0, %v987
        %v989 = vpop.f32.mrf.mxu0
        %990 = vdwg.mxu0
        %v1019 = vunpack.c.l.b16 %v672
        %v1020 = vunpack.c.l.b16 %v673
        %v1021 = vunpack.c.l.b16 %v674
        %v1022 = vunpack.c.l.b16 %v675
        %v1023 = vunpack.c.l.b16 %v676
        %v1024 = vunpack.c.l.b16 %v677
        %v1025 = vunpack.c.l.b16 %v678
        %v1026 = vunpack.c.l.b16 %v679
        %v1027 = vunpack.c.l.b16 %v680
        %v1028 = vunpack.c.l.b16 %v681
        %v1029 = vunpack.c.l.b16 %v682
        %v1030 = vunpack.c.l.b16 %v683
        %v1031 = vunpack.c.l.b16 %v684
        %v1032 = vunpack.c.l.b16 %v685
        %v1033 = vunpack.c.l.b16 %v686
        %v1034 = vunpack.c.l.b16 %v687
        %v1035 = vpack.c.b16 %v1020, %v1019
        %v1036 = vpack.c.b16 %v1022, %v1021
        %v1037 = vpack.c.b16 %v1024, %v1023
        %v1038 = vpack.c.b16 %v1026, %v1025
        %v1039 = vpack.c.b16 %v1028, %v1027
        %v1040 = vpack.c.b16 %v1030, %v1029
        %v1041 = vpack.c.b16 %v1032, %v1031
        %v1042 = vpack.c.b16 %v1034, %v1033
        %1051 = vmatpush.bf16.msra.mxu0 %v1042
        %1052 = vmatpush.bf16.msra.mxu0 %v1041
        %1053 = vmatpush.bf16.msra.mxu0 %v1040
        %1054 = vmatpush.bf16.msra.mxu0 %v1039
        %1055 = vmatpush.bf16.msra.mxu0 %v1038
        %1056 = vmatpush.bf16.msra.mxu0 %v1037
        %1057 = vmatpush.bf16.msra.mxu0 %v1036
        %1058 = vmatpush.bf16.msra.mxu0 %v1035
        %1059 = vmatmul.bf16.gmra.mxu0 %v756
        %v1060 = vpop.f32.mrf.mxu0
        %v1061 = vadd.f32 %v940, %v1060
        %v1062 = vpop.f32.mrf.mxu0
        %v1063 = vadd.f32 %v942, %v1062
        %1064 = vmatmul.bf16.gmra.mxu0 %v757
        %v1065 = vpop.f32.mrf.mxu0
        %v1066 = vpop.f32.mrf.mxu0
        %v1067 = vadd.f32 %v946, %v1066
        %1068 = vmatmul.bf16.gmra.mxu0 %v758
        %v1069 = vpop.f32.mrf.mxu0
        %v1070 = vadd.f32 %v949, %v1069
        %v1071 = vpop.f32.mrf.mxu0
        %1072 = vmatmul.bf16.gmra.mxu0 %v759
        %v1073 = vpop.f32.mrf.mxu0
        %v1074 = vadd.f32 %v953, %v1073
        %v1075 = vpop.f32.mrf.mxu0
        %v1076 = vadd.f32 %v955, %v1075
        %1077 = vmatmul.bf16.gmra.mxu0 %v760
        %v1078 = vpop.f32.mrf.mxu0
        %v1079 = vpop.f32.mrf.mxu0
        %v1080 = vadd.f32 %v959, %v1079
        %1081 = vmatmul.bf16.gmra.mxu0 %v761
        %v1082 = vpop.f32.mrf.mxu0
        %v1083 = vadd.f32 %v962, %v1082
        %v1084 = vpop.f32.mrf.mxu0
        %1085 = vmatmul.bf16.gmra.mxu0 %v762
        %v1086 = vpop.f32.mrf.mxu0
        %v1087 = vadd.f32 %v966, %v1086
        %v1088 = vpop.f32.mrf.mxu0
        %v1089 = vadd.f32 %v968, %v1088
        %1090 = vmatmul.bf16.gmra.mxu0 %v763
        %v1091 = vpop.f32.mrf.mxu0
        %v1092 = vpop.f32.mrf.mxu0
        %v1093 = vadd.f32 %v972, %v1092
        %1094 = vmatmul.bf16.gmra.mxu0 %v764
        %v1095 = vpop.f32.mrf.mxu0
        %v1096 = vadd.f32 %v975, %v1095
        %v1097 = vpop.f32.mrf.mxu0
        %1098 = vmatmul.bf16.gmra.mxu0 %v765
        %v1099 = vpop.f32.mrf.mxu0
        %v1100 = vadd.f32 %v979, %v1099
        %v1101 = vpop.f32.mrf.mxu0
        %v1102 = vadd.f32 %v981, %v1101
        %1103 = vmatmul.bf16.gmra.mxu0 %v766
        %v1104 = vpop.f32.mrf.mxu0
        %v1105 = vpop.f32.mrf.mxu0
        %v1106 = vadd.f32 %v985, %v1105
        %1107 = vmatmul.bf16.gmra.mxu0 %v767
        %v1108 = vpop.f32.mrf.mxu0
        %v1109 = vadd.f32 %v988, %v1108
        %v1110 = vpop.f32.mrf.mxu0
        %1111 = vdwg.mxu0
        %v1112 = vld [vmem:[#allocation2] sm:$0xe]
        %s1113 = scalar_lea.vmem %s1, 128
        %v1114 = vld [vmem:[%s1113] sm:$0xf]
        %v1115 = vld [vmem:[%s1113 + $0x4] sm:$0xf]
        %v1116 = vld [vmem:[%s1113 + $0x8] sm:$0xf]
        %v1117 = vld [vmem:[%s1113 + $0xc] sm:$0xf]
        %v1118 = vld [vmem:[%s1113 + $0x10] sm:$0xf]
        %v1119 = vld [vmem:[%s1113 + $0x14] sm:$0xf]
        %v1120 = vld [vmem:[%s1113 + $0x18] sm:$0xf]
        %v1121 = vld [vmem:[%s1113 + $0x1c] sm:$0xf]
        %v1122 = vld [vmem:[%s1113 + $0x20] sm:$0xf]
        %v1123 = vld [vmem:[%s1113 + $0x24] sm:$0xf]
        %v1124 = vld [vmem:[%s1113 + $0x28] sm:$0xf]
        %v1125 = vld [vmem:[%s1113 + $0x2c] sm:$0xf]
        %v1126 = vld [vmem:[%s1113 + $0x30] sm:$0xf]
        %v1127 = vld [vmem:[%s1113 + $0x34] sm:$0xf]
        %v1128 = vld [vmem:[%s1113 + $0x38] sm:$0xf]
        %v1129 = vld [vmem:[%s1113 + $0x3c] sm:$0xf]
        %v1131 = vunpack.c.l.b16 %v1112
        %v1132 = vpack.c.b16 %v732, %v1131
        %vm1133 = vcmask 1046528
        %v1134 = vrot.slane %v1132, 1
        %v1135 = vrot.slane %v757, 1
        %v1136 = vsel %vm1133, %v1134, %v1135
        %v1137 = vrot.slane %v758, 1
        %v1138 = vsel %vm1133, %v1135, %v1137
        %v1139 = vrot.slane %v759, 1
        %v1140 = vsel %vm1133, %v1137, %v1139
        %v1141 = vrot.slane %v760, 1
        %v1142 = vsel %vm1133, %v1139, %v1141
        %v1143 = vrot.slane %v761, 1
        %v1144 = vsel %vm1133, %v1141, %v1143
        %v1145 = vrot.slane %v762, 1
        %v1146 = vsel %vm1133, %v1143, %v1145
        %v1147 = vrot.slane %v763, 1
        %v1148 = vsel %vm1133, %v1145, %v1147
        %v1149 = vrot.slane %v764, 1
        %v1150 = vsel %vm1133, %v1147, %v1149
        %v1151 = vrot.slane %v765, 1
        %v1152 = vsel %vm1133, %v1149, %v1151
        %v1153 = vrot.slane %v766, 1
        %v1154 = vsel %vm1133, %v1151, %v1153
        %v1155 = vrot.slane %v767, 1
        %v1156 = vsel %vm1133, %v1153, %v1155
        %v1157 = vrot.slane %v768, 1
        %v1158 = vsel %vm1133, %v1155, %v1157
        %v1187 = vunpack.c.l.b16 %v1114
        %v1188 = vunpack.c.l.b16 %v1115
        %v1189 = vunpack.c.l.b16 %v1116
        %v1190 = vunpack.c.l.b16 %v1117
        %v1191 = vunpack.c.l.b16 %v1118
        %v1192 = vunpack.c.l.b16 %v1119
        %v1193 = vunpack.c.l.b16 %v1120
        %v1194 = vunpack.c.l.b16 %v1121
        %v1195 = vunpack.c.l.b16 %v1122
        %v1196 = vunpack.c.l.b16 %v1123
        %v1197 = vunpack.c.l.b16 %v1124
        %v1198 = vunpack.c.l.b16 %v1125
        %v1199 = vunpack.c.l.b16 %v1126
        %v1200 = vunpack.c.l.b16 %v1127
        %v1201 = vunpack.c.l.b16 %v1128
        %v1202 = vunpack.c.l.b16 %v1129
        %v1203 = vpack.c.b16 %v1188, %v1187
        %v1204 = vpack.c.b16 %v1190, %v1189
        %v1205 = vpack.c.b16 %v1192, %v1191
        %v1206 = vpack.c.b16 %v1194, %v1193
        %v1207 = vpack.c.b16 %v1196, %v1195
        %v1208 = vpack.c.b16 %v1198, %v1197
        %v1209 = vpack.c.b16 %v1200, %v1199
        %v1210 = vpack.c.b16 %v1202, %v1201
        %1219 = vmatpush.bf16.msra.mxu0 %v1210
        %1220 = vmatpush.bf16.msra.mxu0 %v1209
        %1221 = vmatpush.bf16.msra.mxu0 %v1208
        %1222 = vmatpush.bf16.msra.mxu0 %v1207
        %1223 = vmatpush.bf16.msra.mxu0 %v1206
        %1224 = vmatpush.bf16.msra.mxu0 %v1205
        %1225 = vmatpush.bf16.msra.mxu0 %v1204
        %1226 = vmatpush.bf16.msra.mxu0 %v1203
        %1227 = vmatmul.bf16.gmra.mxu0 %v1136
        %v1228 = vpop.f32.mrf.mxu0
        %v1229 = vadd.f32 0.0, %v1228
        %v1230 = vpop.f32.mrf.mxu0
        %v1231 = vadd.f32 0.0, %v1230
        %1232 = vmatmul.bf16.gmra.mxu0 %v1138
        %v1233 = vpop.f32.mrf.mxu0
        %v1234 = vpop.f32.mrf.mxu0
        %v1235 = vadd.f32 0.0, %v1234
        %1236 = vmatmul.bf16.gmra.mxu0 %v1140
        %v1237 = vpop.f32.mrf.mxu0
        %v1238 = vadd.f32 0.0, %v1237
        %v1239 = vpop.f32.mrf.mxu0
        %1240 = vmatmul.bf16.gmra.mxu0 %v1142
        %v1241 = vpop.f32.mrf.mxu0
        %v1242 = vadd.f32 0.0, %v1241
        %v1243 = vpop.f32.mrf.mxu0
        %v1244 = vadd.f32 0.0, %v1243
        %1245 = vmatmul.bf16.gmra.mxu0 %v1144
        %v1246 = vpop.f32.mrf.mxu0
        %v1247 = vpop.f32.mrf.mxu0
        %v1248 = vadd.f32 0.0, %v1247
        %1249 = vmatmul.bf16.gmra.mxu0 %v1146
        %v1250 = vpop.f32.mrf.mxu0
        %v1251 = vadd.f32 0.0, %v1250
        %v1252 = vpop.f32.mrf.mxu0
        %1253 = vmatmul.bf16.gmra.mxu0 %v1148
        %v1254 = vpop.f32.mrf.mxu0
        %v1255 = vadd.f32 0.0, %v1254
        %v1256 = vpop.f32.mrf.mxu0
        %v1257 = vadd.f32 0.0, %v1256
        %1258 = vmatmul.bf16.gmra.mxu0 %v1150
        %v1259 = vpop.f32.mrf.mxu0
        %v1260 = vpop.f32.mrf.mxu0
        %v1261 = vadd.f32 0.0, %v1260
        %1262 = vmatmul.bf16.gmra.mxu0 %v1152
        %v1263 = vpop.f32.mrf.mxu0
        %v1264 = vadd.f32 0.0, %v1263
        %v1265 = vpop.f32.mrf.mxu0
        %1266 = vmatmul.bf16.gmra.mxu0 %v1154
        %v1267 = vpop.f32.mrf.mxu0
        %v1268 = vadd.f32 0.0, %v1267
        %v1269 = vpop.f32.mrf.mxu0
        %v1270 = vadd.f32 0.0, %v1269
        %1271 = vmatmul.bf16.gmra.mxu0 %v1156
        %v1272 = vpop.f32.mrf.mxu0
        %v1273 = vpop.f32.mrf.mxu0
        %v1274 = vadd.f32 0.0, %v1273
        %1275 = vmatmul.bf16.gmra.mxu0 %v1158
        %v1276 = vpop.f32.mrf.mxu0
        %v1277 = vadd.f32 0.0, %v1276
        %v1278 = vpop.f32.mrf.mxu0
        %1279 = vdwg.mxu0
        %v1280 = vadd.f32 %v1061, %v1229
        %v1281 = vadd.f32 %v1063, %v1231
        %v1282 = vadd.f32 %v1067, %v1235
        %v1283 = vadd.f32 %v1070, %v1238
        %v1284 = vadd.f32 %v1074, %v1242
        %v1285 = vadd.f32 %v1076, %v1244
        %v1286 = vadd.f32 %v1080, %v1248
        %v1287 = vadd.f32 %v1083, %v1251
        %v1288 = vadd.f32 %v1087, %v1255
        %v1289 = vadd.f32 %v1089, %v1257
        %v1290 = vadd.f32 %v1093, %v1261
        %v1291 = vadd.f32 %v1096, %v1264
        %v1292 = vadd.f32 %v1100, %v1268
        %v1293 = vadd.f32 %v1102, %v1270
        %v1294 = vadd.f32 %v1106, %v1274
        %v1295 = vadd.f32 %v1109, %v1277
        %v1296 = vld [vmem:[#allocation2 + $0xc] sm:$0xf]
        %v1297 = vld [vmem:[#allocation2 + $0x10] sm:$0xf]
        %v1298 = vld [vmem:[#allocation2 + $0x14] sm:$0xf]
        %v1299 = vld [vmem:[#allocation2 + $0x18] sm:$0xf]
        %v1300 = vld [vmem:[#allocation2 + $0x1c] sm:$0xf]
        %v1301 = vld [vmem:[#allocation2 + $0x20] sm:$0xf]
        %v1302 = vld [vmem:[#allocation2 + $0x24] sm:$0xf]
        %v1303 = vld [vmem:[#allocation2 + $0x28] sm:$0xf]
        %v1304 = vld [vmem:[#allocation2 + $0x2c] sm:$0xf]
        %v1305 = vld [vmem:[#allocation2 + $0x30] sm:$0xf]
        %v1306 = vld [vmem:[#allocation2 + $0x34] sm:$0xf]
        %v1307 = vld [vmem:[#allocation2 + $0x38] sm:$0xf]
        %v1308 = vld [vmem:[#allocation2 + $0x3c] sm:$0xf]
        %v1309 = vld [vmem:[#allocation2 + $0x40] sm:$0xf]
        %v1310 = vld [vmem:[#allocation2 + $0x44] sm:$0xf]
        %v1311 = vld [vmem:[#allocation2 + $0x48] sm:$0xf]
        %v1312 = vld [vmem:[#allocation2 + $0x4c] sm:$0xf]
        %v1313 = vld [vmem:[#allocation2 + $0x50] sm:$0xf]
        %v1314 = vld [vmem:[#allocation2 + $0x54] sm:$0xf]
        %v1315 = vld [vmem:[#allocation2 + $0x58] sm:$0xf]
        %v1316 = vld [vmem:[#allocation2 + $0x5c] sm:$0xf]
        %v1317 = vld [vmem:[#allocation2 + $0x60] sm:$0xf]
        %v1318 = vld [vmem:[#allocation2 + $0x64] sm:$0xf]
        %v1319 = vld [vmem:[#allocation2 + $0x68] sm:$0xf]
        %s1320 = scalar_lea.vmem %s1, 192
        %v1321 = vld [vmem:[%s1320] sm:$0xf]
        %v1322 = vld [vmem:[%s1320 + $0x4] sm:$0xf]
        %v1323 = vld [vmem:[%s1320 + $0x8] sm:$0xf]
        %v1324 = vld [vmem:[%s1320 + $0xc] sm:$0xf]
        %v1325 = vld [vmem:[%s1320 + $0x10] sm:$0xf]
        %v1326 = vld [vmem:[%s1320 + $0x14] sm:$0xf]
        %v1327 = vld [vmem:[%s1320 + $0x18] sm:$0xf]
        %v1328 = vld [vmem:[%s1320 + $0x1c] sm:$0xf]
        %v1329 = vld [vmem:[%s1320 + $0x20] sm:$0xf]
        %v1330 = vld [vmem:[%s1320 + $0x24] sm:$0xf]
        %v1331 = vld [vmem:[%s1320 + $0x28] sm:$0xf]
        %v1332 = vld [vmem:[%s1320 + $0x2c] sm:$0xf]
        %v1333 = vld [vmem:[%s1320 + $0x30] sm:$0xf]
        %v1334 = vld [vmem:[%s1320 + $0x34] sm:$0xf]
        %v1335 = vld [vmem:[%s1320 + $0x38] sm:$0xf]
        %v1336 = vld [vmem:[%s1320 + $0x3c] sm:$0xf]
        %v1361 = vunpack.c.l.b16 %v1296
        %v1362 = vunpack.c.l.b16 %v1297
        %v1363 = vunpack.c.l.b16 %v1298
        %v1364 = vunpack.c.l.b16 %v1299
        %v1365 = vunpack.c.l.b16 %v1300
        %v1366 = vunpack.c.l.b16 %v1301
        %v1367 = vunpack.c.l.b16 %v1302
        %v1368 = vunpack.c.l.b16 %v1303
        %v1369 = vunpack.c.l.b16 %v1304
        %v1370 = vunpack.c.l.b16 %v1305
        %v1371 = vunpack.c.l.b16 %v1306
        %v1372 = vunpack.c.l.b16 %v1307
        %v1373 = vunpack.c.l.b16 %v1308
        %v1374 = vunpack.c.l.b16 %v1309
        %v1375 = vunpack.c.l.b16 %v1310
        %v1376 = vunpack.c.l.b16 %v1311
        %v1377 = vunpack.c.l.b16 %v1312
        %v1378 = vunpack.c.l.b16 %v1313
        %v1379 = vunpack.c.l.b16 %v1314
        %v1380 = vunpack.c.l.b16 %v1315
        %v1381 = vunpack.c.l.b16 %v1316
        %v1382 = vunpack.c.l.b16 %v1317
        %v1383 = vunpack.c.l.b16 %v1318
        %v1384 = vunpack.c.l.b16 %v1319
        %v1385 = vpack.c.b16 %v1362, %v1361
        %v1386 = vpack.c.b16 %v1364, %v1363
        %v1387 = vpack.c.b16 %v1366, %v1365
        %v1388 = vpack.c.b16 %v1368, %v1367
        %v1389 = vpack.c.b16 %v1370, %v1369
        %v1390 = vpack.c.b16 %v1372, %v1371
        %v1391 = vpack.c.b16 %v1374, %v1373
        %v1392 = vpack.c.b16 %v1376, %v1375
        %v1393 = vpack.c.b16 %v1378, %v1377
        %v1394 = vpack.c.b16 %v1380, %v1379
        %v1395 = vpack.c.b16 %v1382, %v1381
        %v1396 = vpack.c.b16 %v1384, %v1383
        %v1425 = vunpack.c.l.b16 %v1321
        %v1426 = vunpack.c.l.b16 %v1322
        %v1427 = vunpack.c.l.b16 %v1323
        %v1428 = vunpack.c.l.b16 %v1324
        %v1429 = vunpack.c.l.b16 %v1325
        %v1430 = vunpack.c.l.b16 %v1326
        %v1431 = vunpack.c.l.b16 %v1327
        %v1432 = vunpack.c.l.b16 %v1328
        %v1433 = vunpack.c.l.b16 %v1329
        %v1434 = vunpack.c.l.b16 %v1330
        %v1435 = vunpack.c.l.b16 %v1331
        %v1436 = vunpack.c.l.b16 %v1332
        %v1437 = vunpack.c.l.b16 %v1333
        %v1438 = vunpack.c.l.b16 %v1334
        %v1439 = vunpack.c.l.b16 %v1335
        %v1440 = vunpack.c.l.b16 %v1336
        %v1441 = vpack.c.b16 %v1426, %v1425
        %v1442 = vpack.c.b16 %v1428, %v1427
        %v1443 = vpack.c.b16 %v1430, %v1429
        %v1444 = vpack.c.b16 %v1432, %v1431
        %v1445 = vpack.c.b16 %v1434, %v1433
        %v1446 = vpack.c.b16 %v1436, %v1435
        %v1447 = vpack.c.b16 %v1438, %v1437
        %v1448 = vpack.c.b16 %v1440, %v1439
        %1457 = vmatpush.bf16.msra.mxu0 %v1448
        %1458 = vmatpush.bf16.msra.mxu0 %v1447
        %1459 = vmatpush.bf16.msra.mxu0 %v1446
        %1460 = vmatpush.bf16.msra.mxu0 %v1445
        %1461 = vmatpush.bf16.msra.mxu0 %v1444
        %1462 = vmatpush.bf16.msra.mxu0 %v1443
        %1463 = vmatpush.bf16.msra.mxu0 %v1442
        %1464 = vmatpush.bf16.msra.mxu0 %v1441
        %1465 = vmatmul.bf16.gmra.mxu0 %v1385
        %v1466 = vpop.f32.mrf.mxu0
        %v1467 = vadd.f32 0.0, %v1466
        %v1468 = vpop.f32.mrf.mxu0
        %v1469 = vadd.f32 0.0, %v1468
        %1470 = vmatmul.bf16.gmra.mxu0 %v1386
        %v1471 = vpop.f32.mrf.mxu0
        %v1472 = vpop.f32.mrf.mxu0
        %v1473 = vadd.f32 0.0, %v1472
        %1474 = vmatmul.bf16.gmra.mxu0 %v1387
        %v1475 = vpop.f32.mrf.mxu0
        %v1476 = vadd.f32 0.0, %v1475
        %v1477 = vpop.f32.mrf.mxu0
        %1478 = vmatmul.bf16.gmra.mxu0 %v1388
        %v1479 = vpop.f32.mrf.mxu0
        %v1480 = vadd.f32 0.0, %v1479
        %v1481 = vpop.f32.mrf.mxu0
        %v1482 = vadd.f32 0.0, %v1481
        %1483 = vmatmul.bf16.gmra.mxu0 %v1389
        %v1484 = vpop.f32.mrf.mxu0
        %v1485 = vpop.f32.mrf.mxu0
        %v1486 = vadd.f32 0.0, %v1485
        %1487 = vmatmul.bf16.gmra.mxu0 %v1390
        %v1488 = vpop.f32.mrf.mxu0
        %v1489 = vadd.f32 0.0, %v1488
        %v1490 = vpop.f32.mrf.mxu0
        %1491 = vmatmul.bf16.gmra.mxu0 %v1391
        %v1492 = vpop.f32.mrf.mxu0
        %v1493 = vadd.f32 0.0, %v1492
        %v1494 = vpop.f32.mrf.mxu0
        %v1495 = vadd.f32 0.0, %v1494
        %1496 = vmatmul.bf16.gmra.mxu0 %v1392
        %v1497 = vpop.f32.mrf.mxu0
        %v1498 = vpop.f32.mrf.mxu0
        %v1499 = vadd.f32 0.0, %v1498
        %1500 = vmatmul.bf16.gmra.mxu0 %v1393
        %v1501 = vpop.f32.mrf.mxu0
        %v1502 = vadd.f32 0.0, %v1501
        %v1503 = vpop.f32.mrf.mxu0
        %1504 = vmatmul.bf16.gmra.mxu0 %v1394
        %v1505 = vpop.f32.mrf.mxu0
        %v1506 = vadd.f32 0.0, %v1505
        %v1507 = vpop.f32.mrf.mxu0
        %v1508 = vadd.f32 0.0, %v1507
        %1509 = vmatmul.bf16.gmra.mxu0 %v1395
        %v1510 = vpop.f32.mrf.mxu0
        %v1511 = vpop.f32.mrf.mxu0
        %v1512 = vadd.f32 0.0, %v1511
        %1513 = vmatmul.bf16.gmra.mxu0 %v1396
        %v1514 = vpop.f32.mrf.mxu0
        %v1515 = vadd.f32 0.0, %v1514
        %v1516 = vpop.f32.mrf.mxu0
        %1517 = vdwg.mxu0
        %v1518 = vadd.f32 %v1280, %v1467
        %v1519 = vadd.f32 %v1281, %v1469
        %v1520 = vadd.f32 %v1282, %v1473
        %v1521 = vadd.f32 %v1283, %v1476
        %v1522 = vadd.f32 %v1284, %v1480
        %v1523 = vadd.f32 %v1285, %v1482
        %v1524 = vadd.f32 %v1286, %v1486
        %v1525 = vadd.f32 %v1287, %v1489
        %v1526 = vadd.f32 %v1288, %v1493
        %v1527 = vadd.f32 %v1289, %v1495
        %v1528 = vadd.f32 %v1290, %v1499
        %v1529 = vadd.f32 %v1291, %v1502
        %v1530 = vadd.f32 %v1292, %v1506
        %v1531 = vadd.f32 %v1293, %v1508
        %v1532 = vadd.f32 %v1294, %v1512
        %v1533 = vadd.f32 %v1295, %v1515
        %v1534 = vld [vmem:[#allocation2 + $0xc] sm:$0xf]
        %v1535 = vld [vmem:[#allocation2 + $0x10] sm:$0xf]
        %v1536 = vld [vmem:[#allocation2 + $0x14] sm:$0xf]
        %v1537 = vld [vmem:[#allocation2 + $0x18] sm:$0xf]
        %v1538 = vld [vmem:[#allocation2 + $0x1c] sm:$0xf]
        %v1539 = vld [vmem:[#allocation2 + $0x20] sm:$0xf]
        %v1540 = vld [vmem:[#allocation2 + $0x24] sm:$0xf]
        %v1541 = vld [vmem:[#allocation2 + $0x28] sm:$0xf]
        %v1542 = vld [vmem:[#allocation2 + $0x2c] sm:$0xf]
        %v1543 = vld [vmem:[#allocation2 + $0x30] sm:$0xf]
        %v1544 = vld [vmem:[#allocation2 + $0x34] sm:$0xf]
        %v1545 = vld [vmem:[#allocation2 + $0x38] sm:$0xf]
        %v1546 = vld [vmem:[#allocation2 + $0x3c] sm:$0xf]
        %v1547 = vld [vmem:[#allocation2 + $0x40] sm:$0xf]
        %v1548 = vld [vmem:[#allocation2 + $0x44] sm:$0xf]
        %v1549 = vld [vmem:[#allocation2 + $0x48] sm:$0xf]
        %v1550 = vld [vmem:[#allocation2 + $0x4c] sm:$0xf]
        %v1551 = vld [vmem:[#allocation2 + $0x50] sm:$0xf]
        %v1552 = vld [vmem:[#allocation2 + $0x54] sm:$0xf]
        %v1553 = vld [vmem:[#allocation2 + $0x58] sm:$0xf]
        %v1554 = vld [vmem:[#allocation2 + $0x5c] sm:$0xf]
        %v1555 = vld [vmem:[#allocation2 + $0x60] sm:$0xf]
        %v1556 = vld [vmem:[#allocation2 + $0x64] sm:$0xf]
        %v1557 = vld [vmem:[#allocation2 + $0x68] sm:$0xf]
        %v1558 = vld [vmem:[#allocation2 + $0x6c] sm:$0x1]
        %s1559 = scalar_lea.vmem %s1, 256
        %v1560 = vld [vmem:[%s1559] sm:$0xf]
        %v1561 = vld [vmem:[%s1559 + $0x4] sm:$0xf]
        %v1562 = vld [vmem:[%s1559 + $0x8] sm:$0xf]
        %v1563 = vld [vmem:[%s1559 + $0xc] sm:$0xf]
        %v1564 = vld [vmem:[%s1559 + $0x10] sm:$0xf]
        %v1565 = vld [vmem:[%s1559 + $0x14] sm:$0xf]
        %v1566 = vld [vmem:[%s1559 + $0x18] sm:$0xf]
        %v1567 = vld [vmem:[%s1559 + $0x1c] sm:$0xf]
        %v1568 = vld [vmem:[%s1559 + $0x20] sm:$0xf]
        %v1569 = vld [vmem:[%s1559 + $0x24] sm:$0xf]
        %v1570 = vld [vmem:[%s1559 + $0x28] sm:$0xf]
        %v1571 = vld [vmem:[%s1559 + $0x2c] sm:$0xf]
        %v1572 = vld [vmem:[%s1559 + $0x30] sm:$0xf]
        %v1573 = vld [vmem:[%s1559 + $0x34] sm:$0xf]
        %v1574 = vld [vmem:[%s1559 + $0x38] sm:$0xf]
        %v1575 = vld [vmem:[%s1559 + $0x3c] sm:$0xf]
        %v1601 = vunpack.c.l.b16 %v1534
        %v1602 = vunpack.c.l.b16 %v1535
        %v1603 = vunpack.c.l.b16 %v1536
        %v1604 = vunpack.c.l.b16 %v1537
        %v1605 = vunpack.c.l.b16 %v1538
        %v1606 = vunpack.c.l.b16 %v1539
        %v1607 = vunpack.c.l.b16 %v1540
        %v1608 = vunpack.c.l.b16 %v1541
        %v1609 = vunpack.c.l.b16 %v1542
        %v1610 = vunpack.c.l.b16 %v1543
        %v1611 = vunpack.c.l.b16 %v1544
        %v1612 = vunpack.c.l.b16 %v1545
        %v1613 = vunpack.c.l.b16 %v1546
        %v1614 = vunpack.c.l.b16 %v1547
        %v1615 = vunpack.c.l.b16 %v1548
        %v1616 = vunpack.c.l.b16 %v1549
        %v1617 = vunpack.c.l.b16 %v1550
        %v1618 = vunpack.c.l.b16 %v1551
        %v1619 = vunpack.c.l.b16 %v1552
        %v1620 = vunpack.c.l.b16 %v1553
        %v1621 = vunpack.c.l.b16 %v1554
        %v1622 = vunpack.c.l.b16 %v1555
        %v1623 = vunpack.c.l.b16 %v1556
        %v1624 = vunpack.c.l.b16 %v1557
        %v1625 = vunpack.c.l.b16 %v1558
        %v1626 = vpack.c.b16 %v1602, %v1601
        %v1627 = vpack.c.b16 %v1604, %v1603
        %v1628 = vpack.c.b16 %v1606, %v1605
        %v1629 = vpack.c.b16 %v1608, %v1607
        %v1630 = vpack.c.b16 %v1610, %v1609
        %v1631 = vpack.c.b16 %v1612, %v1611
        %v1632 = vpack.c.b16 %v1614, %v1613
        %v1633 = vpack.c.b16 %v1616, %v1615
        %v1634 = vpack.c.b16 %v1618, %v1617
        %v1635 = vpack.c.b16 %v1620, %v1619
        %v1636 = vpack.c.b16 %v1622, %v1621
        %v1637 = vpack.c.b16 %v1624, %v1623
        %v1638 = vpack.c.b16 %v1625, %v1625
        %v1640 = vshrl.u32 %v1626, 16
        %v1642 = vshll.u32 %v1626, 16
        %v1644 = vrot.slane %v1642, 1
        %v1645 = vor.u32 %v1640, %v1644
        %v1647 = vshll.u32 %v1627, 16
        %v1649 = vrot.slane %v1647, 1
        %v1650 = vsel %vm769, %v1645, %v1649
        %v1651 = vshrl.u32 %v1627, 16
        %v1653 = vor.u32 %v1651, %v1649
        %v1655 = vshll.u32 %v1628, 16
        %v1657 = vrot.slane %v1655, 1
        %v1658 = vsel %vm769, %v1653, %v1657
        %v1659 = vshrl.u32 %v1628, 16
        %v1661 = vor.u32 %v1659, %v1657
        %v1663 = vshll.u32 %v1629, 16
        %v1665 = vrot.slane %v1663, 1
        %v1666 = vsel %vm769, %v1661, %v1665
        %v1667 = vshrl.u32 %v1629, 16
        %v1669 = vor.u32 %v1667, %v1665
        %v1671 = vshll.u32 %v1630, 16
        %v1673 = vrot.slane %v1671, 1
        %v1674 = vsel %vm769, %v1669, %v1673
        %v1675 = vshrl.u32 %v1630, 16
        %v1677 = vor.u32 %v1675, %v1673
        %v1679 = vshll.u32 %v1631, 16
        %v1681 = vrot.slane %v1679, 1
        %v1682 = vsel %vm769, %v1677, %v1681
        %v1683 = vshrl.u32 %v1631, 16
        %v1685 = vor.u32 %v1683, %v1681
        %v1687 = vshll.u32 %v1632, 16
        %v1689 = vrot.slane %v1687, 1
        %v1690 = vsel %vm769, %v1685, %v1689
        %v1691 = vshrl.u32 %v1632, 16
        %v1693 = vor.u32 %v1691, %v1689
        %v1695 = vshll.u32 %v1633, 16
        %v1697 = vrot.slane %v1695, 1
        %v1698 = vsel %vm769, %v1693, %v1697
        %v1699 = vshrl.u32 %v1633, 16
        %v1701 = vor.u32 %v1699, %v1697
        %v1703 = vshll.u32 %v1634, 16
        %v1705 = vrot.slane %v1703, 1
        %v1706 = vsel %vm769, %v1701, %v1705
        %v1707 = vshrl.u32 %v1634, 16
        %v1709 = vor.u32 %v1707, %v1705
        %v1711 = vshll.u32 %v1635, 16
        %v1713 = vrot.slane %v1711, 1
        %v1714 = vsel %vm769, %v1709, %v1713
        %v1715 = vshrl.u32 %v1635, 16
        %v1717 = vor.u32 %v1715, %v1713
        %v1719 = vshll.u32 %v1636, 16
        %v1721 = vrot.slane %v1719, 1
        %v1722 = vsel %vm769, %v1717, %v1721
        %v1723 = vshrl.u32 %v1636, 16
        %v1725 = vor.u32 %v1723, %v1721
        %v1727 = vshll.u32 %v1637, 16
        %v1729 = vrot.slane %v1727, 1
        %v1730 = vsel %vm769, %v1725, %v1729
        %v1731 = vshrl.u32 %v1637, 16
        %v1733 = vor.u32 %v1731, %v1729
        %v1735 = vshll.u32 %v1638, 16
        %v1737 = vrot.slane %v1735, 1
        %v1738 = vsel %vm769, %v1733, %v1737
        %v1767 = vunpack.c.l.b16 %v1560
        %v1768 = vunpack.c.l.b16 %v1561
        %v1769 = vunpack.c.l.b16 %v1562
        %v1770 = vunpack.c.l.b16 %v1563
        %v1771 = vunpack.c.l.b16 %v1564
        %v1772 = vunpack.c.l.b16 %v1565
        %v1773 = vunpack.c.l.b16 %v1566
        %v1774 = vunpack.c.l.b16 %v1567
        %v1775 = vunpack.c.l.b16 %v1568
        %v1776 = vunpack.c.l.b16 %v1569
        %v1777 = vunpack.c.l.b16 %v1570
        %v1778 = vunpack.c.l.b16 %v1571
        %v1779 = vunpack.c.l.b16 %v1572
        %v1780 = vunpack.c.l.b16 %v1573
        %v1781 = vunpack.c.l.b16 %v1574
        %v1782 = vunpack.c.l.b16 %v1575
        %v1783 = vpack.c.b16 %v1768, %v1767
        %v1784 = vpack.c.b16 %v1770, %v1769
        %v1785 = vpack.c.b16 %v1772, %v1771
        %v1786 = vpack.c.b16 %v1774, %v1773
        %v1787 = vpack.c.b16 %v1776, %v1775
        %v1788 = vpack.c.b16 %v1778, %v1777
        %v1789 = vpack.c.b16 %v1780, %v1779
        %v1790 = vpack.c.b16 %v1782, %v1781
        %1799 = vmatpush.bf16.msra.mxu0 %v1790
        %1800 = vmatpush.bf16.msra.mxu0 %v1789
        %1801 = vmatpush.bf16.msra.mxu0 %v1788
        %1802 = vmatpush.bf16.msra.mxu0 %v1787
        %1803 = vmatpush.bf16.msra.mxu0 %v1786
        %1804 = vmatpush.bf16.msra.mxu0 %v1785
        %1805 = vmatpush.bf16.msra.mxu0 %v1784
        %1806 = vmatpush.bf16.msra.mxu0 %v1783
        %1807 = vmatmul.bf16.gmra.mxu0 %v1650
        %v1808 = vpop.f32.mrf.mxu0
        %v1809 = vadd.f32 0.0, %v1808
        %v1810 = vpop.f32.mrf.mxu0
        %v1811 = vadd.f32 0.0, %v1810
        %1812 = vmatmul.bf16.gmra.mxu0 %v1658
        %v1813 = vpop.f32.mrf.mxu0
        %v1814 = vpop.f32.mrf.mxu0
        %v1815 = vadd.f32 0.0, %v1814
        %1816 = vmatmul.bf16.gmra.mxu0 %v1666
        %v1817 = vpop.f32.mrf.mxu0
        %v1818 = vadd.f32 0.0, %v1817
        %v1819 = vpop.f32.mrf.mxu0
        %1820 = vmatmul.bf16.gmra.mxu0 %v1674
        %v1821 = vpop.f32.mrf.mxu0
        %v1822 = vadd.f32 0.0, %v1821
        %v1823 = vpop.f32.mrf.mxu0
        %v1824 = vadd.f32 0.0, %v1823
        %1825 = vmatmul.bf16.gmra.mxu0 %v1682
        %v1826 = vpop.f32.mrf.mxu0
        %v1827 = vpop.f32.mrf.mxu0
        %v1828 = vadd.f32 0.0, %v1827
        %1829 = vmatmul.bf16.gmra.mxu0 %v1690
        %v1830 = vpop.f32.mrf.mxu0
        %v1831 = vadd.f32 0.0, %v1830
        %v1832 = vpop.f32.mrf.mxu0
        %1833 = vmatmul.bf16.gmra.mxu0 %v1698
        %v1834 = vpop.f32.mrf.mxu0
        %v1835 = vadd.f32 0.0, %v1834
        %v1836 = vpop.f32.mrf.mxu0
        %v1837 = vadd.f32 0.0, %v1836
        %1838 = vmatmul.bf16.gmra.mxu0 %v1706
        %v1839 = vpop.f32.mrf.mxu0
        %v1840 = vpop.f32.mrf.mxu0
        %v1841 = vadd.f32 0.0, %v1840
        %1842 = vmatmul.bf16.gmra.mxu0 %v1714
        %v1843 = vpop.f32.mrf.mxu0
        %v1844 = vadd.f32 0.0, %v1843
        %v1845 = vpop.f32.mrf.mxu0
        %1846 = vmatmul.bf16.gmra.mxu0 %v1722
        %v1847 = vpop.f32.mrf.mxu0
        %v1848 = vadd.f32 0.0, %v1847
        %v1849 = vpop.f32.mrf.mxu0
        %v1850 = vadd.f32 0.0, %v1849
        %1851 = vmatmul.bf16.gmra.mxu0 %v1730
        %v1852 = vpop.f32.mrf.mxu0
        %v1853 = vpop.f32.mrf.mxu0
        %v1854 = vadd.f32 0.0, %v1853
        %1855 = vmatmul.bf16.gmra.mxu0 %v1738
        %v1856 = vpop.f32.mrf.mxu0
        %v1857 = vadd.f32 0.0, %v1856
        %v1858 = vpop.f32.mrf.mxu0
        %1859 = vdwg.mxu0
        %v1860 = vadd.f32 %v1518, %v1809
        %v1861 = vadd.f32 %v1519, %v1811
        %v1862 = vadd.f32 %v1520, %v1815
        %v1863 = vadd.f32 %v1521, %v1818
        %v1864 = vadd.f32 %v1522, %v1822
        %v1865 = vadd.f32 %v1523, %v1824
        %v1866 = vadd.f32 %v1524, %v1828
        %v1867 = vadd.f32 %v1525, %v1831
        %v1868 = vadd.f32 %v1526, %v1835
        %v1869 = vadd.f32 %v1527, %v1837
        %v1870 = vadd.f32 %v1528, %v1841
        %v1871 = vadd.f32 %v1529, %v1844
        %v1872 = vadd.f32 %v1530, %v1848
        %v1873 = vadd.f32 %v1531, %v1850
        %v1874 = vadd.f32 %v1532, %v1854
        %v1875 = vadd.f32 %v1533, %v1857
        %v1876 = vld [vmem:[#allocation2 + $0xc] sm:$0xe]
        %s1877 = scalar_lea.vmem %s1, 320
        %v1878 = vld [vmem:[%s1877] sm:$0xf]
        %v1879 = vld [vmem:[%s1877 + $0x4] sm:$0xf]
        %v1880 = vld [vmem:[%s1877 + $0x8] sm:$0xf]
        %v1881 = vld [vmem:[%s1877 + $0xc] sm:$0xf]
        %v1882 = vld [vmem:[%s1877 + $0x10] sm:$0xf]
        %v1883 = vld [vmem:[%s1877 + $0x14] sm:$0xf]
        %v1884 = vld [vmem:[%s1877 + $0x18] sm:$0xf]
        %v1885 = vld [vmem:[%s1877 + $0x1c] sm:$0xf]
        %v1886 = vld [vmem:[%s1877 + $0x20] sm:$0xf]
        %v1887 = vld [vmem:[%s1877 + $0x24] sm:$0xf]
        %v1888 = vld [vmem:[%s1877 + $0x28] sm:$0xf]
        %v1889 = vld [vmem:[%s1877 + $0x2c] sm:$0xf]
        %v1890 = vld [vmem:[%s1877 + $0x30] sm:$0xf]
        %v1891 = vld [vmem:[%s1877 + $0x34] sm:$0xf]
        %v1892 = vld [vmem:[%s1877 + $0x38] sm:$0xf]
        %v1893 = vld [vmem:[%s1877 + $0x3c] sm:$0xf]
        %v1895 = vunpack.c.l.b16 %v1876
        %v1896 = vpack.c.b16 %v1602, %v1895
        %v1897 = vrot.slane %v1896, 1
        %v1898 = vrot.slane %v1627, 1
        %v1899 = vsel %vm1133, %v1897, %v1898
        %v1900 = vrot.slane %v1628, 1
        %v1901 = vsel %vm1133, %v1898, %v1900
        %v1902 = vrot.slane %v1629, 1
        %v1903 = vsel %vm1133, %v1900, %v1902
        %v1904 = vrot.slane %v1630, 1
        %v1905 = vsel %vm1133, %v1902, %v1904
        %v1906 = vrot.slane %v1631, 1
        %v1907 = vsel %vm1133, %v1904, %v1906
        %v1908 = vrot.slane %v1632, 1
        %v1909 = vsel %vm1133, %v1906, %v1908
        %v1910 = vrot.slane %v1633, 1
        %v1911 = vsel %vm1133, %v1908, %v1910
        %v1912 = vrot.slane %v1634, 1
        %v1913 = vsel %vm1133, %v1910, %v1912
        %v1914 = vrot.slane %v1635, 1
        %v1915 = vsel %vm1133, %v1912, %v1914
        %v1916 = vrot.slane %v1636, 1
        %v1917 = vsel %vm1133, %v1914, %v1916
        %v1918 = vrot.slane %v1637, 1
        %v1919 = vsel %vm1133, %v1916, %v1918
        %v1920 = vrot.slane %v1638, 1
        %v1921 = vsel %vm1133, %v1918, %v1920
        %v1950 = vunpack.c.l.b16 %v1878
        %v1951 = vunpack.c.l.b16 %v1879
        %v1952 = vunpack.c.l.b16 %v1880
        %v1953 = vunpack.c.l.b16 %v1881
        %v1954 = vunpack.c.l.b16 %v1882
        %v1955 = vunpack.c.l.b16 %v1883
        %v1956 = vunpack.c.l.b16 %v1884
        %v1957 = vunpack.c.l.b16 %v1885
        %v1958 = vunpack.c.l.b16 %v1886
        %v1959 = vunpack.c.l.b16 %v1887
        %v1960 = vunpack.c.l.b16 %v1888
        %v1961 = vunpack.c.l.b16 %v1889
        %v1962 = vunpack.c.l.b16 %v1890
        %v1963 = vunpack.c.l.b16 %v1891
        %v1964 = vunpack.c.l.b16 %v1892
        %v1965 = vunpack.c.l.b16 %v1893
        %v1966 = vpack.c.b16 %v1951, %v1950
        %v1967 = vpack.c.b16 %v1953, %v1952
        %v1968 = vpack.c.b16 %v1955, %v1954
        %v1969 = vpack.c.b16 %v1957, %v1956
        %v1970 = vpack.c.b16 %v1959, %v1958
        %v1971 = vpack.c.b16 %v1961, %v1960
        %v1972 = vpack.c.b16 %v1963, %v1962
        %v1973 = vpack.c.b16 %v1965, %v1964
        %1982 = vmatpush.bf16.msra.mxu0 %v1973
        %1983 = vmatpush.bf16.msra.mxu0 %v1972
        %1984 = vmatpush.bf16.msra.mxu0 %v1971
        %1985 = vmatpush.bf16.msra.mxu0 %v1970
        %1986 = vmatpush.bf16.msra.mxu0 %v1969
        %1987 = vmatpush.bf16.msra.mxu0 %v1968
        %1988 = vmatpush.bf16.msra.mxu0 %v1967
        %1989 = vmatpush.bf16.msra.mxu0 %v1966
        %1990 = vmatmul.bf16.gmra.mxu0 %v1899
        %v1991 = vpop.f32.mrf.mxu0
        %v1992 = vadd.f32 0.0, %v1991
        %v1993 = vpop.f32.mrf.mxu0
        %v1994 = vadd.f32 0.0, %v1993
        %1995 = vmatmul.bf16.gmra.mxu0 %v1901
        %v1996 = vpop.f32.mrf.mxu0
        %v1997 = vpop.f32.mrf.mxu0
        %v1998 = vadd.f32 0.0, %v1997
        %1999 = vmatmul.bf16.gmra.mxu0 %v1903
        %v2000 = vpop.f32.mrf.mxu0
        %v2001 = vadd.f32 0.0, %v2000
        %v2002 = vpop.f32.mrf.mxu0
        %2003 = vmatmul.bf16.gmra.mxu0 %v1905
        %v2004 = vpop.f32.mrf.mxu0
        %v2005 = vadd.f32 0.0, %v2004
        %v2006 = vpop.f32.mrf.mxu0
        %v2007 = vadd.f32 0.0, %v2006
        %2008 = vmatmul.bf16.gmra.mxu0 %v1907
        %v2009 = vpop.f32.mrf.mxu0
        %v2010 = vpop.f32.mrf.mxu0
        %v2011 = vadd.f32 0.0, %v2010
        %2012 = vmatmul.bf16.gmra.mxu0 %v1909
        %v2013 = vpop.f32.mrf.mxu0
        %v2014 = vadd.f32 0.0, %v2013
        %v2015 = vpop.f32.mrf.mxu0
        %2016 = vmatmul.bf16.gmra.mxu0 %v1911
        %v2017 = vpop.f32.mrf.mxu0
        %v2018 = vadd.f32 0.0, %v2017
        %v2019 = vpop.f32.mrf.mxu0
        %v2020 = vadd.f32 0.0, %v2019
        %2021 = vmatmul.bf16.gmra.mxu0 %v1913
        %v2022 = vpop.f32.mrf.mxu0
        %v2023 = vpop.f32.mrf.mxu0
        %v2024 = vadd.f32 0.0, %v2023
        %2025 = vmatmul.bf16.gmra.mxu0 %v1915
        %v2026 = vpop.f32.mrf.mxu0
        %v2027 = vadd.f32 0.0, %v2026
        %v2028 = vpop.f32.mrf.mxu0
        %2029 = vmatmul.bf16.gmra.mxu0 %v1917
        %v2030 = vpop.f32.mrf.mxu0
        %v2031 = vadd.f32 0.0, %v2030
        %v2032 = vpop.f32.mrf.mxu0
        %v2033 = vadd.f32 0.0, %v2032
        %2034 = vmatmul.bf16.gmra.mxu0 %v1919
        %v2035 = vpop.f32.mrf.mxu0
        %v2036 = vpop.f32.mrf.mxu0
        %v2037 = vadd.f32 0.0, %v2036
        %2038 = vmatmul.bf16.gmra.mxu0 %v1921
        %v2039 = vpop.f32.mrf.mxu0
        %v2040 = vadd.f32 0.0, %v2039
        %v2041 = vpop.f32.mrf.mxu0
        %2042 = vdwg.mxu0
        %v2043 = vadd.f32 %v1860, %v1992
        %v2044 = vadd.f32 %v1861, %v1994
        %v2045 = vadd.f32 %v1862, %v1998
        %v2046 = vadd.f32 %v1863, %v2001
        %v2047 = vadd.f32 %v1864, %v2005
        %v2048 = vadd.f32 %v1865, %v2007
        %v2049 = vadd.f32 %v1866, %v2011
        %v2050 = vadd.f32 %v1867, %v2014
        %v2051 = vadd.f32 %v1868, %v2018
        %v2052 = vadd.f32 %v1869, %v2020
        %v2053 = vadd.f32 %v1870, %v2024
        %v2054 = vadd.f32 %v1871, %v2027
        %v2055 = vadd.f32 %v1872, %v2031
        %v2056 = vadd.f32 %v1873, %v2033
        %v2057 = vadd.f32 %v1874, %v2037
        %v2058 = vadd.f32 %v1875, %v2040
        %v2059 = vld [vmem:[#allocation2 + $0x18] sm:$0xf]
        %v2060 = vld [vmem:[#allocation2 + $0x1c] sm:$0xf]
        %v2061 = vld [vmem:[#allocation2 + $0x20] sm:$0xf]
        %v2062 = vld [vmem:[#allocation2 + $0x24] sm:$0xf]
        %v2063 = vld [vmem:[#allocation2 + $0x28] sm:$0xf]
        %v2064 = vld [vmem:[#allocation2 + $0x2c] sm:$0xf]
        %v2065 = vld [vmem:[#allocation2 + $0x30] sm:$0xf]
        %v2066 = vld [vmem:[#allocation2 + $0x34] sm:$0xf]
        %v2067 = vld [vmem:[#allocation2 + $0x38] sm:$0xf]
        %v2068 = vld [vmem:[#allocation2 + $0x3c] sm:$0xf]
        %v2069 = vld [vmem:[#allocation2 + $0x40] sm:$0xf]
        %v2070 = vld [vmem:[#allocation2 + $0x44] sm:$0xf]
        %v2071 = vld [vmem:[#allocation2 + $0x48] sm:$0xf]
        %v2072 = vld [vmem:[#allocation2 + $0x4c] sm:$0xf]
        %v2073 = vld [vmem:[#allocation2 + $0x50] sm:$0xf]
        %v2074 = vld [vmem:[#allocation2 + $0x54] sm:$0xf]
        %v2075 = vld [vmem:[#allocation2 + $0x58] sm:$0xf]
        %v2076 = vld [vmem:[#allocation2 + $0x5c] sm:$0xf]
        %v2077 = vld [vmem:[#allocation2 + $0x60] sm:$0xf]
        %v2078 = vld [vmem:[#allocation2 + $0x64] sm:$0xf]
        %v2079 = vld [vmem:[#allocation2 + $0x68] sm:$0xf]
        %v2080 = vld [vmem:[#allocation2 + $0x6c] sm:$0xf]
        %v2081 = vld [vmem:[#allocation2 + $0x70] sm:$0xf]
        %v2082 = vld [vmem:[#allocation2 + $0x74] sm:$0xf]
        %s2083 = scalar_lea.vmem %s1, 384
        %v2084 = vld [vmem:[%s2083] sm:$0xf]
        %v2085 = vld [vmem:[%s2083 + $0x4] sm:$0xf]
        %v2086 = vld [vmem:[%s2083 + $0x8] sm:$0xf]
        %v2087 = vld [vmem:[%s2083 + $0xc] sm:$0xf]
        %v2088 = vld [vmem:[%s2083 + $0x10] sm:$0xf]
        %v2089 = vld [vmem:[%s2083 + $0x14] sm:$0xf]
        %v2090 = vld [vmem:[%s2083 + $0x18] sm:$0xf]
        %v2091 = vld [vmem:[%s2083 + $0x1c] sm:$0xf]
        %v2092 = vld [vmem:[%s2083 + $0x20] sm:$0xf]
        %v2093 = vld [vmem:[%s2083 + $0x24] sm:$0xf]
        %v2094 = vld [vmem:[%s2083 + $0x28] sm:$0xf]
        %v2095 = vld [vmem:[%s2083 + $0x2c] sm:$0xf]
        %v2096 = vld [vmem:[%s2083 + $0x30] sm:$0xf]
        %v2097 = vld [vmem:[%s2083 + $0x34] sm:$0xf]
        %v2098 = vld [vmem:[%s2083 + $0x38] sm:$0xf]
        %v2099 = vld [vmem:[%s2083 + $0x3c] sm:$0xf]
        %v2124 = vunpack.c.l.b16 %v2059
        %v2125 = vunpack.c.l.b16 %v2060
        %v2126 = vunpack.c.l.b16 %v2061
        %v2127 = vunpack.c.l.b16 %v2062
        %v2128 = vunpack.c.l.b16 %v2063
        %v2129 = vunpack.c.l.b16 %v2064
        %v2130 = vunpack.c.l.b16 %v2065
        %v2131 = vunpack.c.l.b16 %v2066
        %v2132 = vunpack.c.l.b16 %v2067
        %v2133 = vunpack.c.l.b16 %v2068
        %v2134 = vunpack.c.l.b16 %v2069
        %v2135 = vunpack.c.l.b16 %v2070
        %v2136 = vunpack.c.l.b16 %v2071
        %v2137 = vunpack.c.l.b16 %v2072
        %v2138 = vunpack.c.l.b16 %v2073
        %v2139 = vunpack.c.l.b16 %v2074
        %v2140 = vunpack.c.l.b16 %v2075
        %v2141 = vunpack.c.l.b16 %v2076
        %v2142 = vunpack.c.l.b16 %v2077
        %v2143 = vunpack.c.l.b16 %v2078
        %v2144 = vunpack.c.l.b16 %v2079
        %v2145 = vunpack.c.l.b16 %v2080
        %v2146 = vunpack.c.l.b16 %v2081
        %v2147 = vunpack.c.l.b16 %v2082
        %v2148 = vpack.c.b16 %v2125, %v2124
        %v2149 = vpack.c.b16 %v2127, %v2126
        %v2150 = vpack.c.b16 %v2129, %v2128
        %v2151 = vpack.c.b16 %v2131, %v2130
        %v2152 = vpack.c.b16 %v2133, %v2132
        %v2153 = vpack.c.b16 %v2135, %v2134
        %v2154 = vpack.c.b16 %v2137, %v2136
        %v2155 = vpack.c.b16 %v2139, %v2138
        %v2156 = vpack.c.b16 %v2141, %v2140
        %v2157 = vpack.c.b16 %v2143, %v2142
        %v2158 = vpack.c.b16 %v2145, %v2144
        %v2159 = vpack.c.b16 %v2147, %v2146
        %v2188 = vunpack.c.l.b16 %v2084
        %v2189 = vunpack.c.l.b16 %v2085
        %v2190 = vunpack.c.l.b16 %v2086
        %v2191 = vunpack.c.l.b16 %v2087
        %v2192 = vunpack.c.l.b16 %v2088
        %v2193 = vunpack.c.l.b16 %v2089
        %v2194 = vunpack.c.l.b16 %v2090
        %v2195 = vunpack.c.l.b16 %v2091
        %v2196 = vunpack.c.l.b16 %v2092
        %v2197 = vunpack.c.l.b16 %v2093
        %v2198 = vunpack.c.l.b16 %v2094
        %v2199 = vunpack.c.l.b16 %v2095
        %v2200 = vunpack.c.l.b16 %v2096
        %v2201 = vunpack.c.l.b16 %v2097
        %v2202 = vunpack.c.l.b16 %v2098
        %v2203 = vunpack.c.l.b16 %v2099
        %v2204 = vpack.c.b16 %v2189, %v2188
        %v2205 = vpack.c.b16 %v2191, %v2190
        %v2206 = vpack.c.b16 %v2193, %v2192
        %v2207 = vpack.c.b16 %v2195, %v2194
        %v2208 = vpack.c.b16 %v2197, %v2196
        %v2209 = vpack.c.b16 %v2199, %v2198
        %v2210 = vpack.c.b16 %v2201, %v2200
        %v2211 = vpack.c.b16 %v2203, %v2202
        %2220 = vmatpush.bf16.msra.mxu0 %v2211
        %2221 = vmatpush.bf16.msra.mxu0 %v2210
        %2222 = vmatpush.bf16.msra.mxu0 %v2209
        %2223 = vmatpush.bf16.msra.mxu0 %v2208
        %2224 = vmatpush.bf16.msra.mxu0 %v2207
        %2225 = vmatpush.bf16.msra.mxu0 %v2206
        %2226 = vmatpush.bf16.msra.mxu0 %v2205
        %2227 = vmatpush.bf16.msra.mxu0 %v2204
        %2228 = vmatmul.bf16.gmra.mxu0 %v2148
        %v2229 = vpop.f32.mrf.mxu0
        %v2230 = vadd.f32 0.0, %v2229
        %v2231 = vpop.f32.mrf.mxu0
        %v2232 = vadd.f32 0.0, %v2231
        %2233 = vmatmul.bf16.gmra.mxu0 %v2149
        %v2234 = vpop.f32.mrf.mxu0
        %v2235 = vpop.f32.mrf.mxu0
        %v2236 = vadd.f32 0.0, %v2235
        %2237 = vmatmul.bf16.gmra.mxu0 %v2150
        %v2238 = vpop.f32.mrf.mxu0
        %v2239 = vadd.f32 0.0, %v2238
        %v2240 = vpop.f32.mrf.mxu0
        %2241 = vmatmul.bf16.gmra.mxu0 %v2151
        %v2242 = vpop.f32.mrf.mxu0
        %v2243 = vadd.f32 0.0, %v2242
        %v2244 = vpop.f32.mrf.mxu0
        %v2245 = vadd.f32 0.0, %v2244
        %2246 = vmatmul.bf16.gmra.mxu0 %v2152
        %v2247 = vpop.f32.mrf.mxu0
        %v2248 = vpop.f32.mrf.mxu0
        %v2249 = vadd.f32 0.0, %v2248
        %2250 = vmatmul.bf16.gmra.mxu0 %v2153
        %v2251 = vpop.f32.mrf.mxu0
        %v2252 = vadd.f32 0.0, %v2251
        %v2253 = vpop.f32.mrf.mxu0
        %2254 = vmatmul.bf16.gmra.mxu0 %v2154
        %v2255 = vpop.f32.mrf.mxu0
        %v2256 = vadd.f32 0.0, %v2255
        %v2257 = vpop.f32.mrf.mxu0
        %v2258 = vadd.f32 0.0, %v2257
        %2259 = vmatmul.bf16.gmra.mxu0 %v2155
        %v2260 = vpop.f32.mrf.mxu0
        %v2261 = vpop.f32.mrf.mxu0
        %v2262 = vadd.f32 0.0, %v2261
        %2263 = vmatmul.bf16.gmra.mxu0 %v2156
        %v2264 = vpop.f32.mrf.mxu0
        %v2265 = vadd.f32 0.0, %v2264
        %v2266 = vpop.f32.mrf.mxu0
        %2267 = vmatmul.bf16.gmra.mxu0 %v2157
        %v2268 = vpop.f32.mrf.mxu0
        %v2269 = vadd.f32 0.0, %v2268
        %v2270 = vpop.f32.mrf.mxu0
        %v2271 = vadd.f32 0.0, %v2270
        %2272 = vmatmul.bf16.gmra.mxu0 %v2158
        %v2273 = vpop.f32.mrf.mxu0
        %v2274 = vpop.f32.mrf.mxu0
        %v2275 = vadd.f32 0.0, %v2274
        %2276 = vmatmul.bf16.gmra.mxu0 %v2159
        %v2277 = vpop.f32.mrf.mxu0
        %v2278 = vadd.f32 0.0, %v2277
        %v2279 = vpop.f32.mrf.mxu0
        %2280 = vdwg.mxu0
        %v2281 = vadd.f32 %v2043, %v2230
        %v2282 = vadd.f32 %v2044, %v2232
        %v2283 = vadd.f32 %v2045, %v2236
        %v2284 = vadd.f32 %v2046, %v2239
        %v2285 = vadd.f32 %v2047, %v2243
        %v2286 = vadd.f32 %v2048, %v2245
        %v2287 = vadd.f32 %v2049, %v2249
        %v2288 = vadd.f32 %v2050, %v2252
        %v2289 = vadd.f32 %v2051, %v2256
        %v2290 = vadd.f32 %v2052, %v2258
        %v2291 = vadd.f32 %v2053, %v2262
        %v2292 = vadd.f32 %v2054, %v2265
        %v2293 = vadd.f32 %v2055, %v2269
        %v2294 = vadd.f32 %v2056, %v2271
        %v2295 = vadd.f32 %v2057, %v2275
        %v2296 = vadd.f32 %v2058, %v2278
        %v2297 = vld [vmem:[#allocation2 + $0x18] sm:$0xf]
        %v2298 = vld [vmem:[#allocation2 + $0x1c] sm:$0xf]
        %v2299 = vld [vmem:[#allocation2 + $0x20] sm:$0xf]
        %v2300 = vld [vmem:[#allocation2 + $0x24] sm:$0xf]
        %v2301 = vld [vmem:[#allocation2 + $0x28] sm:$0xf]
        %v2302 = vld [vmem:[#allocation2 + $0x2c] sm:$0xf]
        %v2303 = vld [vmem:[#allocation2 + $0x30] sm:$0xf]
        %v2304 = vld [vmem:[#allocation2 + $0x34] sm:$0xf]
        %v2305 = vld [vmem:[#allocation2 + $0x38] sm:$0xf]
        %v2306 = vld [vmem:[#allocation2 + $0x3c] sm:$0xf]
        %v2307 = vld [vmem:[#allocation2 + $0x40] sm:$0xf]
        %v2308 = vld [vmem:[#allocation2 + $0x44] sm:$0xf]
        %v2309 = vld [vmem:[#allocation2 + $0x48] sm:$0xf]
        %v2310 = vld [vmem:[#allocation2 + $0x4c] sm:$0xf]
        %v2311 = vld [vmem:[#allocation2 + $0x50] sm:$0xf]
        %v2312 = vld [vmem:[#allocation2 + $0x54] sm:$0xf]
        %v2313 = vld [vmem:[#allocation2 + $0x58] sm:$0xf]
        %v2314 = vld [vmem:[#allocation2 + $0x5c] sm:$0xf]
        %v2315 = vld [vmem:[#allocation2 + $0x60] sm:$0xf]
        %v2316 = vld [vmem:[#allocation2 + $0x64] sm:$0xf]
        %v2317 = vld [vmem:[#allocation2 + $0x68] sm:$0xf]
        %v2318 = vld [vmem:[#allocation2 + $0x6c] sm:$0xf]
        %v2319 = vld [vmem:[#allocation2 + $0x70] sm:$0xf]
        %v2320 = vld [vmem:[#allocation2 + $0x74] sm:$0xf]
        %v2321 = vld [vmem:[#allocation2 + $0x78] sm:$0x1]
        %s2322 = scalar_lea.vmem %s1, 448
        %v2323 = vld [vmem:[%s2322] sm:$0xf]
        %v2324 = vld [vmem:[%s2322 + $0x4] sm:$0xf]
        %v2325 = vld [vmem:[%s2322 + $0x8] sm:$0xf]
        %v2326 = vld [vmem:[%s2322 + $0xc] sm:$0xf]
        %v2327 = vld [vmem:[%s2322 + $0x10] sm:$0xf]
        %v2328 = vld [vmem:[%s2322 + $0x14] sm:$0xf]
        %v2329 = vld [vmem:[%s2322 + $0x18] sm:$0xf]
        %v2330 = vld [vmem:[%s2322 + $0x1c] sm:$0xf]
        %v2331 = vld [vmem:[%s2322 + $0x20] sm:$0xf]
        %v2332 = vld [vmem:[%s2322 + $0x24] sm:$0xf]
        %v2333 = vld [vmem:[%s2322 + $0x28] sm:$0xf]
        %v2334 = vld [vmem:[%s2322 + $0x2c] sm:$0xf]
        %v2335 = vld [vmem:[%s2322 + $0x30] sm:$0xf]
        %v2336 = vld [vmem:[%s2322 + $0x34] sm:$0xf]
        %v2337 = vld [vmem:[%s2322 + $0x38] sm:$0xf]
        %v2338 = vld [vmem:[%s2322 + $0x3c] sm:$0xf]
        %v2364 = vunpack.c.l.b16 %v2297
        %v2365 = vunpack.c.l.b16 %v2298
        %v2366 = vunpack.c.l.b16 %v2299
        %v2367 = vunpack.c.l.b16 %v2300
        %v2368 = vunpack.c.l.b16 %v2301
        %v2369 = vunpack.c.l.b16 %v2302
        %v2370 = vunpack.c.l.b16 %v2303
        %v2371 = vunpack.c.l.b16 %v2304
        %v2372 = vunpack.c.l.b16 %v2305
        %v2373 = vunpack.c.l.b16 %v2306
        %v2374 = vunpack.c.l.b16 %v2307
        %v2375 = vunpack.c.l.b16 %v2308
        %v2376 = vunpack.c.l.b16 %v2309
        %v2377 = vunpack.c.l.b16 %v2310
        %v2378 = vunpack.c.l.b16 %v2311
        %v2379 = vunpack.c.l.b16 %v2312
        %v2380 = vunpack.c.l.b16 %v2313
        %v2381 = vunpack.c.l.b16 %v2314
        %v2382 = vunpack.c.l.b16 %v2315
        %v2383 = vunpack.c.l.b16 %v2316
        %v2384 = vunpack.c.l.b16 %v2317
        %v2385 = vunpack.c.l.b16 %v2318
        %v2386 = vunpack.c.l.b16 %v2319
        %v2387 = vunpack.c.l.b16 %v2320
        %v2388 = vunpack.c.l.b16 %v2321
        %v2389 = vpack.c.b16 %v2365, %v2364
        %v2390 = vpack.c.b16 %v2367, %v2366
        %v2391 = vpack.c.b16 %v2369, %v2368
        %v2392 = vpack.c.b16 %v2371, %v2370
        %v2393 = vpack.c.b16 %v2373, %v2372
        %v2394 = vpack.c.b16 %v2375, %v2374
        %v2395 = vpack.c.b16 %v2377, %v2376
        %v2396 = vpack.c.b16 %v2379, %v2378
        %v2397 = vpack.c.b16 %v2381, %v2380
        %v2398 = vpack.c.b16 %v2383, %v2382
        %v2399 = vpack.c.b16 %v2385, %v2384
        %v2400 = vpack.c.b16 %v2387, %v2386
        %v2401 = vpack.c.b16 %v2388, %v2388
        %v2403 = vshrl.u32 %v2389, 16
        %v2405 = vshll.u32 %v2389, 16
        %v2407 = vrot.slane %v2405, 1
        %v2408 = vor.u32 %v2403, %v2407
        %v2410 = vshll.u32 %v2390, 16
        %v2412 = vrot.slane %v2410, 1
        %v2413 = vsel %vm769, %v2408, %v2412
        %v2414 = vshrl.u32 %v2390, 16
        %v2416 = vor.u32 %v2414, %v2412
        %v2418 = vshll.u32 %v2391, 16
        %v2420 = vrot.slane %v2418, 1
        %v2421 = vsel %vm769, %v2416, %v2420
        %v2422 = vshrl.u32 %v2391, 16
        %v2424 = vor.u32 %v2422, %v2420
        %v2426 = vshll.u32 %v2392, 16
        %v2428 = vrot.slane %v2426, 1
        %v2429 = vsel %vm769, %v2424, %v2428
        %v2430 = vshrl.u32 %v2392, 16
        %v2432 = vor.u32 %v2430, %v2428
        %v2434 = vshll.u32 %v2393, 16
        %v2436 = vrot.slane %v2434, 1
        %v2437 = vsel %vm769, %v2432, %v2436
        %v2438 = vshrl.u32 %v2393, 16
        %v2440 = vor.u32 %v2438, %v2436
        %v2442 = vshll.u32 %v2394, 16
        %v2444 = vrot.slane %v2442, 1
        %v2445 = vsel %vm769, %v2440, %v2444
        %v2446 = vshrl.u32 %v2394, 16
        %v2448 = vor.u32 %v2446, %v2444
        %v2450 = vshll.u32 %v2395, 16
        %v2452 = vrot.slane %v2450, 1
        %v2453 = vsel %vm769, %v2448, %v2452
        %v2454 = vshrl.u32 %v2395, 16
        %v2456 = vor.u32 %v2454, %v2452
        %v2458 = vshll.u32 %v2396, 16
        %v2460 = vrot.slane %v2458, 1
        %v2461 = vsel %vm769, %v2456, %v2460
        %v2462 = vshrl.u32 %v2396, 16
        %v2464 = vor.u32 %v2462, %v2460
        %v2466 = vshll.u32 %v2397, 16
        %v2468 = vrot.slane %v2466, 1
        %v2469 = vsel %vm769, %v2464, %v2468
        %v2470 = vshrl.u32 %v2397, 16
        %v2472 = vor.u32 %v2470, %v2468
        %v2474 = vshll.u32 %v2398, 16
        %v2476 = vrot.slane %v2474, 1
        %v2477 = vsel %vm769, %v2472, %v2476
        %v2478 = vshrl.u32 %v2398, 16
        %v2480 = vor.u32 %v2478, %v2476
        %v2482 = vshll.u32 %v2399, 16
        %v2484 = vrot.slane %v2482, 1
        %v2485 = vsel %vm769, %v2480, %v2484
        %v2486 = vshrl.u32 %v2399, 16
        %v2488 = vor.u32 %v2486, %v2484
        %v2490 = vshll.u32 %v2400, 16
        %v2492 = vrot.slane %v2490, 1
        %v2493 = vsel %vm769, %v2488, %v2492
        %v2494 = vshrl.u32 %v2400, 16
        %v2496 = vor.u32 %v2494, %v2492
        %v2498 = vshll.u32 %v2401, 16
        %v2500 = vrot.slane %v2498, 1
        %v2501 = vsel %vm769, %v2496, %v2500
        %v2530 = vunpack.c.l.b16 %v2323
        %v2531 = vunpack.c.l.b16 %v2324
        %v2532 = vunpack.c.l.b16 %v2325
        %v2533 = vunpack.c.l.b16 %v2326
        %v2534 = vunpack.c.l.b16 %v2327
        %v2535 = vunpack.c.l.b16 %v2328
        %v2536 = vunpack.c.l.b16 %v2329
        %v2537 = vunpack.c.l.b16 %v2330
        %v2538 = vunpack.c.l.b16 %v2331
        %v2539 = vunpack.c.l.b16 %v2332
        %v2540 = vunpack.c.l.b16 %v2333
        %v2541 = vunpack.c.l.b16 %v2334
        %v2542 = vunpack.c.l.b16 %v2335
        %v2543 = vunpack.c.l.b16 %v2336
        %v2544 = vunpack.c.l.b16 %v2337
        %v2545 = vunpack.c.l.b16 %v2338
        %v2546 = vpack.c.b16 %v2531, %v2530
        %v2547 = vpack.c.b16 %v2533, %v2532
        %v2548 = vpack.c.b16 %v2535, %v2534
        %v2549 = vpack.c.b16 %v2537, %v2536
        %v2550 = vpack.c.b16 %v2539, %v2538
        %v2551 = vpack.c.b16 %v2541, %v2540
        %v2552 = vpack.c.b16 %v2543, %v2542
        %v2553 = vpack.c.b16 %v2545, %v2544
        %2562 = vmatpush.bf16.msra.mxu0 %v2553
        %2563 = vmatpush.bf16.msra.mxu0 %v2552
        %2564 = vmatpush.bf16.msra.mxu0 %v2551
        %2565 = vmatpush.bf16.msra.mxu0 %v2550
        %2566 = vmatpush.bf16.msra.mxu0 %v2549
        %2567 = vmatpush.bf16.msra.mxu0 %v2548
        %2568 = vmatpush.bf16.msra.mxu0 %v2547
        %2569 = vmatpush.bf16.msra.mxu0 %v2546
        %2570 = vmatmul.bf16.gmra.mxu0 %v2413
        %v2571 = vpop.f32.mrf.mxu0
        %v2572 = vadd.f32 0.0, %v2571
        %v2573 = vpop.f32.mrf.mxu0
        %v2574 = vadd.f32 0.0, %v2573
        %2575 = vmatmul.bf16.gmra.mxu0 %v2421
        %v2576 = vpop.f32.mrf.mxu0
        %v2577 = vpop.f32.mrf.mxu0
        %v2578 = vadd.f32 0.0, %v2577
        %2579 = vmatmul.bf16.gmra.mxu0 %v2429
        %v2580 = vpop.f32.mrf.mxu0
        %v2581 = vadd.f32 0.0, %v2580
        %v2582 = vpop.f32.mrf.mxu0
        %2583 = vmatmul.bf16.gmra.mxu0 %v2437
        %v2584 = vpop.f32.mrf.mxu0
        %v2585 = vadd.f32 0.0, %v2584
        %v2586 = vpop.f32.mrf.mxu0
        %v2587 = vadd.f32 0.0, %v2586
        %2588 = vmatmul.bf16.gmra.mxu0 %v2445
        %v2589 = vpop.f32.mrf.mxu0
        %v2590 = vpop.f32.mrf.mxu0
        %v2591 = vadd.f32 0.0, %v2590
        %2592 = vmatmul.bf16.gmra.mxu0 %v2453
        %v2593 = vpop.f32.mrf.mxu0
        %v2594 = vadd.f32 0.0, %v2593
        %v2595 = vpop.f32.mrf.mxu0
        %2596 = vmatmul.bf16.gmra.mxu0 %v2461
        %v2597 = vpop.f32.mrf.mxu0
        %v2598 = vadd.f32 0.0, %v2597
        %v2599 = vpop.f32.mrf.mxu0
        %v2600 = vadd.f32 0.0, %v2599
        %2601 = vmatmul.bf16.gmra.mxu0 %v2469
        %v2602 = vpop.f32.mrf.mxu0
        %v2603 = vpop.f32.mrf.mxu0
        %v2604 = vadd.f32 0.0, %v2603
        %2605 = vmatmul.bf16.gmra.mxu0 %v2477
        %v2606 = vpop.f32.mrf.mxu0
        %v2607 = vadd.f32 0.0, %v2606
        %v2608 = vpop.f32.mrf.mxu0
        %2609 = vmatmul.bf16.gmra.mxu0 %v2485
        %v2610 = vpop.f32.mrf.mxu0
        %v2611 = vadd.f32 0.0, %v2610
        %v2612 = vpop.f32.mrf.mxu0
        %v2613 = vadd.f32 0.0, %v2612
        %2614 = vmatmul.bf16.gmra.mxu0 %v2493
        %v2615 = vpop.f32.mrf.mxu0
        %v2616 = vpop.f32.mrf.mxu0
        %v2617 = vadd.f32 0.0, %v2616
        %2618 = vmatmul.bf16.gmra.mxu0 %v2501
        %v2619 = vpop.f32.mrf.mxu0
        %v2620 = vadd.f32 0.0, %v2619
        %v2621 = vpop.f32.mrf.mxu0
        %2622 = vdwg.mxu0
        %v2623 = vadd.f32 %v2281, %v2572
        %v2624 = vadd.f32 %v2282, %v2574
        %v2625 = vadd.f32 %v2283, %v2578
        %v2626 = vadd.f32 %v2284, %v2581
        %v2627 = vadd.f32 %v2285, %v2585
        %v2628 = vadd.f32 %v2286, %v2587
        %v2629 = vadd.f32 %v2287, %v2591
        %v2630 = vadd.f32 %v2288, %v2594
        %v2631 = vadd.f32 %v2289, %v2598
        %v2632 = vadd.f32 %v2290, %v2600
        %v2633 = vadd.f32 %v2291, %v2604
        %v2634 = vadd.f32 %v2292, %v2607
        %v2635 = vadd.f32 %v2293, %v2611
        %v2636 = vadd.f32 %v2294, %v2613
        %v2637 = vadd.f32 %v2295, %v2617
        %v2638 = vadd.f32 %v2296, %v2620
        %v2639 = vld [vmem:[#allocation2 + $0x18] sm:$0xe]
        %s2640 = scalar_lea.vmem %s1, 512
        %v2641 = vld [vmem:[%s2640] sm:$0xf]
        %v2642 = vld [vmem:[%s2640 + $0x4] sm:$0xf]
        %v2643 = vld [vmem:[%s2640 + $0x8] sm:$0xf]
        %v2644 = vld [vmem:[%s2640 + $0xc] sm:$0xf]
        %v2645 = vld [vmem:[%s2640 + $0x10] sm:$0xf]
        %v2646 = vld [vmem:[%s2640 + $0x14] sm:$0xf]
        %v2647 = vld [vmem:[%s2640 + $0x18] sm:$0xf]
        %v2648 = vld [vmem:[%s2640 + $0x1c] sm:$0xf]
        %v2649 = vld [vmem:[%s2640 + $0x20] sm:$0xf]
        %v2650 = vld [vmem:[%s2640 + $0x24] sm:$0xf]
        %v2651 = vld [vmem:[%s2640 + $0x28] sm:$0xf]
        %v2652 = vld [vmem:[%s2640 + $0x2c] sm:$0xf]
        %v2653 = vld [vmem:[%s2640 + $0x30] sm:$0xf]
        %v2654 = vld [vmem:[%s2640 + $0x34] sm:$0xf]
        %v2655 = vld [vmem:[%s2640 + $0x38] sm:$0xf]
        %v2656 = vld [vmem:[%s2640 + $0x3c] sm:$0xf]
        %v2658 = vunpack.c.l.b16 %v2639
        %v2659 = vpack.c.b16 %v2365, %v2658
        %v2660 = vrot.slane %v2659, 1
        %v2661 = vrot.slane %v2390, 1
        %v2662 = vsel %vm1133, %v2660, %v2661
        %v2663 = vrot.slane %v2391, 1
        %v2664 = vsel %vm1133, %v2661, %v2663
        %v2665 = vrot.slane %v2392, 1
        %v2666 = vsel %vm1133, %v2663, %v2665
        %v2667 = vrot.slane %v2393, 1
        %v2668 = vsel %vm1133, %v2665, %v2667
        %v2669 = vrot.slane %v2394, 1
        %v2670 = vsel %vm1133, %v2667, %v2669
        %v2671 = vrot.slane %v2395, 1
        %v2672 = vsel %vm1133, %v2669, %v2671
        %v2673 = vrot.slane %v2396, 1
        %v2674 = vsel %vm1133, %v2671, %v2673
        %v2675 = vrot.slane %v2397, 1
        %v2676 = vsel %vm1133, %v2673, %v2675
        %v2677 = vrot.slane %v2398, 1
        %v2678 = vsel %vm1133, %v2675, %v2677
        %v2679 = vrot.slane %v2399, 1
        %v2680 = vsel %vm1133, %v2677, %v2679
        %v2681 = vrot.slane %v2400, 1
        %v2682 = vsel %vm1133, %v2679, %v2681
        %v2683 = vrot.slane %v2401, 1
        %v2684 = vsel %vm1133, %v2681, %v2683
        %v2713 = vunpack.c.l.b16 %v2641
        %v2714 = vunpack.c.l.b16 %v2642
        %v2715 = vunpack.c.l.b16 %v2643
        %v2716 = vunpack.c.l.b16 %v2644
        %v2717 = vunpack.c.l.b16 %v2645
        %v2718 = vunpack.c.l.b16 %v2646
        %v2719 = vunpack.c.l.b16 %v2647
        %v2720 = vunpack.c.l.b16 %v2648
        %v2721 = vunpack.c.l.b16 %v2649
        %v2722 = vunpack.c.l.b16 %v2650
        %v2723 = vunpack.c.l.b16 %v2651
        %v2724 = vunpack.c.l.b16 %v2652
        %v2725 = vunpack.c.l.b16 %v2653
        %v2726 = vunpack.c.l.b16 %v2654
        %v2727 = vunpack.c.l.b16 %v2655
        %v2728 = vunpack.c.l.b16 %v2656
        %v2729 = vpack.c.b16 %v2714, %v2713
        %v2730 = vpack.c.b16 %v2716, %v2715
        %v2731 = vpack.c.b16 %v2718, %v2717
        %v2732 = vpack.c.b16 %v2720, %v2719
        %v2733 = vpack.c.b16 %v2722, %v2721
        %v2734 = vpack.c.b16 %v2724, %v2723
        %v2735 = vpack.c.b16 %v2726, %v2725
        %v2736 = vpack.c.b16 %v2728, %v2727
        %2745 = vmatpush.bf16.msra.mxu0 %v2736
        %2746 = vmatpush.bf16.msra.mxu0 %v2735
        %2747 = vmatpush.bf16.msra.mxu0 %v2734
        %2748 = vmatpush.bf16.msra.mxu0 %v2733
        %2749 = vmatpush.bf16.msra.mxu0 %v2732
        %2750 = vmatpush.bf16.msra.mxu0 %v2731
        %2751 = vmatpush.bf16.msra.mxu0 %v2730
        %2752 = vmatpush.bf16.msra.mxu0 %v2729
        %2753 = vmatmul.bf16.gmra.mxu0 %v2662
        %v2754 = vpop.f32.mrf.mxu0
        %v2755 = vadd.f32 0.0, %v2754
        %v2756 = vpop.f32.mrf.mxu0
        %v2757 = vadd.f32 0.0, %v2756
        %2758 = vmatmul.bf16.gmra.mxu0 %v2664
        %v2759 = vpop.f32.mrf.mxu0
        %v2760 = vpop.f32.mrf.mxu0
        %v2761 = vadd.f32 0.0, %v2760
        %2762 = vmatmul.bf16.gmra.mxu0 %v2666
        %v2763 = vpop.f32.mrf.mxu0
        %v2764 = vadd.f32 0.0, %v2763
        %v2765 = vpop.f32.mrf.mxu0
        %2766 = vmatmul.bf16.gmra.mxu0 %v2668
        %v2767 = vpop.f32.mrf.mxu0
        %v2768 = vadd.f32 0.0, %v2767
        %v2769 = vpop.f32.mrf.mxu0
        %v2770 = vadd.f32 0.0, %v2769
        %2771 = vmatmul.bf16.gmra.mxu0 %v2670
        %v2772 = vpop.f32.mrf.mxu0
        %v2773 = vpop.f32.mrf.mxu0
        %v2774 = vadd.f32 0.0, %v2773
        %2775 = vmatmul.bf16.gmra.mxu0 %v2672
        %v2776 = vpop.f32.mrf.mxu0
        %v2777 = vadd.f32 0.0, %v2776
        %v2778 = vpop.f32.mrf.mxu0
        %2779 = vmatmul.bf16.gmra.mxu0 %v2674
        %v2780 = vpop.f32.mrf.mxu0
        %v2781 = vadd.f32 0.0, %v2780
        %v2782 = vpop.f32.mrf.mxu0
        %v2783 = vadd.f32 0.0, %v2782
        %2784 = vmatmul.bf16.gmra.mxu0 %v2676
        %v2785 = vpop.f32.mrf.mxu0
        %v2786 = vpop.f32.mrf.mxu0
        %v2787 = vadd.f32 0.0, %v2786
        %2788 = vmatmul.bf16.gmra.mxu0 %v2678
        %v2789 = vpop.f32.mrf.mxu0
        %v2790 = vadd.f32 0.0, %v2789
        %v2791 = vpop.f32.mrf.mxu0
        %2792 = vmatmul.bf16.gmra.mxu0 %v2680
        %v2793 = vpop.f32.mrf.mxu0
        %v2794 = vadd.f32 0.0, %v2793
        %v2795 = vpop.f32.mrf.mxu0
        %v2796 = vadd.f32 0.0, %v2795
        %2797 = vmatmul.bf16.gmra.mxu0 %v2682
        %v2798 = vpop.f32.mrf.mxu0
        %v2799 = vpop.f32.mrf.mxu0
        %v2800 = vadd.f32 0.0, %v2799
        %2801 = vmatmul.bf16.gmra.mxu0 %v2684
        %v2802 = vpop.f32.mrf.mxu0
        %v2803 = vadd.f32 0.0, %v2802
        %v2804 = vpop.f32.mrf.mxu0
        %2805 = vdwg.mxu0
        %v2806 = vadd.f32 %v2623, %v2755
        %v2807 = vadd.f32 %v2624, %v2757
        %v2808 = vadd.f32 %v2625, %v2761
        %v2809 = vadd.f32 %v2626, %v2764
        %v2810 = vadd.f32 %v2627, %v2768
        %v2811 = vadd.f32 %v2628, %v2770
        %v2812 = vadd.f32 %v2629, %v2774
        %v2813 = vadd.f32 %v2630, %v2777
        %v2814 = vadd.f32 %v2631, %v2781
        %v2815 = vadd.f32 %v2632, %v2783
        %v2816 = vadd.f32 %v2633, %v2787
        %v2817 = vadd.f32 %v2634, %v2790
        %v2818 = vadd.f32 %v2635, %v2794
        %v2819 = vadd.f32 %v2636, %v2796
        %v2820 = vadd.f32 %v2637, %v2800
        %v2821 = vadd.f32 %v2638, %v2803
        %v2822 = vld [vmem:[%s2] sm:$0x1]
        %v2823 = vperm.slane %v2822, 0
        %v2824 = vmul.f32 %v2806, %v2823
        %v2825 = vmul.f32 %v2807, %v2823
        %v2826 = vmul.f32 %v2808, %v2823
        %v2827 = vmul.f32 %v2809, %v2823
        %v2828 = vmul.f32 %v2810, %v2823
        %v2829 = vmul.f32 %v2811, %v2823
        %v2830 = vmul.f32 %v2812, %v2823
        %v2831 = vmul.f32 %v2813, %v2823
        %v2832 = vmul.f32 %v2814, %v2823
        %v2833 = vmul.f32 %v2815, %v2823
        %v2834 = vmul.f32 %v2816, %v2823
        %v2835 = vmul.f32 %v2817, %v2823
        %v2836 = vmul.f32 %v2818, %v2823
        %v2837 = vmul.f32 %v2819, %v2823
        %v2838 = vmul.f32 %v2820, %v2823
        %v2839 = vmul.f32 %v2821, %v2823
        %v2840 = vld [vmem:[%s2 + $0x1] sm:$0x1]
        %v2841 = vperm.slane %v2840, 0
        %v2842 = vadd.f32 %v2824, %v2841
        %v2843 = vadd.f32 %v2825, %v2841
        %v2844 = vadd.f32 %v2826, %v2841
        %v2845 = vadd.f32 %v2827, %v2841
        %v2846 = vadd.f32 %v2828, %v2841
        %v2847 = vadd.f32 %v2829, %v2841
        %v2848 = vadd.f32 %v2830, %v2841
        %v2849 = vadd.f32 %v2831, %v2841
        %v2850 = vadd.f32 %v2832, %v2841
        %v2851 = vadd.f32 %v2833, %v2841
        %v2852 = vadd.f32 %v2834, %v2841
        %v2853 = vadd.f32 %v2835, %v2841
        %v2854 = vadd.f32 %v2836, %v2841
        %v2855 = vadd.f32 %v2837, %v2841
        %v2856 = vadd.f32 %v2838, %v2841
        %v2857 = vadd.f32 %v2839, %v2841
        %v2858 = vmax.f32 %v2842, 0.0
        %v2859 = vmax.f32 %v2843, 0.0
        %v2860 = vmax.f32 %v2844, 0.0
        %v2861 = vmax.f32 %v2845, 0.0
        %v2862 = vmax.f32 %v2846, 0.0
        %v2863 = vmax.f32 %v2847, 0.0
        %v2864 = vmax.f32 %v2848, 0.0
        %v2865 = vmax.f32 %v2849, 0.0
        %v2866 = vmax.f32 %v2850, 0.0
        %v2867 = vmax.f32 %v2851, 0.0
        %v2868 = vmax.f32 %v2852, 0.0
        %v2869 = vmax.f32 %v2853, 0.0
        %v2870 = vmax.f32 %v2854, 0.0
        %v2871 = vmax.f32 %v2855, 0.0
        %v2872 = vmax.f32 %v2856, 0.0
        %v2873 = vmax.f32 %v2857, 0.0
        %2874 = vst [vmem:[%s177] sm:$0xff] %v2858
        %2875 = vst [vmem:[%s177 + $0x8] sm:$0xff] %v2859
        %2876 = vst [vmem:[%s177 + $0x10] sm:$0xff] %v2860
        %2877 = vst [vmem:[%s177 + $0x18] sm:$0xff] %v2861
        %2878 = vst [vmem:[%s177 + $0x20] sm:$0xff] %v2862
        %2879 = vst [vmem:[%s177 + $0x28] sm:$0xff] %v2863
        %2880 = vst [vmem:[%s177 + $0x30] sm:$0xff] %v2864
        %2881 = vst [vmem:[%s177 + $0x38] sm:$0xff] %v2865
        %2882 = vst [vmem:[%s177 + $0x40] sm:$0xff] %v2866
        %2883 = vst [vmem:[%s177 + $0x48] sm:$0xff] %v2867
        %2884 = vst [vmem:[%s177 + $0x50] sm:$0xff] %v2868
        %2885 = vst [vmem:[%s177 + $0x58] sm:$0xff] %v2869
        %2886 = vst [vmem:[%s177 + $0x60] sm:$0xff] %v2870
        %2887 = vst [vmem:[%s177 + $0x68] sm:$0xff] %v2871
        %2888 = vst [vmem:[%s177 + $0x70] sm:$0xff] %v2872
        %2889 = vst [vmem:[%s177 + $0x78] sm:$0xff] %v2873
        %s2890 = sand.u32 %s107, 1
        %s2891 = scalar_lea.sflag [#allocation4], %s2890
        %s2892 = sand.u32 %s107, 1
        %s2893 = smul.addr %s2892, 128
        %s2894 = scalar_lea.vmem [#allocation3], %s2893
        // Predicated region
        $region41: #{upsampler_forward.5} parent=31 // pred_check
          %p2895 = pneg %p117
        $region42: #{upsampler_forward.5} parent=31 // pred_check_branch
          %2897 = sbr.rel (%p2895) target = $region44
        $region43: #{upsampler_forward.5} parent=31 // pred_region
          %s2898 = smul.u32 8, %s22
          %2900 = vsyncadd %s2891, 0
          %s2901 = smul.addr %s2898, 2
          %s2902 = smul.addr %s21, 32
          %s2903 = sadd.s32 %s2901, %s2902
          %s2904 = smul.addr %s2903, 8
          %s2905 = scalar_lea.hbm %s3, %s2904
          %s2906 = sshll.u32 %s2894, 4
          %s2907 = int_to_ptr.vmem [resolvable:$true] %s2906
          %s2908 = sshll.u32 %s2905, 4
          %s2909 = int_to_ptr.hbm [resolvable:$true] %s2908
          %2914 = dma.vmem_to_hbm [thread:$0]  %s2907, 2048, %s2909, %s2891, 128, 128, 8
        $region44: #{upsampler_forward.5} parent=31 // pred_fallthru
          _
      $region32: #{upsampler_forward.5} parent=5 // pred_fallthru
        _
      %p2915 = scmp.le.s32.totalorder 2, %s12
      // Predicated region
      $region45: #{upsampler_forward.5} parent=5 // pred_check
        %p2916 = pneg %p2915
      $region46: #{upsampler_forward.5} parent=5 // pred_check_branch
        %2918 = sbr.rel (%p2916) target = $region48
      $region47: #{upsampler_forward.5} parent=5 // pred_region
        %s2919 = ssub.s32 %s12, 2
        // Predicated region
        $region49: #{upsampler_forward.5} parent=47 // pred_check
          %p2920 = pneg %p123
        $region50: #{upsampler_forward.5} parent=47 // pred_check_branch
          %2922 = sbr.rel (%p2920) target = $region52
        $region51: #{upsampler_forward.5} parent=47 // pred_region
          %s2923 = sand.u32 %s108, 1
          %s2924 = scalar_lea.sflag [#allocation4], %s2923
          %s2925 = sand.u32 %s108, 1
          %s2926 = smul.addr %s2925, 128
          %s2927 = scalar_lea.vmem [#allocation3], %s2926
          %2929 = dma.done %s2924, 2048
        $region52: #{upsampler_forward.5} parent=47 // pred_fallthru
          _
      $region48: #{upsampler_forward.5} parent=5 // pred_fallthru
        _
    $region6: #{upsampler_forward.5} parent=1 // loop_footer
      %s16 = sadd.s32 1, %s12
    $region7: #{upsampler_forward.5} parent=1 // loop_footer_branch
      %11 = sbr.rel target = $region3
    $region8: #{upsampler_forward.5} parent=1 // loop_exit
      _
    %2930 = vsyncpa [#allocation4], 1
    %s2931 = scalar_lea.sflag [#allocation4], 1
    %2932 = vsyncpa %s2931, 1

// kernel: upsampler_forward.4
$region0: #{upsampler_forward.4}
  #allocation0 [shape = 'u32[]', space=smem, size = 0x4, offset = 0x4, fixed_abs, tag = 'smem constant byte address 0x4 - core index']
  #allocation1 [shape = 'u32[72,128]{1,0:T(1,128)}', space=vmem, size = 0x9000, scoped, tag = 'internal scratch']
  #allocation2 [shape = 'bf16[264,256]{1,0:T(8,128)(2,1)}', space=vmem, size = 0x21000, scoped, tag = 'scratch operand']
  %s0 = inlined_call_operand.vmem [shape: bf16[2,16,16,128], index: 0, kind: input, shape index: {}]
  %s1 = inlined_call_operand.vmem [shape: bf16[2,16,16,128], index: 1, kind: input, shape index: {}]
  %s2 = inlined_call_operand.vmem [shape: bf16[9,256,128], index: 2, kind: input, shape index: {}]
  %s3 = inlined_call_operand.vmem [shape: f32[2,128], index: 3, kind: input, shape index: {}]
  %s4 = inlined_call_operand.vmem [shape: bf16[2,16,16,128], index: 4, kind: output, shape index: {}]
  %s5 = sld [smem:[#allocation0]]
  $region57: #{upsampler_forward.4} parent=0
    _
  %s7 = ssub.s32 1, %s5
  %s8 = scalar_select 0, %s7, %s5
  loop: start=0, step=1, limit=6
  $region2: #{upsampler_forward.4} parent=0 // loop_pre_header
    _
  $region3: #{upsampler_forward.4} parent=0 // loop_header
    %s10 = sphi 0, %s14
    %p11 = scmp.ge.s32.totalorder %s10, 6
    %s17 = sphi 0, %s29
    %s18 = sphi 0, %s25
    %s19 = sphi 0, %s17
    %s20 = sphi 0, %s18
    %s21 = sphi 0, %s19
    %s22 = sphi 0, %s20
    %s32 = sphi 0, %s34
    %s35 = sphi 0, %s32
    %s36 = sphi 0, %s35
    %s52 = sphi 0, %s36
    %s58 = sphi 0, %s60
    %s61 = sphi 0, %s58
    %s62 = sphi 0, %s61
    %s78 = sphi 0, %s62
    %s82 = sphi 0, %s82
    %s84 = sphi 0, %s82
    %s85 = sphi 0, %s84
    %s99 = sphi 0, %s85
    %s103 = sphi 0, %s103
    %s105 = sphi 0, %s103
    %s106 = sphi 0, %s105
    %s120 = sphi 0, %s106
    %s128 = sphi 0, %s130
    %s131 = sphi 0, %s128
    %s132 = sphi 0, %s131
    %s148 = sphi 0, %s132
  $region4: #{upsampler_forward.4} parent=0 // loop_header_branch
    %13 = sbr.rel (%p11) target = $region8
  $region5: #{upsampler_forward.4} parent=0 // loop_body
    %s15 = ssub.s32 %s10, 1
    %s16 = ssub.s32 %s10, 2
    %s23 = sadd.s32 1, %s18
    %p24 = scmp.ge.s32.totalorder %s23, 2
    %s25 = scalar_select %p24, 0, %s23
    %s26 = sadd.s32 1, %s17
    %s27 = scalar_select %p24, %s26, %s17
    %p28 = scmp.ge.s32.totalorder %s27, 2
    %s29 = scalar_select %p28, 0, %s27
    %s30 = ssub.s32 %s17, %s29
    %p31 = scmp.eq.s32.totalorder %s30, 0
    %s33 = sadd.s32 %s32, 1
    %s34 = scalar_select %p31, %s32, %s33
    %p37 = pneg %p31
    %p38 = scmp.eq.s32.totalorder %s10, 3
    %p39 = por %p37, %p38
    %p40 = scmp.ne.s32.totalorder %s32, %s35
    %p41 = scmp.eq.s32.totalorder %s10, 0
    %p42 = por %p40, %p41
    %p43 = scmp.ne.s32.totalorder %s32, %s35
    %p44 = scmp.eq.s32.totalorder %s15, 3
    %p45 = por %p43, %p44
    %p46 = scmp.ne.s32.totalorder %s35, %s36
    %p47 = scmp.eq.s32.totalorder %s15, 0
    %p48 = por %p46, %p47
    %p49 = scmp.ne.s32.totalorder %s35, %s36
    %p50 = scmp.eq.s32.totalorder %s16, 3
    %p51 = por %p49, %p50
    %p53 = scmp.ne.s32.totalorder %s36, %s52
    %p54 = scmp.eq.s32.totalorder %s16, 0
    %p55 = por %p53, %p54
    %s56 = ssub.s32 %s17, %s29
    %p57 = scmp.eq.s32.totalorder %s56, 0
    %s59 = sadd.s32 %s58, 1
    %s60 = scalar_select %p57, %s58, %s59
    %p63 = pneg %p57
    %p64 = scmp.eq.s32.totalorder %s10, 3
    %p65 = por %p63, %p64
    %p66 = scmp.ne.s32.totalorder %s58, %s61
    %p67 = scmp.eq.s32.totalorder %s10, 0
    %p68 = por %p66, %p67
    %p69 = scmp.ne.s32.totalorder %s58, %s61
    %p70 = scmp.eq.s32.totalorder %s15, 3
    %p71 = por %p69, %p70
    %p72 = scmp.ne.s32.totalorder %s61, %s62
    %p73 = scmp.eq.s32.totalorder %s15, 0
    %p74 = por %p72, %p73
    %p75 = scmp.ne.s32.totalorder %s61, %s62
    %p76 = scmp.eq.s32.totalorder %s16, 3
    %p77 = por %p75, %p76
    %p79 = scmp.ne.s32.totalorder %s62, %s78
    %p80 = scmp.eq.s32.totalorder %s16, 0
    %p81 = por %p79, %p80
    %s83 = sadd.s32 %s82, 1
    %p86 = scmp.eq.s32.totalorder %s10, 3
    %p87 = scmp.ne.s32.totalorder %s82, %s84
    %p88 = scmp.eq.s32.totalorder %s10, 0
    %p89 = por %p87, %p88
    %p90 = scmp.ne.s32.totalorder %s82, %s84
    %p91 = scmp.eq.s32.totalorder %s15, 3
    %p92 = por %p90, %p91
    %p93 = scmp.ne.s32.totalorder %s84, %s85
    %p94 = scmp.eq.s32.totalorder %s15, 0
    %p95 = por %p93, %p94
    %p96 = scmp.ne.s32.totalorder %s84, %s85
    %p97 = scmp.eq.s32.totalorder %s16, 3
    %p98 = por %p96, %p97
    %p100 = scmp.ne.s32.totalorder %s85, %s99
    %p101 = scmp.eq.s32.totalorder %s16, 0
    %p102 = por %p100, %p101
    %s104 = sadd.s32 %s103, 1
    %p107 = scmp.eq.s32.totalorder %s10, 3
    %p108 = scmp.ne.s32.totalorder %s103, %s105
    %p109 = scmp.eq.s32.totalorder %s10, 0
    %p110 = por %p108, %p109
    %p111 = scmp.ne.s32.totalorder %s103, %s105
    %p112 = scmp.eq.s32.totalorder %s15, 3
    %p113 = por %p111, %p112
    %p114 = scmp.ne.s32.totalorder %s105, %s106
    %p115 = scmp.eq.s32.totalorder %s15, 0
    %p116 = por %p114, %p115
    %p117 = scmp.ne.s32.totalorder %s105, %s106
    %p118 = scmp.eq.s32.totalorder %s16, 3
    %p119 = por %p117, %p118
    %p121 = scmp.ne.s32.totalorder %s106, %s120
    %p122 = scmp.eq.s32.totalorder %s16, 0
    %p123 = por %p121, %p122
    %s124 = ssub.s32 %s17, %s29
    %s125 = ssub.s32 %s18, %s25
    %s126 = sor.u32 %s124, %s125
    %p127 = scmp.eq.s32.totalorder %s126, 0
    %s129 = sadd.s32 %s128, 1
    %s130 = scalar_select %p127, %s128, %s129
    %p133 = pneg %p127
    %p134 = scmp.eq.s32.totalorder %s10, 3
    %p135 = por %p133, %p134
    %p136 = scmp.ne.s32.totalorder %s128, %s131
    %p137 = scmp.eq.s32.totalorder %s10, 0
    %p138 = por %p136, %p137
    %p139 = scmp.ne.s32.totalorder %s128, %s131
    %p140 = scmp.eq.s32.totalorder %s15, 3
    %p141 = por %p139, %p140
    %p142 = scmp.ne.s32.totalorder %s131, %s132
    %p143 = scmp.eq.s32.totalorder %s15, 0
    %p144 = por %p142, %p143
    %p145 = scmp.ne.s32.totalorder %s131, %s132
    %p146 = scmp.eq.s32.totalorder %s16, 3
    %p147 = por %p145, %p146
    %p149 = scmp.ne.s32.totalorder %s132, %s148
    %p150 = scmp.eq.s32.totalorder %s16, 0
    %p151 = por %p149, %p150
    %p152 = scmp.le.s32.totalorder 1, %s10
    %p153 = scmp.lt.s32.totalorder %s10, 5
    %p154 = pnand %p152, %p153
    %p155 = pneg %p154
    // Predicated region
    $region9: #{upsampler_forward.4} parent=5 // pred_check
      _
    $region10: #{upsampler_forward.4} parent=5 // pred_check_branch
      %157 = sbr.rel (%p154) target = $region12
    $region11: #{upsampler_forward.4} parent=5 // pred_region
      %s158 = ssub.s32 %s10, 1
      // Predicated region
      $region13: #{upsampler_forward.4} parent=11 // pred_check
        %p159 = pneg %p95
      $region14: #{upsampler_forward.4} parent=11 // pred_check_branch
        %161 = sbr.rel (%p159) target = $region16
      $region15: #{upsampler_forward.4} parent=11 // pred_region
        _
      $region16: #{upsampler_forward.4} parent=11 // pred_fallthru
        _
      // Predicated region
      $region17: #{upsampler_forward.4} parent=11 // pred_check
        %p162 = pneg %p116
      $region18: #{upsampler_forward.4} parent=11 // pred_check_branch
        %164 = sbr.rel (%p162) target = $region20
      $region19: #{upsampler_forward.4} parent=11 // pred_region
        _
      $region20: #{upsampler_forward.4} parent=11 // pred_fallthru
        _
    $region12: #{upsampler_forward.4} parent=5 // pred_fallthru
      _
    %p165 = scmp.lt.s32.totalorder %s10, 4
    // Predicated region
    $region21: #{upsampler_forward.4} parent=5 // pred_check
      %p166 = pneg %p165
    $region22: #{upsampler_forward.4} parent=5 // pred_check_branch
      %168 = sbr.rel (%p166) target = $region24
    $region23: #{upsampler_forward.4} parent=5 // pred_region
      // Predicated region
      $region25: #{upsampler_forward.4} parent=23 // pred_check
        %p169 = pneg %p42
      $region26: #{upsampler_forward.4} parent=23 // pred_check_branch
        %171 = sbr.rel (%p169) target = $region28
      $region27: #{upsampler_forward.4} parent=23 // pred_region
        %p172 = scmp.lt.s32.totalorder %s17, 1
        %s173 = scalar_select %p172, %s17, 1
        %s174 = smul.addr %s173, 32
        %s175 = smul.addr %s174, 4
        %s176 = scalar_lea.vmem %s0, %s175
      $region28: #{upsampler_forward.4} parent=23 // pred_fallthru
        _
      // Predicated region
      $region29: #{upsampler_forward.4} parent=23 // pred_check
        %p177 = pneg %p68
      $region30: #{upsampler_forward.4} parent=23 // pred_check_branch
        %179 = sbr.rel (%p177) target = $region32
      $region31: #{upsampler_forward.4} parent=23 // pred_region
        %p180 = scmp.lt.s32.totalorder %s17, 1
        %s181 = scalar_select %p180, %s17, 1
        %s182 = smul.addr %s181, 32
        %s183 = smul.addr %s182, 4
        %s184 = scalar_lea.vmem %s1, %s183
      $region32: #{upsampler_forward.4} parent=23 // pred_fallthru
        _
    $region24: #{upsampler_forward.4} parent=5 // pred_fallthru
      _
    %p185 = scmp.le.s32.totalorder 1, %s10
    %p186 = scmp.lt.s32.totalorder %s10, 5
    %p187 = pnand %p185, %p186
    %p188 = pneg %p187
    // Predicated region
    $region33: #{upsampler_forward.4} parent=5 // pred_check
      _
    $region34: #{upsampler_forward.4} parent=5 // pred_check_branch
      %190 = sbr.rel (%p187) target = $region36
    $region35: #{upsampler_forward.4} parent=5 // pred_region
      %s191 = ssub.s32 %s10, 1
      %p192 = scmp.lt.s32.totalorder %s19, 1
      %s193 = scalar_select %p192, %s19, 1
      %s194 = smul.addr %s193, 32
      %s195 = smul.addr %s194, 4
      %s196 = scalar_lea.vmem %s0, %s195
      %p197 = pneg %p48
      %p198 = pneg %p45
      %p199 = scmp.lt.s32.totalorder %s19, 1
      %s200 = scalar_select %p199, %s19, 1
      %s201 = smul.addr %s200, 32
      %s202 = smul.addr %s201, 4
      %s203 = scalar_lea.vmem %s1, %s202
      %p204 = pneg %p74
      %p205 = pneg %p71
      %p206 = pneg %p95
      %p207 = pneg %p92
      %p208 = pneg %p116
      %p209 = pneg %p113
      %p210 = pneg %p144
      %p211 = pneg %p141
      %s212 = smul.u32 8, %s20
      %p213 = scmp.lt.s32.totalorder %s19, 1
      %s214 = scalar_select %p213, %s19, 1
      %p215 = scmp.lt.s32.totalorder %s212, 15
      %s216 = scalar_select %p215, %s212, 15
      %s217 = smul.addr %s216, 2
      %s218 = smul.addr %s214, 32
      %s219 = sadd.s32 %s217, %s218
      %s220 = smul.addr %s219, 4
      %s221 = scalar_lea.vmem %s4, %s220
      %p222 = scmp.lt.s32.totalorder %s19, 1
      %s223 = scalar_select %p222, %s19, 1
      %s224 = smul.addr %s223, 32
      %s225 = smul.addr %s224, 4
      %s226 = scalar_lea.vmem %s0, %s225
      %p227 = scmp.lt.s32.totalorder %s19, 1
      %s228 = scalar_select %p227, %s19, 1
      %s229 = smul.addr %s228, 32
      %s230 = smul.addr %s229, 4
      %s231 = scalar_lea.vmem %s1, %s230
      %s232 = smul.u32 8, %s20
      %p233 = scmp.lt.s32.totalorder %s19, 1
      %s234 = scalar_select %p233, %s19, 1
      %p235 = scmp.lt.s32.totalorder %s232, 15
      %s236 = scalar_select %p235, %s232, 15
      %s237 = smul.addr %s236, 2
      %s238 = smul.addr %s234, 32
      %s239 = sadd.s32 %s237, %s238
      %s240 = smul.addr %s239, 4
      %s241 = scalar_lea.vmem %s4, %s240
      %s242 = smul.u32 8, %s20
      %s244 = smul.u32 %s20, 8
      %vm245 = vcmask 1040384
      %vm246 = vsmask.f32 256
      %vm247 = vmand %vm245, %vm246
      %vm248 = vcmask 1044484
      %vm249 = vsmask.f32 4352
      %vm250 = vmand %vm248, %vm249
      %vm251 = vmor %vm250, %vm247
      %v252 = vld [vmem:[#allocation2] sm:$0x11]
      %v253 = vsel %vm251, 0, %v252
      %254 = vst [vmem:[#allocation2] sm:$0x11] %v253
      %vm255 = vcmask 1043456
      %vm256 = vsmask.f32 7938
      %vm257 = vmand %vm255, %vm256
      %vm258 = vcmask 1047556
      %vm259 = vsmask.f32 7954
      %vm260 = vmand %vm258, %vm259
      %vm261 = vmor %vm260, %vm257
      %v262 = vld [vmem:[#allocation2 + $0x10] sm:$0xff]
      %v263 = vsel %vm261, 0, %v262
      %264 = vst [vmem:[#allocation2 + $0x10] sm:$0xff] %v263
      %v265 = vld [vmem:[#allocation2 + $0x18] sm:$0x11]
      %v266 = vsel %vm251, 0, %v265
      %267 = vst [vmem:[#allocation2 + $0x18] sm:$0x11] %v266
      %v268 = vld [vmem:[#allocation2 + $0x28] sm:$0xff]
      %v269 = vsel %vm261, 0, %v268
      %270 = vst [vmem:[#allocation2 + $0x28] sm:$0xff] %v269
      %v271 = vld [vmem:[#allocation2 + $0x30] sm:$0x11]
      %v272 = vsel %vm251, 0, %v271
      %273 = vst [vmem:[#allocation2 + $0x30] sm:$0x11] %v272
      %v274 = vld [vmem:[#allocation2 + $0x40] sm:$0xff]
      %v275 = vsel %vm261, 0, %v274
      %276 = vst [vmem:[#allocation2 + $0x40] sm:$0xff] %v275
      %v277 = vld [vmem:[#allocation2 + $0x48] sm:$0x11]
      %v278 = vsel %vm251, 0, %v277
      %279 = vst [vmem:[#allocation2 + $0x48] sm:$0x11] %v278
      %v280 = vld [vmem:[#allocation2 + $0x58] sm:$0xff]
      %v281 = vsel %vm261, 0, %v280
      %282 = vst [vmem:[#allocation2 + $0x58] sm:$0xff] %v281
      %v283 = vld [vmem:[#allocation2 + $0x60] sm:$0x11]
      %v284 = vsel %vm251, 0, %v283
      %285 = vst [vmem:[#allocation2 + $0x60] sm:$0x11] %v284
      %v286 = vld [vmem:[#allocation2 + $0x70] sm:$0xff]
      %v287 = vsel %vm261, 0, %v286
      %288 = vst [vmem:[#allocation2 + $0x70] sm:$0xff] %v287
      %v289 = vld [vmem:[#allocation2 + $0x78] sm:$0x11]
      %v290 = vsel %vm251, 0, %v289
      %291 = vst [vmem:[#allocation2 + $0x78] sm:$0x11] %v290
      %v292 = vld [vmem:[#allocation2 + $0x88] sm:$0xff]
      %v293 = vsel %vm261, 0, %v292
      %294 = vst [vmem:[#allocation2 + $0x88] sm:$0xff] %v293
      %v295 = vld [vmem:[#allocation2 + $0x90] sm:$0x11]
      %v296 = vsel %vm251, 0, %v295
      %297 = vst [vmem:[#allocation2 + $0x90] sm:$0x11] %v296
      %v298 = vld [vmem:[#allocation2 + $0xa0] sm:$0xff]
      %v299 = vsel %vm261, 0, %v298
      %300 = vst [vmem:[#allocation2 + $0xa0] sm:$0xff] %v299
      %v301 = vld [vmem:[#allocation2 + $0xa8] sm:$0x11]
      %v302 = vsel %vm251, 0, %v301
      %303 = vst [vmem:[#allocation2 + $0xa8] sm:$0x11] %v302
      %v304 = vld [vmem:[#allocation2 + $0xb8] sm:$0xff]
      %v305 = vsel %vm261, 0, %v304
      %306 = vst [vmem:[#allocation2 + $0xb8] sm:$0xff] %v305
      %v307 = vld [vmem:[#allocation2 + $0xc0] sm:$0x11]
      %v308 = vsel %vm251, 0, %v307
      %309 = vst [vmem:[#allocation2 + $0xc0] sm:$0x11] %v308
      %v310 = vld [vmem:[#allocation2 + $0xd0] sm:$0xff]
      %v311 = vsel %vm261, 0, %v310
      %312 = vst [vmem:[#allocation2 + $0xd0] sm:$0xff] %v311
      %v313 = vld [vmem:[#allocation2 + $0xd8] sm:$0x11]
      %v314 = vsel %vm251, 0, %v313
      %315 = vst [vmem:[#allocation2 + $0xd8] sm:$0x11] %v314
      %v316 = vld [vmem:[#allocation2 + $0xe8] sm:$0xff]
      %v317 = vsel %vm261, 0, %v316
      %318 = vst [vmem:[#allocation2 + $0xe8] sm:$0xff] %v317
      %319 = vst [vmem:[#allocation2 + $0xf0] sm:$0xff] 0
      %320 = vst [vmem:[#allocation2 + $0xf8] sm:$0xff] 0
      %321 = vst [vmem:[#allocation2 + $0x100] sm:$0xff] 0
      %s322 = ssub.s32 %s244, 1
      %p323 = scmp.gt.s32.totalorder %s322, 0
      %s324 = scalar_select %p323, %s322, 0
      %p325 = scmp.lt.s32.totalorder %s324, 15
      %s326 = scalar_select %p325, %s324, 15
      %s327 = smul.u32 %s326, 2
      %s328 = smul.addr %s327, 4
      %s329 = scalar_lea.vmem %s226, %s328
      %v330 = vld [vmem:[%s329] sm:$0xf]
      %v331 = vld [vmem:[%s329 + $0x4] sm:$0xf]
      %vm332 = vsmask.f32 4368
      %vm333 = vmor %vm246, %vm332
      %v335 = vshrl.u32 %v330, 16
      %v337 = vrot.slane %v335, 7
      %v338 = vshll.u32 %v330, 16
      %v340 = vor.u32 %v337, %v338
      %v341 = vrot.slane %v337, 4
      %v343 = vshrl.u32 %v331, 16
      %v345 = vrot.slane %v343, 7
      %v346 = vshll.u32 %v331, 16
      %v348 = vor.u32 %v345, %v346
      %v349 = vsel %vm333, %v341, %v348
      %v350 = vrot.slane %v345, 4
      %v354 = vld [vmem:[#allocation2] sm:$0xf]
      %v355 = vsel %vm257, %v340, %v354
      %356 = vst [vmem:[#allocation2] sm:$0xf] %v355
      %357 = vst [vmem:[#allocation2 + $0x8] sm:$0xf] %v349
      %v358 = vld [vmem:[#allocation2 + $0x10] sm:$0x1]
      %v359 = vsel %vm247, %v350, %v358
      %360 = vst [vmem:[#allocation2 + $0x10] sm:$0x1] %v359
      %p361 = scmp.gt.s32.totalorder %s244, 0
      %s362 = scalar_select %p361, %s244, 0
      %p363 = scmp.lt.s32.totalorder %s362, 15
      %s364 = scalar_select %p363, %s362, 15
      %s365 = smul.u32 %s364, 2
      %s366 = smul.addr %s365, 4
      %s367 = scalar_lea.vmem %s226, %s366
      %v368 = vld [vmem:[%s367] sm:$0xf]
      %v369 = vld [vmem:[%s367 + $0x4] sm:$0xf]
      %v371 = vshrl.u32 %v368, 16
      %v373 = vrot.slane %v371, 7
      %v374 = vshll.u32 %v368, 16
      %v376 = vor.u32 %v373, %v374
      %v377 = vrot.slane %v373, 4
      %v379 = vshrl.u32 %v369, 16
      %v381 = vrot.slane %v379, 7
      %v382 = vshll.u32 %v369, 16
      %v384 = vor.u32 %v381, %v382
      %v385 = vsel %vm333, %v377, %v384
      %v386 = vrot.slane %v381, 4
      %v390 = vld [vmem:[#allocation2 + $0x18] sm:$0xf]
      %v391 = vsel %vm257, %v376, %v390
      %392 = vst [vmem:[#allocation2 + $0x18] sm:$0xf] %v391
      %393 = vst [vmem:[#allocation2 + $0x20] sm:$0xf] %v385
      %v394 = vld [vmem:[#allocation2 + $0x28] sm:$0x1]
      %v395 = vsel %vm247, %v386, %v394
      %396 = vst [vmem:[#allocation2 + $0x28] sm:$0x1] %v395
      %s397 = sadd.s32 %s244, 1
      %p398 = scmp.gt.s32.totalorder %s397, 0
      %s399 = scalar_select %p398, %s397, 0
      %p400 = scmp.lt.s32.totalorder %s399, 15
      %s401 = scalar_select %p400, %s399, 15
      %s402 = smul.u32 %s401, 2
      %s403 = smul.addr %s402, 4
      %s404 = scalar_lea.vmem %s226, %s403
      %v405 = vld [vmem:[%s404] sm:$0xf]
      %v406 = vld [vmem:[%s404 + $0x4] sm:$0xf]
      %v408 = vshrl.u32 %v405, 16
      %v410 = vrot.slane %v408, 7
      %v411 = vshll.u32 %v405, 16
      %v413 = vor.u32 %v410, %v411
      %v414 = vrot.slane %v410, 4
      %v416 = vshrl.u32 %v406, 16
      %v418 = vrot.slane %v416, 7
      %v419 = vshll.u32 %v406, 16
      %v421 = vor.u32 %v418, %v419
      %v422 = vsel %vm333, %v414, %v421
      %v423 = vrot.slane %v418, 4
      %v427 = vld [vmem:[#allocation2 + $0x30] sm:$0xf]
      %v428 = vsel %vm257, %v413, %v427
      %429 = vst [vmem:[#allocation2 + $0x30] sm:$0xf] %v428
      %430 = vst [vmem:[#allocation2 + $0x38] sm:$0xf] %v422
      %v431 = vld [vmem:[#allocation2 + $0x40] sm:$0x1]
      %v432 = vsel %vm247, %v423, %v431
      %433 = vst [vmem:[#allocation2 + $0x40] sm:$0x1] %v432
      %s434 = sadd.s32 %s244, 2
      %p435 = scmp.gt.s32.totalorder %s434, 0
      %s436 = scalar_select %p435, %s434, 0
      %p437 = scmp.lt.s32.totalorder %s436, 15
      %s438 = scalar_select %p437, %s436, 15
      %s439 = smul.u32 %s438, 2
      %s440 = smul.addr %s439, 4
      %s441 = scalar_lea.vmem %s226, %s440
      %v442 = vld [vmem:[%s441] sm:$0xf]
      %v443 = vld [vmem:[%s441 + $0x4] sm:$0xf]
      %v445 = vshrl.u32 %v442, 16
      %v447 = vrot.slane %v445, 7
      %v448 = vshll.u32 %v442, 16
      %v450 = vor.u32 %v447, %v448
      %v451 = vrot.slane %v447, 4
      %v453 = vshrl.u32 %v443, 16
      %v455 = vrot.slane %v453, 7
      %v456 = vshll.u32 %v443, 16
      %v458 = vor.u32 %v455, %v456
      %v459 = vsel %vm333, %v451, %v458
      %v460 = vrot.slane %v455, 4
      %v464 = vld [vmem:[#allocation2 + $0x48] sm:$0xf]
      %v465 = vsel %vm257, %v450, %v464
      %466 = vst [vmem:[#allocation2 + $0x48] sm:$0xf] %v465
      %467 = vst [vmem:[#allocation2 + $0x50] sm:$0xf] %v459
      %v468 = vld [vmem:[#allocation2 + $0x58] sm:$0x1]
      %v469 = vsel %vm247, %v460, %v468
      %470 = vst [vmem:[#allocation2 + $0x58] sm:$0x1] %v469
      %s471 = sadd.s32 %s244, 3
      %p472 = scmp.gt.s32.totalorder %s471, 0
      %s473 = scalar_select %p472, %s471, 0
      %p474 = scmp.lt.s32.totalorder %s473, 15
      %s475 = scalar_select %p474, %s473, 15
      %s476 = smul.u32 %s475, 2
      %s477 = smul.addr %s476, 4
      %s478 = scalar_lea.vmem %s226, %s477
      %v479 = vld [vmem:[%s478] sm:$0xf]
      %v480 = vld [vmem:[%s478 + $0x4] sm:$0xf]
      %v482 = vshrl.u32 %v479, 16
      %v484 = vrot.slane %v482, 7
      %v485 = vshll.u32 %v479, 16
      %v487 = vor.u32 %v484, %v485
      %v488 = vrot.slane %v484, 4
      %v490 = vshrl.u32 %v480, 16
      %v492 = vrot.slane %v490, 7
      %v493 = vshll.u32 %v480, 16
      %v495 = vor.u32 %v492, %v493
      %v496 = vsel %vm333, %v488, %v495
      %v497 = vrot.slane %v492, 4
      %v501 = vld [vmem:[#allocation2 + $0x60] sm:$0xf]
      %v502 = vsel %vm257, %v487, %v501
      %503 = vst [vmem:[#allocation2 + $0x60] sm:$0xf] %v502
      %504 = vst [vmem:[#allocation2 + $0x68] sm:$0xf] %v496
      %v505 = vld [vmem:[#allocation2 + $0x70] sm:$0x1]
      %v506 = vsel %vm247, %v497, %v505
      %507 = vst [vmem:[#allocation2 + $0x70] sm:$0x1] %v506
      %s508 = sadd.s32 %s244, 4
      %p509 = scmp.gt.s32.totalorder %s508, 0
      %s510 = scalar_select %p509, %s508, 0
      %p511 = scmp.lt.s32.totalorder %s510, 15
      %s512 = scalar_select %p511, %s510, 15
      %s513 = smul.u32 %s512, 2
      %s514 = smul.addr %s513, 4
      %s515 = scalar_lea.vmem %s226, %s514
      %v516 = vld [vmem:[%s515] sm:$0xf]
      %v517 = vld [vmem:[%s515 + $0x4] sm:$0xf]
      %v519 = vshrl.u32 %v516, 16
      %v521 = vrot.slane %v519, 7
      %v522 = vshll.u32 %v516, 16
      %v524 = vor.u32 %v521, %v522
      %v525 = vrot.slane %v521, 4
      %v527 = vshrl.u32 %v517, 16
      %v529 = vrot.slane %v527, 7
      %v530 = vshll.u32 %v517, 16
      %v532 = vor.u32 %v529, %v530
      %v533 = vsel %vm333, %v525, %v532
      %v534 = vrot.slane %v529, 4
      %v538 = vld [vmem:[#allocation2 + $0x78] sm:$0xf]
      %v539 = vsel %vm257, %v524, %v538
      %540 = vst [vmem:[#allocation2 + $0x78] sm:$0xf] %v539
      %541 = vst [vmem:[#allocation2 + $0x80] sm:$0xf] %v533
      %v542 = vld [vmem:[#allocation2 + $0x88] sm:$0x1]
      %v543 = vsel %vm247, %v534, %v542
      %544 = vst [vmem:[#allocation2 + $0x88] sm:$0x1] %v543
      %s545 = sadd.s32 %s244, 5
      %p546 = scmp.gt.s32.totalorder %s545, 0
      %s547 = scalar_select %p546, %s545, 0
      %p548 = scmp.lt.s32.totalorder %s547, 15
      %s549 = scalar_select %p548, %s547, 15
      %s550 = smul.u32 %s549, 2
      %s551 = smul.addr %s550, 4
      %s552 = scalar_lea.vmem %s226, %s551
      %v553 = vld [vmem:[%s552] sm:$0xf]
      %v554 = vld [vmem:[%s552 + $0x4] sm:$0xf]
      %v556 = vshrl.u32 %v553, 16
      %v558 = vrot.slane %v556, 7
      %v559 = vshll.u32 %v553, 16
      %v561 = vor.u32 %v558, %v559
      %v562 = vrot.slane %v558, 4
      %v564 = vshrl.u32 %v554, 16
      %v566 = vrot.slane %v564, 7
      %v567 = vshll.u32 %v554, 16
      %v569 = vor.u32 %v566, %v567
      %v570 = vsel %vm333, %v562, %v569
      %v571 = vrot.slane %v566, 4
      %v575 = vld [vmem:[#allocation2 + $0x90] sm:$0xf]
      %v576 = vsel %vm257, %v561, %v575
      %577 = vst [vmem:[#allocation2 + $0x90] sm:$0xf] %v576
      %578 = vst [vmem:[#allocation2 + $0x98] sm:$0xf] %v570
      %v579 = vld [vmem:[#allocation2 + $0xa0] sm:$0x1]
      %v580 = vsel %vm247, %v571, %v579
      %581 = vst [vmem:[#allocation2 + $0xa0] sm:$0x1] %v580
      %s582 = sadd.s32 %s244, 6
      %p583 = scmp.gt.s32.totalorder %s582, 0
      %s584 = scalar_select %p583, %s582, 0
      %p585 = scmp.lt.s32.totalorder %s584, 15
      %s586 = scalar_select %p585, %s584, 15
      %s587 = smul.u32 %s586, 2
      %s588 = smul.addr %s587, 4
      %s589 = scalar_lea.vmem %s226, %s588
      %v590 = vld [vmem:[%s589] sm:$0xf]
      %v591 = vld [vmem:[%s589 + $0x4] sm:$0xf]
      %v593 = vshrl.u32 %v590, 16
      %v595 = vrot.slane %v593, 7
      %v596 = vshll.u32 %v590, 16
      %v598 = vor.u32 %v595, %v596
      %v599 = vrot.slane %v595, 4
      %v601 = vshrl.u32 %v591, 16
      %v603 = vrot.slane %v601, 7
      %v604 = vshll.u32 %v591, 16
      %v606 = vor.u32 %v603, %v604
      %v607 = vsel %vm333, %v599, %v606
      %v608 = vrot.slane %v603, 4
      %v612 = vld [vmem:[#allocation2 + $0xa8] sm:$0xf]
      %v613 = vsel %vm257, %v598, %v612
      %614 = vst [vmem:[#allocation2 + $0xa8] sm:$0xf] %v613
      %615 = vst [vmem:[#allocation2 + $0xb0] sm:$0xf] %v607
      %v616 = vld [vmem:[#allocation2 + $0xb8] sm:$0x1]
      %v617 = vsel %vm247, %v608, %v616
      %618 = vst [vmem:[#allocation2 + $0xb8] sm:$0x1] %v617
      %s619 = sadd.s32 %s244, 7
      %p620 = scmp.gt.s32.totalorder %s619, 0
      %s621 = scalar_select %p620, %s619, 0
      %p622 = scmp.lt.s32.totalorder %s621, 15
      %s623 = scalar_select %p622, %s621, 15
      %s624 = smul.u32 %s623, 2
      %s625 = smul.addr %s624, 4
      %s626 = scalar_lea.vmem %s226, %s625
      %v627 = vld [vmem:[%s626] sm:$0xf]
      %v628 = vld [vmem:[%s626 + $0x4] sm:$0xf]
      %v630 = vshrl.u32 %v627, 16
      %v632 = vrot.slane %v630, 7
      %v633 = vshll.u32 %v627, 16
      %v635 = vor.u32 %v632, %v633
      %v636 = vrot.slane %v632, 4
      %v638 = vshrl.u32 %v628, 16
      %v640 = vrot.slane %v638, 7
      %v641 = vshll.u32 %v628, 16
      %v643 = vor.u32 %v640, %v641
      %v644 = vsel %vm333, %v636, %v643
      %v645 = vrot.slane %v640, 4
      %v649 = vld [vmem:[#allocation2 + $0xc0] sm:$0xf]
      %v650 = vsel %vm257, %v635, %v649
      %651 = vst [vmem:[#allocation2 + $0xc0] sm:$0xf] %v650
      %652 = vst [vmem:[#allocation2 + $0xc8] sm:$0xf] %v644
      %v653 = vld [vmem:[#allocation2 + $0xd0] sm:$0x1]
      %v654 = vsel %vm247, %v645, %v653
      %655 = vst [vmem:[#allocation2 + $0xd0] sm:$0x1] %v654
      %s656 = sadd.s32 %s244, 8
      %p657 = scmp.gt.s32.totalorder %s656, 0
      %s658 = scalar_select %p657, %s656, 0
      %p659 = scmp.lt.s32.totalorder %s658, 15
      %s660 = scalar_select %p659, %s658, 15
      %s661 = smul.u32 %s660, 2
      %s662 = smul.addr %s661, 4
      %s663 = scalar_lea.vmem %s226, %s662
      %v664 = vld [vmem:[%s663] sm:$0xf]
      %v665 = vld [vmem:[%s663 + $0x4] sm:$0xf]
      %v667 = vshrl.u32 %v664, 16
      %v669 = vrot.slane %v667, 7
      %v670 = vshll.u32 %v664, 16
      %v672 = vor.u32 %v669, %v670
      %v673 = vrot.slane %v669, 4
      %v675 = vshrl.u32 %v665, 16
      %v677 = vrot.slane %v675, 7
      %v678 = vshll.u32 %v665, 16
      %v680 = vor.u32 %v677, %v678
      %v681 = vsel %vm333, %v673, %v680
      %v682 = vrot.slane %v677, 4
      %v686 = vld [vmem:[#allocation2 + $0xd8] sm:$0xf]
      %v687 = vsel %vm257, %v672, %v686
      %688 = vst [vmem:[#allocation2 + $0xd8] sm:$0xf] %v687
      %689 = vst [vmem:[#allocation2 + $0xe0] sm:$0xf] %v681
      %v690 = vld [vmem:[#allocation2 + $0xe8] sm:$0x1]
      %v691 = vsel %vm247, %v682, %v690
      %692 = vst [vmem:[#allocation2 + $0xe8] sm:$0x1] %v691
      %s693 = smul.addr %s327, 4
      %s694 = scalar_lea.vmem %s231, %s693
      %v695 = vld [vmem:[%s694] sm:$0xf]
      %v696 = vld [vmem:[%s694 + $0x4] sm:$0xf]
      %v698 = vshrl.u32 %v695, 16
      %v700 = vrot.slane %v698, 7
      %v701 = vshll.u32 %v695, 16
      %v703 = vor.u32 %v700, %v701
      %v704 = vrot.slane %v700, 4
      %v706 = vshrl.u32 %v696, 16
      %v708 = vrot.slane %v706, 7
      %v709 = vshll.u32 %v696, 16
      %v711 = vor.u32 %v708, %v709
      %v712 = vsel %vm333, %v704, %v711
      %v713 = vrot.slane %v708, 4
      %v717 = vld [vmem:[#allocation2 + $0x4] sm:$0xf]
      %v718 = vsel %vm257, %v703, %v717
      %719 = vst [vmem:[#allocation2 + $0x4] sm:$0xf] %v718
      %720 = vst [vmem:[#allocation2 + $0xc] sm:$0xf] %v712
      %v721 = vld [vmem:[#allocation2 + $0x14] sm:$0x1]
      %v722 = vsel %vm247, %v713, %v721
      %723 = vst [vmem:[#allocation2 + $0x14] sm:$0x1] %v722
      %s724 = smul.addr %s365, 4
      %s725 = scalar_lea.vmem %s231, %s724
      %v726 = vld [vmem:[%s725] sm:$0xf]
      %v727 = vld [vmem:[%s725 + $0x4] sm:$0xf]
      %v729 = vshrl.u32 %v726, 16
      %v731 = vrot.slane %v729, 7
      %v732 = vshll.u32 %v726, 16
      %v734 = vor.u32 %v731, %v732
      %v735 = vrot.slane %v731, 4
      %v737 = vshrl.u32 %v727, 16
      %v739 = vrot.slane %v737, 7
      %v740 = vshll.u32 %v727, 16
      %v742 = vor.u32 %v739, %v740
      %v743 = vsel %vm333, %v735, %v742
      %v744 = vrot.slane %v739, 4
      %v748 = vld [vmem:[#allocation2 + $0x1c] sm:$0xf]
      %v749 = vsel %vm257, %v734, %v748
      %750 = vst [vmem:[#allocation2 + $0x1c] sm:$0xf] %v749
      %751 = vst [vmem:[#allocation2 + $0x24] sm:$0xf] %v743
      %v752 = vld [vmem:[#allocation2 + $0x2c] sm:$0x1]
      %v753 = vsel %vm247, %v744, %v752
      %754 = vst [vmem:[#allocation2 + $0x2c] sm:$0x1] %v753
      %s755 = smul.addr %s402, 4
      %s756 = scalar_lea.vmem %s231, %s755
      %v757 = vld [vmem:[%s756] sm:$0xf]
      %v758 = vld [vmem:[%s756 + $0x4] sm:$0xf]
      %v760 = vshrl.u32 %v757, 16
      %v762 = vrot.slane %v760, 7
      %v763 = vshll.u32 %v757, 16
      %v765 = vor.u32 %v762, %v763
      %v766 = vrot.slane %v762, 4
      %v768 = vshrl.u32 %v758, 16
      %v770 = vrot.slane %v768, 7
      %v771 = vshll.u32 %v758, 16
      %v773 = vor.u32 %v770, %v771
      %v774 = vsel %vm333, %v766, %v773
      %v775 = vrot.slane %v770, 4
      %v779 = vld [vmem:[#allocation2 + $0x34] sm:$0xf]
      %v780 = vsel %vm257, %v765, %v779
      %781 = vst [vmem:[#allocation2 + $0x34] sm:$0xf] %v780
      %782 = vst [vmem:[#allocation2 + $0x3c] sm:$0xf] %v774
      %v783 = vld [vmem:[#allocation2 + $0x44] sm:$0x1]
      %v784 = vsel %vm247, %v775, %v783
      %785 = vst [vmem:[#allocation2 + $0x44] sm:$0x1] %v784
      %s786 = smul.addr %s439, 4
      %s787 = scalar_lea.vmem %s231, %s786
      %v788 = vld [vmem:[%s787] sm:$0xf]
      %v789 = vld [vmem:[%s787 + $0x4] sm:$0xf]
      %v791 = vshrl.u32 %v788, 16
      %v793 = vrot.slane %v791, 7
      %v794 = vshll.u32 %v788, 16
      %v796 = vor.u32 %v793, %v794
      %v797 = vrot.slane %v793, 4
      %v799 = vshrl.u32 %v789, 16
      %v801 = vrot.slane %v799, 7
      %v802 = vshll.u32 %v789, 16
      %v804 = vor.u32 %v801, %v802
      %v805 = vsel %vm333, %v797, %v804
      %v806 = vrot.slane %v801, 4
      %v810 = vld [vmem:[#allocation2 + $0x4c] sm:$0xf]
      %v811 = vsel %vm257, %v796, %v810
      %812 = vst [vmem:[#allocation2 + $0x4c] sm:$0xf] %v811
      %813 = vst [vmem:[#allocation2 + $0x54] sm:$0xf] %v805
      %v814 = vld [vmem:[#allocation2 + $0x5c] sm:$0x1]
      %v815 = vsel %vm247, %v806, %v814
      %816 = vst [vmem:[#allocation2 + $0x5c] sm:$0x1] %v815
      %s817 = smul.addr %s476, 4
      %s818 = scalar_lea.vmem %s231, %s817
      %v819 = vld [vmem:[%s818] sm:$0xf]
      %v820 = vld [vmem:[%s818 + $0x4] sm:$0xf]
      %v822 = vshrl.u32 %v819, 16
      %v824 = vrot.slane %v822, 7
      %v825 = vshll.u32 %v819, 16
      %v827 = vor.u32 %v824, %v825
      %v828 = vrot.slane %v824, 4
      %v830 = vshrl.u32 %v820, 16
      %v832 = vrot.slane %v830, 7
      %v833 = vshll.u32 %v820, 16
      %v835 = vor.u32 %v832, %v833
      %v836 = vsel %vm333, %v828, %v835
      %v837 = vrot.slane %v832, 4
      %v841 = vld [vmem:[#allocation2 + $0x64] sm:$0xf]
      %v842 = vsel %vm257, %v827, %v841
      %843 = vst [vmem:[#allocation2 + $0x64] sm:$0xf] %v842
      %844 = vst [vmem:[#allocation2 + $0x6c] sm:$0xf] %v836
      %v845 = vld [vmem:[#allocation2 + $0x74] sm:$0x1]
      %v846 = vsel %vm247, %v837, %v845
      %847 = vst [vmem:[#allocation2 + $0x74] sm:$0x1] %v846
      %s848 = smul.addr %s513, 4
      %s849 = scalar_lea.vmem %s231, %s848
      %v850 = vld [vmem:[%s849] sm:$0xf]
      %v851 = vld [vmem:[%s849 + $0x4] sm:$0xf]
      %v853 = vshrl.u32 %v850, 16
      %v855 = vrot.slane %v853, 7
      %v856 = vshll.u32 %v850, 16
      %v858 = vor.u32 %v855, %v856
      %v859 = vrot.slane %v855, 4
      %v861 = vshrl.u32 %v851, 16
      %v863 = vrot.slane %v861, 7
      %v864 = vshll.u32 %v851, 16
      %v866 = vor.u32 %v863, %v864
      %v867 = vsel %vm333, %v859, %v866
      %v868 = vrot.slane %v863, 4
      %v872 = vld [vmem:[#allocation2 + $0x7c] sm:$0xf]
      %v873 = vsel %vm257, %v858, %v872
      %874 = vst [vmem:[#allocation2 + $0x7c] sm:$0xf] %v873
      %875 = vst [vmem:[#allocation2 + $0x84] sm:$0xf] %v867
      %v876 = vld [vmem:[#allocation2 + $0x8c] sm:$0x1]
      %v877 = vsel %vm247, %v868, %v876
      %878 = vst [vmem:[#allocation2 + $0x8c] sm:$0x1] %v877
      %s879 = smul.addr %s550, 4
      %s880 = scalar_lea.vmem %s231, %s879
      %v881 = vld [vmem:[%s880] sm:$0xf]
      %v882 = vld [vmem:[%s880 + $0x4] sm:$0xf]
      %v884 = vshrl.u32 %v881, 16
      %v886 = vrot.slane %v884, 7
      %v887 = vshll.u32 %v881, 16
      %v889 = vor.u32 %v886, %v887
      %v890 = vrot.slane %v886, 4
      %v892 = vshrl.u32 %v882, 16
      %v894 = vrot.slane %v892, 7
      %v895 = vshll.u32 %v882, 16
      %v897 = vor.u32 %v894, %v895
      %v898 = vsel %vm333, %v890, %v897
      %v899 = vrot.slane %v894, 4
      %v903 = vld [vmem:[#allocation2 + $0x94] sm:$0xf]
      %v904 = vsel %vm257, %v889, %v903
      %905 = vst [vmem:[#allocation2 + $0x94] sm:$0xf] %v904
      %906 = vst [vmem:[#allocation2 + $0x9c] sm:$0xf] %v898
      %v907 = vld [vmem:[#allocation2 + $0xa4] sm:$0x1]
      %v908 = vsel %vm247, %v899, %v907
      %909 = vst [vmem:[#allocation2 + $0xa4] sm:$0x1] %v908
      %s910 = smul.addr %s587, 4
      %s911 = scalar_lea.vmem %s231, %s910
      %v912 = vld [vmem:[%s911] sm:$0xf]
      %v913 = vld [vmem:[%s911 + $0x4] sm:$0xf]
      %v915 = vshrl.u32 %v912, 16
      %v917 = vrot.slane %v915, 7
      %v918 = vshll.u32 %v912, 16
      %v920 = vor.u32 %v917, %v918
      %v921 = vrot.slane %v917, 4
      %v923 = vshrl.u32 %v913, 16
      %v925 = vrot.slane %v923, 7
      %v926 = vshll.u32 %v913, 16
      %v928 = vor.u32 %v925, %v926
      %v929 = vsel %vm333, %v921, %v928
      %v930 = vrot.slane %v925, 4
      %v934 = vld [vmem:[#allocation2 + $0xac] sm:$0xf]
      %v935 = vsel %vm257, %v920, %v934
      %936 = vst [vmem:[#allocation2 + $0xac] sm:$0xf] %v935
      %937 = vst [vmem:[#allocation2 + $0xb4] sm:$0xf] %v929
      %v938 = vld [vmem:[#allocation2 + $0xbc] sm:$0x1]
      %v939 = vsel %vm247, %v930, %v938
      %940 = vst [vmem:[#allocation2 + $0xbc] sm:$0x1] %v939
      %s941 = smul.addr %s624, 4
      %s942 = scalar_lea.vmem %s231, %s941
      %v943 = vld [vmem:[%s942] sm:$0xf]
      %v944 = vld [vmem:[%s942 + $0x4] sm:$0xf]
      %v946 = vshrl.u32 %v943, 16
      %v948 = vrot.slane %v946, 7
      %v949 = vshll.u32 %v943, 16
      %v951 = vor.u32 %v948, %v949
      %v952 = vrot.slane %v948, 4
      %v954 = vshrl.u32 %v944, 16
      %v956 = vrot.slane %v954, 7
      %v957 = vshll.u32 %v944, 16
      %v959 = vor.u32 %v956, %v957
      %v960 = vsel %vm333, %v952, %v959
      %v961 = vrot.slane %v956, 4
      %v965 = vld [vmem:[#allocation2 + $0xc4] sm:$0xf]
      %v966 = vsel %vm257, %v951, %v965
      %967 = vst [vmem:[#allocation2 + $0xc4] sm:$0xf] %v966
      %968 = vst [vmem:[#allocation2 + $0xcc] sm:$0xf] %v960
      %v969 = vld [vmem:[#allocation2 + $0xd4] sm:$0x1]
      %v970 = vsel %vm247, %v961, %v969
      %971 = vst [vmem:[#allocation2 + $0xd4] sm:$0x1] %v970
      %s972 = smul.addr %s661, 4
      %s973 = scalar_lea.vmem %s231, %s972
      %v974 = vld [vmem:[%s973] sm:$0xf]
      %v975 = vld [vmem:[%s973 + $0x4] sm:$0xf]
      %v977 = vshrl.u32 %v974, 16
      %v979 = vrot.slane %v977, 7
      %v980 = vshll.u32 %v974, 16
      %v982 = vor.u32 %v979, %v980
      %v983 = vrot.slane %v979, 4
      %v985 = vshrl.u32 %v975, 16
      %v987 = vrot.slane %v985, 7
      %v988 = vshll.u32 %v975, 16
      %v990 = vor.u32 %v987, %v988
      %v991 = vsel %vm333, %v983, %v990
      %v992 = vrot.slane %v987, 4
      %v996 = vld [vmem:[#allocation2 + $0xdc] sm:$0xf]
      %v997 = vsel %vm257, %v982, %v996
      %998 = vst [vmem:[#allocation2 + $0xdc] sm:$0xf] %v997
      %999 = vst [vmem:[#allocation2 + $0xe4] sm:$0xf] %v991
      %v1000 = vld [vmem:[#allocation2 + $0xec] sm:$0x1]
      %v1001 = vsel %vm247, %v992, %v1000
      %1002 = vst [vmem:[#allocation2 + $0xec] sm:$0x1] %v1001
      %p1003 = scmp.eq.s32.totalorder %s20, 0
      // Predicated region
      $region37: #{upsampler_forward.4} parent=35 // pred_check
        %p1004 = pneg %p1003
      $region38: #{upsampler_forward.4} parent=35 // pred_check_branch
        %1006 = sbr.rel (%p1004) target = $region40
      $region39: #{upsampler_forward.4} parent=35 // pred_region
        %v1007 = vld [vmem:[#allocation2] sm:$0xff]
        %v1008 = vsel %vm261, 0, %v1007
        %1009 = vst [vmem:[#allocation2] sm:$0xff] %v1008
        %1010 = vst [vmem:[#allocation2 + $0x8] sm:$0xff] 0
        %v1011 = vld [vmem:[#allocation2 + $0x10] sm:$0x11]
        %v1012 = vsel %vm251, 0, %v1011
        %1013 = vst [vmem:[#allocation2 + $0x10] sm:$0x11] %v1012
      $region40: #{upsampler_forward.4} parent=35 // pred_fallthru
        _
      %p1014 = scmp.eq.s32.totalorder %s20, 1
      // Predicated region
      $region41: #{upsampler_forward.4} parent=35 // pred_check
        %p1015 = pneg %p1014
      $region42: #{upsampler_forward.4} parent=35 // pred_check_branch
        %1017 = sbr.rel (%p1015) target = $region44
      $region43: #{upsampler_forward.4} parent=35 // pred_region
        %v1018 = vld [vmem:[#allocation2 + $0xd8] sm:$0xff]
        %v1019 = vsel %vm261, 0, %v1018
        %1020 = vst [vmem:[#allocation2 + $0xd8] sm:$0xff] %v1019
        %1021 = vst [vmem:[#allocation2 + $0xe0] sm:$0xff] 0
        %v1022 = vld [vmem:[#allocation2 + $0xe8] sm:$0x11]
        %v1023 = vsel %vm251, 0, %v1022
        %1024 = vst [vmem:[#allocation2 + $0xe8] sm:$0x11] %v1023
      $region44: #{upsampler_forward.4} parent=35 // pred_fallthru
        _
      %v1025 = vld [vmem:[#allocation2] sm:$0xff]
      %v1026 = vld [vmem:[#allocation2 + $0x8] sm:$0xff]
      %v1027 = vld [vmem:[#allocation2 + $0x10] sm:$0xff]
      %v1028 = vld [vmem:[#allocation2 + $0x18] sm:$0xff]
      %v1029 = vld [vmem:[#allocation2 + $0x20] sm:$0xff]
      %v1030 = vld [vmem:[#allocation2 + $0x28] sm:$0xff]
      %v1031 = vld [vmem:[#allocation2 + $0x30] sm:$0xff]
      %v1032 = vld [vmem:[#allocation2 + $0x38] sm:$0xff]
      %v1033 = vld [vmem:[#allocation2 + $0x40] sm:$0xff]
      %v1034 = vld [vmem:[#allocation2 + $0x48] sm:$0xff]
      %v1035 = vld [vmem:[#allocation2 + $0x50] sm:$0xff]
      %v1036 = vld [vmem:[#allocation2 + $0x58] sm:$0xff]
      %v1037 = vld [vmem:[#allocation2 + $0x60] sm:$0xff]
      %v1038 = vld [vmem:[#allocation2 + $0x68] sm:$0xff]
      %v1039 = vld [vmem:[#allocation2 + $0x70] sm:$0xff]
      %v1040 = vld [vmem:[#allocation2 + $0x78] sm:$0xff]
      %v1041 = vld [vmem:[#allocation2 + $0x80] sm:$0xff]
      %v1042 = vld [vmem:[#allocation2 + $0x88] sm:$0xff]
      %v1043 = vld [vmem:[#allocation2 + $0x90] sm:$0xff]
      %v1044 = vld [vmem:[#allocation2 + $0x98] sm:$0xff]
      %v1045 = vld [vmem:[#allocation2 + $0xa0] sm:$0xff]
      %v1046 = vld [vmem:[#allocation2 + $0xa8] sm:$0xff]
      %v1047 = vld [vmem:[#allocation2 + $0xb0] sm:$0xff]
      %v1048 = vld [vmem:[#allocation2 + $0xb8] sm:$0xff]
      %v1049 = vld [vmem:[%s2] sm:$0xf]
      %v1050 = vld [vmem:[%s2 + $0x4] sm:$0xf]
      %v1051 = vld [vmem:[%s2 + $0x8] sm:$0xf]
      %v1052 = vld [vmem:[%s2 + $0xc] sm:$0xf]
      %v1053 = vld [vmem:[%s2 + $0x10] sm:$0xf]
      %v1054 = vld [vmem:[%s2 + $0x14] sm:$0xf]
      %v1055 = vld [vmem:[%s2 + $0x18] sm:$0xf]
      %v1056 = vld [vmem:[%s2 + $0x1c] sm:$0xf]
      %v1057 = vld [vmem:[%s2 + $0x20] sm:$0xf]
      %v1058 = vld [vmem:[%s2 + $0x24] sm:$0xf]
      %v1059 = vld [vmem:[%s2 + $0x28] sm:$0xf]
      %v1060 = vld [vmem:[%s2 + $0x2c] sm:$0xf]
      %v1061 = vld [vmem:[%s2 + $0x30] sm:$0xf]
      %v1062 = vld [vmem:[%s2 + $0x34] sm:$0xf]
      %v1063 = vld [vmem:[%s2 + $0x38] sm:$0xf]
      %v1064 = vld [vmem:[%s2 + $0x3c] sm:$0xf]
      %v1065 = vld [vmem:[%s2 + $0x40] sm:$0xf]
      %v1066 = vld [vmem:[%s2 + $0x44] sm:$0xf]
      %v1067 = vld [vmem:[%s2 + $0x48] sm:$0xf]
      %v1068 = vld [vmem:[%s2 + $0x4c] sm:$0xf]
      %v1069 = vld [vmem:[%s2 + $0x50] sm:$0xf]
      %v1070 = vld [vmem:[%s2 + $0x54] sm:$0xf]
      %v1071 = vld [vmem:[%s2 + $0x58] sm:$0xf]
      %v1072 = vld [vmem:[%s2 + $0x5c] sm:$0xf]
      %v1073 = vld [vmem:[%s2 + $0x60] sm:$0xf]
      %v1074 = vld [vmem:[%s2 + $0x64] sm:$0xf]
      %v1075 = vld [vmem:[%s2 + $0x68] sm:$0xf]
      %v1076 = vld [vmem:[%s2 + $0x6c] sm:$0xf]
      %v1077 = vld [vmem:[%s2 + $0x70] sm:$0xf]
      %v1078 = vld [vmem:[%s2 + $0x74] sm:$0xf]
      %v1079 = vld [vmem:[%s2 + $0x78] sm:$0xf]
      %v1080 = vld [vmem:[%s2 + $0x7c] sm:$0xf]
      %v1081 = vld [vmem:[#allocation2 + $0xc0] sm:$0x11]
      %s1082 = scalar_lea.vmem %s2, 128
      %v1083 = vld [vmem:[%s1082] sm:$0xf]
      %v1084 = vld [vmem:[%s1082 + $0x4] sm:$0xf]
      %v1085 = vld [vmem:[%s1082 + $0x8] sm:$0xf]
      %v1086 = vld [vmem:[%s1082 + $0xc] sm:$0xf]
      %v1087 = vld [vmem:[%s1082 + $0x10] sm:$0xf]
      %v1088 = vld [vmem:[%s1082 + $0x14] sm:$0xf]
      %v1089 = vld [vmem:[%s1082 + $0x18] sm:$0xf]
      %v1090 = vld [vmem:[%s1082 + $0x1c] sm:$0xf]
      %v1091 = vld [vmem:[%s1082 + $0x20] sm:$0xf]
      %v1092 = vld [vmem:[%s1082 + $0x24] sm:$0xf]
      %v1093 = vld [vmem:[%s1082 + $0x28] sm:$0xf]
      %v1094 = vld [vmem:[%s1082 + $0x2c] sm:$0xf]
      %v1095 = vld [vmem:[%s1082 + $0x30] sm:$0xf]
      %v1096 = vld [vmem:[%s1082 + $0x34] sm:$0xf]
      %v1097 = vld [vmem:[%s1082 + $0x38] sm:$0xf]
      %v1098 = vld [vmem:[%s1082 + $0x3c] sm:$0xf]
      %v1099 = vld [vmem:[%s1082 + $0x40] sm:$0xf]
      %v1100 = vld [vmem:[%s1082 + $0x44] sm:$0xf]
      %v1101 = vld [vmem:[%s1082 + $0x48] sm:$0xf]
      %v1102 = vld [vmem:[%s1082 + $0x4c] sm:$0xf]
      %v1103 = vld [vmem:[%s1082 + $0x50] sm:$0xf]
      %v1104 = vld [vmem:[%s1082 + $0x54] sm:$0xf]
      %v1105 = vld [vmem:[%s1082 + $0x58] sm:$0xf]
      %v1106 = vld [vmem:[%s1082 + $0x5c] sm:$0xf]
      %v1107 = vld [vmem:[%s1082 + $0x60] sm:$0xf]
      %v1108 = vld [vmem:[%s1082 + $0x64] sm:$0xf]
      %v1109 = vld [vmem:[%s1082 + $0x68] sm:$0xf]
      %v1110 = vld [vmem:[%s1082 + $0x6c] sm:$0xf]
      %v1111 = vld [vmem:[%s1082 + $0x70] sm:$0xf]
      %v1112 = vld [vmem:[%s1082 + $0x74] sm:$0xf]
      %v1113 = vld [vmem:[%s1082 + $0x78] sm:$0xf]
      %v1114 = vld [vmem:[%s1082 + $0x7c] sm:$0xf]
      %v1140 = vunpack.c.l.b16 %v1025
      %v1141 = vunpack.c.h.b16 %v1025
      %v1142 = vunpack.c.l.b16 %v1026
      %v1143 = vunpack.c.h.b16 %v1026
      %v1144 = vunpack.c.l.b16 %v1027
      %v1145 = vunpack.c.h.b16 %v1027
      %v1146 = vunpack.c.l.b16 %v1028
      %v1147 = vunpack.c.h.b16 %v1028
      %v1148 = vunpack.c.l.b16 %v1029
      %v1149 = vunpack.c.h.b16 %v1029
      %v1150 = vunpack.c.l.b16 %v1030
      %v1151 = vunpack.c.h.b16 %v1030
      %v1152 = vunpack.c.l.b16 %v1031
      %v1153 = vunpack.c.h.b16 %v1031
      %v1154 = vunpack.c.l.b16 %v1032
      %v1155 = vunpack.c.h.b16 %v1032
      %v1156 = vunpack.c.l.b16 %v1033
      %v1157 = vunpack.c.h.b16 %v1033
      %v1158 = vunpack.c.l.b16 %v1034
      %v1159 = vunpack.c.h.b16 %v1034
      %v1160 = vunpack.c.l.b16 %v1035
      %v1161 = vunpack.c.h.b16 %v1035
      %v1162 = vunpack.c.l.b16 %v1036
      %v1163 = vunpack.c.h.b16 %v1036
      %v1164 = vunpack.c.l.b16 %v1037
      %v1165 = vunpack.c.h.b16 %v1037
      %v1166 = vunpack.c.l.b16 %v1038
      %v1167 = vunpack.c.h.b16 %v1038
      %v1168 = vunpack.c.l.b16 %v1039
      %v1169 = vunpack.c.h.b16 %v1039
      %v1170 = vunpack.c.l.b16 %v1040
      %v1171 = vunpack.c.h.b16 %v1040
      %v1172 = vunpack.c.l.b16 %v1041
      %v1173 = vunpack.c.h.b16 %v1041
      %v1174 = vunpack.c.l.b16 %v1042
      %v1175 = vunpack.c.h.b16 %v1042
      %v1176 = vunpack.c.l.b16 %v1043
      %v1177 = vunpack.c.h.b16 %v1043
      %v1178 = vunpack.c.l.b16 %v1044
      %v1179 = vunpack.c.h.b16 %v1044
      %v1180 = vunpack.c.l.b16 %v1045
      %v1181 = vunpack.c.h.b16 %v1045
      %v1182 = vunpack.c.l.b16 %v1046
      %v1183 = vunpack.c.h.b16 %v1046
      %v1184 = vunpack.c.l.b16 %v1047
      %v1185 = vunpack.c.h.b16 %v1047
      %v1186 = vunpack.c.l.b16 %v1048
      %v1187 = vunpack.c.h.b16 %v1048
      %v1188 = vunpack.c.l.b16 %v1081
      %v1189 = vunpack.c.h.b16 %v1081
      %v1190 = vpack.c.b16 %v1142, %v1140
      %v1191 = vpack.c.b16 %v1143, %v1141
      %v1192 = vpack.c.b16 %v1146, %v1144
      %v1193 = vpack.c.b16 %v1147, %v1145
      %v1194 = vpack.c.b16 %v1150, %v1148
      %v1195 = vpack.c.b16 %v1151, %v1149
      %v1196 = vpack.c.b16 %v1154, %v1152
      %v1197 = vpack.c.b16 %v1155, %v1153
      %v1198 = vpack.c.b16 %v1158, %v1156
      %v1199 = vpack.c.b16 %v1159, %v1157
      %v1200 = vpack.c.b16 %v1162, %v1160
      %v1201 = vpack.c.b16 %v1163, %v1161
      %v1202 = vpack.c.b16 %v1166, %v1164
      %v1203 = vpack.c.b16 %v1167, %v1165
      %v1204 = vpack.c.b16 %v1170, %v1168
      %v1205 = vpack.c.b16 %v1171, %v1169
      %v1206 = vpack.c.b16 %v1174, %v1172
      %v1207 = vpack.c.b16 %v1175, %v1173
      %v1208 = vpack.c.b16 %v1178, %v1176
      %v1209 = vpack.c.b16 %v1179, %v1177
      %v1210 = vpack.c.b16 %v1182, %v1180
      %v1211 = vpack.c.b16 %v1183, %v1181
      %v1212 = vpack.c.b16 %v1186, %v1184
      %v1213 = vpack.c.b16 %v1187, %v1185
      %v1214 = vpack.c.b16 %v1188, %v1188
      %v1215 = vpack.c.b16 %v1189, %v1189
      %vm1216 = vsmask.f32 7424
      %v1218 = vshrl.u32 %v1190, 16
      %v1220 = vshll.u32 %v1190, 16
      %v1222 = vrot.slane %v1220, 1
      %v1223 = vor.u32 %v1218, %v1222
      %v1225 = vshll.u32 %v1192, 16
      %v1227 = vrot.slane %v1225, 1
      %v1228 = vsel %vm1216, %v1223, %v1227
      %v1230 = vshrl.u32 %v1191, 16
      %v1232 = vshll.u32 %v1191, 16
      %v1234 = vrot.slane %v1232, 1
      %v1235 = vor.u32 %v1230, %v1234
      %v1237 = vshll.u32 %v1193, 16
      %v1239 = vrot.slane %v1237, 1
      %v1240 = vsel %vm1216, %v1235, %v1239
      %v1241 = vshrl.u32 %v1192, 16
      %v1243 = vor.u32 %v1241, %v1227
      %v1245 = vshll.u32 %v1194, 16
      %v1247 = vrot.slane %v1245, 1
      %v1248 = vsel %vm1216, %v1243, %v1247
      %v1249 = vshrl.u32 %v1193, 16
      %v1251 = vor.u32 %v1249, %v1239
      %v1253 = vshll.u32 %v1195, 16
      %v1255 = vrot.slane %v1253, 1
      %v1256 = vsel %vm1216, %v1251, %v1255
      %v1257 = vshrl.u32 %v1194, 16
      %v1259 = vor.u32 %v1257, %v1247
      %v1261 = vshll.u32 %v1196, 16
      %v1263 = vrot.slane %v1261, 1
      %v1264 = vsel %vm1216, %v1259, %v1263
      %v1265 = vshrl.u32 %v1195, 16
      %v1267 = vor.u32 %v1265, %v1255
      %v1269 = vshll.u32 %v1197, 16
      %v1271 = vrot.slane %v1269, 1
      %v1272 = vsel %vm1216, %v1267, %v1271
      %v1273 = vshrl.u32 %v1196, 16
      %v1275 = vor.u32 %v1273, %v1263
      %v1277 = vshll.u32 %v1198, 16
      %v1279 = vrot.slane %v1277, 1
      %v1280 = vsel %vm1216, %v1275, %v1279
      %v1281 = vshrl.u32 %v1197, 16
      %v1283 = vor.u32 %v1281, %v1271
      %v1285 = vshll.u32 %v1199, 16
      %v1287 = vrot.slane %v1285, 1
      %v1288 = vsel %vm1216, %v1283, %v1287
      %v1289 = vshrl.u32 %v1198, 16
      %v1291 = vor.u32 %v1289, %v1279
      %v1293 = vshll.u32 %v1200, 16
      %v1295 = vrot.slane %v1293, 1
      %v1296 = vsel %vm1216, %v1291, %v1295
      %v1297 = vshrl.u32 %v1199, 16
      %v1299 = vor.u32 %v1297, %v1287
      %v1301 = vshll.u32 %v1201, 16
      %v1303 = vrot.slane %v1301, 1
      %v1304 = vsel %vm1216, %v1299, %v1303
      %v1305 = vshrl.u32 %v1200, 16
      %v1307 = vor.u32 %v1305, %v1295
      %v1309 = vshll.u32 %v1202, 16
      %v1311 = vrot.slane %v1309, 1
      %v1312 = vsel %vm1216, %v1307, %v1311
      %v1313 = vshrl.u32 %v1201, 16
      %v1315 = vor.u32 %v1313, %v1303
      %v1317 = vshll.u32 %v1203, 16
      %v1319 = vrot.slane %v1317, 1
      %v1320 = vsel %vm1216, %v1315, %v1319
      %v1321 = vshrl.u32 %v1202, 16
      %v1323 = vor.u32 %v1321, %v1311
      %v1325 = vshll.u32 %v1204, 16
      %v1327 = vrot.slane %v1325, 1
      %v1328 = vsel %vm1216, %v1323, %v1327
      %v1329 = vshrl.u32 %v1203, 16
      %v1331 = vor.u32 %v1329, %v1319
      %v1333 = vshll.u32 %v1205, 16
      %v1335 = vrot.slane %v1333, 1
      %v1336 = vsel %vm1216, %v1331, %v1335
      %v1337 = vshrl.u32 %v1204, 16
      %v1339 = vor.u32 %v1337, %v1327
      %v1341 = vshll.u32 %v1206, 16
      %v1343 = vrot.slane %v1341, 1
      %v1344 = vsel %vm1216, %v1339, %v1343
      %v1345 = vshrl.u32 %v1205, 16
      %v1347 = vor.u32 %v1345, %v1335
      %v1349 = vshll.u32 %v1207, 16
      %v1351 = vrot.slane %v1349, 1
      %v1352 = vsel %vm1216, %v1347, %v1351
      %v1353 = vshrl.u32 %v1206, 16
      %v1355 = vor.u32 %v1353, %v1343
      %v1357 = vshll.u32 %v1208, 16
      %v1359 = vrot.slane %v1357, 1
      %v1360 = vsel %vm1216, %v1355, %v1359
      %v1361 = vshrl.u32 %v1207, 16
      %v1363 = vor.u32 %v1361, %v1351
      %v1365 = vshll.u32 %v1209, 16
      %v1367 = vrot.slane %v1365, 1
      %v1368 = vsel %vm1216, %v1363, %v1367
      %v1369 = vshrl.u32 %v1208, 16
      %v1371 = vor.u32 %v1369, %v1359
      %v1373 = vshll.u32 %v1210, 16
      %v1375 = vrot.slane %v1373, 1
      %v1376 = vsel %vm1216, %v1371, %v1375
      %v1377 = vshrl.u32 %v1209, 16
      %v1379 = vor.u32 %v1377, %v1367
      %v1381 = vshll.u32 %v1211, 16
      %v1383 = vrot.slane %v1381, 1
      %v1384 = vsel %vm1216, %v1379, %v1383
      %v1385 = vshrl.u32 %v1210, 16
      %v1387 = vor.u32 %v1385, %v1375
      %v1389 = vshll.u32 %v1212, 16
      %v1391 = vrot.slane %v1389, 1
      %v1392 = vsel %vm1216, %v1387, %v1391
      %v1393 = vshrl.u32 %v1211, 16
      %v1395 = vor.u32 %v1393, %v1383
      %v1397 = vshll.u32 %v1213, 16
      %v1399 = vrot.slane %v1397, 1
      %v1400 = vsel %vm1216, %v1395, %v1399
      %v1401 = vshrl.u32 %v1212, 16
      %v1403 = vor.u32 %v1401, %v1391
      %v1405 = vshll.u32 %v1214, 16
      %v1407 = vrot.slane %v1405, 1
      %v1408 = vsel %vm1216, %v1403, %v1407
      %v1409 = vshrl.u32 %v1213, 16
      %v1411 = vor.u32 %v1409, %v1399
      %v1413 = vshll.u32 %v1215, 16
      %v1415 = vrot.slane %v1413, 1
      %v1416 = vsel %vm1216, %v1411, %v1415
      %v1473 = vunpack.c.l.b16 %v1083
      %v1474 = vunpack.c.l.b16 %v1084
      %v1475 = vunpack.c.l.b16 %v1085
      %v1476 = vunpack.c.l.b16 %v1086
      %v1477 = vunpack.c.l.b16 %v1087
      %v1478 = vunpack.c.l.b16 %v1088
      %v1479 = vunpack.c.l.b16 %v1089
      %v1480 = vunpack.c.l.b16 %v1090
      %v1481 = vunpack.c.l.b16 %v1091
      %v1482 = vunpack.c.l.b16 %v1092
      %v1483 = vunpack.c.l.b16 %v1093
      %v1484 = vunpack.c.l.b16 %v1094
      %v1485 = vunpack.c.l.b16 %v1095
      %v1486 = vunpack.c.l.b16 %v1096
      %v1487 = vunpack.c.l.b16 %v1097
      %v1488 = vunpack.c.l.b16 %v1098
      %v1489 = vunpack.c.l.b16 %v1099
      %v1490 = vunpack.c.l.b16 %v1100
      %v1491 = vunpack.c.l.b16 %v1101
      %v1492 = vunpack.c.l.b16 %v1102
      %v1493 = vunpack.c.l.b16 %v1103
      %v1494 = vunpack.c.l.b16 %v1104
      %v1495 = vunpack.c.l.b16 %v1105
      %v1496 = vunpack.c.l.b16 %v1106
      %v1497 = vunpack.c.l.b16 %v1107
      %v1498 = vunpack.c.l.b16 %v1108
      %v1499 = vunpack.c.l.b16 %v1109
      %v1500 = vunpack.c.l.b16 %v1110
      %v1501 = vunpack.c.l.b16 %v1111
      %v1502 = vunpack.c.l.b16 %v1112
      %v1503 = vunpack.c.l.b16 %v1113
      %v1504 = vunpack.c.l.b16 %v1114
      %v1505 = vpack.c.b16 %v1474, %v1473
      %v1506 = vpack.c.b16 %v1476, %v1475
      %v1507 = vpack.c.b16 %v1478, %v1477
      %v1508 = vpack.c.b16 %v1480, %v1479
      %v1509 = vpack.c.b16 %v1482, %v1481
      %v1510 = vpack.c.b16 %v1484, %v1483
      %v1511 = vpack.c.b16 %v1486, %v1485
      %v1512 = vpack.c.b16 %v1488, %v1487
      %v1513 = vpack.c.b16 %v1490, %v1489
      %v1514 = vpack.c.b16 %v1492, %v1491
      %v1515 = vpack.c.b16 %v1494, %v1493
      %v1516 = vpack.c.b16 %v1496, %v1495
      %v1517 = vpack.c.b16 %v1498, %v1497
      %v1518 = vpack.c.b16 %v1500, %v1499
      %v1519 = vpack.c.b16 %v1502, %v1501
      %v1520 = vpack.c.b16 %v1504, %v1503
      %1537 = vmatpush.bf16.msra.mxu0 %v1512
      %1538 = vmatpush.bf16.msra.mxu0 %v1511
      %1539 = vmatpush.bf16.msra.mxu0 %v1510
      %1540 = vmatpush.bf16.msra.mxu0 %v1509
      %1541 = vmatpush.bf16.msra.mxu0 %v1508
      %1542 = vmatpush.bf16.msra.mxu0 %v1507
      %1543 = vmatpush.bf16.msra.mxu0 %v1506
      %1544 = vmatpush.bf16.msra.mxu0 %v1505
      %1545 = vmatmul.bf16.gmra.mxu0 %v1228
      %v1546 = vpop.f32.mrf.mxu0
      %v1547 = vadd.f32 0.0, %v1546
      %v1548 = vpop.f32.mrf.mxu0
      %v1549 = vadd.f32 0.0, %v1548
      %1550 = vmatmul.bf16.gmra.mxu0 %v1248
      %v1551 = vpop.f32.mrf.mxu0
      %v1552 = vpop.f32.mrf.mxu0
      %v1553 = vadd.f32 0.0, %v1552
      %1554 = vmatmul.bf16.gmra.mxu0 %v1264
      %v1555 = vpop.f32.mrf.mxu0
      %v1556 = vadd.f32 0.0, %v1555
      %v1557 = vpop.f32.mrf.mxu0
      %1558 = vmatmul.bf16.gmra.mxu0 %v1280
      %v1559 = vpop.f32.mrf.mxu0
      %v1560 = vadd.f32 0.0, %v1559
      %v1561 = vpop.f32.mrf.mxu0
      %v1562 = vadd.f32 0.0, %v1561
      %1563 = vmatmul.bf16.gmra.mxu0 %v1296
      %v1564 = vpop.f32.mrf.mxu0
      %v1565 = vpop.f32.mrf.mxu0
      %v1566 = vadd.f32 0.0, %v1565
      %1567 = vmatmul.bf16.gmra.mxu0 %v1312
      %v1568 = vpop.f32.mrf.mxu0
      %v1569 = vadd.f32 0.0, %v1568
      %v1570 = vpop.f32.mrf.mxu0
      %1571 = vmatmul.bf16.gmra.mxu0 %v1328
      %v1572 = vpop.f32.mrf.mxu0
      %v1573 = vadd.f32 0.0, %v1572
      %v1574 = vpop.f32.mrf.mxu0
      %v1575 = vadd.f32 0.0, %v1574
      %1576 = vmatmul.bf16.gmra.mxu0 %v1344
      %v1577 = vpop.f32.mrf.mxu0
      %v1578 = vpop.f32.mrf.mxu0
      %v1579 = vadd.f32 0.0, %v1578
      %1580 = vmatmul.bf16.gmra.mxu0 %v1360
      %v1581 = vpop.f32.mrf.mxu0
      %v1582 = vadd.f32 0.0, %v1581
      %v1583 = vpop.f32.mrf.mxu0
      %1584 = vmatmul.bf16.gmra.mxu0 %v1376
      %v1585 = vpop.f32.mrf.mxu0
      %v1586 = vadd.f32 0.0, %v1585
      %v1587 = vpop.f32.mrf.mxu0
      %v1588 = vadd.f32 0.0, %v1587
      %1589 = vmatmul.bf16.gmra.mxu0 %v1392
      %v1590 = vpop.f32.mrf.mxu0
      %v1591 = vpop.f32.mrf.mxu0
      %v1592 = vadd.f32 0.0, %v1591
      %1593 = vmatmul.bf16.gmra.mxu0 %v1408
      %v1594 = vpop.f32.mrf.mxu0
      %v1595 = vadd.f32 0.0, %v1594
      %v1596 = vpop.f32.mrf.mxu0
      %1597 = vdwg.mxu0
      %1598 = vmatpush.bf16.msra.mxu0 %v1520
      %1599 = vmatpush.bf16.msra.mxu0 %v1519
      %1600 = vmatpush.bf16.msra.mxu0 %v1518
      %1601 = vmatpush.bf16.msra.mxu0 %v1517
      %1602 = vmatpush.bf16.msra.mxu0 %v1516
      %1603 = vmatpush.bf16.msra.mxu0 %v1515
      %1604 = vmatpush.bf16.msra.mxu0 %v1514
      %1605 = vmatpush.bf16.msra.mxu0 %v1513
      %1606 = vmatmul.bf16.gmra.mxu0 %v1240
      %v1607 = vpop.f32.mrf.mxu0
      %v1608 = vadd.f32 %v1547, %v1607
      %v1609 = vpop.f32.mrf.mxu0
      %v1610 = vadd.f32 %v1549, %v1609
      %1611 = vmatmul.bf16.gmra.mxu0 %v1256
      %v1612 = vpop.f32.mrf.mxu0
      %v1613 = vpop.f32.mrf.mxu0
      %v1614 = vadd.f32 %v1553, %v1613
      %1615 = vmatmul.bf16.gmra.mxu0 %v1272
      %v1616 = vpop.f32.mrf.mxu0
      %v1617 = vadd.f32 %v1556, %v1616
      %v1618 = vpop.f32.mrf.mxu0
      %1619 = vmatmul.bf16.gmra.mxu0 %v1288
      %v1620 = vpop.f32.mrf.mxu0
      %v1621 = vadd.f32 %v1560, %v1620
      %v1622 = vpop.f32.mrf.mxu0
      %v1623 = vadd.f32 %v1562, %v1622
      %1624 = vmatmul.bf16.gmra.mxu0 %v1304
      %v1625 = vpop.f32.mrf.mxu0
      %v1626 = vpop.f32.mrf.mxu0
      %v1627 = vadd.f32 %v1566, %v1626
      %1628 = vmatmul.bf16.gmra.mxu0 %v1320
      %v1629 = vpop.f32.mrf.mxu0
      %v1630 = vadd.f32 %v1569, %v1629
      %v1631 = vpop.f32.mrf.mxu0
      %1632 = vmatmul.bf16.gmra.mxu0 %v1336
      %v1633 = vpop.f32.mrf.mxu0
      %v1634 = vadd.f32 %v1573, %v1633
      %v1635 = vpop.f32.mrf.mxu0
      %v1636 = vadd.f32 %v1575, %v1635
      %1637 = vmatmul.bf16.gmra.mxu0 %v1352
      %v1638 = vpop.f32.mrf.mxu0
      %v1639 = vpop.f32.mrf.mxu0
      %v1640 = vadd.f32 %v1579, %v1639
      %1641 = vmatmul.bf16.gmra.mxu0 %v1368
      %v1642 = vpop.f32.mrf.mxu0
      %v1643 = vadd.f32 %v1582, %v1642
      %v1644 = vpop.f32.mrf.mxu0
      %1645 = vmatmul.bf16.gmra.mxu0 %v1384
      %v1646 = vpop.f32.mrf.mxu0
      %v1647 = vadd.f32 %v1586, %v1646
      %v1648 = vpop.f32.mrf.mxu0
      %v1649 = vadd.f32 %v1588, %v1648
      %1650 = vmatmul.bf16.gmra.mxu0 %v1400
      %v1651 = vpop.f32.mrf.mxu0
      %v1652 = vpop.f32.mrf.mxu0
      %v1653 = vadd.f32 %v1592, %v1652
      %1654 = vmatmul.bf16.gmra.mxu0 %v1416
      %v1655 = vpop.f32.mrf.mxu0
      %v1656 = vadd.f32 %v1595, %v1655
      %v1657 = vpop.f32.mrf.mxu0
      %1658 = vdwg.mxu0
      %v1715 = vunpack.c.l.b16 %v1049
      %v1716 = vunpack.c.l.b16 %v1050
      %v1717 = vunpack.c.l.b16 %v1051
      %v1718 = vunpack.c.l.b16 %v1052
      %v1719 = vunpack.c.l.b16 %v1053
      %v1720 = vunpack.c.l.b16 %v1054
      %v1721 = vunpack.c.l.b16 %v1055
      %v1722 = vunpack.c.l.b16 %v1056
      %v1723 = vunpack.c.l.b16 %v1057
      %v1724 = vunpack.c.l.b16 %v1058
      %v1725 = vunpack.c.l.b16 %v1059
      %v1726 = vunpack.c.l.b16 %v1060
      %v1727 = vunpack.c.l.b16 %v1061
      %v1728 = vunpack.c.l.b16 %v1062
      %v1729 = vunpack.c.l.b16 %v1063
      %v1730 = vunpack.c.l.b16 %v1064
      %v1731 = vunpack.c.l.b16 %v1065
      %v1732 = vunpack.c.l.b16 %v1066
      %v1733 = vunpack.c.l.b16 %v1067
      %v1734 = vunpack.c.l.b16 %v1068
      %v1735 = vunpack.c.l.b16 %v1069
      %v1736 = vunpack.c.l.b16 %v1070
      %v1737 = vunpack.c.l.b16 %v1071
      %v1738 = vunpack.c.l.b16 %v1072
      %v1739 = vunpack.c.l.b16 %v1073
      %v1740 = vunpack.c.l.b16 %v1074
      %v1741 = vunpack.c.l.b16 %v1075
      %v1742 = vunpack.c.l.b16 %v1076
      %v1743 = vunpack.c.l.b16 %v1077
      %v1744 = vunpack.c.l.b16 %v1078
      %v1745 = vunpack.c.l.b16 %v1079
      %v1746 = vunpack.c.l.b16 %v1080
      %v1747 = vpack.c.b16 %v1716, %v1715
      %v1748 = vpack.c.b16 %v1718, %v1717
      %v1749 = vpack.c.b16 %v1720, %v1719
      %v1750 = vpack.c.b16 %v1722, %v1721
      %v1751 = vpack.c.b16 %v1724, %v1723
      %v1752 = vpack.c.b16 %v1726, %v1725
      %v1753 = vpack.c.b16 %v1728, %v1727
      %v1754 = vpack.c.b16 %v1730, %v1729
      %v1755 = vpack.c.b16 %v1732, %v1731
      %v1756 = vpack.c.b16 %v1734, %v1733
      %v1757 = vpack.c.b16 %v1736, %v1735
      %v1758 = vpack.c.b16 %v1738, %v1737
      %v1759 = vpack.c.b16 %v1740, %v1739
      %v1760 = vpack.c.b16 %v1742, %v1741
      %v1761 = vpack.c.b16 %v1744, %v1743
      %v1762 = vpack.c.b16 %v1746, %v1745
      %1779 = vmatpush.bf16.msra.mxu0 %v1754
      %1780 = vmatpush.bf16.msra.mxu0 %v1753
      %1781 = vmatpush.bf16.msra.mxu0 %v1752
      %1782 = vmatpush.bf16.msra.mxu0 %v1751
      %1783 = vmatpush.bf16.msra.mxu0 %v1750
      %1784 = vmatpush.bf16.msra.mxu0 %v1749
      %1785 = vmatpush.bf16.msra.mxu0 %v1748
      %1786 = vmatpush.bf16.msra.mxu0 %v1747
      %1787 = vmatmul.bf16.gmra.mxu0 %v1190
      %v1788 = vpop.f32.mrf.mxu0
      %v1789 = vadd.f32 %v1608, %v1788
      %v1790 = vpop.f32.mrf.mxu0
      %v1791 = vadd.f32 %v1610, %v1790
      %1792 = vmatmul.bf16.gmra.mxu0 %v1192
      %v1793 = vpop.f32.mrf.mxu0
      %v1794 = vpop.f32.mrf.mxu0
      %v1795 = vadd.f32 %v1614, %v1794
      %1796 = vmatmul.bf16.gmra.mxu0 %v1194
      %v1797 = vpop.f32.mrf.mxu0
      %v1798 = vadd.f32 %v1617, %v1797
      %v1799 = vpop.f32.mrf.mxu0
      %1800 = vmatmul.bf16.gmra.mxu0 %v1196
      %v1801 = vpop.f32.mrf.mxu0
      %v1802 = vadd.f32 %v1621, %v1801
      %v1803 = vpop.f32.mrf.mxu0
      %v1804 = vadd.f32 %v1623, %v1803
      %1805 = vmatmul.bf16.gmra.mxu0 %v1198
      %v1806 = vpop.f32.mrf.mxu0
      %v1807 = vpop.f32.mrf.mxu0
      %v1808 = vadd.f32 %v1627, %v1807
      %1809 = vmatmul.bf16.gmra.mxu0 %v1200
      %v1810 = vpop.f32.mrf.mxu0
      %v1811 = vadd.f32 %v1630, %v1810
      %v1812 = vpop.f32.mrf.mxu0
      %1813 = vmatmul.bf16.gmra.mxu0 %v1202
      %v1814 = vpop.f32.mrf.mxu0
      %v1815 = vadd.f32 %v1634, %v1814
      %v1816 = vpop.f32.mrf.mxu0
      %v1817 = vadd.f32 %v1636, %v1816
      %1818 = vmatmul.bf16.gmra.mxu0 %v1204
      %v1819 = vpop.f32.mrf.mxu0
      %v1820 = vpop.f32.mrf.mxu0
      %v1821 = vadd.f32 %v1640, %v1820
      %1822 = vmatmul.bf16.gmra.mxu0 %v1206
      %v1823 = vpop.f32.mrf.mxu0
      %v1824 = vadd.f32 %v1643, %v1823
      %v1825 = vpop.f32.mrf.mxu0
      %1826 = vmatmul.bf16.gmra.mxu0 %v1208
      %v1827 = vpop.f32.mrf.mxu0
      %v1828 = vadd.f32 %v1647, %v1827
      %v1829 = vpop.f32.mrf.mxu0
      %v1830 = vadd.f32 %v1649, %v1829
      %1831 = vmatmul.bf16.gmra.mxu0 %v1210
      %v1832 = vpop.f32.mrf.mxu0
      %v1833 = vpop.f32.mrf.mxu0
      %v1834 = vadd.f32 %v1653, %v1833
      %1835 = vmatmul.bf16.gmra.mxu0 %v1212
      %v1836 = vpop.f32.mrf.mxu0
      %v1837 = vadd.f32 %v1656, %v1836
      %v1838 = vpop.f32.mrf.mxu0
      %1839 = vdwg.mxu0
      %1840 = vmatpush.bf16.msra.mxu0 %v1762
      %1841 = vmatpush.bf16.msra.mxu0 %v1761
      %1842 = vmatpush.bf16.msra.mxu0 %v1760
      %1843 = vmatpush.bf16.msra.mxu0 %v1759
      %1844 = vmatpush.bf16.msra.mxu0 %v1758
      %1845 = vmatpush.bf16.msra.mxu0 %v1757
      %1846 = vmatpush.bf16.msra.mxu0 %v1756
      %1847 = vmatpush.bf16.msra.mxu0 %v1755
      %1848 = vmatmul.bf16.gmra.mxu0 %v1191
      %v1849 = vpop.f32.mrf.mxu0
      %v1850 = vadd.f32 %v1789, %v1849
      %v1851 = vpop.f32.mrf.mxu0
      %v1852 = vadd.f32 %v1791, %v1851
      %1853 = vmatmul.bf16.gmra.mxu0 %v1193
      %v1854 = vpop.f32.mrf.mxu0
      %v1855 = vpop.f32.mrf.mxu0
      %v1856 = vadd.f32 %v1795, %v1855
      %1857 = vmatmul.bf16.gmra.mxu0 %v1195
      %v1858 = vpop.f32.mrf.mxu0
      %v1859 = vadd.f32 %v1798, %v1858
      %v1860 = vpop.f32.mrf.mxu0
      %1861 = vmatmul.bf16.gmra.mxu0 %v1197
      %v1862 = vpop.f32.mrf.mxu0
      %v1863 = vadd.f32 %v1802, %v1862
      %v1864 = vpop.f32.mrf.mxu0
      %v1865 = vadd.f32 %v1804, %v1864
      %1866 = vmatmul.bf16.gmra.mxu0 %v1199
      %v1867 = vpop.f32.mrf.mxu0
      %v1868 = vpop.f32.mrf.mxu0
      %v1869 = vadd.f32 %v1808, %v1868
      %1870 = vmatmul.bf16.gmra.mxu0 %v1201
      %v1871 = vpop.f32.mrf.mxu0
      %v1872 = vadd.f32 %v1811, %v1871
      %v1873 = vpop.f32.mrf.mxu0
      %1874 = vmatmul.bf16.gmra.mxu0 %v1203
      %v1875 = vpop.f32.mrf.mxu0
      %v1876 = vadd.f32 %v1815, %v1875
      %v1877 = vpop.f32.mrf.mxu0
      %v1878 = vadd.f32 %v1817, %v1877
      %1879 = vmatmul.bf16.gmra.mxu0 %v1205
      %v1880 = vpop.f32.mrf.mxu0
      %v1881 = vpop.f32.mrf.mxu0
      %v1882 = vadd.f32 %v1821, %v1881
      %1883 = vmatmul.bf16.gmra.mxu0 %v1207
      %v1884 = vpop.f32.mrf.mxu0
      %v1885 = vadd.f32 %v1824, %v1884
      %v1886 = vpop.f32.mrf.mxu0
      %1887 = vmatmul.bf16.gmra.mxu0 %v1209
      %v1888 = vpop.f32.mrf.mxu0
      %v1889 = vadd.f32 %v1828, %v1888
      %v1890 = vpop.f32.mrf.mxu0
      %v1891 = vadd.f32 %v1830, %v1890
      %1892 = vmatmul.bf16.gmra.mxu0 %v1211
      %v1893 = vpop.f32.mrf.mxu0
      %v1894 = vpop.f32.mrf.mxu0
      %v1895 = vadd.f32 %v1834, %v1894
      %1896 = vmatmul.bf16.gmra.mxu0 %v1213
      %v1897 = vpop.f32.mrf.mxu0
      %v1898 = vadd.f32 %v1837, %v1897
      %v1899 = vpop.f32.mrf.mxu0
      %1900 = vdwg.mxu0
      %v1901 = vld [vmem:[#allocation2] sm:$0xee]
      %s1902 = scalar_lea.vmem %s2, 256
      %v1903 = vld [vmem:[%s1902] sm:$0xf]
      %v1904 = vld [vmem:[%s1902 + $0x4] sm:$0xf]
      %v1905 = vld [vmem:[%s1902 + $0x8] sm:$0xf]
      %v1906 = vld [vmem:[%s1902 + $0xc] sm:$0xf]
      %v1907 = vld [vmem:[%s1902 + $0x10] sm:$0xf]
      %v1908 = vld [vmem:[%s1902 + $0x14] sm:$0xf]
      %v1909 = vld [vmem:[%s1902 + $0x18] sm:$0xf]
      %v1910 = vld [vmem:[%s1902 + $0x1c] sm:$0xf]
      %v1911 = vld [vmem:[%s1902 + $0x20] sm:$0xf]
      %v1912 = vld [vmem:[%s1902 + $0x24] sm:$0xf]
      %v1913 = vld [vmem:[%s1902 + $0x28] sm:$0xf]
      %v1914 = vld [vmem:[%s1902 + $0x2c] sm:$0xf]
      %v1915 = vld [vmem:[%s1902 + $0x30] sm:$0xf]
      %v1916 = vld [vmem:[%s1902 + $0x34] sm:$0xf]
      %v1917 = vld [vmem:[%s1902 + $0x38] sm:$0xf]
      %v1918 = vld [vmem:[%s1902 + $0x3c] sm:$0xf]
      %v1919 = vld [vmem:[%s1902 + $0x40] sm:$0xf]
      %v1920 = vld [vmem:[%s1902 + $0x44] sm:$0xf]
      %v1921 = vld [vmem:[%s1902 + $0x48] sm:$0xf]
      %v1922 = vld [vmem:[%s1902 + $0x4c] sm:$0xf]
      %v1923 = vld [vmem:[%s1902 + $0x50] sm:$0xf]
      %v1924 = vld [vmem:[%s1902 + $0x54] sm:$0xf]
      %v1925 = vld [vmem:[%s1902 + $0x58] sm:$0xf]
      %v1926 = vld [vmem:[%s1902 + $0x5c] sm:$0xf]
      %v1927 = vld [vmem:[%s1902 + $0x60] sm:$0xf]
      %v1928 = vld [vmem:[%s1902 + $0x64] sm:$0xf]
      %v1929 = vld [vmem:[%s1902 + $0x68] sm:$0xf]
      %v1930 = vld [vmem:[%s1902 + $0x6c] sm:$0xf]
      %v1931 = vld [vmem:[%s1902 + $0x70] sm:$0xf]
      %v1932 = vld [vmem:[%s1902 + $0x74] sm:$0xf]
      %v1933 = vld [vmem:[%s1902 + $0x78] sm:$0xf]
      %v1934 = vld [vmem:[%s1902 + $0x7c] sm:$0xf]
      %v1936 = vunpack.c.l.b16 %v1901
      %v1937 = vunpack.c.h.b16 %v1901
      %v1938 = vpack.c.b16 %v1142, %v1936
      %v1939 = vpack.c.b16 %v1143, %v1937
      %vm1940 = vcmask 1046528
      %v1941 = vrot.slane %v1938, 1
      %v1942 = vrot.slane %v1192, 1
      %v1943 = vsel %vm1940, %v1941, %v1942
      %v1944 = vrot.slane %v1939, 1
      %v1945 = vrot.slane %v1193, 1
      %v1946 = vsel %vm1940, %v1944, %v1945
      %v1947 = vrot.slane %v1194, 1
      %v1948 = vsel %vm1940, %v1942, %v1947
      %v1949 = vrot.slane %v1195, 1
      %v1950 = vsel %vm1940, %v1945, %v1949
      %v1951 = vrot.slane %v1196, 1
      %v1952 = vsel %vm1940, %v1947, %v1951
      %v1953 = vrot.slane %v1197, 1
      %v1954 = vsel %vm1940, %v1949, %v1953
      %v1955 = vrot.slane %v1198, 1
      %v1956 = vsel %vm1940, %v1951, %v1955
      %v1957 = vrot.slane %v1199, 1
      %v1958 = vsel %vm1940, %v1953, %v1957
      %v1959 = vrot.slane %v1200, 1
      %v1960 = vsel %vm1940, %v1955, %v1959
      %v1961 = vrot.slane %v1201, 1
      %v1962 = vsel %vm1940, %v1957, %v1961
      %v1963 = vrot.slane %v1202, 1
      %v1964 = vsel %vm1940, %v1959, %v1963
      %v1965 = vrot.slane %v1203, 1
      %v1966 = vsel %vm1940, %v1961, %v1965
      %v1967 = vrot.slane %v1204, 1
      %v1968 = vsel %vm1940, %v1963, %v1967
      %v1969 = vrot.slane %v1205, 1
      %v1970 = vsel %vm1940, %v1965, %v1969
      %v1971 = vrot.slane %v1206, 1
      %v1972 = vsel %vm1940, %v1967, %v1971
      %v1973 = vrot.slane %v1207, 1
      %v1974 = vsel %vm1940, %v1969, %v1973
      %v1975 = vrot.slane %v1208, 1
      %v1976 = vsel %vm1940, %v1971, %v1975
      %v1977 = vrot.slane %v1209, 1
      %v1978 = vsel %vm1940, %v1973, %v1977
      %v1979 = vrot.slane %v1210, 1
      %v1980 = vsel %vm1940, %v1975, %v1979
      %v1981 = vrot.slane %v1211, 1
      %v1982 = vsel %vm1940, %v1977, %v1981
      %v1983 = vrot.slane %v1212, 1
      %v1984 = vsel %vm1940, %v1979, %v1983
      %v1985 = vrot.slane %v1213, 1
      %v1986 = vsel %vm1940, %v1981, %v1985
      %v1987 = vrot.slane %v1214, 1
      %v1988 = vsel %vm1940, %v1983, %v1987
      %v1989 = vrot.slane %v1215, 1
      %v1990 = vsel %vm1940, %v1985, %v1989
      %v2047 = vunpack.c.l.b16 %v1903
      %v2048 = vunpack.c.l.b16 %v1904
      %v2049 = vunpack.c.l.b16 %v1905
      %v2050 = vunpack.c.l.b16 %v1906
      %v2051 = vunpack.c.l.b16 %v1907
      %v2052 = vunpack.c.l.b16 %v1908
      %v2053 = vunpack.c.l.b16 %v1909
      %v2054 = vunpack.c.l.b16 %v1910
      %v2055 = vunpack.c.l.b16 %v1911
      %v2056 = vunpack.c.l.b16 %v1912
      %v2057 = vunpack.c.l.b16 %v1913
      %v2058 = vunpack.c.l.b16 %v1914
      %v2059 = vunpack.c.l.b16 %v1915
      %v2060 = vunpack.c.l.b16 %v1916
      %v2061 = vunpack.c.l.b16 %v1917
      %v2062 = vunpack.c.l.b16 %v1918
      %v2063 = vunpack.c.l.b16 %v1919
      %v2064 = vunpack.c.l.b16 %v1920
      %v2065 = vunpack.c.l.b16 %v1921
      %v2066 = vunpack.c.l.b16 %v1922
      %v2067 = vunpack.c.l.b16 %v1923
      %v2068 = vunpack.c.l.b16 %v1924
      %v2069 = vunpack.c.l.b16 %v1925
      %v2070 = vunpack.c.l.b16 %v1926
      %v2071 = vunpack.c.l.b16 %v1927
      %v2072 = vunpack.c.l.b16 %v1928
      %v2073 = vunpack.c.l.b16 %v1929
      %v2074 = vunpack.c.l.b16 %v1930
      %v2075 = vunpack.c.l.b16 %v1931
      %v2076 = vunpack.c.l.b16 %v1932
      %v2077 = vunpack.c.l.b16 %v1933
      %v2078 = vunpack.c.l.b16 %v1934
      %v2079 = vpack.c.b16 %v2048, %v2047
      %v2080 = vpack.c.b16 %v2050, %v2049
      %v2081 = vpack.c.b16 %v2052, %v2051
      %v2082 = vpack.c.b16 %v2054, %v2053
      %v2083 = vpack.c.b16 %v2056, %v2055
      %v2084 = vpack.c.b16 %v2058, %v2057
      %v2085 = vpack.c.b16 %v2060, %v2059
      %v2086 = vpack.c.b16 %v2062, %v2061
      %v2087 = vpack.c.b16 %v2064, %v2063
      %v2088 = vpack.c.b16 %v2066, %v2065
      %v2089 = vpack.c.b16 %v2068, %v2067
      %v2090 = vpack.c.b16 %v2070, %v2069
      %v2091 = vpack.c.b16 %v2072, %v2071
      %v2092 = vpack.c.b16 %v2074, %v2073
      %v2093 = vpack.c.b16 %v2076, %v2075
      %v2094 = vpack.c.b16 %v2078, %v2077
      %2111 = vmatpush.bf16.msra.mxu0 %v2086
      %2112 = vmatpush.bf16.msra.mxu0 %v2085
      %2113 = vmatpush.bf16.msra.mxu0 %v2084
      %2114 = vmatpush.bf16.msra.mxu0 %v2083
      %2115 = vmatpush.bf16.msra.mxu0 %v2082
      %2116 = vmatpush.bf16.msra.mxu0 %v2081
      %2117 = vmatpush.bf16.msra.mxu0 %v2080
      %2118 = vmatpush.bf16.msra.mxu0 %v2079
      %2119 = vmatmul.bf16.gmra.mxu0 %v1943
      %v2120 = vpop.f32.mrf.mxu0
      %v2121 = vadd.f32 0.0, %v2120
      %v2122 = vpop.f32.mrf.mxu0
      %v2123 = vadd.f32 0.0, %v2122
      %2124 = vmatmul.bf16.gmra.mxu0 %v1948
      %v2125 = vpop.f32.mrf.mxu0
      %v2126 = vpop.f32.mrf.mxu0
      %v2127 = vadd.f32 0.0, %v2126
      %2128 = vmatmul.bf16.gmra.mxu0 %v1952
      %v2129 = vpop.f32.mrf.mxu0
      %v2130 = vadd.f32 0.0, %v2129
      %v2131 = vpop.f32.mrf.mxu0
      %2132 = vmatmul.bf16.gmra.mxu0 %v1956
      %v2133 = vpop.f32.mrf.mxu0
      %v2134 = vadd.f32 0.0, %v2133
      %v2135 = vpop.f32.mrf.mxu0
      %v2136 = vadd.f32 0.0, %v2135
      %2137 = vmatmul.bf16.gmra.mxu0 %v1960
      %v2138 = vpop.f32.mrf.mxu0
      %v2139 = vpop.f32.mrf.mxu0
      %v2140 = vadd.f32 0.0, %v2139
      %2141 = vmatmul.bf16.gmra.mxu0 %v1964
      %v2142 = vpop.f32.mrf.mxu0
      %v2143 = vadd.f32 0.0, %v2142
      %v2144 = vpop.f32.mrf.mxu0
      %2145 = vmatmul.bf16.gmra.mxu0 %v1968
      %v2146 = vpop.f32.mrf.mxu0
      %v2147 = vadd.f32 0.0, %v2146
      %v2148 = vpop.f32.mrf.mxu0
      %v2149 = vadd.f32 0.0, %v2148
      %2150 = vmatmul.bf16.gmra.mxu0 %v1972
      %v2151 = vpop.f32.mrf.mxu0
      %v2152 = vpop.f32.mrf.mxu0
      %v2153 = vadd.f32 0.0, %v2152
      %2154 = vmatmul.bf16.gmra.mxu0 %v1976
      %v2155 = vpop.f32.mrf.mxu0
      %v2156 = vadd.f32 0.0, %v2155
      %v2157 = vpop.f32.mrf.mxu0
      %2158 = vmatmul.bf16.gmra.mxu0 %v1980
      %v2159 = vpop.f32.mrf.mxu0
      %v2160 = vadd.f32 0.0, %v2159
      %v2161 = vpop.f32.mrf.mxu0
      %v2162 = vadd.f32 0.0, %v2161
      %2163 = vmatmul.bf16.gmra.mxu0 %v1984
      %v2164 = vpop.f32.mrf.mxu0
      %v2165 = vpop.f32.mrf.mxu0
      %v2166 = vadd.f32 0.0, %v2165
      %2167 = vmatmul.bf16.gmra.mxu0 %v1988
      %v2168 = vpop.f32.mrf.mxu0
      %v2169 = vadd.f32 0.0, %v2168
      %v2170 = vpop.f32.mrf.mxu0
      %2171 = vdwg.mxu0
      %2172 = vmatpush.bf16.msra.mxu0 %v2094
      %2173 = vmatpush.bf16.msra.mxu0 %v2093
      %2174 = vmatpush.bf16.msra.mxu0 %v2092
      %2175 = vmatpush.bf16.msra.mxu0 %v2091
      %2176 = vmatpush.bf16.msra.mxu0 %v2090
      %2177 = vmatpush.bf16.msra.mxu0 %v2089
      %2178 = vmatpush.bf16.msra.mxu0 %v2088
      %2179 = vmatpush.bf16.msra.mxu0 %v2087
      %2180 = vmatmul.bf16.gmra.mxu0 %v1946
      %v2181 = vpop.f32.mrf.mxu0
      %v2182 = vadd.f32 %v2121, %v2181
      %v2183 = vpop.f32.mrf.mxu0
      %v2184 = vadd.f32 %v2123, %v2183
      %2185 = vmatmul.bf16.gmra.mxu0 %v1950
      %v2186 = vpop.f32.mrf.mxu0
      %v2187 = vpop.f32.mrf.mxu0
      %v2188 = vadd.f32 %v2127, %v2187
      %2189 = vmatmul.bf16.gmra.mxu0 %v1954
      %v2190 = vpop.f32.mrf.mxu0
      %v2191 = vadd.f32 %v2130, %v2190
      %v2192 = vpop.f32.mrf.mxu0
      %2193 = vmatmul.bf16.gmra.mxu0 %v1958
      %v2194 = vpop.f32.mrf.mxu0
      %v2195 = vadd.f32 %v2134, %v2194
      %v2196 = vpop.f32.mrf.mxu0
      %v2197 = vadd.f32 %v2136, %v2196
      %2198 = vmatmul.bf16.gmra.mxu0 %v1962
      %v2199 = vpop.f32.mrf.mxu0
      %v2200 = vpop.f32.mrf.mxu0
      %v2201 = vadd.f32 %v2140, %v2200
      %2202 = vmatmul.bf16.gmra.mxu0 %v1966
      %v2203 = vpop.f32.mrf.mxu0
      %v2204 = vadd.f32 %v2143, %v2203
      %v2205 = vpop.f32.mrf.mxu0
      %2206 = vmatmul.bf16.gmra.mxu0 %v1970
      %v2207 = vpop.f32.mrf.mxu0
      %v2208 = vadd.f32 %v2147, %v2207
      %v2209 = vpop.f32.mrf.mxu0
      %v2210 = vadd.f32 %v2149, %v2209
      %2211 = vmatmul.bf16.gmra.mxu0 %v1974
      %v2212 = vpop.f32.mrf.mxu0
      %v2213 = vpop.f32.mrf.mxu0
      %v2214 = vadd.f32 %v2153, %v2213
      %2215 = vmatmul.bf16.gmra.mxu0 %v1978
      %v2216 = vpop.f32.mrf.mxu0
      %v2217 = vadd.f32 %v2156, %v2216
      %v2218 = vpop.f32.mrf.mxu0
      %2219 = vmatmul.bf16.gmra.mxu0 %v1982
      %v2220 = vpop.f32.mrf.mxu0
      %v2221 = vadd.f32 %v2160, %v2220
      %v2222 = vpop.f32.mrf.mxu0
      %v2223 = vadd.f32 %v2162, %v2222
      %2224 = vmatmul.bf16.gmra.mxu0 %v1986
      %v2225 = vpop.f32.mrf.mxu0
      %v2226 = vpop.f32.mrf.mxu0
      %v2227 = vadd.f32 %v2166, %v2226
      %2228 = vmatmul.bf16.gmra.mxu0 %v1990
      %v2229 = vpop.f32.mrf.mxu0
      %v2230 = vadd.f32 %v2169, %v2229
      %v2231 = vpop.f32.mrf.mxu0
      %2232 = vdwg.mxu0
      %v2233 = vadd.f32 %v1850, %v2182
      %v2234 = vadd.f32 %v1852, %v2184
      %v2235 = vadd.f32 %v1856, %v2188
      %v2236 = vadd.f32 %v1859, %v2191
      %v2237 = vadd.f32 %v1863, %v2195
      %v2238 = vadd.f32 %v1865, %v2197
      %v2239 = vadd.f32 %v1869, %v2201
      %v2240 = vadd.f32 %v1872, %v2204
      %v2241 = vadd.f32 %v1876, %v2208
      %v2242 = vadd.f32 %v1878, %v2210
      %v2243 = vadd.f32 %v1882, %v2214
      %v2244 = vadd.f32 %v1885, %v2217
      %v2245 = vadd.f32 %v1889, %v2221
      %v2246 = vadd.f32 %v1891, %v2223
      %v2247 = vadd.f32 %v1895, %v2227
      %v2248 = vadd.f32 %v1898, %v2230
      %v2249 = vld [vmem:[#allocation2 + $0x18] sm:$0xff]
      %v2250 = vld [vmem:[#allocation2 + $0x20] sm:$0xff]
      %v2251 = vld [vmem:[#allocation2 + $0x28] sm:$0xff]
      %v2252 = vld [vmem:[#allocation2 + $0x30] sm:$0xff]
      %v2253 = vld [vmem:[#allocation2 + $0x38] sm:$0xff]
      %v2254 = vld [vmem:[#allocation2 + $0x40] sm:$0xff]
      %v2255 = vld [vmem:[#allocation2 + $0x48] sm:$0xff]
      %v2256 = vld [vmem:[#allocation2 + $0x50] sm:$0xff]
      %v2257 = vld [vmem:[#allocation2 + $0x58] sm:$0xff]
      %v2258 = vld [vmem:[#allocation2 + $0x60] sm:$0xff]
      %v2259 = vld [vmem:[#allocation2 + $0x68] sm:$0xff]
      %v2260 = vld [vmem:[#allocation2 + $0x70] sm:$0xff]
      %v2261 = vld [vmem:[#allocation2 + $0x78] sm:$0xff]
      %v2262 = vld [vmem:[#allocation2 + $0x80] sm:$0xff]
      %v2263 = vld [vmem:[#allocation2 + $0x88] sm:$0xff]
      %v2264 = vld [vmem:[#allocation2 + $0x90] sm:$0xff]
      %v2265 = vld [vmem:[#allocation2 + $0x98] sm:$0xff]
      %v2266 = vld [vmem:[#allocation2 + $0xa0] sm:$0xff]
      %v2267 = vld [vmem:[#allocation2 + $0xa8] sm:$0xff]
      %v2268 = vld [vmem:[#allocation2 + $0xb0] sm:$0xff]
      %v2269 = vld [vmem:[#allocation2 + $0xb8] sm:$0xff]
      %v2270 = vld [vmem:[#allocation2 + $0xc0] sm:$0xff]
      %v2271 = vld [vmem:[#allocation2 + $0xc8] sm:$0xff]
      %v2272 = vld [vmem:[#allocation2 + $0xd0] sm:$0xff]
      %s2273 = scalar_lea.vmem %s2, 384
      %v2274 = vld [vmem:[%s2273] sm:$0xf]
      %v2275 = vld [vmem:[%s2273 + $0x4] sm:$0xf]
      %v2276 = vld [vmem:[%s2273 + $0x8] sm:$0xf]
      %v2277 = vld [vmem:[%s2273 + $0xc] sm:$0xf]
      %v2278 = vld [vmem:[%s2273 + $0x10] sm:$0xf]
      %v2279 = vld [vmem:[%s2273 + $0x14] sm:$0xf]
      %v2280 = vld [vmem:[%s2273 + $0x18] sm:$0xf]
      %v2281 = vld [vmem:[%s2273 + $0x1c] sm:$0xf]
      %v2282 = vld [vmem:[%s2273 + $0x20] sm:$0xf]
      %v2283 = vld [vmem:[%s2273 + $0x24] sm:$0xf]
      %v2284 = vld [vmem:[%s2273 + $0x28] sm:$0xf]
      %v2285 = vld [vmem:[%s2273 + $0x2c] sm:$0xf]
      %v2286 = vld [vmem:[%s2273 + $0x30] sm:$0xf]
      %v2287 = vld [vmem:[%s2273 + $0x34] sm:$0xf]
      %v2288 = vld [vmem:[%s2273 + $0x38] sm:$0xf]
      %v2289 = vld [vmem:[%s2273 + $0x3c] sm:$0xf]
      %v2290 = vld [vmem:[%s2273 + $0x40] sm:$0xf]
      %v2291 = vld [vmem:[%s2273 + $0x44] sm:$0xf]
      %v2292 = vld [vmem:[%s2273 + $0x48] sm:$0xf]
      %v2293 = vld [vmem:[%s2273 + $0x4c] sm:$0xf]
      %v2294 = vld [vmem:[%s2273 + $0x50] sm:$0xf]
      %v2295 = vld [vmem:[%s2273 + $0x54] sm:$0xf]
      %v2296 = vld [vmem:[%s2273 + $0x58] sm:$0xf]
      %v2297 = vld [vmem:[%s2273 + $0x5c] sm:$0xf]
      %v2298 = vld [vmem:[%s2273 + $0x60] sm:$0xf]
      %v2299 = vld [vmem:[%s2273 + $0x64] sm:$0xf]
      %v2300 = vld [vmem:[%s2273 + $0x68] sm:$0xf]
      %v2301 = vld [vmem:[%s2273 + $0x6c] sm:$0xf]
      %v2302 = vld [vmem:[%s2273 + $0x70] sm:$0xf]
      %v2303 = vld [vmem:[%s2273 + $0x74] sm:$0xf]
      %v2304 = vld [vmem:[%s2273 + $0x78] sm:$0xf]
      %v2305 = vld [vmem:[%s2273 + $0x7c] sm:$0xf]
      %v2330 = vunpack.c.l.b16 %v2249
      %v2331 = vunpack.c.h.b16 %v2249
      %v2332 = vunpack.c.l.b16 %v2250
      %v2333 = vunpack.c.h.b16 %v2250
      %v2334 = vunpack.c.l.b16 %v2251
      %v2335 = vunpack.c.h.b16 %v2251
      %v2336 = vunpack.c.l.b16 %v2252
      %v2337 = vunpack.c.h.b16 %v2252
      %v2338 = vunpack.c.l.b16 %v2253
      %v2339 = vunpack.c.h.b16 %v2253
      %v2340 = vunpack.c.l.b16 %v2254
      %v2341 = vunpack.c.h.b16 %v2254
      %v2342 = vunpack.c.l.b16 %v2255
      %v2343 = vunpack.c.h.b16 %v2255
      %v2344 = vunpack.c.l.b16 %v2256
      %v2345 = vunpack.c.h.b16 %v2256
      %v2346 = vunpack.c.l.b16 %v2257
      %v2347 = vunpack.c.h.b16 %v2257
      %v2348 = vunpack.c.l.b16 %v2258
      %v2349 = vunpack.c.h.b16 %v2258
      %v2350 = vunpack.c.l.b16 %v2259
      %v2351 = vunpack.c.h.b16 %v2259
      %v2352 = vunpack.c.l.b16 %v2260
      %v2353 = vunpack.c.h.b16 %v2260
      %v2354 = vunpack.c.l.b16 %v2261
      %v2355 = vunpack.c.h.b16 %v2261
      %v2356 = vunpack.c.l.b16 %v2262
      %v2357 = vunpack.c.h.b16 %v2262
      %v2358 = vunpack.c.l.b16 %v2263
      %v2359 = vunpack.c.h.b16 %v2263
      %v2360 = vunpack.c.l.b16 %v2264
      %v2361 = vunpack.c.h.b16 %v2264
      %v2362 = vunpack.c.l.b16 %v2265
      %v2363 = vunpack.c.h.b16 %v2265
      %v2364 = vunpack.c.l.b16 %v2266
      %v2365 = vunpack.c.h.b16 %v2266
      %v2366 = vunpack.c.l.b16 %v2267
      %v2367 = vunpack.c.h.b16 %v2267
      %v2368 = vunpack.c.l.b16 %v2268
      %v2369 = vunpack.c.h.b16 %v2268
      %v2370 = vunpack.c.l.b16 %v2269
      %v2371 = vunpack.c.h.b16 %v2269
      %v2372 = vunpack.c.l.b16 %v2270
      %v2373 = vunpack.c.h.b16 %v2270
      %v2374 = vunpack.c.l.b16 %v2271
      %v2375 = vunpack.c.h.b16 %v2271
      %v2376 = vunpack.c.l.b16 %v2272
      %v2377 = vunpack.c.h.b16 %v2272
      %v2378 = vpack.c.b16 %v2332, %v2330
      %v2379 = vpack.c.b16 %v2333, %v2331
      %v2380 = vpack.c.b16 %v2336, %v2334
      %v2381 = vpack.c.b16 %v2337, %v2335
      %v2382 = vpack.c.b16 %v2340, %v2338
      %v2383 = vpack.c.b16 %v2341, %v2339
      %v2384 = vpack.c.b16 %v2344, %v2342
      %v2385 = vpack.c.b16 %v2345, %v2343
      %v2386 = vpack.c.b16 %v2348, %v2346
      %v2387 = vpack.c.b16 %v2349, %v2347
      %v2388 = vpack.c.b16 %v2352, %v2350
      %v2389 = vpack.c.b16 %v2353, %v2351
      %v2390 = vpack.c.b16 %v2356, %v2354
      %v2391 = vpack.c.b16 %v2357, %v2355
      %v2392 = vpack.c.b16 %v2360, %v2358
      %v2393 = vpack.c.b16 %v2361, %v2359
      %v2394 = vpack.c.b16 %v2364, %v2362
      %v2395 = vpack.c.b16 %v2365, %v2363
      %v2396 = vpack.c.b16 %v2368, %v2366
      %v2397 = vpack.c.b16 %v2369, %v2367
      %v2398 = vpack.c.b16 %v2372, %v2370
      %v2399 = vpack.c.b16 %v2373, %v2371
      %v2400 = vpack.c.b16 %v2376, %v2374
      %v2401 = vpack.c.b16 %v2377, %v2375
      %v2458 = vunpack.c.l.b16 %v2274
      %v2459 = vunpack.c.l.b16 %v2275
      %v2460 = vunpack.c.l.b16 %v2276
      %v2461 = vunpack.c.l.b16 %v2277
      %v2462 = vunpack.c.l.b16 %v2278
      %v2463 = vunpack.c.l.b16 %v2279
      %v2464 = vunpack.c.l.b16 %v2280
      %v2465 = vunpack.c.l.b16 %v2281
      %v2466 = vunpack.c.l.b16 %v2282
      %v2467 = vunpack.c.l.b16 %v2283
      %v2468 = vunpack.c.l.b16 %v2284
      %v2469 = vunpack.c.l.b16 %v2285
      %v2470 = vunpack.c.l.b16 %v2286
      %v2471 = vunpack.c.l.b16 %v2287
      %v2472 = vunpack.c.l.b16 %v2288
      %v2473 = vunpack.c.l.b16 %v2289
      %v2474 = vunpack.c.l.b16 %v2290
      %v2475 = vunpack.c.l.b16 %v2291
      %v2476 = vunpack.c.l.b16 %v2292
      %v2477 = vunpack.c.l.b16 %v2293
      %v2478 = vunpack.c.l.b16 %v2294
      %v2479 = vunpack.c.l.b16 %v2295
      %v2480 = vunpack.c.l.b16 %v2296
      %v2481 = vunpack.c.l.b16 %v2297
      %v2482 = vunpack.c.l.b16 %v2298
      %v2483 = vunpack.c.l.b16 %v2299
      %v2484 = vunpack.c.l.b16 %v2300
      %v2485 = vunpack.c.l.b16 %v2301
      %v2486 = vunpack.c.l.b16 %v2302
      %v2487 = vunpack.c.l.b16 %v2303
      %v2488 = vunpack.c.l.b16 %v2304
      %v2489 = vunpack.c.l.b16 %v2305
      %v2490 = vpack.c.b16 %v2459, %v2458
      %v2491 = vpack.c.b16 %v2461, %v2460
      %v2492 = vpack.c.b16 %v2463, %v2462
      %v2493 = vpack.c.b16 %v2465, %v2464
      %v2494 = vpack.c.b16 %v2467, %v2466
      %v2495 = vpack.c.b16 %v2469, %v2468
      %v2496 = vpack.c.b16 %v2471, %v2470
      %v2497 = vpack.c.b16 %v2473, %v2472
      %v2498 = vpack.c.b16 %v2475, %v2474
      %v2499 = vpack.c.b16 %v2477, %v2476
      %v2500 = vpack.c.b16 %v2479, %v2478
      %v2501 = vpack.c.b16 %v2481, %v2480
      %v2502 = vpack.c.b16 %v2483, %v2482
      %v2503 = vpack.c.b16 %v2485, %v2484
      %v2504 = vpack.c.b16 %v2487, %v2486
      %v2505 = vpack.c.b16 %v2489, %v2488
      %2522 = vmatpush.bf16.msra.mxu0 %v2497
      %2523 = vmatpush.bf16.msra.mxu0 %v2496
      %2524 = vmatpush.bf16.msra.mxu0 %v2495
      %2525 = vmatpush.bf16.msra.mxu0 %v2494
      %2526 = vmatpush.bf16.msra.mxu0 %v2493
      %2527 = vmatpush.bf16.msra.mxu0 %v2492
      %2528 = vmatpush.bf16.msra.mxu0 %v2491
      %2529 = vmatpush.bf16.msra.mxu0 %v2490
      %2530 = vmatmul.bf16.gmra.mxu0 %v2378
      %v2531 = vpop.f32.mrf.mxu0
      %v2532 = vadd.f32 0.0, %v2531
      %v2533 = vpop.f32.mrf.mxu0
      %v2534 = vadd.f32 0.0, %v2533
      %2535 = vmatmul.bf16.gmra.mxu0 %v2380
      %v2536 = vpop.f32.mrf.mxu0
      %v2537 = vpop.f32.mrf.mxu0
      %v2538 = vadd.f32 0.0, %v2537
      %2539 = vmatmul.bf16.gmra.mxu0 %v2382
      %v2540 = vpop.f32.mrf.mxu0
      %v2541 = vadd.f32 0.0, %v2540
      %v2542 = vpop.f32.mrf.mxu0
      %2543 = vmatmul.bf16.gmra.mxu0 %v2384
      %v2544 = vpop.f32.mrf.mxu0
      %v2545 = vadd.f32 0.0, %v2544
      %v2546 = vpop.f32.mrf.mxu0
      %v2547 = vadd.f32 0.0, %v2546
      %2548 = vmatmul.bf16.gmra.mxu0 %v2386
      %v2549 = vpop.f32.mrf.mxu0
      %v2550 = vpop.f32.mrf.mxu0
      %v2551 = vadd.f32 0.0, %v2550
      %2552 = vmatmul.bf16.gmra.mxu0 %v2388
      %v2553 = vpop.f32.mrf.mxu0
      %v2554 = vadd.f32 0.0, %v2553
      %v2555 = vpop.f32.mrf.mxu0
      %2556 = vmatmul.bf16.gmra.mxu0 %v2390
      %v2557 = vpop.f32.mrf.mxu0
      %v2558 = vadd.f32 0.0, %v2557
      %v2559 = vpop.f32.mrf.mxu0
      %v2560 = vadd.f32 0.0, %v2559
      %2561 = vmatmul.bf16.gmra.mxu0 %v2392
      %v2562 = vpop.f32.mrf.mxu0
      %v2563 = vpop.f32.mrf.mxu0
      %v2564 = vadd.f32 0.0, %v2563
      %2565 = vmatmul.bf16.gmra.mxu0 %v2394
      %v2566 = vpop.f32.mrf.mxu0
      %v2567 = vadd.f32 0.0, %v2566
      %v2568 = vpop.f32.mrf.mxu0
      %2569 = vmatmul.bf16.gmra.mxu0 %v2396
      %v2570 = vpop.f32.mrf.mxu0
      %v2571 = vadd.f32 0.0, %v2570
      %v2572 = vpop.f32.mrf.mxu0
      %v2573 = vadd.f32 0.0, %v2572
      %2574 = vmatmul.bf16.gmra.mxu0 %v2398
      %v2575 = vpop.f32.mrf.mxu0
      %v2576 = vpop.f32.mrf.mxu0
      %v2577 = vadd.f32 0.0, %v2576
      %2578 = vmatmul.bf16.gmra.mxu0 %v2400
      %v2579 = vpop.f32.mrf.mxu0
      %v2580 = vadd.f32 0.0, %v2579
      %v2581 = vpop.f32.mrf.mxu0
      %2582 = vdwg.mxu0
      %2583 = vmatpush.bf16.msra.mxu0 %v2505
      %2584 = vmatpush.bf16.msra.mxu0 %v2504
      %2585 = vmatpush.bf16.msra.mxu0 %v2503
      %2586 = vmatpush.bf16.msra.mxu0 %v2502
      %2587 = vmatpush.bf16.msra.mxu0 %v2501
      %2588 = vmatpush.bf16.msra.mxu0 %v2500
      %2589 = vmatpush.bf16.msra.mxu0 %v2499
      %2590 = vmatpush.bf16.msra.mxu0 %v2498
      %2591 = vmatmul.bf16.gmra.mxu0 %v2379
      %v2592 = vpop.f32.mrf.mxu0
      %v2593 = vadd.f32 %v2532, %v2592
      %v2594 = vpop.f32.mrf.mxu0
      %v2595 = vadd.f32 %v2534, %v2594
      %2596 = vmatmul.bf16.gmra.mxu0 %v2381
      %v2597 = vpop.f32.mrf.mxu0
      %v2598 = vpop.f32.mrf.mxu0
      %v2599 = vadd.f32 %v2538, %v2598
      %2600 = vmatmul.bf16.gmra.mxu0 %v2383
      %v2601 = vpop.f32.mrf.mxu0
      %v2602 = vadd.f32 %v2541, %v2601
      %v2603 = vpop.f32.mrf.mxu0
      %2604 = vmatmul.bf16.gmra.mxu0 %v2385
      %v2605 = vpop.f32.mrf.mxu0
      %v2606 = vadd.f32 %v2545, %v2605
      %v2607 = vpop.f32.mrf.mxu0
      %v2608 = vadd.f32 %v2547, %v2607
      %2609 = vmatmul.bf16.gmra.mxu0 %v2387
      %v2610 = vpop.f32.mrf.mxu0
      %v2611 = vpop.f32.mrf.mxu0
      %v2612 = vadd.f32 %v2551, %v2611
      %2613 = vmatmul.bf16.gmra.mxu0 %v2389
      %v2614 = vpop.f32.mrf.mxu0
      %v2615 = vadd.f32 %v2554, %v2614
      %v2616 = vpop.f32.mrf.mxu0
      %2617 = vmatmul.bf16.gmra.mxu0 %v2391
      %v2618 = vpop.f32.mrf.mxu0
      %v2619 = vadd.f32 %v2558, %v2618
      %v2620 = vpop.f32.mrf.mxu0
      %v2621 = vadd.f32 %v2560, %v2620
      %2622 = vmatmul.bf16.gmra.mxu0 %v2393
      %v2623 = vpop.f32.mrf.mxu0
      %v2624 = vpop.f32.mrf.mxu0
      %v2625 = vadd.f32 %v2564, %v2624
      %2626 = vmatmul.bf16.gmra.mxu0 %v2395
      %v2627 = vpop.f32.mrf.mxu0
      %v2628 = vadd.f32 %v2567, %v2627
      %v2629 = vpop.f32.mrf.mxu0
      %2630 = vmatmul.bf16.gmra.mxu0 %v2397
      %v2631 = vpop.f32.mrf.mxu0
      %v2632 = vadd.f32 %v2571, %v2631
      %v2633 = vpop.f32.mrf.mxu0
      %v2634 = vadd.f32 %v2573, %v2633
      %2635 = vmatmul.bf16.gmra.mxu0 %v2399
      %v2636 = vpop.f32.mrf.mxu0
      %v2637 = vpop.f32.mrf.mxu0
      %v2638 = vadd.f32 %v2577, %v2637
      %2639 = vmatmul.bf16.gmra.mxu0 %v2401
      %v2640 = vpop.f32.mrf.mxu0
      %v2641 = vadd.f32 %v2580, %v2640
      %v2642 = vpop.f32.mrf.mxu0
      %2643 = vdwg.mxu0
      %v2644 = vadd.f32 %v2233, %v2593
      %v2645 = vadd.f32 %v2234, %v2595
      %v2646 = vadd.f32 %v2235, %v2599
      %v2647 = vadd.f32 %v2236, %v2602
      %v2648 = vadd.f32 %v2237, %v2606
      %v2649 = vadd.f32 %v2238, %v2608
      %v2650 = vadd.f32 %v2239, %v2612
      %v2651 = vadd.f32 %v2240, %v2615
      %v2652 = vadd.f32 %v2241, %v2619
      %v2653 = vadd.f32 %v2242, %v2621
      %v2654 = vadd.f32 %v2243, %v2625
      %v2655 = vadd.f32 %v2244, %v2628
      %v2656 = vadd.f32 %v2245, %v2632
      %v2657 = vadd.f32 %v2246, %v2634
      %v2658 = vadd.f32 %v2247, %v2638
      %v2659 = vadd.f32 %v2248, %v2641
      %v2660 = vld [vmem:[#allocation2 + $0x18] sm:$0xff]
      %v2661 = vld [vmem:[#allocation2 + $0x20] sm:$0xff]
      %v2662 = vld [vmem:[#allocation2 + $0x28] sm:$0xff]
      %v2663 = vld [vmem:[#allocation2 + $0x30] sm:$0xff]
      %v2664 = vld [vmem:[#allocation2 + $0x38] sm:$0xff]
      %v2665 = vld [vmem:[#allocation2 + $0x40] sm:$0xff]
      %v2666 = vld [vmem:[#allocation2 + $0x48] sm:$0xff]
      %v2667 = vld [vmem:[#allocation2 + $0x50] sm:$0xff]
      %v2668 = vld [vmem:[#allocation2 + $0x58] sm:$0xff]
      %v2669 = vld [vmem:[#allocation2 + $0x60] sm:$0xff]
      %v2670 = vld [vmem:[#allocation2 + $0x68] sm:$0xff]
      %v2671 = vld [vmem:[#allocation2 + $0x70] sm:$0xff]
      %v2672 = vld [vmem:[#allocation2 + $0x78] sm:$0xff]
      %v2673 = vld [vmem:[#allocation2 + $0x80] sm:$0xff]
      %v2674 = vld [vmem:[#allocation2 + $0x88] sm:$0xff]
      %v2675 = vld [vmem:[#allocation2 + $0x90] sm:$0xff]
      %v2676 = vld [vmem:[#allocation2 + $0x98] sm:$0xff]
      %v2677 = vld [vmem:[#allocation2 + $0xa0] sm:$0xff]
      %v2678 = vld [vmem:[#allocation2 + $0xa8] sm:$0xff]
      %v2679 = vld [vmem:[#allocation2 + $0xb0] sm:$0xff]
      %v2680 = vld [vmem:[#allocation2 + $0xb8] sm:$0xff]
      %v2681 = vld [vmem:[#allocation2 + $0xc0] sm:$0xff]
      %v2682 = vld [vmem:[#allocation2 + $0xc8] sm:$0xff]
      %v2683 = vld [vmem:[#allocation2 + $0xd0] sm:$0xff]
      %v2684 = vld [vmem:[#allocation2 + $0xd8] sm:$0x11]
      %s2685 = scalar_lea.vmem %s2, 512
      %v2686 = vld [vmem:[%s2685] sm:$0xf]
      %v2687 = vld [vmem:[%s2685 + $0x4] sm:$0xf]
      %v2688 = vld [vmem:[%s2685 + $0x8] sm:$0xf]
      %v2689 = vld [vmem:[%s2685 + $0xc] sm:$0xf]
      %v2690 = vld [vmem:[%s2685 + $0x10] sm:$0xf]
      %v2691 = vld [vmem:[%s2685 + $0x14] sm:$0xf]
      %v2692 = vld [vmem:[%s2685 + $0x18] sm:$0xf]
      %v2693 = vld [vmem:[%s2685 + $0x1c] sm:$0xf]
      %v2694 = vld [vmem:[%s2685 + $0x20] sm:$0xf]
      %v2695 = vld [vmem:[%s2685 + $0x24] sm:$0xf]
      %v2696 = vld [vmem:[%s2685 + $0x28] sm:$0xf]
      %v2697 = vld [vmem:[%s2685 + $0x2c] sm:$0xf]
      %v2698 = vld [vmem:[%s2685 + $0x30] sm:$0xf]
      %v2699 = vld [vmem:[%s2685 + $0x34] sm:$0xf]
      %v2700 = vld [vmem:[%s2685 + $0x38] sm:$0xf]
      %v2701 = vld [vmem:[%s2685 + $0x3c] sm:$0xf]
      %v2702 = vld [vmem:[%s2685 + $0x40] sm:$0xf]
      %v2703 = vld [vmem:[%s2685 + $0x44] sm:$0xf]
      %v2704 = vld [vmem:[%s2685 + $0x48] sm:$0xf]
      %v2705 = vld [vmem:[%s2685 + $0x4c] sm:$0xf]
      %v2706 = vld [vmem:[%s2685 + $0x50] sm:$0xf]
      %v2707 = vld [vmem:[%s2685 + $0x54] sm:$0xf]
      %v2708 = vld [vmem:[%s2685 + $0x58] sm:$0xf]
      %v2709 = vld [vmem:[%s2685 + $0x5c] sm:$0xf]
      %v2710 = vld [vmem:[%s2685 + $0x60] sm:$0xf]
      %v2711 = vld [vmem:[%s2685 + $0x64] sm:$0xf]
      %v2712 = vld [vmem:[%s2685 + $0x68] sm:$0xf]
      %v2713 = vld [vmem:[%s2685 + $0x6c] sm:$0xf]
      %v2714 = vld [vmem:[%s2685 + $0x70] sm:$0xf]
      %v2715 = vld [vmem:[%s2685 + $0x74] sm:$0xf]
      %v2716 = vld [vmem:[%s2685 + $0x78] sm:$0xf]
      %v2717 = vld [vmem:[%s2685 + $0x7c] sm:$0xf]
      %v2743 = vunpack.c.l.b16 %v2660
      %v2744 = vunpack.c.h.b16 %v2660
      %v2745 = vunpack.c.l.b16 %v2661
      %v2746 = vunpack.c.h.b16 %v2661
      %v2747 = vunpack.c.l.b16 %v2662
      %v2748 = vunpack.c.h.b16 %v2662
      %v2749 = vunpack.c.l.b16 %v2663
      %v2750 = vunpack.c.h.b16 %v2663
      %v2751 = vunpack.c.l.b16 %v2664
      %v2752 = vunpack.c.h.b16 %v2664
      %v2753 = vunpack.c.l.b16 %v2665
      %v2754 = vunpack.c.h.b16 %v2665
      %v2755 = vunpack.c.l.b16 %v2666
      %v2756 = vunpack.c.h.b16 %v2666
      %v2757 = vunpack.c.l.b16 %v2667
      %v2758 = vunpack.c.h.b16 %v2667
      %v2759 = vunpack.c.l.b16 %v2668
      %v2760 = vunpack.c.h.b16 %v2668
      %v2761 = vunpack.c.l.b16 %v2669
      %v2762 = vunpack.c.h.b16 %v2669
      %v2763 = vunpack.c.l.b16 %v2670
      %v2764 = vunpack.c.h.b16 %v2670
      %v2765 = vunpack.c.l.b16 %v2671
      %v2766 = vunpack.c.h.b16 %v2671
      %v2767 = vunpack.c.l.b16 %v2672
      %v2768 = vunpack.c.h.b16 %v2672
      %v2769 = vunpack.c.l.b16 %v2673
      %v2770 = vunpack.c.h.b16 %v2673
      %v2771 = vunpack.c.l.b16 %v2674
      %v2772 = vunpack.c.h.b16 %v2674
      %v2773 = vunpack.c.l.b16 %v2675
      %v2774 = vunpack.c.h.b16 %v2675
      %v2775 = vunpack.c.l.b16 %v2676
      %v2776 = vunpack.c.h.b16 %v2676
      %v2777 = vunpack.c.l.b16 %v2677
      %v2778 = vunpack.c.h.b16 %v2677
      %v2779 = vunpack.c.l.b16 %v2678
      %v2780 = vunpack.c.h.b16 %v2678
      %v2781 = vunpack.c.l.b16 %v2679
      %v2782 = vunpack.c.h.b16 %v2679
      %v2783 = vunpack.c.l.b16 %v2680
      %v2784 = vunpack.c.h.b16 %v2680
      %v2785 = vunpack.c.l.b16 %v2681
      %v2786 = vunpack.c.h.b16 %v2681
      %v2787 = vunpack.c.l.b16 %v2682
      %v2788 = vunpack.c.h.b16 %v2682
      %v2789 = vunpack.c.l.b16 %v2683
      %v2790 = vunpack.c.h.b16 %v2683
      %v2791 = vunpack.c.l.b16 %v2684
      %v2792 = vunpack.c.h.b16 %v2684
      %v2793 = vpack.c.b16 %v2745, %v2743
      %v2794 = vpack.c.b16 %v2746, %v2744
      %v2795 = vpack.c.b16 %v2749, %v2747
      %v2796 = vpack.c.b16 %v2750, %v2748
      %v2797 = vpack.c.b16 %v2753, %v2751
      %v2798 = vpack.c.b16 %v2754, %v2752
      %v2799 = vpack.c.b16 %v2757, %v2755
      %v2800 = vpack.c.b16 %v2758, %v2756
      %v2801 = vpack.c.b16 %v2761, %v2759
      %v2802 = vpack.c.b16 %v2762, %v2760
      %v2803 = vpack.c.b16 %v2765, %v2763
      %v2804 = vpack.c.b16 %v2766, %v2764
      %v2805 = vpack.c.b16 %v2769, %v2767
      %v2806 = vpack.c.b16 %v2770, %v2768
      %v2807 = vpack.c.b16 %v2773, %v2771
      %v2808 = vpack.c.b16 %v2774, %v2772
      %v2809 = vpack.c.b16 %v2777, %v2775
      %v2810 = vpack.c.b16 %v2778, %v2776
      %v2811 = vpack.c.b16 %v2781, %v2779
      %v2812 = vpack.c.b16 %v2782, %v2780
      %v2813 = vpack.c.b16 %v2785, %v2783
      %v2814 = vpack.c.b16 %v2786, %v2784
      %v2815 = vpack.c.b16 %v2789, %v2787
      %v2816 = vpack.c.b16 %v2790, %v2788
      %v2817 = vpack.c.b16 %v2791, %v2791
      %v2818 = vpack.c.b16 %v2792, %v2792
      %v2820 = vshrl.u32 %v2793, 16
      %v2822 = vshll.u32 %v2793, 16
      %v2824 = vrot.slane %v2822, 1
      %v2825 = vor.u32 %v2820, %v2824
      %v2827 = vshll.u32 %v2795, 16
      %v2829 = vrot.slane %v2827, 1
      %v2830 = vsel %vm1216, %v2825, %v2829
      %v2832 = vshrl.u32 %v2794, 16
      %v2834 = vshll.u32 %v2794, 16
      %v2836 = vrot.slane %v2834, 1
      %v2837 = vor.u32 %v2832, %v2836
      %v2839 = vshll.u32 %v2796, 16
      %v2841 = vrot.slane %v2839, 1
      %v2842 = vsel %vm1216, %v2837, %v2841
      %v2843 = vshrl.u32 %v2795, 16
      %v2845 = vor.u32 %v2843, %v2829
      %v2847 = vshll.u32 %v2797, 16
      %v2849 = vrot.slane %v2847, 1
      %v2850 = vsel %vm1216, %v2845, %v2849
      %v2851 = vshrl.u32 %v2796, 16
      %v2853 = vor.u32 %v2851, %v2841
      %v2855 = vshll.u32 %v2798, 16
      %v2857 = vrot.slane %v2855, 1
      %v2858 = vsel %vm1216, %v2853, %v2857
      %v2859 = vshrl.u32 %v2797, 16
      %v2861 = vor.u32 %v2859, %v2849
      %v2863 = vshll.u32 %v2799, 16
      %v2865 = vrot.slane %v2863, 1
      %v2866 = vsel %vm1216, %v2861, %v2865
      %v2867 = vshrl.u32 %v2798, 16
      %v2869 = vor.u32 %v2867, %v2857
      %v2871 = vshll.u32 %v2800, 16
      %v2873 = vrot.slane %v2871, 1
      %v2874 = vsel %vm1216, %v2869, %v2873
      %v2875 = vshrl.u32 %v2799, 16
      %v2877 = vor.u32 %v2875, %v2865
      %v2879 = vshll.u32 %v2801, 16
      %v2881 = vrot.slane %v2879, 1
      %v2882 = vsel %vm1216, %v2877, %v2881
      %v2883 = vshrl.u32 %v2800, 16
      %v2885 = vor.u32 %v2883, %v2873
      %v2887 = vshll.u32 %v2802, 16
      %v2889 = vrot.slane %v2887, 1
      %v2890 = vsel %vm1216, %v2885, %v2889
      %v2891 = vshrl.u32 %v2801, 16
      %v2893 = vor.u32 %v2891, %v2881
      %v2895 = vshll.u32 %v2803, 16
      %v2897 = vrot.slane %v2895, 1
      %v2898 = vsel %vm1216, %v2893, %v2897
      %v2899 = vshrl.u32 %v2802, 16
      %v2901 = vor.u32 %v2899, %v2889
      %v2903 = vshll.u32 %v2804, 16
      %v2905 = vrot.slane %v2903, 1
      %v2906 = vsel %vm1216, %v2901, %v2905
      %v2907 = vshrl.u32 %v2803, 16
      %v2909 = vor.u32 %v2907, %v2897
      %v2911 = vshll.u32 %v2805, 16
      %v2913 = vrot.slane %v2911, 1
      %v2914 = vsel %vm1216, %v2909, %v2913
      %v2915 = vshrl.u32 %v2804, 16
      %v2917 = vor.u32 %v2915, %v2905
      %v2919 = vshll.u32 %v2806, 16
      %v2921 = vrot.slane %v2919, 1
      %v2922 = vsel %vm1216, %v2917, %v2921
      %v2923 = vshrl.u32 %v2805, 16
      %v2925 = vor.u32 %v2923, %v2913
      %v2927 = vshll.u32 %v2807, 16
      %v2929 = vrot.slane %v2927, 1
      %v2930 = vsel %vm1216, %v2925, %v2929
      %v2931 = vshrl.u32 %v2806, 16
      %v2933 = vor.u32 %v2931, %v2921
      %v2935 = vshll.u32 %v2808, 16
      %v2937 = vrot.slane %v2935, 1
      %v2938 = vsel %vm1216, %v2933, %v2937
      %v2939 = vshrl.u32 %v2807, 16
      %v2941 = vor.u32 %v2939, %v2929
      %v2943 = vshll.u32 %v2809, 16
      %v2945 = vrot.slane %v2943, 1
      %v2946 = vsel %vm1216, %v2941, %v2945
      %v2947 = vshrl.u32 %v2808, 16
      %v2949 = vor.u32 %v2947, %v2937
      %v2951 = vshll.u32 %v2810, 16
      %v2953 = vrot.slane %v2951, 1
      %v2954 = vsel %vm1216, %v2949, %v2953
      %v2955 = vshrl.u32 %v2809, 16
      %v2957 = vor.u32 %v2955, %v2945
      %v2959 = vshll.u32 %v2811, 16
      %v2961 = vrot.slane %v2959, 1
      %v2962 = vsel %vm1216, %v2957, %v2961
      %v2963 = vshrl.u32 %v2810, 16
      %v2965 = vor.u32 %v2963, %v2953
      %v2967 = vshll.u32 %v2812, 16
      %v2969 = vrot.slane %v2967, 1
      %v2970 = vsel %vm1216, %v2965, %v2969
      %v2971 = vshrl.u32 %v2811, 16
      %v2973 = vor.u32 %v2971, %v2961
      %v2975 = vshll.u32 %v2813, 16
      %v2977 = vrot.slane %v2975, 1
      %v2978 = vsel %vm1216, %v2973, %v2977
      %v2979 = vshrl.u32 %v2812, 16
      %v2981 = vor.u32 %v2979, %v2969
      %v2983 = vshll.u32 %v2814, 16
      %v2985 = vrot.slane %v2983, 1
      %v2986 = vsel %vm1216, %v2981, %v2985
      %v2987 = vshrl.u32 %v2813, 16
      %v2989 = vor.u32 %v2987, %v2977
      %v2991 = vshll.u32 %v2815, 16
      %v2993 = vrot.slane %v2991, 1
      %v2994 = vsel %vm1216, %v2989, %v2993
      %v2995 = vshrl.u32 %v2814, 16
      %v2997 = vor.u32 %v2995, %v2985
      %v2999 = vshll.u32 %v2816, 16
      %v3001 = vrot.slane %v2999, 1
      %v3002 = vsel %vm1216, %v2997, %v3001
      %v3003 = vshrl.u32 %v2815, 16
      %v3005 = vor.u32 %v3003, %v2993
      %v3007 = vshll.u32 %v2817, 16
      %v3009 = vrot.slane %v3007, 1
      %v3010 = vsel %vm1216, %v3005, %v3009
      %v3011 = vshrl.u32 %v2816, 16
      %v3013 = vor.u32 %v3011, %v3001
      %v3015 = vshll.u32 %v2818, 16
      %v3017 = vrot.slane %v3015, 1
      %v3018 = vsel %vm1216, %v3013, %v3017
      %v3075 = vunpack.c.l.b16 %v2686
      %v3076 = vunpack.c.l.b16 %v2687
      %v3077 = vunpack.c.l.b16 %v2688
      %v3078 = vunpack.c.l.b16 %v2689
      %v3079 = vunpack.c.l.b16 %v2690
      %v3080 = vunpack.c.l.b16 %v2691
      %v3081 = vunpack.c.l.b16 %v2692
      %v3082 = vunpack.c.l.b16 %v2693
      %v3083 = vunpack.c.l.b16 %v2694
      %v3084 = vunpack.c.l.b16 %v2695
      %v3085 = vunpack.c.l.b16 %v2696
      %v3086 = vunpack.c.l.b16 %v2697
      %v3087 = vunpack.c.l.b16 %v2698
      %v3088 = vunpack.c.l.b16 %v2699
      %v3089 = vunpack.c.l.b16 %v2700
      %v3090 = vunpack.c.l.b16 %v2701
      %v3091 = vunpack.c.l.b16 %v2702
      %v3092 = vunpack.c.l.b16 %v2703
      %v3093 = vunpack.c.l.b16 %v2704
      %v3094 = vunpack.c.l.b16 %v2705
      %v3095 = vunpack.c.l.b16 %v2706
      %v3096 = vunpack.c.l.b16 %v2707
      %v3097 = vunpack.c.l.b16 %v2708
      %v3098 = vunpack.c.l.b16 %v2709
      %v3099 = vunpack.c.l.b16 %v2710
      %v3100 = vunpack.c.l.b16 %v2711
      %v3101 = vunpack.c.l.b16 %v2712
      %v3102 = vunpack.c.l.b16 %v2713
      %v3103 = vunpack.c.l.b16 %v2714
      %v3104 = vunpack.c.l.b16 %v2715
      %v3105 = vunpack.c.l.b16 %v2716
      %v3106 = vunpack.c.l.b16 %v2717
      %v3107 = vpack.c.b16 %v3076, %v3075
      %v3108 = vpack.c.b16 %v3078, %v3077
      %v3109 = vpack.c.b16 %v3080, %v3079
      %v3110 = vpack.c.b16 %v3082, %v3081
      %v3111 = vpack.c.b16 %v3084, %v3083
      %v3112 = vpack.c.b16 %v3086, %v3085
      %v3113 = vpack.c.b16 %v3088, %v3087
      %v3114 = vpack.c.b16 %v3090, %v3089
      %v3115 = vpack.c.b16 %v3092, %v3091
      %v3116 = vpack.c.b16 %v3094, %v3093
      %v3117 = vpack.c.b16 %v3096, %v3095
      %v3118 = vpack.c.b16 %v3098, %v3097
      %v3119 = vpack.c.b16 %v3100, %v3099
      %v3120 = vpack.c.b16 %v3102, %v3101
      %v3121 = vpack.c.b16 %v3104, %v3103
      %v3122 = vpack.c.b16 %v3106, %v3105
      %3139 = vmatpush.bf16.msra.mxu0 %v3114
      %3140 = vmatpush.bf16.msra.mxu0 %v3113
      %3141 = vmatpush.bf16.msra.mxu0 %v3112
      %3142 = vmatpush.bf16.msra.mxu0 %v3111
      %3143 = vmatpush.bf16.msra.mxu0 %v3110
      %3144 = vmatpush.bf16.msra.mxu0 %v3109
      %3145 = vmatpush.bf16.msra.mxu0 %v3108
      %3146 = vmatpush.bf16.msra.mxu0 %v3107
      %3147 = vmatmul.bf16.gmra.mxu0 %v2830
      %v3148 = vpop.f32.mrf.mxu0
      %v3149 = vadd.f32 0.0, %v3148
      %v3150 = vpop.f32.mrf.mxu0
      %v3151 = vadd.f32 0.0, %v3150
      %3152 = vmatmul.bf16.gmra.mxu0 %v2850
      %v3153 = vpop.f32.mrf.mxu0
      %v3154 = vpop.f32.mrf.mxu0
      %v3155 = vadd.f32 0.0, %v3154
      %3156 = vmatmul.bf16.gmra.mxu0 %v2866
      %v3157 = vpop.f32.mrf.mxu0
      %v3158 = vadd.f32 0.0, %v3157
      %v3159 = vpop.f32.mrf.mxu0
      %3160 = vmatmul.bf16.gmra.mxu0 %v2882
      %v3161 = vpop.f32.mrf.mxu0
      %v3162 = vadd.f32 0.0, %v3161
      %v3163 = vpop.f32.mrf.mxu0
      %v3164 = vadd.f32 0.0, %v3163
      %3165 = vmatmul.bf16.gmra.mxu0 %v2898
      %v3166 = vpop.f32.mrf.mxu0
      %v3167 = vpop.f32.mrf.mxu0
      %v3168 = vadd.f32 0.0, %v3167
      %3169 = vmatmul.bf16.gmra.mxu0 %v2914
      %v3170 = vpop.f32.mrf.mxu0
      %v3171 = vadd.f32 0.0, %v3170
      %v3172 = vpop.f32.mrf.mxu0
      %3173 = vmatmul.bf16.gmra.mxu0 %v2930
      %v3174 = vpop.f32.mrf.mxu0
      %v3175 = vadd.f32 0.0, %v3174
      %v3176 = vpop.f32.mrf.mxu0
      %v3177 = vadd.f32 0.0, %v3176
      %3178 = vmatmul.bf16.gmra.mxu0 %v2946
      %v3179 = vpop.f32.mrf.mxu0
      %v3180 = vpop.f32.mrf.mxu0
      %v3181 = vadd.f32 0.0, %v3180
      %3182 = vmatmul.bf16.gmra.mxu0 %v2962
      %v3183 = vpop.f32.mrf.mxu0
      %v3184 = vadd.f32 0.0, %v3183
      %v3185 = vpop.f32.mrf.mxu0
      %3186 = vmatmul.bf16.gmra.mxu0 %v2978
      %v3187 = vpop.f32.mrf.mxu0
      %v3188 = vadd.f32 0.0, %v3187
      %v3189 = vpop.f32.mrf.mxu0
      %v3190 = vadd.f32 0.0, %v3189
      %3191 = vmatmul.bf16.gmra.mxu0 %v2994
      %v3192 = vpop.f32.mrf.mxu0
      %v3193 = vpop.f32.mrf.mxu0
      %v3194 = vadd.f32 0.0, %v3193
      %3195 = vmatmul.bf16.gmra.mxu0 %v3010
      %v3196 = vpop.f32.mrf.mxu0
      %v3197 = vadd.f32 0.0, %v3196
      %v3198 = vpop.f32.mrf.mxu0
      %3199 = vdwg.mxu0
      %3200 = vmatpush.bf16.msra.mxu0 %v3122
      %3201 = vmatpush.bf16.msra.mxu0 %v3121
      %3202 = vmatpush.bf16.msra.mxu0 %v3120
      %3203 = vmatpush.bf16.msra.mxu0 %v3119
      %3204 = vmatpush.bf16.msra.mxu0 %v3118
      %3205 = vmatpush.bf16.msra.mxu0 %v3117
      %3206 = vmatpush.bf16.msra.mxu0 %v3116
      %3207 = vmatpush.bf16.msra.mxu0 %v3115
      %3208 = vmatmul.bf16.gmra.mxu0 %v2842
      %v3209 = vpop.f32.mrf.mxu0
      %v3210 = vadd.f32 %v3149, %v3209
      %v3211 = vpop.f32.mrf.mxu0
      %v3212 = vadd.f32 %v3151, %v3211
      %3213 = vmatmul.bf16.gmra.mxu0 %v2858
      %v3214 = vpop.f32.mrf.mxu0
      %v3215 = vpop.f32.mrf.mxu0
      %v3216 = vadd.f32 %v3155, %v3215
      %3217 = vmatmul.bf16.gmra.mxu0 %v2874
      %v3218 = vpop.f32.mrf.mxu0
      %v3219 = vadd.f32 %v3158, %v3218
      %v3220 = vpop.f32.mrf.mxu0
      %3221 = vmatmul.bf16.gmra.mxu0 %v2890
      %v3222 = vpop.f32.mrf.mxu0
      %v3223 = vadd.f32 %v3162, %v3222
      %v3224 = vpop.f32.mrf.mxu0
      %v3225 = vadd.f32 %v3164, %v3224
      %3226 = vmatmul.bf16.gmra.mxu0 %v2906
      %v3227 = vpop.f32.mrf.mxu0
      %v3228 = vpop.f32.mrf.mxu0
      %v3229 = vadd.f32 %v3168, %v3228
      %3230 = vmatmul.bf16.gmra.mxu0 %v2922
      %v3231 = vpop.f32.mrf.mxu0
      %v3232 = vadd.f32 %v3171, %v3231
      %v3233 = vpop.f32.mrf.mxu0
      %3234 = vmatmul.bf16.gmra.mxu0 %v2938
      %v3235 = vpop.f32.mrf.mxu0
      %v3236 = vadd.f32 %v3175, %v3235
      %v3237 = vpop.f32.mrf.mxu0
      %v3238 = vadd.f32 %v3177, %v3237
      %3239 = vmatmul.bf16.gmra.mxu0 %v2954
      %v3240 = vpop.f32.mrf.mxu0
      %v3241 = vpop.f32.mrf.mxu0
      %v3242 = vadd.f32 %v3181, %v3241
      %3243 = vmatmul.bf16.gmra.mxu0 %v2970
      %v3244 = vpop.f32.mrf.mxu0
      %v3245 = vadd.f32 %v3184, %v3244
      %v3246 = vpop.f32.mrf.mxu0
      %3247 = vmatmul.bf16.gmra.mxu0 %v2986
      %v3248 = vpop.f32.mrf.mxu0
      %v3249 = vadd.f32 %v3188, %v3248
      %v3250 = vpop.f32.mrf.mxu0
      %v3251 = vadd.f32 %v3190, %v3250
      %3252 = vmatmul.bf16.gmra.mxu0 %v3002
      %v3253 = vpop.f32.mrf.mxu0
      %v3254 = vpop.f32.mrf.mxu0
      %v3255 = vadd.f32 %v3194, %v3254
      %3256 = vmatmul.bf16.gmra.mxu0 %v3018
      %v3257 = vpop.f32.mrf.mxu0
      %v3258 = vadd.f32 %v3197, %v3257
      %v3259 = vpop.f32.mrf.mxu0
      %3260 = vdwg.mxu0
      %v3261 = vadd.f32 %v2644, %v3210
      %v3262 = vadd.f32 %v2645, %v3212
      %v3263 = vadd.f32 %v2646, %v3216
      %v3264 = vadd.f32 %v2647, %v3219
      %v3265 = vadd.f32 %v2648, %v3223
      %v3266 = vadd.f32 %v2649, %v3225
      %v3267 = vadd.f32 %v2650, %v3229
      %v3268 = vadd.f32 %v2651, %v3232
      %v3269 = vadd.f32 %v2652, %v3236
      %v3270 = vadd.f32 %v2653, %v3238
      %v3271 = vadd.f32 %v2654, %v3242
      %v3272 = vadd.f32 %v2655, %v3245
      %v3273 = vadd.f32 %v2656, %v3249
      %v3274 = vadd.f32 %v2657, %v3251
      %v3275 = vadd.f32 %v2658, %v3255
      %v3276 = vadd.f32 %v2659, %v3258
      %v3277 = vld [vmem:[#allocation2 + $0x18] sm:$0xee]
      %s3278 = scalar_lea.vmem %s2, 640
      %v3279 = vld [vmem:[%s3278] sm:$0xf]
      %v3280 = vld [vmem:[%s3278 + $0x4] sm:$0xf]
      %v3281 = vld [vmem:[%s3278 + $0x8] sm:$0xf]
      %v3282 = vld [vmem:[%s3278 + $0xc] sm:$0xf]
      %v3283 = vld [vmem:[%s3278 + $0x10] sm:$0xf]
      %v3284 = vld [vmem:[%s3278 + $0x14] sm:$0xf]
      %v3285 = vld [vmem:[%s3278 + $0x18] sm:$0xf]
      %v3286 = vld [vmem:[%s3278 + $0x1c] sm:$0xf]
      %v3287 = vld [vmem:[%s3278 + $0x20] sm:$0xf]
      %v3288 = vld [vmem:[%s3278 + $0x24] sm:$0xf]
      %v3289 = vld [vmem:[%s3278 + $0x28] sm:$0xf]
      %v3290 = vld [vmem:[%s3278 + $0x2c] sm:$0xf]
      %v3291 = vld [vmem:[%s3278 + $0x30] sm:$0xf]
      %v3292 = vld [vmem:[%s3278 + $0x34] sm:$0xf]
      %v3293 = vld [vmem:[%s3278 + $0x38] sm:$0xf]
      %v3294 = vld [vmem:[%s3278 + $0x3c] sm:$0xf]
      %v3295 = vld [vmem:[%s3278 + $0x40] sm:$0xf]
      %v3296 = vld [vmem:[%s3278 + $0x44] sm:$0xf]
      %v3297 = vld [vmem:[%s3278 + $0x48] sm:$0xf]
      %v3298 = vld [vmem:[%s3278 + $0x4c] sm:$0xf]
      %v3299 = vld [vmem:[%s3278 + $0x50] sm:$0xf]
      %v3300 = vld [vmem:[%s3278 + $0x54] sm:$0xf]
      %v3301 = vld [vmem:[%s3278 + $0x58] sm:$0xf]
      %v3302 = vld [vmem:[%s3278 + $0x5c] sm:$0xf]
      %v3303 = vld [vmem:[%s3278 + $0x60] sm:$0xf]
      %v3304 = vld [vmem:[%s3278 + $0x64] sm:$0xf]
      %v3305 = vld [vmem:[%s3278 + $0x68] sm:$0xf]
      %v3306 = vld [vmem:[%s3278 + $0x6c] sm:$0xf]
      %v3307 = vld [vmem:[%s3278 + $0x70] sm:$0xf]
      %v3308 = vld [vmem:[%s3278 + $0x74] sm:$0xf]
      %v3309 = vld [vmem:[%s3278 + $0x78] sm:$0xf]
      %v3310 = vld [vmem:[%s3278 + $0x7c] sm:$0xf]
      %v3312 = vunpack.c.l.b16 %v3277
      %v3313 = vunpack.c.h.b16 %v3277
      %v3314 = vpack.c.b16 %v2745, %v3312
      %v3315 = vpack.c.b16 %v2746, %v3313
      %v3316 = vrot.slane %v3314, 1
      %v3317 = vrot.slane %v2795, 1
      %v3318 = vsel %vm1940, %v3316, %v3317
      %v3319 = vrot.slane %v3315, 1
      %v3320 = vrot.slane %v2796, 1
      %v3321 = vsel %vm1940, %v3319, %v3320
      %v3322 = vrot.slane %v2797, 1
      %v3323 = vsel %vm1940, %v3317, %v3322
      %v3324 = vrot.slane %v2798, 1
      %v3325 = vsel %vm1940, %v3320, %v3324
      %v3326 = vrot.slane %v2799, 1
      %v3327 = vsel %vm1940, %v3322, %v3326
      %v3328 = vrot.slane %v2800, 1
      %v3329 = vsel %vm1940, %v3324, %v3328
      %v3330 = vrot.slane %v2801, 1
      %v3331 = vsel %vm1940, %v3326, %v3330
      %v3332 = vrot.slane %v2802, 1
      %v3333 = vsel %vm1940, %v3328, %v3332
      %v3334 = vrot.slane %v2803, 1
      %v3335 = vsel %vm1940, %v3330, %v3334
      %v3336 = vrot.slane %v2804, 1
      %v3337 = vsel %vm1940, %v3332, %v3336
      %v3338 = vrot.slane %v2805, 1
      %v3339 = vsel %vm1940, %v3334, %v3338
      %v3340 = vrot.slane %v2806, 1
      %v3341 = vsel %vm1940, %v3336, %v3340
      %v3342 = vrot.slane %v2807, 1
      %v3343 = vsel %vm1940, %v3338, %v3342
      %v3344 = vrot.slane %v2808, 1
      %v3345 = vsel %vm1940, %v3340, %v3344
      %v3346 = vrot.slane %v2809, 1
      %v3347 = vsel %vm1940, %v3342, %v3346
      %v3348 = vrot.slane %v2810, 1
      %v3349 = vsel %vm1940, %v3344, %v3348
      %v3350 = vrot.slane %v2811, 1
      %v3351 = vsel %vm1940, %v3346, %v3350
      %v3352 = vrot.slane %v2812, 1
      %v3353 = vsel %vm1940, %v3348, %v3352
      %v3354 = vrot.slane %v2813, 1
      %v3355 = vsel %vm1940, %v3350, %v3354
      %v3356 = vrot.slane %v2814, 1
      %v3357 = vsel %vm1940, %v3352, %v3356
      %v3358 = vrot.slane %v2815, 1
      %v3359 = vsel %vm1940, %v3354, %v3358
      %v3360 = vrot.slane %v2816, 1
      %v3361 = vsel %vm1940, %v3356, %v3360
      %v3362 = vrot.slane %v2817, 1
      %v3363 = vsel %vm1940, %v3358, %v3362
      %v3364 = vrot.slane %v2818, 1
      %v3365 = vsel %vm1940, %v3360, %v3364
      %v3422 = vunpack.c.l.b16 %v3279
      %v3423 = vunpack.c.l.b16 %v3280
      %v3424 = vunpack.c.l.b16 %v3281
      %v3425 = vunpack.c.l.b16 %v3282
      %v3426 = vunpack.c.l.b16 %v3283
      %v3427 = vunpack.c.l.b16 %v3284
      %v3428 = vunpack.c.l.b16 %v3285
      %v3429 = vunpack.c.l.b16 %v3286
      %v3430 = vunpack.c.l.b16 %v3287
      %v3431 = vunpack.c.l.b16 %v3288
      %v3432 = vunpack.c.l.b16 %v3289
      %v3433 = vunpack.c.l.b16 %v3290
      %v3434 = vunpack.c.l.b16 %v3291
      %v3435 = vunpack.c.l.b16 %v3292
      %v3436 = vunpack.c.l.b16 %v3293
      %v3437 = vunpack.c.l.b16 %v3294
      %v3438 = vunpack.c.l.b16 %v3295
      %v3439 = vunpack.c.l.b16 %v3296
      %v3440 = vunpack.c.l.b16 %v3297
      %v3441 = vunpack.c.l.b16 %v3298
      %v3442 = vunpack.c.l.b16 %v3299
      %v3443 = vunpack.c.l.b16 %v3300
      %v3444 = vunpack.c.l.b16 %v3301
      %v3445 = vunpack.c.l.b16 %v3302
      %v3446 = vunpack.c.l.b16 %v3303
      %v3447 = vunpack.c.l.b16 %v3304
      %v3448 = vunpack.c.l.b16 %v3305
      %v3449 = vunpack.c.l.b16 %v3306
      %v3450 = vunpack.c.l.b16 %v3307
      %v3451 = vunpack.c.l.b16 %v3308
      %v3452 = vunpack.c.l.b16 %v3309
      %v3453 = vunpack.c.l.b16 %v3310
      %v3454 = vpack.c.b16 %v3423, %v3422
      %v3455 = vpack.c.b16 %v3425, %v3424
      %v3456 = vpack.c.b16 %v3427, %v3426
      %v3457 = vpack.c.b16 %v3429, %v3428
      %v3458 = vpack.c.b16 %v3431, %v3430
      %v3459 = vpack.c.b16 %v3433, %v3432
      %v3460 = vpack.c.b16 %v3435, %v3434
      %v3461 = vpack.c.b16 %v3437, %v3436
      %v3462 = vpack.c.b16 %v3439, %v3438
      %v3463 = vpack.c.b16 %v3441, %v3440
      %v3464 = vpack.c.b16 %v3443, %v3442
      %v3465 = vpack.c.b16 %v3445, %v3444
      %v3466 = vpack.c.b16 %v3447, %v3446
      %v3467 = vpack.c.b16 %v3449, %v3448
      %v3468 = vpack.c.b16 %v3451, %v3450
      %v3469 = vpack.c.b16 %v3453, %v3452
      %3486 = vmatpush.bf16.msra.mxu0 %v3461
      %3487 = vmatpush.bf16.msra.mxu0 %v3460
      %3488 = vmatpush.bf16.msra.mxu0 %v3459
      %3489 = vmatpush.bf16.msra.mxu0 %v3458
      %3490 = vmatpush.bf16.msra.mxu0 %v3457
      %3491 = vmatpush.bf16.msra.mxu0 %v3456
      %3492 = vmatpush.bf16.msra.mxu0 %v3455
      %3493 = vmatpush.bf16.msra.mxu0 %v3454
      %3494 = vmatmul.bf16.gmra.mxu0 %v3318
      %v3495 = vpop.f32.mrf.mxu0
      %v3496 = vadd.f32 0.0, %v3495
      %v3497 = vpop.f32.mrf.mxu0
      %v3498 = vadd.f32 0.0, %v3497
      %3499 = vmatmul.bf16.gmra.mxu0 %v3323
      %v3500 = vpop.f32.mrf.mxu0
      %v3501 = vpop.f32.mrf.mxu0
      %v3502 = vadd.f32 0.0, %v3501
      %3503 = vmatmul.bf16.gmra.mxu0 %v3327
      %v3504 = vpop.f32.mrf.mxu0
      %v3505 = vadd.f32 0.0, %v3504
      %v3506 = vpop.f32.mrf.mxu0
      %3507 = vmatmul.bf16.gmra.mxu0 %v3331
      %v3508 = vpop.f32.mrf.mxu0
      %v3509 = vadd.f32 0.0, %v3508
      %v3510 = vpop.f32.mrf.mxu0
      %v3511 = vadd.f32 0.0, %v3510
      %3512 = vmatmul.bf16.gmra.mxu0 %v3335
      %v3513 = vpop.f32.mrf.mxu0
      %v3514 = vpop.f32.mrf.mxu0
      %v3515 = vadd.f32 0.0, %v3514
      %3516 = vmatmul.bf16.gmra.mxu0 %v3339
      %v3517 = vpop.f32.mrf.mxu0
      %v3518 = vadd.f32 0.0, %v3517
      %v3519 = vpop.f32.mrf.mxu0
      %3520 = vmatmul.bf16.gmra.mxu0 %v3343
      %v3521 = vpop.f32.mrf.mxu0
      %v3522 = vadd.f32 0.0, %v3521
      %v3523 = vpop.f32.mrf.mxu0
      %v3524 = vadd.f32 0.0, %v3523
      %3525 = vmatmul.bf16.gmra.mxu0 %v3347
      %v3526 = vpop.f32.mrf.mxu0
      %v3527 = vpop.f32.mrf.mxu0
      %v3528 = vadd.f32 0.0, %v3527
      %3529 = vmatmul.bf16.gmra.mxu0 %v3351
      %v3530 = vpop.f32.mrf.mxu0
      %v3531 = vadd.f32 0.0, %v3530
      %v3532 = vpop.f32.mrf.mxu0
      %3533 = vmatmul.bf16.gmra.mxu0 %v3355
      %v3534 = vpop.f32.mrf.mxu0
      %v3535 = vadd.f32 0.0, %v3534
      %v3536 = vpop.f32.mrf.mxu0
      %v3537 = vadd.f32 0.0, %v3536
      %3538 = vmatmul.bf16.gmra.mxu0 %v3359
      %v3539 = vpop.f32.mrf.mxu0
      %v3540 = vpop.f32.mrf.mxu0
      %v3541 = vadd.f32 0.0, %v3540
      %3542 = vmatmul.bf16.gmra.mxu0 %v3363
      %v3543 = vpop.f32.mrf.mxu0
      %v3544 = vadd.f32 0.0, %v3543
      %v3545 = vpop.f32.mrf.mxu0
      %3546 = vdwg.mxu0
      %3547 = vmatpush.bf16.msra.mxu0 %v3469
      %3548 = vmatpush.bf16.msra.mxu0 %v3468
      %3549 = vmatpush.bf16.msra.mxu0 %v3467
      %3550 = vmatpush.bf16.msra.mxu0 %v3466
      %3551 = vmatpush.bf16.msra.mxu0 %v3465
      %3552 = vmatpush.bf16.msra.mxu0 %v3464
      %3553 = vmatpush.bf16.msra.mxu0 %v3463
      %3554 = vmatpush.bf16.msra.mxu0 %v3462
      %3555 = vmatmul.bf16.gmra.mxu0 %v3321
      %v3556 = vpop.f32.mrf.mxu0
      %v3557 = vadd.f32 %v3496, %v3556
      %v3558 = vpop.f32.mrf.mxu0
      %v3559 = vadd.f32 %v3498, %v3558
      %3560 = vmatmul.bf16.gmra.mxu0 %v3325
      %v3561 = vpop.f32.mrf.mxu0
      %v3562 = vpop.f32.mrf.mxu0
      %v3563 = vadd.f32 %v3502, %v3562
      %3564 = vmatmul.bf16.gmra.mxu0 %v3329
      %v3565 = vpop.f32.mrf.mxu0
      %v3566 = vadd.f32 %v3505, %v3565
      %v3567 = vpop.f32.mrf.mxu0
      %3568 = vmatmul.bf16.gmra.mxu0 %v3333
      %v3569 = vpop.f32.mrf.mxu0
      %v3570 = vadd.f32 %v3509, %v3569
      %v3571 = vpop.f32.mrf.mxu0
      %v3572 = vadd.f32 %v3511, %v3571
      %3573 = vmatmul.bf16.gmra.mxu0 %v3337
      %v3574 = vpop.f32.mrf.mxu0
      %v3575 = vpop.f32.mrf.mxu0
      %v3576 = vadd.f32 %v3515, %v3575
      %3577 = vmatmul.bf16.gmra.mxu0 %v3341
      %v3578 = vpop.f32.mrf.mxu0
      %v3579 = vadd.f32 %v3518, %v3578
      %v3580 = vpop.f32.mrf.mxu0
      %3581 = vmatmul.bf16.gmra.mxu0 %v3345
      %v3582 = vpop.f32.mrf.mxu0
      %v3583 = vadd.f32 %v3522, %v3582
      %v3584 = vpop.f32.mrf.mxu0
      %v3585 = vadd.f32 %v3524, %v3584
      %3586 = vmatmul.bf16.gmra.mxu0 %v3349
      %v3587 = vpop.f32.mrf.mxu0
      %v3588 = vpop.f32.mrf.mxu0
      %v3589 = vadd.f32 %v3528, %v3588
      %3590 = vmatmul.bf16.gmra.mxu0 %v3353
      %v3591 = vpop.f32.mrf.mxu0
      %v3592 = vadd.f32 %v3531, %v3591
      %v3593 = vpop.f32.mrf.mxu0
      %3594 = vmatmul.bf16.gmra.mxu0 %v3357
      %v3595 = vpop.f32.mrf.mxu0
      %v3596 = vadd.f32 %v3535, %v3595
      %v3597 = vpop.f32.mrf.mxu0
      %v3598 = vadd.f32 %v3537, %v3597
      %3599 = vmatmul.bf16.gmra.mxu0 %v3361
      %v3600 = vpop.f32.mrf.mxu0
      %v3601 = vpop.f32.mrf.mxu0
      %v3602 = vadd.f32 %v3541, %v3601
      %3603 = vmatmul.bf16.gmra.mxu0 %v3365
      %v3604 = vpop.f32.mrf.mxu0
      %v3605 = vadd.f32 %v3544, %v3604
      %v3606 = vpop.f32.mrf.mxu0
      %3607 = vdwg.mxu0
      %v3608 = vadd.f32 %v3261, %v3557
      %v3609 = vadd.f32 %v3262, %v3559
      %v3610 = vadd.f32 %v3263, %v3563
      %v3611 = vadd.f32 %v3264, %v3566
      %v3612 = vadd.f32 %v3265, %v3570
      %v3613 = vadd.f32 %v3266, %v3572
      %v3614 = vadd.f32 %v3267, %v3576
      %v3615 = vadd.f32 %v3268, %v3579
      %v3616 = vadd.f32 %v3269, %v3583
      %v3617 = vadd.f32 %v3270, %v3585
      %v3618 = vadd.f32 %v3271, %v3589
      %v3619 = vadd.f32 %v3272, %v3592
      %v3620 = vadd.f32 %v3273, %v3596
      %v3621 = vadd.f32 %v3274, %v3598
      %v3622 = vadd.f32 %v3275, %v3602
      %v3623 = vadd.f32 %v3276, %v3605
      %v3624 = vld [vmem:[#allocation2 + $0x30] sm:$0xff]
      %v3625 = vld [vmem:[#allocation2 + $0x38] sm:$0xff]
      %v3626 = vld [vmem:[#allocation2 + $0x40] sm:$0xff]
      %v3627 = vld [vmem:[#allocation2 + $0x48] sm:$0xff]
      %v3628 = vld [vmem:[#allocation2 + $0x50] sm:$0xff]
      %v3629 = vld [vmem:[#allocation2 + $0x58] sm:$0xff]
      %v3630 = vld [vmem:[#allocation2 + $0x60] sm:$0xff]
      %v3631 = vld [vmem:[#allocation2 + $0x68] sm:$0xff]
      %v3632 = vld [vmem:[#allocation2 + $0x70] sm:$0xff]
      %v3633 = vld [vmem:[#allocation2 + $0x78] sm:$0xff]
      %v3634 = vld [vmem:[#allocation2 + $0x80] sm:$0xff]
      %v3635 = vld [vmem:[#allocation2 + $0x88] sm:$0xff]
      %v3636 = vld [vmem:[#allocation2 + $0x90] sm:$0xff]
      %v3637 = vld [vmem:[#allocation2 + $0x98] sm:$0xff]
      %v3638 = vld [vmem:[#allocation2 + $0xa0] sm:$0xff]
      %v3639 = vld [vmem:[#allocation2 + $0xa8] sm:$0xff]
      %v3640 = vld [vmem:[#allocation2 + $0xb0] sm:$0xff]
      %v3641 = vld [vmem:[#allocation2 + $0xb8] sm:$0xff]
      %v3642 = vld [vmem:[#allocation2 + $0xc0] sm:$0xff]
      %v3643 = vld [vmem:[#allocation2 + $0xc8] sm:$0xff]
      %v3644 = vld [vmem:[#allocation2 + $0xd0] sm:$0xff]
      %v3645 = vld [vmem:[#allocation2 + $0xd8] sm:$0xff]
      %v3646 = vld [vmem:[#allocation2 + $0xe0] sm:$0xff]
      %v3647 = vld [vmem:[#allocation2 + $0xe8] sm:$0xff]
      %s3648 = scalar_lea.vmem %s2, 768
      %v3649 = vld [vmem:[%s3648] sm:$0xf]
      %v3650 = vld [vmem:[%s3648 + $0x4] sm:$0xf]
      %v3651 = vld [vmem:[%s3648 + $0x8] sm:$0xf]
      %v3652 = vld [vmem:[%s3648 + $0xc] sm:$0xf]
      %v3653 = vld [vmem:[%s3648 + $0x10] sm:$0xf]
      %v3654 = vld [vmem:[%s3648 + $0x14] sm:$0xf]
      %v3655 = vld [vmem:[%s3648 + $0x18] sm:$0xf]
      %v3656 = vld [vmem:[%s3648 + $0x1c] sm:$0xf]
      %v3657 = vld [vmem:[%s3648 + $0x20] sm:$0xf]
      %v3658 = vld [vmem:[%s3648 + $0x24] sm:$0xf]
      %v3659 = vld [vmem:[%s3648 + $0x28] sm:$0xf]
      %v3660 = vld [vmem:[%s3648 + $0x2c] sm:$0xf]
      %v3661 = vld [vmem:[%s3648 + $0x30] sm:$0xf]
      %v3662 = vld [vmem:[%s3648 + $0x34] sm:$0xf]
      %v3663 = vld [vmem:[%s3648 + $0x38] sm:$0xf]
      %v3664 = vld [vmem:[%s3648 + $0x3c] sm:$0xf]
      %v3665 = vld [vmem:[%s3648 + $0x40] sm:$0xf]
      %v3666 = vld [vmem:[%s3648 + $0x44] sm:$0xf]
      %v3667 = vld [vmem:[%s3648 + $0x48] sm:$0xf]
      %v3668 = vld [vmem:[%s3648 + $0x4c] sm:$0xf]
      %v3669 = vld [vmem:[%s3648 + $0x50] sm:$0xf]
      %v3670 = vld [vmem:[%s3648 + $0x54] sm:$0xf]
      %v3671 = vld [vmem:[%s3648 + $0x58] sm:$0xf]
      %v3672 = vld [vmem:[%s3648 + $0x5c] sm:$0xf]
      %v3673 = vld [vmem:[%s3648 + $0x60] sm:$0xf]
      %v3674 = vld [vmem:[%s3648 + $0x64] sm:$0xf]
      %v3675 = vld [vmem:[%s3648 + $0x68] sm:$0xf]
      %v3676 = vld [vmem:[%s3648 + $0x6c] sm:$0xf]
      %v3677 = vld [vmem:[%s3648 + $0x70] sm:$0xf]
      %v3678 = vld [vmem:[%s3648 + $0x74] sm:$0xf]
      %v3679 = vld [vmem:[%s3648 + $0x78] sm:$0xf]
      %v3680 = vld [vmem:[%s3648 + $0x7c] sm:$0xf]
      %v3705 = vunpack.c.l.b16 %v3624
      %v3706 = vunpack.c.h.b16 %v3624
      %v3707 = vunpack.c.l.b16 %v3625
      %v3708 = vunpack.c.h.b16 %v3625
      %v3709 = vunpack.c.l.b16 %v3626
      %v3710 = vunpack.c.h.b16 %v3626
      %v3711 = vunpack.c.l.b16 %v3627
      %v3712 = vunpack.c.h.b16 %v3627
      %v3713 = vunpack.c.l.b16 %v3628
      %v3714 = vunpack.c.h.b16 %v3628
      %v3715 = vunpack.c.l.b16 %v3629
      %v3716 = vunpack.c.h.b16 %v3629
      %v3717 = vunpack.c.l.b16 %v3630
      %v3718 = vunpack.c.h.b16 %v3630
      %v3719 = vunpack.c.l.b16 %v3631
      %v3720 = vunpack.c.h.b16 %v3631
      %v3721 = vunpack.c.l.b16 %v3632
      %v3722 = vunpack.c.h.b16 %v3632
      %v3723 = vunpack.c.l.b16 %v3633
      %v3724 = vunpack.c.h.b16 %v3633
      %v3725 = vunpack.c.l.b16 %v3634
      %v3726 = vunpack.c.h.b16 %v3634
      %v3727 = vunpack.c.l.b16 %v3635
      %v3728 = vunpack.c.h.b16 %v3635
      %v3729 = vunpack.c.l.b16 %v3636
      %v3730 = vunpack.c.h.b16 %v3636
      %v3731 = vunpack.c.l.b16 %v3637
      %v3732 = vunpack.c.h.b16 %v3637
      %v3733 = vunpack.c.l.b16 %v3638
      %v3734 = vunpack.c.h.b16 %v3638
      %v3735 = vunpack.c.l.b16 %v3639
      %v3736 = vunpack.c.h.b16 %v3639
      %v3737 = vunpack.c.l.b16 %v3640
      %v3738 = vunpack.c.h.b16 %v3640
      %v3739 = vunpack.c.l.b16 %v3641
      %v3740 = vunpack.c.h.b16 %v3641
      %v3741 = vunpack.c.l.b16 %v3642
      %v3742 = vunpack.c.h.b16 %v3642
      %v3743 = vunpack.c.l.b16 %v3643
      %v3744 = vunpack.c.h.b16 %v3643
      %v3745 = vunpack.c.l.b16 %v3644
      %v3746 = vunpack.c.h.b16 %v3644
      %v3747 = vunpack.c.l.b16 %v3645
      %v3748 = vunpack.c.h.b16 %v3645
      %v3749 = vunpack.c.l.b16 %v3646
      %v3750 = vunpack.c.h.b16 %v3646
      %v3751 = vunpack.c.l.b16 %v3647
      %v3752 = vunpack.c.h.b16 %v3647
      %v3753 = vpack.c.b16 %v3707, %v3705
      %v3754 = vpack.c.b16 %v3708, %v3706
      %v3755 = vpack.c.b16 %v3711, %v3709
      %v3756 = vpack.c.b16 %v3712, %v3710
      %v3757 = vpack.c.b16 %v3715, %v3713
      %v3758 = vpack.c.b16 %v3716, %v3714
      %v3759 = vpack.c.b16 %v3719, %v3717
      %v3760 = vpack.c.b16 %v3720, %v3718
      %v3761 = vpack.c.b16 %v3723, %v3721
      %v3762 = vpack.c.b16 %v3724, %v3722
      %v3763 = vpack.c.b16 %v3727, %v3725
      %v3764 = vpack.c.b16 %v3728, %v3726
      %v3765 = vpack.c.b16 %v3731, %v3729
      %v3766 = vpack.c.b16 %v3732, %v3730
      %v3767 = vpack.c.b16 %v3735, %v3733
      %v3768 = vpack.c.b16 %v3736, %v3734
      %v3769 = vpack.c.b16 %v3739, %v3737
      %v3770 = vpack.c.b16 %v3740, %v3738
      %v3771 = vpack.c.b16 %v3743, %v3741
      %v3772 = vpack.c.b16 %v3744, %v3742
      %v3773 = vpack.c.b16 %v3747, %v3745
      %v3774 = vpack.c.b16 %v3748, %v3746
      %v3775 = vpack.c.b16 %v3751, %v3749
      %v3776 = vpack.c.b16 %v3752, %v3750
      %v3833 = vunpack.c.l.b16 %v3649
      %v3834 = vunpack.c.l.b16 %v3650
      %v3835 = vunpack.c.l.b16 %v3651
      %v3836 = vunpack.c.l.b16 %v3652
      %v3837 = vunpack.c.l.b16 %v3653
      %v3838 = vunpack.c.l.b16 %v3654
      %v3839 = vunpack.c.l.b16 %v3655
      %v3840 = vunpack.c.l.b16 %v3656
      %v3841 = vunpack.c.l.b16 %v3657
      %v3842 = vunpack.c.l.b16 %v3658
      %v3843 = vunpack.c.l.b16 %v3659
      %v3844 = vunpack.c.l.b16 %v3660
      %v3845 = vunpack.c.l.b16 %v3661
      %v3846 = vunpack.c.l.b16 %v3662
      %v3847 = vunpack.c.l.b16 %v3663
      %v3848 = vunpack.c.l.b16 %v3664
      %v3849 = vunpack.c.l.b16 %v3665
      %v3850 = vunpack.c.l.b16 %v3666
      %v3851 = vunpack.c.l.b16 %v3667
      %v3852 = vunpack.c.l.b16 %v3668
      %v3853 = vunpack.c.l.b16 %v3669
      %v3854 = vunpack.c.l.b16 %v3670
      %v3855 = vunpack.c.l.b16 %v3671
      %v3856 = vunpack.c.l.b16 %v3672
      %v3857 = vunpack.c.l.b16 %v3673
      %v3858 = vunpack.c.l.b16 %v3674
      %v3859 = vunpack.c.l.b16 %v3675
      %v3860 = vunpack.c.l.b16 %v3676
      %v3861 = vunpack.c.l.b16 %v3677
      %v3862 = vunpack.c.l.b16 %v3678
      %v3863 = vunpack.c.l.b16 %v3679
      %v3864 = vunpack.c.l.b16 %v3680
      %v3865 = vpack.c.b16 %v3834, %v3833
      %v3866 = vpack.c.b16 %v3836, %v3835
      %v3867 = vpack.c.b16 %v3838, %v3837
      %v3868 = vpack.c.b16 %v3840, %v3839
      %v3869 = vpack.c.b16 %v3842, %v3841
      %v3870 = vpack.c.b16 %v3844, %v3843
      %v3871 = vpack.c.b16 %v3846, %v3845
      %v3872 = vpack.c.b16 %v3848, %v3847
      %v3873 = vpack.c.b16 %v3850, %v3849
      %v3874 = vpack.c.b16 %v3852, %v3851
      %v3875 = vpack.c.b16 %v3854, %v3853
      %v3876 = vpack.c.b16 %v3856, %v3855
      %v3877 = vpack.c.b16 %v3858, %v3857
      %v3878 = vpack.c.b16 %v3860, %v3859
      %v3879 = vpack.c.b16 %v3862, %v3861
      %v3880 = vpack.c.b16 %v3864, %v3863
      %3897 = vmatpush.bf16.msra.mxu0 %v3872
      %3898 = vmatpush.bf16.msra.mxu0 %v3871
      %3899 = vmatpush.bf16.msra.mxu0 %v3870
      %3900 = vmatpush.bf16.msra.mxu0 %v3869
      %3901 = vmatpush.bf16.msra.mxu0 %v3868
      %3902 = vmatpush.bf16.msra.mxu0 %v3867
      %3903 = vmatpush.bf16.msra.mxu0 %v3866
      %3904 = vmatpush.bf16.msra.mxu0 %v3865
      %3905 = vmatmul.bf16.gmra.mxu0 %v3753
      %v3906 = vpop.f32.mrf.mxu0
      %v3907 = vadd.f32 0.0, %v3906
      %v3908 = vpop.f32.mrf.mxu0
      %v3909 = vadd.f32 0.0, %v3908
      %3910 = vmatmul.bf16.gmra.mxu0 %v3755
      %v3911 = vpop.f32.mrf.mxu0
      %v3912 = vpop.f32.mrf.mxu0
      %v3913 = vadd.f32 0.0, %v3912
      %3914 = vmatmul.bf16.gmra.mxu0 %v3757
      %v3915 = vpop.f32.mrf.mxu0
      %v3916 = vadd.f32 0.0, %v3915
      %v3917 = vpop.f32.mrf.mxu0
      %3918 = vmatmul.bf16.gmra.mxu0 %v3759
      %v3919 = vpop.f32.mrf.mxu0
      %v3920 = vadd.f32 0.0, %v3919
      %v3921 = vpop.f32.mrf.mxu0
      %v3922 = vadd.f32 0.0, %v3921
      %3923 = vmatmul.bf16.gmra.mxu0 %v3761
      %v3924 = vpop.f32.mrf.mxu0
      %v3925 = vpop.f32.mrf.mxu0
      %v3926 = vadd.f32 0.0, %v3925
      %3927 = vmatmul.bf16.gmra.mxu0 %v3763
      %v3928 = vpop.f32.mrf.mxu0
      %v3929 = vadd.f32 0.0, %v3928
      %v3930 = vpop.f32.mrf.mxu0
      %3931 = vmatmul.bf16.gmra.mxu0 %v3765
      %v3932 = vpop.f32.mrf.mxu0
      %v3933 = vadd.f32 0.0, %v3932
      %v3934 = vpop.f32.mrf.mxu0
      %v3935 = vadd.f32 0.0, %v3934
      %3936 = vmatmul.bf16.gmra.mxu0 %v3767
      %v3937 = vpop.f32.mrf.mxu0
      %v3938 = vpop.f32.mrf.mxu0
      %v3939 = vadd.f32 0.0, %v3938
      %3940 = vmatmul.bf16.gmra.mxu0 %v3769
      %v3941 = vpop.f32.mrf.mxu0
      %v3942 = vadd.f32 0.0, %v3941
      %v3943 = vpop.f32.mrf.mxu0
      %3944 = vmatmul.bf16.gmra.mxu0 %v3771
      %v3945 = vpop.f32.mrf.mxu0
      %v3946 = vadd.f32 0.0, %v3945
      %v3947 = vpop.f32.mrf.mxu0
      %v3948 = vadd.f32 0.0, %v3947
      %3949 = vmatmul.bf16.gmra.mxu0 %v3773
      %v3950 = vpop.f32.mrf.mxu0
      %v3951 = vpop.f32.mrf.mxu0
      %v3952 = vadd.f32 0.0, %v3951
      %3953 = vmatmul.bf16.gmra.mxu0 %v3775
      %v3954 = vpop.f32.mrf.mxu0
      %v3955 = vadd.f32 0.0, %v3954
      %v3956 = vpop.f32.mrf.mxu0
      %3957 = vdwg.mxu0
      %3958 = vmatpush.bf16.msra.mxu0 %v3880
      %3959 = vmatpush.bf16.msra.mxu0 %v3879
      %3960 = vmatpush.bf16.msra.mxu0 %v3878
      %3961 = vmatpush.bf16.msra.mxu0 %v3877
      %3962 = vmatpush.bf16.msra.mxu0 %v3876
      %3963 = vmatpush.bf16.msra.mxu0 %v3875
      %3964 = vmatpush.bf16.msra.mxu0 %v3874
      %3965 = vmatpush.bf16.msra.mxu0 %v3873
      %3966 = vmatmul.bf16.gmra.mxu0 %v3754
      %v3967 = vpop.f32.mrf.mxu0
      %v3968 = vadd.f32 %v3907, %v3967
      %v3969 = vpop.f32.mrf.mxu0
      %v3970 = vadd.f32 %v3909, %v3969
      %3971 = vmatmul.bf16.gmra.mxu0 %v3756
      %v3972 = vpop.f32.mrf.mxu0
      %v3973 = vpop.f32.mrf.mxu0
      %v3974 = vadd.f32 %v3913, %v3973
      %3975 = vmatmul.bf16.gmra.mxu0 %v3758
      %v3976 = vpop.f32.mrf.mxu0
      %v3977 = vadd.f32 %v3916, %v3976
      %v3978 = vpop.f32.mrf.mxu0
      %3979 = vmatmul.bf16.gmra.mxu0 %v3760
      %v3980 = vpop.f32.mrf.mxu0
      %v3981 = vadd.f32 %v3920, %v3980
      %v3982 = vpop.f32.mrf.mxu0
      %v3983 = vadd.f32 %v3922, %v3982
      %3984 = vmatmul.bf16.gmra.mxu0 %v3762
      %v3985 = vpop.f32.mrf.mxu0
      %v3986 = vpop.f32.mrf.mxu0
      %v3987 = vadd.f32 %v3926, %v3986
      %3988 = vmatmul.bf16.gmra.mxu0 %v3764
      %v3989 = vpop.f32.mrf.mxu0
      %v3990 = vadd.f32 %v3929, %v3989
      %v3991 = vpop.f32.mrf.mxu0
      %3992 = vmatmul.bf16.gmra.mxu0 %v3766
      %v3993 = vpop.f32.mrf.mxu0
      %v3994 = vadd.f32 %v3933, %v3993
      %v3995 = vpop.f32.mrf.mxu0
      %v3996 = vadd.f32 %v3935, %v3995
      %3997 = vmatmul.bf16.gmra.mxu0 %v3768
      %v3998 = vpop.f32.mrf.mxu0
      %v3999 = vpop.f32.mrf.mxu0
      %v4000 = vadd.f32 %v3939, %v3999
      %4001 = vmatmul.bf16.gmra.mxu0 %v3770
      %v4002 = vpop.f32.mrf.mxu0
      %v4003 = vadd.f32 %v3942, %v4002
      %v4004 = vpop.f32.mrf.mxu0
      %4005 = vmatmul.bf16.gmra.mxu0 %v3772
      %v4006 = vpop.f32.mrf.mxu0
      %v4007 = vadd.f32 %v3946, %v4006
      %v4008 = vpop.f32.mrf.mxu0
      %v4009 = vadd.f32 %v3948, %v4008
      %4010 = vmatmul.bf16.gmra.mxu0 %v3774
      %v4011 = vpop.f32.mrf.mxu0
      %v4012 = vpop.f32.mrf.mxu0
      %v4013 = vadd.f32 %v3952, %v4012
      %4014 = vmatmul.bf16.gmra.mxu0 %v3776
      %v4015 = vpop.f32.mrf.mxu0
      %v4016 = vadd.f32 %v3955, %v4015
      %v4017 = vpop.f32.mrf.mxu0
      %4018 = vdwg.mxu0
      %v4019 = vadd.f32 %v3608, %v3968
      %v4020 = vadd.f32 %v3609, %v3970
      %v4021 = vadd.f32 %v3610, %v3974
      %v4022 = vadd.f32 %v3611, %v3977
      %v4023 = vadd.f32 %v3612, %v3981
      %v4024 = vadd.f32 %v3613, %v3983
      %v4025 = vadd.f32 %v3614, %v3987
      %v4026 = vadd.f32 %v3615, %v3990
      %v4027 = vadd.f32 %v3616, %v3994
      %v4028 = vadd.f32 %v3617, %v3996
      %v4029 = vadd.f32 %v3618, %v4000
      %v4030 = vadd.f32 %v3619, %v4003
      %v4031 = vadd.f32 %v3620, %v4007
      %v4032 = vadd.f32 %v3621, %v4009
      %v4033 = vadd.f32 %v3622, %v4013
      %v4034 = vadd.f32 %v3623, %v4016
      %v4035 = vld [vmem:[#allocation2 + $0x30] sm:$0xff]
      %v4036 = vld [vmem:[#allocation2 + $0x38] sm:$0xff]
      %v4037 = vld [vmem:[#allocation2 + $0x40] sm:$0xff]
      %v4038 = vld [vmem:[#allocation2 + $0x48] sm:$0xff]
      %v4039 = vld [vmem:[#allocation2 + $0x50] sm:$0xff]
      %v4040 = vld [vmem:[#allocation2 + $0x58] sm:$0xff]
      %v4041 = vld [vmem:[#allocation2 + $0x60] sm:$0xff]
      %v4042 = vld [vmem:[#allocation2 + $0x68] sm:$0xff]
      %v4043 = vld [vmem:[#allocation2 + $0x70] sm:$0xff]
      %v4044 = vld [vmem:[#allocation2 + $0x78] sm:$0xff]
      %v4045 = vld [vmem:[#allocation2 + $0x80] sm:$0xff]
      %v4046 = vld [vmem:[#allocation2 + $0x88] sm:$0xff]
      %v4047 = vld [vmem:[#allocation2 + $0x90] sm:$0xff]
      %v4048 = vld [vmem:[#allocation2 + $0x98] sm:$0xff]
      %v4049 = vld [vmem:[#allocation2 + $0xa0] sm:$0xff]
      %v4050 = vld [vmem:[#allocation2 + $0xa8] sm:$0xff]
      %v4051 = vld [vmem:[#allocation2 + $0xb0] sm:$0xff]
      %v4052 = vld [vmem:[#allocation2 + $0xb8] sm:$0xff]
      %v4053 = vld [vmem:[#allocation2 + $0xc0] sm:$0xff]
      %v4054 = vld [vmem:[#allocation2 + $0xc8] sm:$0xff]
      %v4055 = vld [vmem:[#allocation2 + $0xd0] sm:$0xff]
      %v4056 = vld [vmem:[#allocation2 + $0xd8] sm:$0xff]
      %v4057 = vld [vmem:[#allocation2 + $0xe0] sm:$0xff]
      %v4058 = vld [vmem:[#allocation2 + $0xe8] sm:$0xff]
      %v4059 = vld [vmem:[#allocation2 + $0xf0] sm:$0x11]
      %s4060 = scalar_lea.vmem %s2, 896
      %v4061 = vld [vmem:[%s4060] sm:$0xf]
      %v4062 = vld [vmem:[%s4060 + $0x4] sm:$0xf]
      %v4063 = vld [vmem:[%s4060 + $0x8] sm:$0xf]
      %v4064 = vld [vmem:[%s4060 + $0xc] sm:$0xf]
      %v4065 = vld [vmem:[%s4060 + $0x10] sm:$0xf]
      %v4066 = vld [vmem:[%s4060 + $0x14] sm:$0xf]
      %v4067 = vld [vmem:[%s4060 + $0x18] sm:$0xf]
      %v4068 = vld [vmem:[%s4060 + $0x1c] sm:$0xf]
      %v4069 = vld [vmem:[%s4060 + $0x20] sm:$0xf]
      %v4070 = vld [vmem:[%s4060 + $0x24] sm:$0xf]
      %v4071 = vld [vmem:[%s4060 + $0x28] sm:$0xf]
      %v4072 = vld [vmem:[%s4060 + $0x2c] sm:$0xf]
      %v4073 = vld [vmem:[%s4060 + $0x30] sm:$0xf]
      %v4074 = vld [vmem:[%s4060 + $0x34] sm:$0xf]
      %v4075 = vld [vmem:[%s4060 + $0x38] sm:$0xf]
      %v4076 = vld [vmem:[%s4060 + $0x3c] sm:$0xf]
      %v4077 = vld [vmem:[%s4060 + $0x40] sm:$0xf]
      %v4078 = vld [vmem:[%s4060 + $0x44] sm:$0xf]
      %v4079 = vld [vmem:[%s4060 + $0x48] sm:$0xf]
      %v4080 = vld [vmem:[%s4060 + $0x4c] sm:$0xf]
      %v4081 = vld [vmem:[%s4060 + $0x50] sm:$0xf]
      %v4082 = vld [vmem:[%s4060 + $0x54] sm:$0xf]
      %v4083 = vld [vmem:[%s4060 + $0x58] sm:$0xf]
      %v4084 = vld [vmem:[%s4060 + $0x5c] sm:$0xf]
      %v4085 = vld [vmem:[%s4060 + $0x60] sm:$0xf]
      %v4086 = vld [vmem:[%s4060 + $0x64] sm:$0xf]
      %v4087 = vld [vmem:[%s4060 + $0x68] sm:$0xf]
      %v4088 = vld [vmem:[%s4060 + $0x6c] sm:$0xf]
      %v4089 = vld [vmem:[%s4060 + $0x70] sm:$0xf]
      %v4090 = vld [vmem:[%s4060 + $0x74] sm:$0xf]
      %v4091 = vld [vmem:[%s4060 + $0x78] sm:$0xf]
      %v4092 = vld [vmem:[%s4060 + $0x7c] sm:$0xf]
      %v4118 = vunpack.c.l.b16 %v4035
      %v4119 = vunpack.c.h.b16 %v4035
      %v4120 = vunpack.c.l.b16 %v4036
      %v4121 = vunpack.c.h.b16 %v4036
      %v4122 = vunpack.c.l.b16 %v4037
      %v4123 = vunpack.c.h.b16 %v4037
      %v4124 = vunpack.c.l.b16 %v4038
      %v4125 = vunpack.c.h.b16 %v4038
      %v4126 = vunpack.c.l.b16 %v4039
      %v4127 = vunpack.c.h.b16 %v4039
      %v4128 = vunpack.c.l.b16 %v4040
      %v4129 = vunpack.c.h.b16 %v4040
      %v4130 = vunpack.c.l.b16 %v4041
      %v4131 = vunpack.c.h.b16 %v4041
      %v4132 = vunpack.c.l.b16 %v4042
      %v4133 = vunpack.c.h.b16 %v4042
      %v4134 = vunpack.c.l.b16 %v4043
      %v4135 = vunpack.c.h.b16 %v4043
      %v4136 = vunpack.c.l.b16 %v4044
      %v4137 = vunpack.c.h.b16 %v4044
      %v4138 = vunpack.c.l.b16 %v4045
      %v4139 = vunpack.c.h.b16 %v4045
      %v4140 = vunpack.c.l.b16 %v4046
      %v4141 = vunpack.c.h.b16 %v4046
      %v4142 = vunpack.c.l.b16 %v4047
      %v4143 = vunpack.c.h.b16 %v4047
      %v4144 = vunpack.c.l.b16 %v4048
      %v4145 = vunpack.c.h.b16 %v4048
      %v4146 = vunpack.c.l.b16 %v4049
      %v4147 = vunpack.c.h.b16 %v4049
      %v4148 = vunpack.c.l.b16 %v4050
      %v4149 = vunpack.c.h.b16 %v4050
      %v4150 = vunpack.c.l.b16 %v4051
      %v4151 = vunpack.c.h.b16 %v4051
      %v4152 = vunpack.c.l.b16 %v4052
      %v4153 = vunpack.c.h.b16 %v4052
      %v4154 = vunpack.c.l.b16 %v4053
      %v4155 = vunpack.c.h.b16 %v4053
      %v4156 = vunpack.c.l.b16 %v4054
      %v4157 = vunpack.c.h.b16 %v4054
      %v4158 = vunpack.c.l.b16 %v4055
      %v4159 = vunpack.c.h.b16 %v4055
      %v4160 = vunpack.c.l.b16 %v4056
      %v4161 = vunpack.c.h.b16 %v4056
      %v4162 = vunpack.c.l.b16 %v4057
      %v4163 = vunpack.c.h.b16 %v4057
      %v4164 = vunpack.c.l.b16 %v4058
      %v4165 = vunpack.c.h.b16 %v4058
      %v4166 = vunpack.c.l.b16 %v4059
      %v4167 = vunpack.c.h.b16 %v4059
      %v4168 = vpack.c.b16 %v4120, %v4118
      %v4169 = vpack.c.b16 %v4121, %v4119
      %v4170 = vpack.c.b16 %v4124, %v4122
      %v4171 = vpack.c.b16 %v4125, %v4123
      %v4172 = vpack.c.b16 %v4128, %v4126
      %v4173 = vpack.c.b16 %v4129, %v4127
      %v4174 = vpack.c.b16 %v4132, %v4130
      %v4175 = vpack.c.b16 %v4133, %v4131
      %v4176 = vpack.c.b16 %v4136, %v4134
      %v4177 = vpack.c.b16 %v4137, %v4135
      %v4178 = vpack.c.b16 %v4140, %v4138
      %v4179 = vpack.c.b16 %v4141, %v4139
      %v4180 = vpack.c.b16 %v4144, %v4142
      %v4181 = vpack.c.b16 %v4145, %v4143
      %v4182 = vpack.c.b16 %v4148, %v4146
      %v4183 = vpack.c.b16 %v4149, %v4147
      %v4184 = vpack.c.b16 %v4152, %v4150
      %v4185 = vpack.c.b16 %v4153, %v4151
      %v4186 = vpack.c.b16 %v4156, %v4154
      %v4187 = vpack.c.b16 %v4157, %v4155
      %v4188 = vpack.c.b16 %v4160, %v4158
      %v4189 = vpack.c.b16 %v4161, %v4159
      %v4190 = vpack.c.b16 %v4164, %v4162
      %v4191 = vpack.c.b16 %v4165, %v4163
      %v4192 = vpack.c.b16 %v4166, %v4166
      %v4193 = vpack.c.b16 %v4167, %v4167
      %v4195 = vshrl.u32 %v4168, 16
      %v4197 = vshll.u32 %v4168, 16
      %v4199 = vrot.slane %v4197, 1
      %v4200 = vor.u32 %v4195, %v4199
      %v4202 = vshll.u32 %v4170, 16
      %v4204 = vrot.slane %v4202, 1
      %v4205 = vsel %vm1216, %v4200, %v4204
      %v4207 = vshrl.u32 %v4169, 16
      %v4209 = vshll.u32 %v4169, 16
      %v4211 = vrot.slane %v4209, 1
      %v4212 = vor.u32 %v4207, %v4211
      %v4214 = vshll.u32 %v4171, 16
      %v4216 = vrot.slane %v4214, 1
      %v4217 = vsel %vm1216, %v4212, %v4216
      %v4218 = vshrl.u32 %v4170, 16
      %v4220 = vor.u32 %v4218, %v4204
      %v4222 = vshll.u32 %v4172, 16
      %v4224 = vrot.slane %v4222, 1
      %v4225 = vsel %vm1216, %v4220, %v4224
      %v4226 = vshrl.u32 %v4171, 16
      %v4228 = vor.u32 %v4226, %v4216
      %v4230 = vshll.u32 %v4173, 16
      %v4232 = vrot.slane %v4230, 1
      %v4233 = vsel %vm1216, %v4228, %v4232
      %v4234 = vshrl.u32 %v4172, 16
      %v4236 = vor.u32 %v4234, %v4224
      %v4238 = vshll.u32 %v4174, 16
      %v4240 = vrot.slane %v4238, 1
      %v4241 = vsel %vm1216, %v4236, %v4240
      %v4242 = vshrl.u32 %v4173, 16
      %v4244 = vor.u32 %v4242, %v4232
      %v4246 = vshll.u32 %v4175, 16
      %v4248 = vrot.slane %v4246, 1
      %v4249 = vsel %vm1216, %v4244, %v4248
      %v4250 = vshrl.u32 %v4174, 16
      %v4252 = vor.u32 %v4250, %v4240
      %v4254 = vshll.u32 %v4176, 16
      %v4256 = vrot.slane %v4254, 1
      %v4257 = vsel %vm1216, %v4252, %v4256
      %v4258 = vshrl.u32 %v4175, 16
      %v4260 = vor.u32 %v4258, %v4248
      %v4262 = vshll.u32 %v4177, 16
      %v4264 = vrot.slane %v4262, 1
      %v4265 = vsel %vm1216, %v4260, %v4264
      %v4266 = vshrl.u32 %v4176, 16
      %v4268 = vor.u32 %v4266, %v4256
      %v4270 = vshll.u32 %v4178, 16
      %v4272 = vrot.slane %v4270, 1
      %v4273 = vsel %vm1216, %v4268, %v4272
      %v4274 = vshrl.u32 %v4177, 16
      %v4276 = vor.u32 %v4274, %v4264
      %v4278 = vshll.u32 %v4179, 16
      %v4280 = vrot.slane %v4278, 1
      %v4281 = vsel %vm1216, %v4276, %v4280
      %v4282 = vshrl.u32 %v4178, 16
      %v4284 = vor.u32 %v4282, %v4272
      %v4286 = vshll.u32 %v4180, 16
      %v4288 = vrot.slane %v4286, 1
      %v4289 = vsel %vm1216, %v4284, %v4288
      %v4290 = vshrl.u32 %v4179, 16
      %v4292 = vor.u32 %v4290, %v4280
      %v4294 = vshll.u32 %v4181, 16
      %v4296 = vrot.slane %v4294, 1
      %v4297 = vsel %vm1216, %v4292, %v4296
      %v4298 = vshrl.u32 %v4180, 16
      %v4300 = vor.u32 %v4298, %v4288
      %v4302 = vshll.u32 %v4182, 16
      %v4304 = vrot.slane %v4302, 1
      %v4305 = vsel %vm1216, %v4300, %v4304
      %v4306 = vshrl.u32 %v4181, 16
      %v4308 = vor.u32 %v4306, %v4296
      %v4310 = vshll.u32 %v4183, 16
      %v4312 = vrot.slane %v4310, 1
      %v4313 = vsel %vm1216, %v4308, %v4312
      %v4314 = vshrl.u32 %v4182, 16
      %v4316 = vor.u32 %v4314, %v4304
      %v4318 = vshll.u32 %v4184, 16
      %v4320 = vrot.slane %v4318, 1
      %v4321 = vsel %vm1216, %v4316, %v4320
      %v4322 = vshrl.u32 %v4183, 16
      %v4324 = vor.u32 %v4322, %v4312
      %v4326 = vshll.u32 %v4185, 16
      %v4328 = vrot.slane %v4326, 1
      %v4329 = vsel %vm1216, %v4324, %v4328
      %v4330 = vshrl.u32 %v4184, 16
      %v4332 = vor.u32 %v4330, %v4320
      %v4334 = vshll.u32 %v4186, 16
      %v4336 = vrot.slane %v4334, 1
      %v4337 = vsel %vm1216, %v4332, %v4336
      %v4338 = vshrl.u32 %v4185, 16
      %v4340 = vor.u32 %v4338, %v4328
      %v4342 = vshll.u32 %v4187, 16
      %v4344 = vrot.slane %v4342, 1
      %v4345 = vsel %vm1216, %v4340, %v4344
      %v4346 = vshrl.u32 %v4186, 16
      %v4348 = vor.u32 %v4346, %v4336
      %v4350 = vshll.u32 %v4188, 16
      %v4352 = vrot.slane %v4350, 1
      %v4353 = vsel %vm1216, %v4348, %v4352
      %v4354 = vshrl.u32 %v4187, 16
      %v4356 = vor.u32 %v4354, %v4344
      %v4358 = vshll.u32 %v4189, 16
      %v4360 = vrot.slane %v4358, 1
      %v4361 = vsel %vm1216, %v4356, %v4360
      %v4362 = vshrl.u32 %v4188, 16
      %v4364 = vor.u32 %v4362, %v4352
      %v4366 = vshll.u32 %v4190, 16
      %v4368 = vrot.slane %v4366, 1
      %v4369 = vsel %vm1216, %v4364, %v4368
      %v4370 = vshrl.u32 %v4189, 16
      %v4372 = vor.u32 %v4370, %v4360
      %v4374 = vshll.u32 %v4191, 16
      %v4376 = vrot.slane %v4374, 1
      %v4377 = vsel %vm1216, %v4372, %v4376
      %v4378 = vshrl.u32 %v4190, 16
      %v4380 = vor.u32 %v4378, %v4368
      %v4382 = vshll.u32 %v4192, 16
      %v4384 = vrot.slane %v4382, 1
      %v4385 = vsel %vm1216, %v4380, %v4384
      %v4386 = vshrl.u32 %v4191, 16
      %v4388 = vor.u32 %v4386, %v4376
      %v4390 = vshll.u32 %v4193, 16
      %v4392 = vrot.slane %v4390, 1
      %v4393 = vsel %vm1216, %v4388, %v4392
      %v4450 = vunpack.c.l.b16 %v4061
      %v4451 = vunpack.c.l.b16 %v4062
      %v4452 = vunpack.c.l.b16 %v4063
      %v4453 = vunpack.c.l.b16 %v4064
      %v4454 = vunpack.c.l.b16 %v4065
      %v4455 = vunpack.c.l.b16 %v4066
      %v4456 = vunpack.c.l.b16 %v4067
      %v4457 = vunpack.c.l.b16 %v4068
      %v4458 = vunpack.c.l.b16 %v4069
      %v4459 = vunpack.c.l.b16 %v4070
      %v4460 = vunpack.c.l.b16 %v4071
      %v4461 = vunpack.c.l.b16 %v4072
      %v4462 = vunpack.c.l.b16 %v4073
      %v4463 = vunpack.c.l.b16 %v4074
      %v4464 = vunpack.c.l.b16 %v4075
      %v4465 = vunpack.c.l.b16 %v4076
      %v4466 = vunpack.c.l.b16 %v4077
      %v4467 = vunpack.c.l.b16 %v4078
      %v4468 = vunpack.c.l.b16 %v4079
      %v4469 = vunpack.c.l.b16 %v4080
      %v4470 = vunpack.c.l.b16 %v4081
      %v4471 = vunpack.c.l.b16 %v4082
      %v4472 = vunpack.c.l.b16 %v4083
      %v4473 = vunpack.c.l.b16 %v4084
      %v4474 = vunpack.c.l.b16 %v4085
      %v4475 = vunpack.c.l.b16 %v4086
      %v4476 = vunpack.c.l.b16 %v4087
      %v4477 = vunpack.c.l.b16 %v4088
      %v4478 = vunpack.c.l.b16 %v4089
      %v4479 = vunpack.c.l.b16 %v4090
      %v4480 = vunpack.c.l.b16 %v4091
      %v4481 = vunpack.c.l.b16 %v4092
      %v4482 = vpack.c.b16 %v4451, %v4450
      %v4483 = vpack.c.b16 %v4453, %v4452
      %v4484 = vpack.c.b16 %v4455, %v4454
      %v4485 = vpack.c.b16 %v4457, %v4456
      %v4486 = vpack.c.b16 %v4459, %v4458
      %v4487 = vpack.c.b16 %v4461, %v4460
      %v4488 = vpack.c.b16 %v4463, %v4462
      %v4489 = vpack.c.b16 %v4465, %v4464
      %v4490 = vpack.c.b16 %v4467, %v4466
      %v4491 = vpack.c.b16 %v4469, %v4468
      %v4492 = vpack.c.b16 %v4471, %v4470
      %v4493 = vpack.c.b16 %v4473, %v4472
      %v4494 = vpack.c.b16 %v4475, %v4474
      %v4495 = vpack.c.b16 %v4477, %v4476
      %v4496 = vpack.c.b16 %v4479, %v4478
      %v4497 = vpack.c.b16 %v4481, %v4480
      %4514 = vmatpush.bf16.msra.mxu0 %v4489
      %4515 = vmatpush.bf16.msra.mxu0 %v4488
      %4516 = vmatpush.bf16.msra.mxu0 %v4487
      %4517 = vmatpush.bf16.msra.mxu0 %v4486
      %4518 = vmatpush.bf16.msra.mxu0 %v4485
      %4519 = vmatpush.bf16.msra.mxu0 %v4484
      %4520 = vmatpush.bf16.msra.mxu0 %v4483
      %4521 = vmatpush.bf16.msra.mxu0 %v4482
      %4522 = vmatmul.bf16.gmra.mxu0 %v4205
      %v4523 = vpop.f32.mrf.mxu0
      %v4524 = vadd.f32 0.0, %v4523
      %v4525 = vpop.f32.mrf.mxu0
      %v4526 = vadd.f32 0.0, %v4525
      %4527 = vmatmul.bf16.gmra.mxu0 %v4225
      %v4528 = vpop.f32.mrf.mxu0
      %v4529 = vpop.f32.mrf.mxu0
      %v4530 = vadd.f32 0.0, %v4529
      %4531 = vmatmul.bf16.gmra.mxu0 %v4241
      %v4532 = vpop.f32.mrf.mxu0
      %v4533 = vadd.f32 0.0, %v4532
      %v4534 = vpop.f32.mrf.mxu0
      %4535 = vmatmul.bf16.gmra.mxu0 %v4257
      %v4536 = vpop.f32.mrf.mxu0
      %v4537 = vadd.f32 0.0, %v4536
      %v4538 = vpop.f32.mrf.mxu0
      %v4539 = vadd.f32 0.0, %v4538
      %4540 = vmatmul.bf16.gmra.mxu0 %v4273
      %v4541 = vpop.f32.mrf.mxu0
      %v4542 = vpop.f32.mrf.mxu0
      %v4543 = vadd.f32 0.0, %v4542
      %4544 = vmatmul.bf16.gmra.mxu0 %v4289
      %v4545 = vpop.f32.mrf.mxu0
      %v4546 = vadd.f32 0.0, %v4545
      %v4547 = vpop.f32.mrf.mxu0
      %4548 = vmatmul.bf16.gmra.mxu0 %v4305
      %v4549 = vpop.f32.mrf.mxu0
      %v4550 = vadd.f32 0.0, %v4549
      %v4551 = vpop.f32.mrf.mxu0
      %v4552 = vadd.f32 0.0, %v4551
      %4553 = vmatmul.bf16.gmra.mxu0 %v4321
      %v4554 = vpop.f32.mrf.mxu0
      %v4555 = vpop.f32.mrf.mxu0
      %v4556 = vadd.f32 0.0, %v4555
      %4557 = vmatmul.bf16.gmra.mxu0 %v4337
      %v4558 = vpop.f32.mrf.mxu0
      %v4559 = vadd.f32 0.0, %v4558
      %v4560 = vpop.f32.mrf.mxu0
      %4561 = vmatmul.bf16.gmra.mxu0 %v4353
      %v4562 = vpop.f32.mrf.mxu0
      %v4563 = vadd.f32 0.0, %v4562
      %v4564 = vpop.f32.mrf.mxu0
      %v4565 = vadd.f32 0.0, %v4564
      %4566 = vmatmul.bf16.gmra.mxu0 %v4369
      %v4567 = vpop.f32.mrf.mxu0
      %v4568 = vpop.f32.mrf.mxu0
      %v4569 = vadd.f32 0.0, %v4568
      %4570 = vmatmul.bf16.gmra.mxu0 %v4385
      %v4571 = vpop.f32.mrf.mxu0
      %v4572 = vadd.f32 0.0, %v4571
      %v4573 = vpop.f32.mrf.mxu0
      %4574 = vdwg.mxu0
      %4575 = vmatpush.bf16.msra.mxu0 %v4497
      %4576 = vmatpush.bf16.msra.mxu0 %v4496
      %4577 = vmatpush.bf16.msra.mxu0 %v4495
      %4578 = vmatpush.bf16.msra.mxu0 %v4494
      %4579 = vmatpush.bf16.msra.mxu0 %v4493
      %4580 = vmatpush.bf16.msra.mxu0 %v4492
      %4581 = vmatpush.bf16.msra.mxu0 %v4491
      %4582 = vmatpush.bf16.msra.mxu0 %v4490
      %4583 = vmatmul.bf16.gmra.mxu0 %v4217
      %v4584 = vpop.f32.mrf.mxu0
      %v4585 = vadd.f32 %v4524, %v4584
      %v4586 = vpop.f32.mrf.mxu0
      %v4587 = vadd.f32 %v4526, %v4586
      %4588 = vmatmul.bf16.gmra.mxu0 %v4233
      %v4589 = vpop.f32.mrf.mxu0
      %v4590 = vpop.f32.mrf.mxu0
      %v4591 = vadd.f32 %v4530, %v4590
      %4592 = vmatmul.bf16.gmra.mxu0 %v4249
      %v4593 = vpop.f32.mrf.mxu0
      %v4594 = vadd.f32 %v4533, %v4593
      %v4595 = vpop.f32.mrf.mxu0
      %4596 = vmatmul.bf16.gmra.mxu0 %v4265
      %v4597 = vpop.f32.mrf.mxu0
      %v4598 = vadd.f32 %v4537, %v4597
      %v4599 = vpop.f32.mrf.mxu0
      %v4600 = vadd.f32 %v4539, %v4599
      %4601 = vmatmul.bf16.gmra.mxu0 %v4281
      %v4602 = vpop.f32.mrf.mxu0
      %v4603 = vpop.f32.mrf.mxu0
      %v4604 = vadd.f32 %v4543, %v4603
      %4605 = vmatmul.bf16.gmra.mxu0 %v4297
      %v4606 = vpop.f32.mrf.mxu0
      %v4607 = vadd.f32 %v4546, %v4606
      %v4608 = vpop.f32.mrf.mxu0
      %4609 = vmatmul.bf16.gmra.mxu0 %v4313
      %v4610 = vpop.f32.mrf.mxu0
      %v4611 = vadd.f32 %v4550, %v4610
      %v4612 = vpop.f32.mrf.mxu0
      %v4613 = vadd.f32 %v4552, %v4612
      %4614 = vmatmul.bf16.gmra.mxu0 %v4329
      %v4615 = vpop.f32.mrf.mxu0
      %v4616 = vpop.f32.mrf.mxu0
      %v4617 = vadd.f32 %v4556, %v4616
      %4618 = vmatmul.bf16.gmra.mxu0 %v4345
      %v4619 = vpop.f32.mrf.mxu0
      %v4620 = vadd.f32 %v4559, %v4619
      %v4621 = vpop.f32.mrf.mxu0
      %4622 = vmatmul.bf16.gmra.mxu0 %v4361
      %v4623 = vpop.f32.mrf.mxu0
      %v4624 = vadd.f32 %v4563, %v4623
      %v4625 = vpop.f32.mrf.mxu0
      %v4626 = vadd.f32 %v4565, %v4625
      %4627 = vmatmul.bf16.gmra.mxu0 %v4377
      %v4628 = vpop.f32.mrf.mxu0
      %v4629 = vpop.f32.mrf.mxu0
      %v4630 = vadd.f32 %v4569, %v4629
      %4631 = vmatmul.bf16.gmra.mxu0 %v4393
      %v4632 = vpop.f32.mrf.mxu0
      %v4633 = vadd.f32 %v4572, %v4632
      %v4634 = vpop.f32.mrf.mxu0
      %4635 = vdwg.mxu0
      %v4636 = vadd.f32 %v4019, %v4585
      %v4637 = vadd.f32 %v4020, %v4587
      %v4638 = vadd.f32 %v4021, %v4591
      %v4639 = vadd.f32 %v4022, %v4594
      %v4640 = vadd.f32 %v4023, %v4598
      %v4641 = vadd.f32 %v4024, %v4600
      %v4642 = vadd.f32 %v4025, %v4604
      %v4643 = vadd.f32 %v4026, %v4607
      %v4644 = vadd.f32 %v4027, %v4611
      %v4645 = vadd.f32 %v4028, %v4613
      %v4646 = vadd.f32 %v4029, %v4617
      %v4647 = vadd.f32 %v4030, %v4620
      %v4648 = vadd.f32 %v4031, %v4624
      %v4649 = vadd.f32 %v4032, %v4626
      %v4650 = vadd.f32 %v4033, %v4630
      %v4651 = vadd.f32 %v4034, %v4633
      %v4652 = vld [vmem:[#allocation2 + $0x30] sm:$0xee]
      %s4653 = scalar_lea.vmem %s2, 1024
      %v4654 = vld [vmem:[%s4653] sm:$0xf]
      %v4655 = vld [vmem:[%s4653 + $0x4] sm:$0xf]
      %v4656 = vld [vmem:[%s4653 + $0x8] sm:$0xf]
      %v4657 = vld [vmem:[%s4653 + $0xc] sm:$0xf]
      %v4658 = vld [vmem:[%s4653 + $0x10] sm:$0xf]
      %v4659 = vld [vmem:[%s4653 + $0x14] sm:$0xf]
      %v4660 = vld [vmem:[%s4653 + $0x18] sm:$0xf]
      %v4661 = vld [vmem:[%s4653 + $0x1c] sm:$0xf]
      %v4662 = vld [vmem:[%s4653 + $0x20] sm:$0xf]
      %v4663 = vld [vmem:[%s4653 + $0x24] sm:$0xf]
      %v4664 = vld [vmem:[%s4653 + $0x28] sm:$0xf]
      %v4665 = vld [vmem:[%s4653 + $0x2c] sm:$0xf]
      %v4666 = vld [vmem:[%s4653 + $0x30] sm:$0xf]
      %v4667 = vld [vmem:[%s4653 + $0x34] sm:$0xf]
      %v4668 = vld [vmem:[%s4653 + $0x38] sm:$0xf]
      %v4669 = vld [vmem:[%s4653 + $0x3c] sm:$0xf]
      %v4670 = vld [vmem:[%s4653 + $0x40] sm:$0xf]
      %v4671 = vld [vmem:[%s4653 + $0x44] sm:$0xf]
      %v4672 = vld [vmem:[%s4653 + $0x48] sm:$0xf]
      %v4673 = vld [vmem:[%s4653 + $0x4c] sm:$0xf]
      %v4674 = vld [vmem:[%s4653 + $0x50] sm:$0xf]
      %v4675 = vld [vmem:[%s4653 + $0x54] sm:$0xf]
      %v4676 = vld [vmem:[%s4653 + $0x58] sm:$0xf]
      %v4677 = vld [vmem:[%s4653 + $0x5c] sm:$0xf]
      %v4678 = vld [vmem:[%s4653 + $0x60] sm:$0xf]
      %v4679 = vld [vmem:[%s4653 + $0x64] sm:$0xf]
      %v4680 = vld [vmem:[%s4653 + $0x68] sm:$0xf]
      %v4681 = vld [vmem:[%s4653 + $0x6c] sm:$0xf]
      %v4682 = vld [vmem:[%s4653 + $0x70] sm:$0xf]
      %v4683 = vld [vmem:[%s4653 + $0x74] sm:$0xf]
      %v4684 = vld [vmem:[%s4653 + $0x78] sm:$0xf]
      %v4685 = vld [vmem:[%s4653 + $0x7c] sm:$0xf]
      %v4687 = vunpack.c.l.b16 %v4652
      %v4688 = vunpack.c.h.b16 %v4652
      %v4689 = vpack.c.b16 %v4120, %v4687
      %v4690 = vpack.c.b16 %v4121, %v4688
      %v4691 = vrot.slane %v4689, 1
      %v4692 = vrot.slane %v4170, 1
      %v4693 = vsel %vm1940, %v4691, %v4692
      %v4694 = vrot.slane %v4690, 1
      %v4695 = vrot.slane %v4171, 1
      %v4696 = vsel %vm1940, %v4694, %v4695
      %v4697 = vrot.slane %v4172, 1
      %v4698 = vsel %vm1940, %v4692, %v4697
      %v4699 = vrot.slane %v4173, 1
      %v4700 = vsel %vm1940, %v4695, %v4699
      %v4701 = vrot.slane %v4174, 1
      %v4702 = vsel %vm1940, %v4697, %v4701
      %v4703 = vrot.slane %v4175, 1
      %v4704 = vsel %vm1940, %v4699, %v4703
      %v4705 = vrot.slane %v4176, 1
      %v4706 = vsel %vm1940, %v4701, %v4705
      %v4707 = vrot.slane %v4177, 1
      %v4708 = vsel %vm1940, %v4703, %v4707
      %v4709 = vrot.slane %v4178, 1
      %v4710 = vsel %vm1940, %v4705, %v4709
      %v4711 = vrot.slane %v4179, 1
      %v4712 = vsel %vm1940, %v4707, %v4711
      %v4713 = vrot.slane %v4180, 1
      %v4714 = vsel %vm1940, %v4709, %v4713
      %v4715 = vrot.slane %v4181, 1
      %v4716 = vsel %vm1940, %v4711, %v4715
      %v4717 = vrot.slane %v4182, 1
      %v4718 = vsel %vm1940, %v4713, %v4717
      %v4719 = vrot.slane %v4183, 1
      %v4720 = vsel %vm1940, %v4715, %v4719
      %v4721 = vrot.slane %v4184, 1
      %v4722 = vsel %vm1940, %v4717, %v4721
      %v4723 = vrot.slane %v4185, 1
      %v4724 = vsel %vm1940, %v4719, %v4723
      %v4725 = vrot.slane %v4186, 1
      %v4726 = vsel %vm1940, %v4721, %v4725
      %v4727 = vrot.slane %v4187, 1
      %v4728 = vsel %vm1940, %v4723, %v4727
      %v4729 = vrot.slane %v4188, 1
      %v4730 = vsel %vm1940, %v4725, %v4729
      %v4731 = vrot.slane %v4189, 1
      %v4732 = vsel %vm1940, %v4727, %v4731
      %v4733 = vrot.slane %v4190, 1
      %v4734 = vsel %vm1940, %v4729, %v4733
      %v4735 = vrot.slane %v4191, 1
      %v4736 = vsel %vm1940, %v4731, %v4735
      %v4737 = vrot.slane %v4192, 1
      %v4738 = vsel %vm1940, %v4733, %v4737
      %v4739 = vrot.slane %v4193, 1
      %v4740 = vsel %vm1940, %v4735, %v4739
      %v4797 = vunpack.c.l.b16 %v4654
      %v4798 = vunpack.c.l.b16 %v4655
      %v4799 = vunpack.c.l.b16 %v4656
      %v4800 = vunpack.c.l.b16 %v4657
      %v4801 = vunpack.c.l.b16 %v4658
      %v4802 = vunpack.c.l.b16 %v4659
      %v4803 = vunpack.c.l.b16 %v4660
      %v4804 = vunpack.c.l.b16 %v4661
      %v4805 = vunpack.c.l.b16 %v4662
      %v4806 = vunpack.c.l.b16 %v4663
      %v4807 = vunpack.c.l.b16 %v4664
      %v4808 = vunpack.c.l.b16 %v4665
      %v4809 = vunpack.c.l.b16 %v4666
      %v4810 = vunpack.c.l.b16 %v4667
      %v4811 = vunpack.c.l.b16 %v4668
      %v4812 = vunpack.c.l.b16 %v4669
      %v4813 = vunpack.c.l.b16 %v4670
      %v4814 = vunpack.c.l.b16 %v4671
      %v4815 = vunpack.c.l.b16 %v4672
      %v4816 = vunpack.c.l.b16 %v4673
      %v4817 = vunpack.c.l.b16 %v4674
      %v4818 = vunpack.c.l.b16 %v4675
      %v4819 = vunpack.c.l.b16 %v4676
      %v4820 = vunpack.c.l.b16 %v4677
      %v4821 = vunpack.c.l.b16 %v4678
      %v4822 = vunpack.c.l.b16 %v4679
      %v4823 = vunpack.c.l.b16 %v4680
      %v4824 = vunpack.c.l.b16 %v4681
      %v4825 = vunpack.c.l.b16 %v4682
      %v4826 = vunpack.c.l.b16 %v4683
      %v4827 = vunpack.c.l.b16 %v4684
      %v4828 = vunpack.c.l.b16 %v4685
      %v4829 = vpack.c.b16 %v4798, %v4797
      %v4830 = vpack.c.b16 %v4800, %v4799
      %v4831 = vpack.c.b16 %v4802, %v4801
      %v4832 = vpack.c.b16 %v4804, %v4803
      %v4833 = vpack.c.b16 %v4806, %v4805
      %v4834 = vpack.c.b16 %v4808, %v4807
      %v4835 = vpack.c.b16 %v4810, %v4809
      %v4836 = vpack.c.b16 %v4812, %v4811
      %v4837 = vpack.c.b16 %v4814, %v4813
      %v4838 = vpack.c.b16 %v4816, %v4815
      %v4839 = vpack.c.b16 %v4818, %v4817
      %v4840 = vpack.c.b16 %v4820, %v4819
      %v4841 = vpack.c.b16 %v4822, %v4821
      %v4842 = vpack.c.b16 %v4824, %v4823
      %v4843 = vpack.c.b16 %v4826, %v4825
      %v4844 = vpack.c.b16 %v4828, %v4827
      %4861 = vmatpush.bf16.msra.mxu0 %v4836
      %4862 = vmatpush.bf16.msra.mxu0 %v4835
      %4863 = vmatpush.bf16.msra.mxu0 %v4834
      %4864 = vmatpush.bf16.msra.mxu0 %v4833
      %4865 = vmatpush.bf16.msra.mxu0 %v4832
      %4866 = vmatpush.bf16.msra.mxu0 %v4831
      %4867 = vmatpush.bf16.msra.mxu0 %v4830
      %4868 = vmatpush.bf16.msra.mxu0 %v4829
      %4869 = vmatmul.bf16.gmra.mxu0 %v4693
      %v4870 = vpop.f32.mrf.mxu0
      %v4871 = vadd.f32 0.0, %v4870
      %v4872 = vpop.f32.mrf.mxu0
      %v4873 = vadd.f32 0.0, %v4872
      %4874 = vmatmul.bf16.gmra.mxu0 %v4698
      %v4875 = vpop.f32.mrf.mxu0
      %v4876 = vpop.f32.mrf.mxu0
      %v4877 = vadd.f32 0.0, %v4876
      %4878 = vmatmul.bf16.gmra.mxu0 %v4702
      %v4879 = vpop.f32.mrf.mxu0
      %v4880 = vadd.f32 0.0, %v4879
      %v4881 = vpop.f32.mrf.mxu0
      %4882 = vmatmul.bf16.gmra.mxu0 %v4706
      %v4883 = vpop.f32.mrf.mxu0
      %v4884 = vadd.f32 0.0, %v4883
      %v4885 = vpop.f32.mrf.mxu0
      %v4886 = vadd.f32 0.0, %v4885
      %4887 = vmatmul.bf16.gmra.mxu0 %v4710
      %v4888 = vpop.f32.mrf.mxu0
      %v4889 = vpop.f32.mrf.mxu0
      %v4890 = vadd.f32 0.0, %v4889
      %4891 = vmatmul.bf16.gmra.mxu0 %v4714
      %v4892 = vpop.f32.mrf.mxu0
      %v4893 = vadd.f32 0.0, %v4892
      %v4894 = vpop.f32.mrf.mxu0
      %4895 = vmatmul.bf16.gmra.mxu0 %v4718
      %v4896 = vpop.f32.mrf.mxu0
      %v4897 = vadd.f32 0.0, %v4896
      %v4898 = vpop.f32.mrf.mxu0
      %v4899 = vadd.f32 0.0, %v4898
      %4900 = vmatmul.bf16.gmra.mxu0 %v4722
      %v4901 = vpop.f32.mrf.mxu0
      %v4902 = vpop.f32.mrf.mxu0
      %v4903 = vadd.f32 0.0, %v4902
      %4904 = vmatmul.bf16.gmra.mxu0 %v4726
      %v4905 = vpop.f32.mrf.mxu0
      %v4906 = vadd.f32 0.0, %v4905
      %v4907 = vpop.f32.mrf.mxu0
      %4908 = vmatmul.bf16.gmra.mxu0 %v4730
      %v4909 = vpop.f32.mrf.mxu0
      %v4910 = vadd.f32 0.0, %v4909
      %v4911 = vpop.f32.mrf.mxu0
      %v4912 = vadd.f32 0.0, %v4911
      %4913 = vmatmul.bf16.gmra.mxu0 %v4734
      %v4914 = vpop.f32.mrf.mxu0
      %v4915 = vpop.f32.mrf.mxu0
      %v4916 = vadd.f32 0.0, %v4915
      %4917 = vmatmul.bf16.gmra.mxu0 %v4738
      %v4918 = vpop.f32.mrf.mxu0
      %v4919 = vadd.f32 0.0, %v4918
      %v4920 = vpop.f32.mrf.mxu0
      %4921 = vdwg.mxu0
      %4922 = vmatpush.bf16.msra.mxu0 %v4844
      %4923 = vmatpush.bf16.msra.mxu0 %v4843
      %4924 = vmatpush.bf16.msra.mxu0 %v4842
      %4925 = vmatpush.bf16.msra.mxu0 %v4841
      %4926 = vmatpush.bf16.msra.mxu0 %v4840
      %4927 = vmatpush.bf16.msra.mxu0 %v4839
      %4928 = vmatpush.bf16.msra.mxu0 %v4838
      %4929 = vmatpush.bf16.msra.mxu0 %v4837
      %4930 = vmatmul.bf16.gmra.mxu0 %v4696
      %v4931 = vpop.f32.mrf.mxu0
      %v4932 = vadd.f32 %v4871, %v4931
      %v4933 = vpop.f32.mrf.mxu0
      %v4934 = vadd.f32 %v4873, %v4933
      %4935 = vmatmul.bf16.gmra.mxu0 %v4700
      %v4936 = vpop.f32.mrf.mxu0
      %v4937 = vpop.f32.mrf.mxu0
      %v4938 = vadd.f32 %v4877, %v4937
      %4939 = vmatmul.bf16.gmra.mxu0 %v4704
      %v4940 = vpop.f32.mrf.mxu0
      %v4941 = vadd.f32 %v4880, %v4940
      %v4942 = vpop.f32.mrf.mxu0
      %4943 = vmatmul.bf16.gmra.mxu0 %v4708
      %v4944 = vpop.f32.mrf.mxu0
      %v4945 = vadd.f32 %v4884, %v4944
      %v4946 = vpop.f32.mrf.mxu0
      %v4947 = vadd.f32 %v4886, %v4946
      %4948 = vmatmul.bf16.gmra.mxu0 %v4712
      %v4949 = vpop.f32.mrf.mxu0
      %v4950 = vpop.f32.mrf.mxu0
      %v4951 = vadd.f32 %v4890, %v4950
      %4952 = vmatmul.bf16.gmra.mxu0 %v4716
      %v4953 = vpop.f32.mrf.mxu0
      %v4954 = vadd.f32 %v4893, %v4953
      %v4955 = vpop.f32.mrf.mxu0
      %4956 = vmatmul.bf16.gmra.mxu0 %v4720
      %v4957 = vpop.f32.mrf.mxu0
      %v4958 = vadd.f32 %v4897, %v4957
      %v4959 = vpop.f32.mrf.mxu0
      %v4960 = vadd.f32 %v4899, %v4959
      %4961 = vmatmul.bf16.gmra.mxu0 %v4724
      %v4962 = vpop.f32.mrf.mxu0
      %v4963 = vpop.f32.mrf.mxu0
      %v4964 = vadd.f32 %v4903, %v4963
      %4965 = vmatmul.bf16.gmra.mxu0 %v4728
      %v4966 = vpop.f32.mrf.mxu0
      %v4967 = vadd.f32 %v4906, %v4966
      %v4968 = vpop.f32.mrf.mxu0
      %4969 = vmatmul.bf16.gmra.mxu0 %v4732
      %v4970 = vpop.f32.mrf.mxu0
      %v4971 = vadd.f32 %v4910, %v4970
      %v4972 = vpop.f32.mrf.mxu0
      %v4973 = vadd.f32 %v4912, %v4972
      %4974 = vmatmul.bf16.gmra.mxu0 %v4736
      %v4975 = vpop.f32.mrf.mxu0
      %v4976 = vpop.f32.mrf.mxu0
      %v4977 = vadd.f32 %v4916, %v4976
      %4978 = vmatmul.bf16.gmra.mxu0 %v4740
      %v4979 = vpop.f32.mrf.mxu0
      %v4980 = vadd.f32 %v4919, %v4979
      %v4981 = vpop.f32.mrf.mxu0
      %4982 = vdwg.mxu0
      %v4983 = vadd.f32 %v4636, %v4932
      %v4984 = vadd.f32 %v4637, %v4934
      %v4985 = vadd.f32 %v4638, %v4938
      %v4986 = vadd.f32 %v4639, %v4941
      %v4987 = vadd.f32 %v4640, %v4945
      %v4988 = vadd.f32 %v4641, %v4947
      %v4989 = vadd.f32 %v4642, %v4951
      %v4990 = vadd.f32 %v4643, %v4954
      %v4991 = vadd.f32 %v4644, %v4958
      %v4992 = vadd.f32 %v4645, %v4960
      %v4993 = vadd.f32 %v4646, %v4964
      %v4994 = vadd.f32 %v4647, %v4967
      %v4995 = vadd.f32 %v4648, %v4971
      %v4996 = vadd.f32 %v4649, %v4973
      %v4997 = vadd.f32 %v4650, %v4977
      %v4998 = vadd.f32 %v4651, %v4980
      %v4999 = vld [vmem:[%s3] sm:$0x1]
      %v5000 = vperm.slane %v4999, 0
      %v5001 = vmul.f32 %v4983, %v5000
      %v5002 = vmul.f32 %v4984, %v5000
      %v5003 = vmul.f32 %v4985, %v5000
      %v5004 = vmul.f32 %v4986, %v5000
      %v5005 = vmul.f32 %v4987, %v5000
      %v5006 = vmul.f32 %v4988, %v5000
      %v5007 = vmul.f32 %v4989, %v5000
      %v5008 = vmul.f32 %v4990, %v5000
      %v5009 = vmul.f32 %v4991, %v5000
      %v5010 = vmul.f32 %v4992, %v5000
      %v5011 = vmul.f32 %v4993, %v5000
      %v5012 = vmul.f32 %v4994, %v5000
      %v5013 = vmul.f32 %v4995, %v5000
      %v5014 = vmul.f32 %v4996, %v5000
      %v5015 = vmul.f32 %v4997, %v5000
      %v5016 = vmul.f32 %v4998, %v5000
      %v5017 = vld [vmem:[%s3 + $0x1] sm:$0x1]
      %v5018 = vperm.slane %v5017, 0
      %v5019 = vadd.f32 %v5001, %v5018
      %v5020 = vadd.f32 %v5002, %v5018
      %v5021 = vadd.f32 %v5003, %v5018
      %v5022 = vadd.f32 %v5004, %v5018
      %v5023 = vadd.f32 %v5005, %v5018
      %v5024 = vadd.f32 %v5006, %v5018
      %v5025 = vadd.f32 %v5007, %v5018
      %v5026 = vadd.f32 %v5008, %v5018
      %v5027 = vadd.f32 %v5009, %v5018
      %v5028 = vadd.f32 %v5010, %v5018
      %v5029 = vadd.f32 %v5011, %v5018
      %v5030 = vadd.f32 %v5012, %v5018
      %v5031 = vadd.f32 %v5013, %v5018
      %v5032 = vadd.f32 %v5014, %v5018
      %v5033 = vadd.f32 %v5015, %v5018
      %v5034 = vadd.f32 %v5016, %v5018
      %v5035 = vmax.f32 %v5019, 0.0
      %v5036 = vmax.f32 %v5020, 0.0
      %v5037 = vmax.f32 %v5021, 0.0
      %v5038 = vmax.f32 %v5022, 0.0
      %v5039 = vmax.f32 %v5023, 0.0
      %v5040 = vmax.f32 %v5024, 0.0
      %v5041 = vmax.f32 %v5025, 0.0
      %v5042 = vmax.f32 %v5026, 0.0
      %v5043 = vmax.f32 %v5027, 0.0
      %v5044 = vmax.f32 %v5028, 0.0
      %v5045 = vmax.f32 %v5029, 0.0
      %v5046 = vmax.f32 %v5030, 0.0
      %v5047 = vmax.f32 %v5031, 0.0
      %v5048 = vmax.f32 %v5032, 0.0
      %v5049 = vmax.f32 %v5033, 0.0
      %v5050 = vmax.f32 %v5034, 0.0
      %v5051 = vpack.c.bf16 %v5035, %v5035
      %v5052 = vpack.c.bf16 %v5036, %v5036
      %v5053 = vpack.c.bf16 %v5037, %v5037
      %v5054 = vpack.c.bf16 %v5038, %v5038
      %v5055 = vpack.c.bf16 %v5039, %v5039
      %v5056 = vpack.c.bf16 %v5040, %v5040
      %v5057 = vpack.c.bf16 %v5041, %v5041
      %v5058 = vpack.c.bf16 %v5042, %v5042
      %v5059 = vpack.c.bf16 %v5043, %v5043
      %v5060 = vpack.c.bf16 %v5044, %v5044
      %v5061 = vpack.c.bf16 %v5045, %v5045
      %v5062 = vpack.c.bf16 %v5046, %v5046
      %v5063 = vpack.c.bf16 %v5047, %v5047
      %v5064 = vpack.c.bf16 %v5048, %v5048
      %v5065 = vpack.c.bf16 %v5049, %v5049
      %v5066 = vpack.c.bf16 %v5050, %v5050
      %5067 = vst [vmem:[%s241] sm:$0xf] %v5051
      %5068 = vst [vmem:[%s241 + $0x4] sm:$0xf] %v5052
      %5069 = vst [vmem:[%s241 + $0x8] sm:$0xf] %v5053
      %5070 = vst [vmem:[%s241 + $0xc] sm:$0xf] %v5054
      %5071 = vst [vmem:[%s241 + $0x10] sm:$0xf] %v5055
      %5072 = vst [vmem:[%s241 + $0x14] sm:$0xf] %v5056
      %5073 = vst [vmem:[%s241 + $0x18] sm:$0xf] %v5057
      %5074 = vst [vmem:[%s241 + $0x1c] sm:$0xf] %v5058
      %5075 = vst [vmem:[%s241 + $0x20] sm:$0xf] %v5059
      %5076 = vst [vmem:[%s241 + $0x24] sm:$0xf] %v5060
      %5077 = vst [vmem:[%s241 + $0x28] sm:$0xf] %v5061
      %5078 = vst [vmem:[%s241 + $0x2c] sm:$0xf] %v5062
      %5079 = vst [vmem:[%s241 + $0x30] sm:$0xf] %v5063
      %5080 = vst [vmem:[%s241 + $0x34] sm:$0xf] %v5064
      %5081 = vst [vmem:[%s241 + $0x38] sm:$0xf] %v5065
      %5082 = vst [vmem:[%s241 + $0x3c] sm:$0xf] %v5066
      %s5083 = smul.u32 8, %s20
      %p5084 = scmp.lt.s32.totalorder %s19, 1
      %s5085 = scalar_select %p5084, %s19, 1
      %p5086 = scmp.lt.s32.totalorder %s5083, 15
      %s5087 = scalar_select %p5086, %s5083, 15
      %s5088 = smul.addr %s5087, 2
      %s5089 = smul.addr %s5085, 32
      %s5090 = sadd.s32 %s5088, %s5089
      %s5091 = smul.addr %s5090, 4
      %s5092 = scalar_lea.vmem %s4, %s5091
      // Predicated region
      $region45: #{upsampler_forward.4} parent=35 // pred_check
        %p5093 = pneg %p141
      $region46: #{upsampler_forward.4} parent=35 // pred_check_branch
        %5095 = sbr.rel (%p5093) target = $region48
      $region47: #{upsampler_forward.4} parent=35 // pred_region
        %s5096 = smul.u32 8, %s20
      $region48: #{upsampler_forward.4} parent=35 // pred_fallthru
        _
    $region36: #{upsampler_forward.4} parent=5 // pred_fallthru
      _
    %p5097 = scmp.le.s32.totalorder 2, %s10
    // Predicated region
    $region49: #{upsampler_forward.4} parent=5 // pred_check
      %p5098 = pneg %p5097
    $region50: #{upsampler_forward.4} parent=5 // pred_check_branch
      %5100 = sbr.rel (%p5098) target = $region52
    $region51: #{upsampler_forward.4} parent=5 // pred_region
      %s5101 = ssub.s32 %s10, 2
      // Predicated region
      $region53: #{upsampler_forward.4} parent=51 // pred_check
        %p5102 = pneg %p147
      $region54: #{upsampler_forward.4} parent=51 // pred_check_branch
        %5104 = sbr.rel (%p5102) target = $region56
      $region55: #{upsampler_forward.4} parent=51 // pred_region
        %s5105 = smul.u32 8, %s22
        %p5106 = scmp.lt.s32.totalorder %s21, 1
        %s5107 = scalar_select %p5106, %s21, 1
        %p5108 = scmp.lt.s32.totalorder %s5105, 15
        %s5109 = scalar_select %p5108, %s5105, 15
        %s5110 = smul.addr %s5109, 2
        %s5111 = smul.addr %s5107, 32
        %s5112 = sadd.s32 %s5110, %s5111
        %s5113 = smul.addr %s5112, 4
        %s5114 = scalar_lea.vmem %s4, %s5113
      $region56: #{upsampler_forward.4} parent=51 // pred_fallthru
        _
    $region52: #{upsampler_forward.4} parent=5 // pred_fallthru
      _
  $region6: #{upsampler_forward.4} parent=0 // loop_footer
    %s14 = sadd.s32 1, %s10
  $region7: #{upsampler_forward.4} parent=0 // loop_footer_branch
    %9 = sbr.rel target = $region3
  $region8: #{upsampler_forward.4} parent=0 // loop_exit
    _

</llo_original>
